<compile_context>
chip_gen: v7x
topology: tpu7x:2x2x1
jax: 0.10.0
libtpu: 0.0.40
codegen_flags: <defaults>
</compile_context>

<pallas_src>
import functools

import jax
import jax.numpy as jnp
import numpy as np
from jax.experimental import pallas as pl
from jax.experimental.pallas import tpu as pltpu

IMG_SIZE = 3 * 64 * 64   # 12288, as in the PyTorch module
LDIM = 512
BN_EPS = 1e-5
LEAKY_SLOPE = 0.5


def _encoder_kernel(x_ref, w_ref, b_ref, o_ref):
    """Fused BatchNorm1d (train-mode stats) + Linear(no bias) + LeakyReLU(0.5).

    Grid: (j, k) = (LDIM tile ["parallel"], feature/reduction tile ["arbitrary"]).
      x_ref: (N, TK)  f32 input tile (indexed only by k -> full batch present)
      w_ref: (TK, TN) bf16 tile of gamma-folded W^T
      b_ref: (1, TN)  f32 tile of the beta-folded bias (beta @ W^T)
      o_ref: (N, TN)  f32 output tile; its block index is constant across k so
                      it stays VMEM-resident and doubles as the accumulator.
    """
    k = pl.program_id(1)

    @pl.when(k == 0)
    def _():
        o_ref[...] = jnp.zeros_like(o_ref)

    x = x_ref[...]                                            # (N, TK) f32
    # Per-feature batch statistics (biased variance, as in torch BN training
    # forward). Correct only because every feature tile sees the whole batch.
    mean = jnp.mean(x, axis=0, keepdims=True)                 # (1, TK)
    var = jnp.mean((x - mean) ** 2, axis=0, keepdims=True)    # (1, TK)
    x_norm = (x - mean) * jax.lax.rsqrt(var + BN_EPS)         # (N, TK) f32

    # bf16 x bf16 -> f32 accumulate: native MXU path, f32 kept in the resident
    # output block. gamma is already folded into w_ref.
    o_ref[...] += jnp.dot(x_norm.astype(jnp.bfloat16), w_ref[...],
                          preferred_element_type=jnp.float32)

    @pl.when(k == pl.num_programs(1) - 1)
    def _():
        z = o_ref[...] + b_ref[...]                           # beta @ W^T, exact f32
        o_ref[...] = jnp.where(z >= 0, z, LEAKY_SLOPE * z)


def _pick_tiles(f, ldim):
    """Per-generation tile selection (falls back to full-extent tiles)."""
    try:
        kind = jax.devices()[0].device_kind.lower()
    except Exception:
        kind = ""
    dual_tc = ("v7" in kind) or ("7x" in kind)
    if dual_tc:
        # Keep a 2-way "parallel" LDIM axis so both TensorCores are engaged,
        # and take the whole feature dim in a single reduction step per TC.
        tn = ldim // 2 if (ldim % 2 == 0 and (ldim // 2) % 128 == 0) else ldim
        tk = f
    else:
        # Single-TC (v5e/v6e): a serial LDIM revisit loop is pure overhead ->
        # full LDIM per step, two reduction steps over the feature dim.
        tn = ldim
        tk = f // 2 if (f % 2 == 0 and (f // 2) % 128 == 0) else f
    return tk, tn


@functools.partial(jax.jit, static_argnames=("tk", "tn"))
def _encoder_forward_impl(img, gamma, beta, w_t, *, tk, tn):
    n, f = img.shape
    ldim = w_t.shape[1]
    assert f % tk == 0, "feature dim must be divisible by the K tile size"
    assert ldim % tn == 0, "ldim must be divisible by the N tile size"
    # The batch axis is never tiled: BN stats require the full batch per tile.

    # Fold the BN affine into the Linear weight: BN(x) @ W^T
    #   = ((x - mean)/std) @ (gamma[:,None] * W^T) + beta @ W^T.
    # (Pure weight preprocessing — XLA fuses it with the bf16 cast; in a real
    # deployment it would be done once offline.)
    w_f32 = w_t.astype(jnp.float32)
    w_fold = (gamma.astype(jnp.float32)[:, None] * w_f32).astype(jnp.bfloat16)
    bias = (beta.astype(jnp.float32) @ w_f32).reshape(1, ldim)      # f32 (1, LDIM)

    grid = (ldim // tn, f // tk)   # ("parallel" over LDIM, "arbitrary" over K)
    n_j = ldim // tn

    cost = pl.CostEstimate(
        flops=2 * n * f * ldim,
        transcendentals=f * n_j,               # rsqrt per feature per LDIM tile
        bytes_accessed=(f * ldim * 2           # bf16 weight (streamed once)
                        + n * f * 4 * n_j      # f32 input, re-fetched per j tile
                        + ldim * 4 * n_j       # bias
                        + n * ldim * 4),       # f32 output
    )

    return pl.pallas_call(
        _encoder_kernel,
        out_shape=jax.ShapeDtypeStruct((n, ldim), jnp.float32),
        grid_spec=pltpu.PrefetchScalarGridSpec(
            num_scalar_prefetch=0,
            grid=grid,
            in_specs=[
                pl.BlockSpec((n, tk), lambda j, k: (0, k)),      # x (full batch)
                pl.BlockSpec((tk, tn), lambda j, k: (k, j)),     # gamma-folded W^T (bf16)
                pl.BlockSpec((1, tn), lambda j, k: (0, j)),      # beta-folded bias
            ],
            out_specs=pl.BlockSpec((n, tn), lambda j, k: (0, j)),
        ),
        compiler_params=pltpu.CompilerParams(
            dimension_semantics=("parallel", "arbitrary"),
            vmem_limit_bytes=32 * 1024 * 1024,   # <=~25 MiB used; needed on v5e
        ),
        cost_estimate=cost,
    )(img, w_fold, bias)


def encoder_forward(img, gamma, beta, w_t, *, tk=None, tn=None):
    """img: (N, F) f32; gamma/beta: (F,); w_t: (F, LDIM) [= W^T] -> (N, LDIM) f32."""
    _, f = img.shape
    ldim = w_t.shape[1]
    if tk is None or tn is None:
        auto_tk, auto_tn = _pick_tiles(f, ldim)
        tk = auto_tk if tk is None else tk
        tn = auto_tn if tn is None else tn
    return _encoder_forward_impl(img, gamma, beta, w_t, tk=tk, tn=tn)


def _reference(img, gamma, beta, w_t):
    """Pure-JAX f32 reference of the same forward pass."""
    mean = jnp.mean(img, axis=0, keepdims=True)
    var = jnp.mean((img - mean) ** 2, axis=0, keepdims=True)
    x_bn = (img - mean) / jnp.sqrt(var + BN_EPS) * gamma[None, :] + beta[None, :]
    z = x_bn @ w_t
    return jnp.where(z >= 0, z, LEAKY_SLOPE * z)


if __name__ == "__main__":
    key = jax.random.PRNGKey(0)
    k_img, k_w, k_g, k_b = jax.random.split(key, 4)

    N = 8  # small batch (full batch must fit in every tile for BN stats)

    # Parameter shapes follow the PyTorch __init__:
    #   BatchNorm1d(IMG_SIZE): weight (F,), bias (F,)
    #   Linear(IMG_SIZE, LDIM, bias=False): weight (LDIM, F) -> stored transposed
    bound = 1.0 / np.sqrt(IMG_SIZE)
    w_t = jax.random.uniform(k_w, (IMG_SIZE, LDIM), jnp.float32, -bound, bound)
    gamma = 1.0 + 0.1 * jax.random.normal(k_g, (IMG_SIZE,), jnp.float32)
    beta = 0.1 * jax.random.normal(k_b, (IMG_SIZE,), jnp.float32)

    img = jax.random.normal(k_img, (N, IMG_SIZE), jnp.float32)

    out = jax.block_until_ready(encoder_forward(img, gamma, beta, w_t))
    ref = jax.block_until_ready(_reference(img, gamma, beta, w_t))

    # Tolerance loosened vs. pure-f32 because the (gamma-folded) weight and the
    # normalized activations are fed to the MXU in bf16.
    np.testing.assert_allclose(np.asarray(out), np.asarray(ref),
                               rtol=2e-2, atol=2e-2)

    print("KERNEL_OK")
</pallas_src>

<mosaic_0001>
module attributes {stable_mosaic.version = 11 : i64} {
  func.func @_encoder_kernel(%arg0: i32, %arg1: i32, %arg2: memref<8x6144xf32, #tpu.memory_space<vmem>>, %arg3: memref<6144x512xbf16, #tpu.memory_space<vmem>>, %arg4: memref<1x512xf32, #tpu.memory_space<vmem>>, %arg5: memref<8x512xf32, #tpu.memory_space<vmem>>) attributes {dimension_semantics = [#tpu.dimension_semantics<parallel>, #tpu.dimension_semantics<arbitrary>], iteration_bounds = array<i64: 1, 2>, scalar_prefetch = 0 : i64, scratch_operands = 0 : i64, tpu.core_type = #tpu.core_type<tc>, window_params = [{transform_indices = @transform_0, window_bounds = array<i64: 8, 6144>}, {transform_indices = @transform_1, window_bounds = array<i64: 6144, 512>}, {transform_indices = @transform_2, window_bounds = array<i64: 1, 512>}, {transform_indices = @transform_3, window_bounds = array<i64: 8, 512>}]} {
    %c0_i32 = arith.constant 0 : i32
    %0 = arith.cmpi eq, %arg1, %c0_i32 : i32
    %1 = arith.extui %0 : i1 to i32
    %c0_i32_0 = arith.constant 0 : i32
    %2 = arith.cmpi ne, %1, %c0_i32_0 : i32
    scf.if %2 {
      %cst_14 = arith.constant 0.000000e+00 : f32
      %31 = vector.broadcast %cst_14 : f32 to vector<8x512xf32>
      %c0_15 = arith.constant 0 : index
      %c0_16 = arith.constant 0 : index
      %32 = vector.load %arg5[%c0_15, %c0_16] : memref<8x512xf32, #tpu.memory_space<vmem>>, vector<8x512xf32>
      tpu.vector_store %arg5[%c0_15, %c0_16], %31 {strides = array<i32>} : memref<8x512xf32, #tpu.memory_space<vmem>>, vector<8x512xf32>,
    } else {
    }
    %c0 = arith.constant 0 : index
    %c0_1 = arith.constant 0 : index
    %3 = vector.load %arg2[%c0, %c0_1] : memref<8x6144xf32, #tpu.memory_space<vmem>>, vector<8x6144xf32>
    %cst = arith.constant dense<0.000000e+00> : vector<6144xf32>
    %4 = vector.multi_reduction <add>, %3, %cst [0] : vector<8x6144xf32> to vector<6144xf32>
    %5 = vector.shape_cast %4 : vector<6144xf32> to vector<1x6144xf32>
    %cst_2 = arith.constant 8.000000e+00 : f32
    %6 = vector.broadcast %cst_2 : f32 to vector<1x6144xf32>
    %7 = arith.divf %5, %6 : vector<1x6144xf32>
    %8 = vector.broadcast %7 : vector<1x6144xf32> to vector<8x6144xf32>
    %9 = arith.subf %3, %8 : vector<8x6144xf32>
    %10 = arith.mulf %9, %9 : vector<8x6144xf32>
    %cst_3 = arith.constant dense<0.000000e+00> : vector<6144xf32>
    %11 = vector.multi_reduction <add>, %10, %cst_3 [0] : vector<8x6144xf32> to vector<6144xf32>
    %12 = vector.shape_cast %11 : vector<6144xf32> to vector<1x6144xf32>
    %cst_4 = arith.constant 8.000000e+00 : f32
    %13 = vector.broadcast %cst_4 : f32 to vector<1x6144xf32>
    %14 = arith.divf %12, %13 : vector<1x6144xf32>
    %15 = vector.broadcast %7 : vector<1x6144xf32> to vector<8x6144xf32>
    %16 = arith.subf %3, %15 : vector<8x6144xf32>
    %cst_5 = arith.constant 9.99999974E-6 : f32
    %17 = vector.broadcast %cst_5 : f32 to vector<1x6144xf32>
    %18 = arith.addf %14, %17 : vector<1x6144xf32>
    %19 = math.rsqrt %18 : vector<1x6144xf32>
    %20 = vector.broadcast %19 : vector<1x6144xf32> to vector<8x6144xf32>
    %21 = arith.mulf %16, %20 : vector<8x6144xf32>
    %c0_6 = arith.constant 0 : index
    %c0_7 = arith.constant 0 : index
    %22 = vector.load %arg5[%c0_6, %c0_7] : memref<8x512xf32, #tpu.memory_space<vmem>>, vector<8x512xf32>
    %23 = arith.truncf %21 : vector<8x6144xf32> to vector<8x6144xbf16>
    %c0_8 = arith.constant 0 : index
    %c0_9 = arith.constant 0 : index
    %24 = vector.load %arg3[%c0_8, %c0_9] : memref<6144x512xbf16, #tpu.memory_space<vmem>>, vector<6144x512xbf16>
    %cst_10 = arith.constant dense<0.000000e+00> : vector<8x512xf32>
    %25 = tpu.matmul %23, %24, %cst_10 {dimension_numbers = #tpu.dot_dimension_numbers<[1], [0], [0], [1], [0, 0, 1, 1], [], []>} : vector<8x6144xbf16>, vector<6144x512xbf16>, vector<8x512xf32> -> vector<8x512xf32>
    %26 = arith.addf %22, %25 : vector<8x512xf32>
    %c0_11 = arith.constant 0 : index
    %c0_12 = arith.constant 0 : index
    %27 = vector.load %arg5[%c0_11, %c0_12] : memref<8x512xf32, #tpu.memory_space<vmem>>, vector<8x512xf32>
    tpu.vector_store %arg5[%c0_11, %c0_12], %26 {strides = array<i32>} : memref<8x512xf32, #tpu.memory_space<vmem>>, vector<8x512xf32>,
    %c1_i32 = arith.constant 1 : i32
    %28 = arith.cmpi eq, %arg1, %c1_i32 : i32
    %29 = arith.extui %28 : i1 to i32
    %c0_i32_13 = arith.constant 0 : i32
    %30 = arith.cmpi ne, %29, %c0_i32_13 : i32
    scf.if %30 {
      %c0_14 = arith.constant 0 : index
      %c0_15 = arith.constant 0 : index
      %31 = vector.load %arg5[%c0_14, %c0_15] : memref<8x512xf32, #tpu.memory_space<vmem>>, vector<8x512xf32>
      %c0_16 = arith.constant 0 : index
      %c0_17 = arith.constant 0 : index
      %32 = vector.load %arg4[%c0_16, %c0_17] : memref<1x512xf32, #tpu.memory_space<vmem>>, vector<1x512xf32>
      %33 = vector.broadcast %32 : vector<1x512xf32> to vector<8x512xf32>
      %34 = arith.addf %31, %33 : vector<8x512xf32>
      %cst_18 = arith.constant 0.000000e+00 : f32
      %35 = vector.broadcast %cst_18 : f32 to vector<8x512xf32>
      %36 = arith.cmpf oge, %34, %35 : vector<8x512xf32>
      %cst_19 = arith.constant 5.000000e-01 : f32
      %37 = vector.broadcast %cst_19 : f32 to vector<8x512xf32>
      %38 = arith.mulf %37, %34 : vector<8x512xf32>
      %39 = arith.select %36, %34, %38 : vector<8x512xi1>, vector<8x512xf32>
      %c0_20 = arith.constant 0 : index
      %c0_21 = arith.constant 0 : index
      %40 = vector.load %arg5[%c0_20, %c0_21] : memref<8x512xf32, #tpu.memory_space<vmem>>, vector<8x512xf32>
      tpu.vector_store %arg5[%c0_20, %c0_21], %39 {strides = array<i32>} : memref<8x512xf32, #tpu.memory_space<vmem>>, vector<8x512xf32>,
    } else {
    }
    return
  }
  func.func @transform_0(%arg0: i32, %arg1: i32) -> (i32, i32) {
    %c0_i32 = arith.constant 0 : i32
    %c0_i32_0 = arith.constant 0 : i32
    return %c0_i32, %arg1 : i32, i32
  }
  func.func @transform_1(%arg0: i32, %arg1: i32) -> (i32, i32) {
    %c0_i32 = arith.constant 0 : i32
    return %arg1, %arg0 : i32, i32
  }
  func.func @transform_2(%arg0: i32, %arg1: i32) -> (i32, i32) {
    %c0_i32 = arith.constant 0 : i32
    %c0_i32_0 = arith.constant 0 : i32
    return %c0_i32, %arg0 : i32, i32
  }
  func.func @transform_3(%arg0: i32, %arg1: i32) -> (i32, i32) {
    %c0_i32 = arith.constant 0 : i32
    %c0_i32_0 = arith.constant 0 : i32
    return %c0_i32, %arg0 : i32, i32
  }
}

</mosaic_0001>

<llo_original>
// kernel: _encoder_forward_impl.1
$region0: #{_encoder_forward_impl.1}
  #allocation0 [shape = 'u32[]', space=smem, size = 0x4, offset = 0x4, fixed_abs, tag = 'smem constant byte address 0x4 - core index']
  #allocation1 [shape = 'u32[144,128]{1,0:T(1,128)}', space=vmem, size = 0x12000, scoped, tag = 'internal scratch']
  %s0 = inlined_call_operand.vmem [shape: f32[8,12288], index: 0, kind: input, shape index: {}]
  %s1 = inlined_call_operand.vmem [shape: bf16[12288,512], index: 1, kind: input, shape index: {}]
  %s2 = inlined_call_operand.vmem [shape: f32[1,512], index: 2, kind: input, shape index: {}]
  %s3 = inlined_call_operand.hbm [shape: f32[8,512], index: 3, kind: output, shape index: {}]
  %s4 = sld [smem:[#allocation0]]
  $region53: #{_encoder_forward_impl.1} parent=0
    _
  %s6 = ssub.s32 1, %s4
  %s7 = scalar_select 0, %s6, %s4
  $region1: #{_encoder_forward_impl.1} parent=0
    #allocation2 [shape = 'u8[16384]{0}', space=vmem, size = 0x4000, scoped, tag = 'output window, operand 0, single buffered']
    #allocation3 [shape = 's32[2]{0}', space=sflag, size = 0x8, scoped, tag = 'scoped memory for _encoder_forward_impl.1']
    %8 = vsyncpa [#allocation3], 0
    loop: start=0, step=1, limit=4
    $region2: #{_encoder_forward_impl.1} parent=1 // loop_pre_header
      _
    $region3: #{_encoder_forward_impl.1} parent=1 // loop_header
      %s10 = sphi 0, %s14
      %p11 = scmp.ge.s32.totalorder %s10, 4
      %s17 = sphi 0, %s29
      %s18 = sphi 0, %s25
      %s19 = sphi 0, %s17
      %s20 = sphi 0, %s18
      %s21 = sphi 0, %s19
      %s22 = sphi 0, %s20
      %s32 = sphi 0, %s34
      %s35 = sphi 0, %s32
      %s36 = sphi 0, %s35
      %s52 = sphi 0, %s36
      %s60 = sphi 0, %s62
      %s63 = sphi 0, %s60
      %s64 = sphi 0, %s63
      %s80 = sphi 0, %s64
      %s86 = sphi 0, %s88
      %s89 = sphi 0, %s86
      %s90 = sphi 0, %s89
      %s106 = sphi 0, %s90
      %s112 = sphi 0, %s114
      %s115 = sphi 0, %s112
      %s116 = sphi 0, %s115
      %s132 = sphi 0, %s116
    $region4: #{_encoder_forward_impl.1} parent=1 // loop_header_branch
      %13 = sbr.rel (%p11) target = $region8
    $region5: #{_encoder_forward_impl.1} parent=1 // loop_body
      %s15 = ssub.s32 %s10, 1
      %s16 = ssub.s32 %s10, 2
      %s23 = sadd.s32 1, %s18
      %p24 = scmp.ge.s32.totalorder %s23, 2
      %s25 = scalar_select %p24, 0, %s23
      %s26 = sadd.s32 1, %s17
      %s27 = scalar_select %p24, %s26, %s17
      %p28 = scmp.ge.s32.totalorder %s27, 1
      %s29 = scalar_select %p28, 0, %s27
      %s30 = ssub.s32 %s18, %s25
      %p31 = scmp.eq.s32.totalorder %s30, 0
      %s33 = sadd.s32 %s32, 1
      %s34 = scalar_select %p31, %s32, %s33
      %p37 = pneg %p31
      %p38 = scmp.eq.s32.totalorder %s10, 1
      %p39 = por %p37, %p38
      %p40 = scmp.ne.s32.totalorder %s32, %s35
      %p41 = scmp.eq.s32.totalorder %s10, 0
      %p42 = por %p40, %p41
      %p43 = scmp.ne.s32.totalorder %s32, %s35
      %p44 = scmp.eq.s32.totalorder %s15, 1
      %p45 = por %p43, %p44
      %p46 = scmp.ne.s32.totalorder %s35, %s36
      %p47 = scmp.eq.s32.totalorder %s15, 0
      %p48 = por %p46, %p47
      %p49 = scmp.ne.s32.totalorder %s35, %s36
      %p50 = scmp.eq.s32.totalorder %s16, 1
      %p51 = por %p49, %p50
      %p53 = scmp.ne.s32.totalorder %s36, %s52
      %p54 = scmp.eq.s32.totalorder %s16, 0
      %p55 = por %p53, %p54
      %s56 = ssub.s32 %s18, %s25
      %s57 = ssub.s32 %s17, %s29
      %s58 = sor.u32 %s56, %s57
      %p59 = scmp.eq.s32.totalorder %s58, 0
      %s61 = sadd.s32 %s60, 1
      %s62 = scalar_select %p59, %s60, %s61
      %p65 = pneg %p59
      %p66 = scmp.eq.s32.totalorder %s10, 1
      %p67 = por %p65, %p66
      %p68 = scmp.ne.s32.totalorder %s60, %s63
      %p69 = scmp.eq.s32.totalorder %s10, 0
      %p70 = por %p68, %p69
      %p71 = scmp.ne.s32.totalorder %s60, %s63
      %p72 = scmp.eq.s32.totalorder %s15, 1
      %p73 = por %p71, %p72
      %p74 = scmp.ne.s32.totalorder %s63, %s64
      %p75 = scmp.eq.s32.totalorder %s15, 0
      %p76 = por %p74, %p75
      %p77 = scmp.ne.s32.totalorder %s63, %s64
      %p78 = scmp.eq.s32.totalorder %s16, 1
      %p79 = por %p77, %p78
      %p81 = scmp.ne.s32.totalorder %s64, %s80
      %p82 = scmp.eq.s32.totalorder %s16, 0
      %p83 = por %p81, %p82
      %s84 = ssub.s32 %s17, %s29
      %p85 = scmp.eq.s32.totalorder %s84, 0
      %s87 = sadd.s32 %s86, 1
      %s88 = scalar_select %p85, %s86, %s87
      %p91 = pneg %p85
      %p92 = scmp.eq.s32.totalorder %s10, 1
      %p93 = por %p91, %p92
      %p94 = scmp.ne.s32.totalorder %s86, %s89
      %p95 = scmp.eq.s32.totalorder %s10, 0
      %p96 = por %p94, %p95
      %p97 = scmp.ne.s32.totalorder %s86, %s89
      %p98 = scmp.eq.s32.totalorder %s15, 1
      %p99 = por %p97, %p98
      %p100 = scmp.ne.s32.totalorder %s89, %s90
      %p101 = scmp.eq.s32.totalorder %s15, 0
      %p102 = por %p100, %p101
      %p103 = scmp.ne.s32.totalorder %s89, %s90
      %p104 = scmp.eq.s32.totalorder %s16, 1
      %p105 = por %p103, %p104
      %p107 = scmp.ne.s32.totalorder %s90, %s106
      %p108 = scmp.eq.s32.totalorder %s16, 0
      %p109 = por %p107, %p108
      %s110 = ssub.s32 %s17, %s29
      %p111 = scmp.eq.s32.totalorder %s110, 0
      %s113 = sadd.s32 %s112, 1
      %s114 = scalar_select %p111, %s112, %s113
      %p117 = pneg %p111
      %p118 = scmp.eq.s32.totalorder %s10, 1
      %p119 = por %p117, %p118
      %p120 = scmp.ne.s32.totalorder %s112, %s115
      %p121 = scmp.eq.s32.totalorder %s10, 0
      %p122 = por %p120, %p121
      %p123 = scmp.ne.s32.totalorder %s112, %s115
      %p124 = scmp.eq.s32.totalorder %s15, 1
      %p125 = por %p123, %p124
      %p126 = scmp.ne.s32.totalorder %s115, %s116
      %p127 = scmp.eq.s32.totalorder %s15, 0
      %p128 = por %p126, %p127
      %p129 = scmp.ne.s32.totalorder %s115, %s116
      %p130 = scmp.eq.s32.totalorder %s16, 1
      %p131 = por %p129, %p130
      %p133 = scmp.ne.s32.totalorder %s116, %s132
      %p134 = scmp.eq.s32.totalorder %s16, 0
      %p135 = por %p133, %p134
      %p136 = scmp.le.s32.totalorder 1, %s10
      %p137 = scmp.lt.s32.totalorder %s10, 3
      %p138 = pnand %p136, %p137
      %p139 = pneg %p138
      // Predicated region
      $region9: #{_encoder_forward_impl.1} parent=5 // pred_check
        _
      $region10: #{_encoder_forward_impl.1} parent=5 // pred_check_branch
        %141 = sbr.rel (%p138) target = $region12
      $region11: #{_encoder_forward_impl.1} parent=5 // pred_region
        %s142 = ssub.s32 %s10, 1
        // Predicated region
        $region13: #{_encoder_forward_impl.1} parent=11 // pred_check
          %p143 = pneg %p102
        $region14: #{_encoder_forward_impl.1} parent=11 // pred_check_branch
          %145 = sbr.rel (%p143) target = $region16
        $region15: #{_encoder_forward_impl.1} parent=11 // pred_region
          %s146 = smul.u32 4, %s19
          %p147 = scmp.lt.s32.totalorder %s146, 3
          %s148 = scalar_select %p147, %s146, 3
          %s149 = scalar_lea.vmem %s2, %s148
          %s150 = smul.u32 4, %s19
        $region16: #{_encoder_forward_impl.1} parent=11 // pred_fallthru
          _
      $region12: #{_encoder_forward_impl.1} parent=5 // pred_fallthru
        _
      %p151 = scmp.lt.s32.totalorder %s10, 2
      // Predicated region
      $region17: #{_encoder_forward_impl.1} parent=5 // pred_check
        %p152 = pneg %p151
      $region18: #{_encoder_forward_impl.1} parent=5 // pred_check_branch
        %154 = sbr.rel (%p152) target = $region20
      $region19: #{_encoder_forward_impl.1} parent=5 // pred_region
        // Predicated region
        $region21: #{_encoder_forward_impl.1} parent=19 // pred_check
          %p155 = pneg %p42
        $region22: #{_encoder_forward_impl.1} parent=19 // pred_check_branch
          %157 = sbr.rel (%p155) target = $region24
        $region23: #{_encoder_forward_impl.1} parent=19 // pred_region
          %s158 = smul.u32 48, %s18
          %p159 = scmp.lt.s32.totalorder %s158, 95
          %s160 = scalar_select %p159, %s158, 95
          %s161 = smul.addr %s160, 8
          %s162 = scalar_lea.vmem %s0, %s161
          %s163 = smul.u32 48, %s18
        $region24: #{_encoder_forward_impl.1} parent=19 // pred_fallthru
          _
        // Predicated region
        $region25: #{_encoder_forward_impl.1} parent=19 // pred_check
          %p164 = pneg %p70
        $region26: #{_encoder_forward_impl.1} parent=19 // pred_check_branch
          %166 = sbr.rel (%p164) target = $region28
        $region27: #{_encoder_forward_impl.1} parent=19 // pred_region
          %s167 = smul.u32 768, %s18
          %s168 = smul.u32 4, %s17
          %p169 = scmp.lt.s32.totalorder %s167, 1535
          %s170 = scalar_select %p169, %s167, 1535
          %p171 = scmp.lt.s32.totalorder %s168, 3
          %s172 = scalar_select %p171, %s168, 3
          %s173 = smul.addr %s170, 4
          %s174 = sadd.s32 %s172, %s173
          %s175 = smul.addr %s174, 4
          %s176 = scalar_lea.vmem %s1, %s175
          %s177 = smul.u32 768, %s18
          %s178 = smul.u32 4, %s17
        $region28: #{_encoder_forward_impl.1} parent=19 // pred_fallthru
          _
      $region20: #{_encoder_forward_impl.1} parent=5 // pred_fallthru
        _
      %p179 = scmp.le.s32.totalorder 1, %s10
      %p180 = scmp.lt.s32.totalorder %s10, 3
      %p181 = pnand %p179, %p180
      %p182 = pneg %p181
      // Predicated region
      $region29: #{_encoder_forward_impl.1} parent=5 // pred_check
        _
      $region30: #{_encoder_forward_impl.1} parent=5 // pred_check_branch
        %184 = sbr.rel (%p181) target = $region32
      $region31: #{_encoder_forward_impl.1} parent=5 // pred_region
        %s185 = ssub.s32 %s10, 1
        %s186 = smul.u32 48, %s20
        %p187 = scmp.lt.s32.totalorder %s186, 95
        %s188 = scalar_select %p187, %s186, 95
        %s189 = smul.addr %s188, 8
        %s190 = scalar_lea.vmem %s0, %s189
        %p191 = pneg %p48
        %p192 = pneg %p45
        %s193 = smul.u32 768, %s20
        %s194 = smul.u32 4, %s19
        %p195 = scmp.lt.s32.totalorder %s193, 1535
        %s196 = scalar_select %p195, %s193, 1535
        %p197 = scmp.lt.s32.totalorder %s194, 3
        %s198 = scalar_select %p197, %s194, 3
        %s199 = smul.addr %s196, 4
        %s200 = sadd.s32 %s198, %s199
        %s201 = smul.addr %s200, 4
        %s202 = scalar_lea.vmem %s1, %s201
        %p203 = pneg %p76
        %p204 = pneg %p73
        %s205 = smul.u32 4, %s19
        %p206 = scmp.lt.s32.totalorder %s205, 3
        %s207 = scalar_select %p206, %s205, 3
        %s208 = scalar_lea.vmem %s2, %s207
        %p209 = pneg %p102
        %p210 = pneg %p99
        %p211 = pneg %p128
        %p212 = pneg %p125
        %s213 = smul.u32 48, %s20
        %p214 = scmp.lt.s32.totalorder %s213, 95
        %s215 = scalar_select %p214, %s213, 95
        %s216 = smul.addr %s215, 8
        %s217 = scalar_lea.vmem %s0, %s216
        %s218 = smul.u32 48, %s20
        %s219 = smul.u32 768, %s20
        %s220 = smul.u32 4, %s19
        %p221 = scmp.lt.s32.totalorder %s219, 1535
        %s222 = scalar_select %p221, %s219, 1535
        %p223 = scmp.lt.s32.totalorder %s220, 3
        %s224 = scalar_select %p223, %s220, 3
        %s225 = smul.addr %s222, 4
        %s226 = sadd.s32 %s224, %s225
        %s227 = smul.addr %s226, 4
        %s228 = scalar_lea.vmem %s1, %s227
        %s229 = smul.u32 768, %s20
        %s230 = smul.u32 4, %s19
        %s231 = smul.u32 4, %s19
        %p232 = scmp.lt.s32.totalorder %s231, 3
        %s233 = scalar_select %p232, %s231, 3
        %s234 = scalar_lea.vmem %s2, %s233
        %s235 = smul.u32 4, %s19
        %s236 = smul.u32 4, %s19
        %p237 = scmp.eq.s32.totalorder %s20, 0
        // Predicated region
        $region33: #{_encoder_forward_impl.1} parent=31 // pred_check
          %p238 = pneg %p237
        $region34: #{_encoder_forward_impl.1} parent=31 // pred_check_branch
          %240 = sbr.rel (%p238) target = $region36
        $region35: #{_encoder_forward_impl.1} parent=31 // pred_region
          %241 = vst [vmem:[#allocation2] sm:$0xff] 0.0
          %242 = vst [vmem:[#allocation2 + $0x8] sm:$0xff] 0.0
          %243 = vst [vmem:[#allocation2 + $0x10] sm:$0xff] 0.0
          %244 = vst [vmem:[#allocation2 + $0x18] sm:$0xff] 0.0
        $region36: #{_encoder_forward_impl.1} parent=31 // pred_fallthru
          _
        %v245 = vld [vmem:[%s217] sm:$0xff]
        %v246 = vld [vmem:[%s217 + $0x8] sm:$0xff]
        %v247 = vld [vmem:[%s217 + $0x10] sm:$0xff]
        %v248 = vld [vmem:[%s217 + $0x18] sm:$0xff]
        %v249 = vld [vmem:[%s217 + $0x20] sm:$0xff]
        %v250 = vld [vmem:[%s217 + $0x28] sm:$0xff]
        %v251 = vld [vmem:[%s217 + $0x30] sm:$0xff]
        %v252 = vld [vmem:[%s217 + $0x38] sm:$0xff]
        %v253 = vld [vmem:[%s217 + $0x40] sm:$0xff]
        %v254 = vld [vmem:[%s217 + $0x48] sm:$0xff]
        %v255 = vld [vmem:[%s217 + $0x50] sm:$0xff]
        %v256 = vld [vmem:[%s217 + $0x58] sm:$0xff]
        %v257 = vld [vmem:[%s217 + $0x60] sm:$0xff]
        %v258 = vld [vmem:[%s217 + $0x68] sm:$0xff]
        %v259 = vld [vmem:[%s217 + $0x70] sm:$0xff]
        %v260 = vld [vmem:[%s217 + $0x78] sm:$0xff]
        %v261 = vld [vmem:[%s217 + $0x80] sm:$0xff]
        %v262 = vld [vmem:[%s217 + $0x88] sm:$0xff]
        %v263 = vld [vmem:[%s217 + $0x90] sm:$0xff]
        %v264 = vld [vmem:[%s217 + $0x98] sm:$0xff]
        %v265 = vld [vmem:[%s217 + $0xa0] sm:$0xff]
        %v266 = vld [vmem:[%s217 + $0xa8] sm:$0xff]
        %v267 = vld [vmem:[%s217 + $0xb0] sm:$0xff]
        %v268 = vld [vmem:[%s217 + $0xb8] sm:$0xff]
        %v269 = vld [vmem:[%s217 + $0xc0] sm:$0xff]
        %v270 = vld [vmem:[%s217 + $0xc8] sm:$0xff]
        %v271 = vld [vmem:[%s217 + $0xd0] sm:$0xff]
        %v272 = vld [vmem:[%s217 + $0xd8] sm:$0xff]
        %v273 = vld [vmem:[%s217 + $0xe0] sm:$0xff]
        %v274 = vld [vmem:[%s217 + $0xe8] sm:$0xff]
        %v275 = vld [vmem:[%s217 + $0xf0] sm:$0xff]
        %v276 = vld [vmem:[%s217 + $0xf8] sm:$0xff]
        %v277 = vld [vmem:[%s217 + $0x100] sm:$0xff]
        %v278 = vld [vmem:[%s217 + $0x108] sm:$0xff]
        %v279 = vld [vmem:[%s217 + $0x110] sm:$0xff]
        %v280 = vld [vmem:[%s217 + $0x118] sm:$0xff]
        %v281 = vld [vmem:[%s217 + $0x120] sm:$0xff]
        %v282 = vld [vmem:[%s217 + $0x128] sm:$0xff]
        %v283 = vld [vmem:[%s217 + $0x130] sm:$0xff]
        %v284 = vld [vmem:[%s217 + $0x138] sm:$0xff]
        %v285 = vld [vmem:[%s217 + $0x140] sm:$0xff]
        %v286 = vld [vmem:[%s217 + $0x148] sm:$0xff]
        %v287 = vld [vmem:[%s217 + $0x150] sm:$0xff]
        %v288 = vld [vmem:[%s217 + $0x158] sm:$0xff]
        %v289 = vld [vmem:[%s217 + $0x160] sm:$0xff]
        %v290 = vld [vmem:[%s217 + $0x168] sm:$0xff]
        %v291 = vld [vmem:[%s217 + $0x170] sm:$0xff]
        %v292 = vld [vmem:[%s217 + $0x178] sm:$0xff]
        %v293 = vrot.slane %v245, 4
        %v294 = vadd.f32 %v245, %v293
        %v295 = vrot.slane %v294, 2
        %v296 = vadd.f32 %v294, %v295
        %v297 = vrot.slane %v296, 1
        %v298 = vadd.f32 %v296, %v297
        %v299 = vrot.slane %v246, 4
        %v300 = vadd.f32 %v246, %v299
        %v301 = vrot.slane %v300, 2
        %v302 = vadd.f32 %v300, %v301
        %v303 = vrot.slane %v302, 1
        %v304 = vadd.f32 %v302, %v303
        %v305 = vrot.slane %v247, 4
        %v306 = vadd.f32 %v247, %v305
        %v307 = vrot.slane %v306, 2
        %v308 = vadd.f32 %v306, %v307
        %v309 = vrot.slane %v308, 1
        %v310 = vadd.f32 %v308, %v309
        %v311 = vrot.slane %v248, 4
        %v312 = vadd.f32 %v248, %v311
        %v313 = vrot.slane %v312, 2
        %v314 = vadd.f32 %v312, %v313
        %v315 = vrot.slane %v314, 1
        %v316 = vadd.f32 %v314, %v315
        %v317 = vrot.slane %v249, 4
        %v318 = vadd.f32 %v249, %v317
        %v319 = vrot.slane %v318, 2
        %v320 = vadd.f32 %v318, %v319
        %v321 = vrot.slane %v320, 1
        %v322 = vadd.f32 %v320, %v321
        %v323 = vrot.slane %v250, 4
        %v324 = vadd.f32 %v250, %v323
        %v325 = vrot.slane %v324, 2
        %v326 = vadd.f32 %v324, %v325
        %v327 = vrot.slane %v326, 1
        %v328 = vadd.f32 %v326, %v327
        %v329 = vrot.slane %v251, 4
        %v330 = vadd.f32 %v251, %v329
        %v331 = vrot.slane %v330, 2
        %v332 = vadd.f32 %v330, %v331
        %v333 = vrot.slane %v332, 1
        %v334 = vadd.f32 %v332, %v333
        %v335 = vrot.slane %v252, 4
        %v336 = vadd.f32 %v252, %v335
        %v337 = vrot.slane %v336, 2
        %v338 = vadd.f32 %v336, %v337
        %v339 = vrot.slane %v338, 1
        %v340 = vadd.f32 %v338, %v339
        %v341 = vrot.slane %v253, 4
        %v342 = vadd.f32 %v253, %v341
        %v343 = vrot.slane %v342, 2
        %v344 = vadd.f32 %v342, %v343
        %v345 = vrot.slane %v344, 1
        %v346 = vadd.f32 %v344, %v345
        %v347 = vrot.slane %v254, 4
        %v348 = vadd.f32 %v254, %v347
        %v349 = vrot.slane %v348, 2
        %v350 = vadd.f32 %v348, %v349
        %v351 = vrot.slane %v350, 1
        %v352 = vadd.f32 %v350, %v351
        %v353 = vrot.slane %v255, 4
        %v354 = vadd.f32 %v255, %v353
        %v355 = vrot.slane %v354, 2
        %v356 = vadd.f32 %v354, %v355
        %v357 = vrot.slane %v356, 1
        %v358 = vadd.f32 %v356, %v357
        %v359 = vrot.slane %v256, 4
        %v360 = vadd.f32 %v256, %v359
        %v361 = vrot.slane %v360, 2
        %v362 = vadd.f32 %v360, %v361
        %v363 = vrot.slane %v362, 1
        %v364 = vadd.f32 %v362, %v363
        %v365 = vrot.slane %v257, 4
        %v366 = vadd.f32 %v257, %v365
        %v367 = vrot.slane %v366, 2
        %v368 = vadd.f32 %v366, %v367
        %v369 = vrot.slane %v368, 1
        %v370 = vadd.f32 %v368, %v369
        %v371 = vrot.slane %v258, 4
        %v372 = vadd.f32 %v258, %v371
        %v373 = vrot.slane %v372, 2
        %v374 = vadd.f32 %v372, %v373
        %v375 = vrot.slane %v374, 1
        %v376 = vadd.f32 %v374, %v375
        %v377 = vrot.slane %v259, 4
        %v378 = vadd.f32 %v259, %v377
        %v379 = vrot.slane %v378, 2
        %v380 = vadd.f32 %v378, %v379
        %v381 = vrot.slane %v380, 1
        %v382 = vadd.f32 %v380, %v381
        %v383 = vrot.slane %v260, 4
        %v384 = vadd.f32 %v260, %v383
        %v385 = vrot.slane %v384, 2
        %v386 = vadd.f32 %v384, %v385
        %v387 = vrot.slane %v386, 1
        %v388 = vadd.f32 %v386, %v387
        %v389 = vrot.slane %v261, 4
        %v390 = vadd.f32 %v261, %v389
        %v391 = vrot.slane %v390, 2
        %v392 = vadd.f32 %v390, %v391
        %v393 = vrot.slane %v392, 1
        %v394 = vadd.f32 %v392, %v393
        %v395 = vrot.slane %v262, 4
        %v396 = vadd.f32 %v262, %v395
        %v397 = vrot.slane %v396, 2
        %v398 = vadd.f32 %v396, %v397
        %v399 = vrot.slane %v398, 1
        %v400 = vadd.f32 %v398, %v399
        %v401 = vrot.slane %v263, 4
        %v402 = vadd.f32 %v263, %v401
        %v403 = vrot.slane %v402, 2
        %v404 = vadd.f32 %v402, %v403
        %v405 = vrot.slane %v404, 1
        %v406 = vadd.f32 %v404, %v405
        %v407 = vrot.slane %v264, 4
        %v408 = vadd.f32 %v264, %v407
        %v409 = vrot.slane %v408, 2
        %v410 = vadd.f32 %v408, %v409
        %v411 = vrot.slane %v410, 1
        %v412 = vadd.f32 %v410, %v411
        %v413 = vrot.slane %v265, 4
        %v414 = vadd.f32 %v265, %v413
        %v415 = vrot.slane %v414, 2
        %v416 = vadd.f32 %v414, %v415
        %v417 = vrot.slane %v416, 1
        %v418 = vadd.f32 %v416, %v417
        %v419 = vrot.slane %v266, 4
        %v420 = vadd.f32 %v266, %v419
        %v421 = vrot.slane %v420, 2
        %v422 = vadd.f32 %v420, %v421
        %v423 = vrot.slane %v422, 1
        %v424 = vadd.f32 %v422, %v423
        %v425 = vrot.slane %v267, 4
        %v426 = vadd.f32 %v267, %v425
        %v427 = vrot.slane %v426, 2
        %v428 = vadd.f32 %v426, %v427
        %v429 = vrot.slane %v428, 1
        %v430 = vadd.f32 %v428, %v429
        %v431 = vrot.slane %v268, 4
        %v432 = vadd.f32 %v268, %v431
        %v433 = vrot.slane %v432, 2
        %v434 = vadd.f32 %v432, %v433
        %v435 = vrot.slane %v434, 1
        %v436 = vadd.f32 %v434, %v435
        %v437 = vrot.slane %v269, 4
        %v438 = vadd.f32 %v269, %v437
        %v439 = vrot.slane %v438, 2
        %v440 = vadd.f32 %v438, %v439
        %v441 = vrot.slane %v440, 1
        %v442 = vadd.f32 %v440, %v441
        %v443 = vrot.slane %v270, 4
        %v444 = vadd.f32 %v270, %v443
        %v445 = vrot.slane %v444, 2
        %v446 = vadd.f32 %v444, %v445
        %v447 = vrot.slane %v446, 1
        %v448 = vadd.f32 %v446, %v447
        %v449 = vrot.slane %v271, 4
        %v450 = vadd.f32 %v271, %v449
        %v451 = vrot.slane %v450, 2
        %v452 = vadd.f32 %v450, %v451
        %v453 = vrot.slane %v452, 1
        %v454 = vadd.f32 %v452, %v453
        %v455 = vrot.slane %v272, 4
        %v456 = vadd.f32 %v272, %v455
        %v457 = vrot.slane %v456, 2
        %v458 = vadd.f32 %v456, %v457
        %v459 = vrot.slane %v458, 1
        %v460 = vadd.f32 %v458, %v459
        %v461 = vrot.slane %v273, 4
        %v462 = vadd.f32 %v273, %v461
        %v463 = vrot.slane %v462, 2
        %v464 = vadd.f32 %v462, %v463
        %v465 = vrot.slane %v464, 1
        %v466 = vadd.f32 %v464, %v465
        %v467 = vrot.slane %v274, 4
        %v468 = vadd.f32 %v274, %v467
        %v469 = vrot.slane %v468, 2
        %v470 = vadd.f32 %v468, %v469
        %v471 = vrot.slane %v470, 1
        %v472 = vadd.f32 %v470, %v471
        %v473 = vrot.slane %v275, 4
        %v474 = vadd.f32 %v275, %v473
        %v475 = vrot.slane %v474, 2
        %v476 = vadd.f32 %v474, %v475
        %v477 = vrot.slane %v476, 1
        %v478 = vadd.f32 %v476, %v477
        %v479 = vrot.slane %v276, 4
        %v480 = vadd.f32 %v276, %v479
        %v481 = vrot.slane %v480, 2
        %v482 = vadd.f32 %v480, %v481
        %v483 = vrot.slane %v482, 1
        %v484 = vadd.f32 %v482, %v483
        %v485 = vrot.slane %v277, 4
        %v486 = vadd.f32 %v277, %v485
        %v487 = vrot.slane %v486, 2
        %v488 = vadd.f32 %v486, %v487
        %v489 = vrot.slane %v488, 1
        %v490 = vadd.f32 %v488, %v489
        %v491 = vrot.slane %v278, 4
        %v492 = vadd.f32 %v278, %v491
        %v493 = vrot.slane %v492, 2
        %v494 = vadd.f32 %v492, %v493
        %v495 = vrot.slane %v494, 1
        %v496 = vadd.f32 %v494, %v495
        %v497 = vrot.slane %v279, 4
        %v498 = vadd.f32 %v279, %v497
        %v499 = vrot.slane %v498, 2
        %v500 = vadd.f32 %v498, %v499
        %v501 = vrot.slane %v500, 1
        %v502 = vadd.f32 %v500, %v501
        %v503 = vrot.slane %v280, 4
        %v504 = vadd.f32 %v280, %v503
        %v505 = vrot.slane %v504, 2
        %v506 = vadd.f32 %v504, %v505
        %v507 = vrot.slane %v506, 1
        %v508 = vadd.f32 %v506, %v507
        %v509 = vrot.slane %v281, 4
        %v510 = vadd.f32 %v281, %v509
        %v511 = vrot.slane %v510, 2
        %v512 = vadd.f32 %v510, %v511
        %v513 = vrot.slane %v512, 1
        %v514 = vadd.f32 %v512, %v513
        %v515 = vrot.slane %v282, 4
        %v516 = vadd.f32 %v282, %v515
        %v517 = vrot.slane %v516, 2
        %v518 = vadd.f32 %v516, %v517
        %v519 = vrot.slane %v518, 1
        %v520 = vadd.f32 %v518, %v519
        %v521 = vrot.slane %v283, 4
        %v522 = vadd.f32 %v283, %v521
        %v523 = vrot.slane %v522, 2
        %v524 = vadd.f32 %v522, %v523
        %v525 = vrot.slane %v524, 1
        %v526 = vadd.f32 %v524, %v525
        %v527 = vrot.slane %v284, 4
        %v528 = vadd.f32 %v284, %v527
        %v529 = vrot.slane %v528, 2
        %v530 = vadd.f32 %v528, %v529
        %v531 = vrot.slane %v530, 1
        %v532 = vadd.f32 %v530, %v531
        %v533 = vrot.slane %v285, 4
        %v534 = vadd.f32 %v285, %v533
        %v535 = vrot.slane %v534, 2
        %v536 = vadd.f32 %v534, %v535
        %v537 = vrot.slane %v536, 1
        %v538 = vadd.f32 %v536, %v537
        %v539 = vrot.slane %v286, 4
        %v540 = vadd.f32 %v286, %v539
        %v541 = vrot.slane %v540, 2
        %v542 = vadd.f32 %v540, %v541
        %v543 = vrot.slane %v542, 1
        %v544 = vadd.f32 %v542, %v543
        %v545 = vrot.slane %v287, 4
        %v546 = vadd.f32 %v287, %v545
        %v547 = vrot.slane %v546, 2
        %v548 = vadd.f32 %v546, %v547
        %v549 = vrot.slane %v548, 1
        %v550 = vadd.f32 %v548, %v549
        %v551 = vrot.slane %v288, 4
        %v552 = vadd.f32 %v288, %v551
        %v553 = vrot.slane %v552, 2
        %v554 = vadd.f32 %v552, %v553
        %v555 = vrot.slane %v554, 1
        %v556 = vadd.f32 %v554, %v555
        %v557 = vrot.slane %v289, 4
        %v558 = vadd.f32 %v289, %v557
        %v559 = vrot.slane %v558, 2
        %v560 = vadd.f32 %v558, %v559
        %v561 = vrot.slane %v560, 1
        %v562 = vadd.f32 %v560, %v561
        %v563 = vrot.slane %v290, 4
        %v564 = vadd.f32 %v290, %v563
        %v565 = vrot.slane %v564, 2
        %v566 = vadd.f32 %v564, %v565
        %v567 = vrot.slane %v566, 1
        %v568 = vadd.f32 %v566, %v567
        %v569 = vrot.slane %v291, 4
        %v570 = vadd.f32 %v291, %v569
        %v571 = vrot.slane %v570, 2
        %v572 = vadd.f32 %v570, %v571
        %v573 = vrot.slane %v572, 1
        %v574 = vadd.f32 %v572, %v573
        %v575 = vrot.slane %v292, 4
        %v576 = vadd.f32 %v292, %v575
        %v577 = vrot.slane %v576, 2
        %v578 = vadd.f32 %v576, %v577
        %v579 = vrot.slane %v578, 1
        %v580 = vadd.f32 %v578, %v579
        %v581 = vrcp.pop 8.0
        %v582 = vmul.f32 %v298, %v581
        %v583 = vmul.f32 %v304, %v581
        %v584 = vmul.f32 %v310, %v581
        %v585 = vmul.f32 %v316, %v581
        %v586 = vmul.f32 %v322, %v581
        %v587 = vmul.f32 %v328, %v581
        %v588 = vmul.f32 %v334, %v581
        %v589 = vmul.f32 %v340, %v581
        %v590 = vmul.f32 %v346, %v581
        %v591 = vmul.f32 %v352, %v581
        %v592 = vmul.f32 %v358, %v581
        %v593 = vmul.f32 %v364, %v581
        %v594 = vmul.f32 %v370, %v581
        %v595 = vmul.f32 %v376, %v581
        %v596 = vmul.f32 %v382, %v581
        %v597 = vmul.f32 %v388, %v581
        %v598 = vmul.f32 %v394, %v581
        %v599 = vmul.f32 %v400, %v581
        %v600 = vmul.f32 %v406, %v581
        %v601 = vmul.f32 %v412, %v581
        %v602 = vmul.f32 %v418, %v581
        %v603 = vmul.f32 %v424, %v581
        %v604 = vmul.f32 %v430, %v581
        %v605 = vmul.f32 %v436, %v581
        %v606 = vmul.f32 %v442, %v581
        %v607 = vmul.f32 %v448, %v581
        %v608 = vmul.f32 %v454, %v581
        %v609 = vmul.f32 %v460, %v581
        %v610 = vmul.f32 %v466, %v581
        %v611 = vmul.f32 %v472, %v581
        %v612 = vmul.f32 %v478, %v581
        %v613 = vmul.f32 %v484, %v581
        %v614 = vmul.f32 %v490, %v581
        %v615 = vmul.f32 %v496, %v581
        %v616 = vmul.f32 %v502, %v581
        %v617 = vmul.f32 %v508, %v581
        %v618 = vmul.f32 %v514, %v581
        %v619 = vmul.f32 %v520, %v581
        %v620 = vmul.f32 %v526, %v581
        %v621 = vmul.f32 %v532, %v581
        %v622 = vmul.f32 %v538, %v581
        %v623 = vmul.f32 %v544, %v581
        %v624 = vmul.f32 %v550, %v581
        %v625 = vmul.f32 %v556, %v581
        %v626 = vmul.f32 %v562, %v581
        %v627 = vmul.f32 %v568, %v581
        %v628 = vmul.f32 %v574, %v581
        %v629 = vmul.f32 %v580, %v581
        %v630 = vsub.f32 %v245, %v582
        %v631 = vsub.f32 %v246, %v583
        %v632 = vsub.f32 %v247, %v584
        %v633 = vsub.f32 %v248, %v585
        %v634 = vsub.f32 %v249, %v586
        %v635 = vsub.f32 %v250, %v587
        %v636 = vsub.f32 %v251, %v588
        %v637 = vsub.f32 %v252, %v589
        %v638 = vsub.f32 %v253, %v590
        %v639 = vsub.f32 %v254, %v591
        %v640 = vsub.f32 %v255, %v592
        %v641 = vsub.f32 %v256, %v593
        %v642 = vsub.f32 %v257, %v594
        %v643 = vsub.f32 %v258, %v595
        %v644 = vsub.f32 %v259, %v596
        %v645 = vsub.f32 %v260, %v597
        %v646 = vsub.f32 %v261, %v598
        %v647 = vsub.f32 %v262, %v599
        %v648 = vsub.f32 %v263, %v600
        %v649 = vsub.f32 %v264, %v601
        %v650 = vsub.f32 %v265, %v602
        %v651 = vsub.f32 %v266, %v603
        %v652 = vsub.f32 %v267, %v604
        %v653 = vsub.f32 %v268, %v605
        %v654 = vsub.f32 %v269, %v606
        %v655 = vsub.f32 %v270, %v607
        %v656 = vsub.f32 %v271, %v608
        %v657 = vsub.f32 %v272, %v609
        %v658 = vsub.f32 %v273, %v610
        %v659 = vsub.f32 %v274, %v611
        %v660 = vsub.f32 %v275, %v612
        %v661 = vsub.f32 %v276, %v613
        %v662 = vsub.f32 %v277, %v614
        %v663 = vsub.f32 %v278, %v615
        %v664 = vsub.f32 %v279, %v616
        %v665 = vsub.f32 %v280, %v617
        %v666 = vsub.f32 %v281, %v618
        %v667 = vsub.f32 %v282, %v619
        %v668 = vsub.f32 %v283, %v620
        %v669 = vsub.f32 %v284, %v621
        %v670 = vsub.f32 %v285, %v622
        %v671 = vsub.f32 %v286, %v623
        %v672 = vsub.f32 %v287, %v624
        %v673 = vsub.f32 %v288, %v625
        %v674 = vsub.f32 %v289, %v626
        %v675 = vsub.f32 %v290, %v627
        %v676 = vsub.f32 %v291, %v628
        %v677 = vsub.f32 %v292, %v629
        %v678 = vmul.f32 %v630, %v630
        %v679 = vmul.f32 %v631, %v631
        %v680 = vmul.f32 %v632, %v632
        %v681 = vmul.f32 %v633, %v633
        %v682 = vmul.f32 %v634, %v634
        %v683 = vmul.f32 %v635, %v635
        %v684 = vmul.f32 %v636, %v636
        %v685 = vmul.f32 %v637, %v637
        %v686 = vmul.f32 %v638, %v638
        %v687 = vmul.f32 %v639, %v639
        %v688 = vmul.f32 %v640, %v640
        %v689 = vmul.f32 %v641, %v641
        %v690 = vmul.f32 %v642, %v642
        %v691 = vmul.f32 %v643, %v643
        %v692 = vmul.f32 %v644, %v644
        %v693 = vmul.f32 %v645, %v645
        %v694 = vmul.f32 %v646, %v646
        %v695 = vmul.f32 %v647, %v647
        %v696 = vmul.f32 %v648, %v648
        %v697 = vmul.f32 %v649, %v649
        %v698 = vmul.f32 %v650, %v650
        %v699 = vmul.f32 %v651, %v651
        %v700 = vmul.f32 %v652, %v652
        %v701 = vmul.f32 %v653, %v653
        %v702 = vmul.f32 %v654, %v654
        %v703 = vmul.f32 %v655, %v655
        %v704 = vmul.f32 %v656, %v656
        %v705 = vmul.f32 %v657, %v657
        %v706 = vmul.f32 %v658, %v658
        %v707 = vmul.f32 %v659, %v659
        %v708 = vmul.f32 %v660, %v660
        %v709 = vmul.f32 %v661, %v661
        %v710 = vmul.f32 %v662, %v662
        %v711 = vmul.f32 %v663, %v663
        %v712 = vmul.f32 %v664, %v664
        %v713 = vmul.f32 %v665, %v665
        %v714 = vmul.f32 %v666, %v666
        %v715 = vmul.f32 %v667, %v667
        %v716 = vmul.f32 %v668, %v668
        %v717 = vmul.f32 %v669, %v669
        %v718 = vmul.f32 %v670, %v670
        %v719 = vmul.f32 %v671, %v671
        %v720 = vmul.f32 %v672, %v672
        %v721 = vmul.f32 %v673, %v673
        %v722 = vmul.f32 %v674, %v674
        %v723 = vmul.f32 %v675, %v675
        %v724 = vmul.f32 %v676, %v676
        %v725 = vmul.f32 %v677, %v677
        %v726 = vrot.slane %v678, 4
        %v727 = vadd.f32 %v678, %v726
        %v728 = vrot.slane %v727, 2
        %v729 = vadd.f32 %v727, %v728
        %v730 = vrot.slane %v729, 1
        %v731 = vadd.f32 %v729, %v730
        %v732 = vrot.slane %v679, 4
        %v733 = vadd.f32 %v679, %v732
        %v734 = vrot.slane %v733, 2
        %v735 = vadd.f32 %v733, %v734
        %v736 = vrot.slane %v735, 1
        %v737 = vadd.f32 %v735, %v736
        %v738 = vrot.slane %v680, 4
        %v739 = vadd.f32 %v680, %v738
        %v740 = vrot.slane %v739, 2
        %v741 = vadd.f32 %v739, %v740
        %v742 = vrot.slane %v741, 1
        %v743 = vadd.f32 %v741, %v742
        %v744 = vrot.slane %v681, 4
        %v745 = vadd.f32 %v681, %v744
        %v746 = vrot.slane %v745, 2
        %v747 = vadd.f32 %v745, %v746
        %v748 = vrot.slane %v747, 1
        %v749 = vadd.f32 %v747, %v748
        %v750 = vrot.slane %v682, 4
        %v751 = vadd.f32 %v682, %v750
        %v752 = vrot.slane %v751, 2
        %v753 = vadd.f32 %v751, %v752
        %v754 = vrot.slane %v753, 1
        %v755 = vadd.f32 %v753, %v754
        %v756 = vrot.slane %v683, 4
        %v757 = vadd.f32 %v683, %v756
        %v758 = vrot.slane %v757, 2
        %v759 = vadd.f32 %v757, %v758
        %v760 = vrot.slane %v759, 1
        %v761 = vadd.f32 %v759, %v760
        %v762 = vrot.slane %v684, 4
        %v763 = vadd.f32 %v684, %v762
        %v764 = vrot.slane %v763, 2
        %v765 = vadd.f32 %v763, %v764
        %v766 = vrot.slane %v765, 1
        %v767 = vadd.f32 %v765, %v766
        %v768 = vrot.slane %v685, 4
        %v769 = vadd.f32 %v685, %v768
        %v770 = vrot.slane %v769, 2
        %v771 = vadd.f32 %v769, %v770
        %v772 = vrot.slane %v771, 1
        %v773 = vadd.f32 %v771, %v772
        %v774 = vrot.slane %v686, 4
        %v775 = vadd.f32 %v686, %v774
        %v776 = vrot.slane %v775, 2
        %v777 = vadd.f32 %v775, %v776
        %v778 = vrot.slane %v777, 1
        %v779 = vadd.f32 %v777, %v778
        %v780 = vrot.slane %v687, 4
        %v781 = vadd.f32 %v687, %v780
        %v782 = vrot.slane %v781, 2
        %v783 = vadd.f32 %v781, %v782
        %v784 = vrot.slane %v783, 1
        %v785 = vadd.f32 %v783, %v784
        %v786 = vrot.slane %v688, 4
        %v787 = vadd.f32 %v688, %v786
        %v788 = vrot.slane %v787, 2
        %v789 = vadd.f32 %v787, %v788
        %v790 = vrot.slane %v789, 1
        %v791 = vadd.f32 %v789, %v790
        %v792 = vrot.slane %v689, 4
        %v793 = vadd.f32 %v689, %v792
        %v794 = vrot.slane %v793, 2
        %v795 = vadd.f32 %v793, %v794
        %v796 = vrot.slane %v795, 1
        %v797 = vadd.f32 %v795, %v796
        %v798 = vrot.slane %v690, 4
        %v799 = vadd.f32 %v690, %v798
        %v800 = vrot.slane %v799, 2
        %v801 = vadd.f32 %v799, %v800
        %v802 = vrot.slane %v801, 1
        %v803 = vadd.f32 %v801, %v802
        %v804 = vrot.slane %v691, 4
        %v805 = vadd.f32 %v691, %v804
        %v806 = vrot.slane %v805, 2
        %v807 = vadd.f32 %v805, %v806
        %v808 = vrot.slane %v807, 1
        %v809 = vadd.f32 %v807, %v808
        %v810 = vrot.slane %v692, 4
        %v811 = vadd.f32 %v692, %v810
        %v812 = vrot.slane %v811, 2
        %v813 = vadd.f32 %v811, %v812
        %v814 = vrot.slane %v813, 1
        %v815 = vadd.f32 %v813, %v814
        %v816 = vrot.slane %v693, 4
        %v817 = vadd.f32 %v693, %v816
        %v818 = vrot.slane %v817, 2
        %v819 = vadd.f32 %v817, %v818
        %v820 = vrot.slane %v819, 1
        %v821 = vadd.f32 %v819, %v820
        %v822 = vrot.slane %v694, 4
        %v823 = vadd.f32 %v694, %v822
        %v824 = vrot.slane %v823, 2
        %v825 = vadd.f32 %v823, %v824
        %v826 = vrot.slane %v825, 1
        %v827 = vadd.f32 %v825, %v826
        %v828 = vrot.slane %v695, 4
        %v829 = vadd.f32 %v695, %v828
        %v830 = vrot.slane %v829, 2
        %v831 = vadd.f32 %v829, %v830
        %v832 = vrot.slane %v831, 1
        %v833 = vadd.f32 %v831, %v832
        %v834 = vrot.slane %v696, 4
        %v835 = vadd.f32 %v696, %v834
        %v836 = vrot.slane %v835, 2
        %v837 = vadd.f32 %v835, %v836
        %v838 = vrot.slane %v837, 1
        %v839 = vadd.f32 %v837, %v838
        %v840 = vrot.slane %v697, 4
        %v841 = vadd.f32 %v697, %v840
        %v842 = vrot.slane %v841, 2
        %v843 = vadd.f32 %v841, %v842
        %v844 = vrot.slane %v843, 1
        %v845 = vadd.f32 %v843, %v844
        %v846 = vrot.slane %v698, 4
        %v847 = vadd.f32 %v698, %v846
        %v848 = vrot.slane %v847, 2
        %v849 = vadd.f32 %v847, %v848
        %v850 = vrot.slane %v849, 1
        %v851 = vadd.f32 %v849, %v850
        %v852 = vrot.slane %v699, 4
        %v853 = vadd.f32 %v699, %v852
        %v854 = vrot.slane %v853, 2
        %v855 = vadd.f32 %v853, %v854
        %v856 = vrot.slane %v855, 1
        %v857 = vadd.f32 %v855, %v856
        %v858 = vrot.slane %v700, 4
        %v859 = vadd.f32 %v700, %v858
        %v860 = vrot.slane %v859, 2
        %v861 = vadd.f32 %v859, %v860
        %v862 = vrot.slane %v861, 1
        %v863 = vadd.f32 %v861, %v862
        %v864 = vrot.slane %v701, 4
        %v865 = vadd.f32 %v701, %v864
        %v866 = vrot.slane %v865, 2
        %v867 = vadd.f32 %v865, %v866
        %v868 = vrot.slane %v867, 1
        %v869 = vadd.f32 %v867, %v868
        %v870 = vrot.slane %v702, 4
        %v871 = vadd.f32 %v702, %v870
        %v872 = vrot.slane %v871, 2
        %v873 = vadd.f32 %v871, %v872
        %v874 = vrot.slane %v873, 1
        %v875 = vadd.f32 %v873, %v874
        %v876 = vrot.slane %v703, 4
        %v877 = vadd.f32 %v703, %v876
        %v878 = vrot.slane %v877, 2
        %v879 = vadd.f32 %v877, %v878
        %v880 = vrot.slane %v879, 1
        %v881 = vadd.f32 %v879, %v880
        %v882 = vrot.slane %v704, 4
        %v883 = vadd.f32 %v704, %v882
        %v884 = vrot.slane %v883, 2
        %v885 = vadd.f32 %v883, %v884
        %v886 = vrot.slane %v885, 1
        %v887 = vadd.f32 %v885, %v886
        %v888 = vrot.slane %v705, 4
        %v889 = vadd.f32 %v705, %v888
        %v890 = vrot.slane %v889, 2
        %v891 = vadd.f32 %v889, %v890
        %v892 = vrot.slane %v891, 1
        %v893 = vadd.f32 %v891, %v892
        %v894 = vrot.slane %v706, 4
        %v895 = vadd.f32 %v706, %v894
        %v896 = vrot.slane %v895, 2
        %v897 = vadd.f32 %v895, %v896
        %v898 = vrot.slane %v897, 1
        %v899 = vadd.f32 %v897, %v898
        %v900 = vrot.slane %v707, 4
        %v901 = vadd.f32 %v707, %v900
        %v902 = vrot.slane %v901, 2
        %v903 = vadd.f32 %v901, %v902
        %v904 = vrot.slane %v903, 1
        %v905 = vadd.f32 %v903, %v904
        %v906 = vrot.slane %v708, 4
        %v907 = vadd.f32 %v708, %v906
        %v908 = vrot.slane %v907, 2
        %v909 = vadd.f32 %v907, %v908
        %v910 = vrot.slane %v909, 1
        %v911 = vadd.f32 %v909, %v910
        %v912 = vrot.slane %v709, 4
        %v913 = vadd.f32 %v709, %v912
        %v914 = vrot.slane %v913, 2
        %v915 = vadd.f32 %v913, %v914
        %v916 = vrot.slane %v915, 1
        %v917 = vadd.f32 %v915, %v916
        %v918 = vrot.slane %v710, 4
        %v919 = vadd.f32 %v710, %v918
        %v920 = vrot.slane %v919, 2
        %v921 = vadd.f32 %v919, %v920
        %v922 = vrot.slane %v921, 1
        %v923 = vadd.f32 %v921, %v922
        %v924 = vrot.slane %v711, 4
        %v925 = vadd.f32 %v711, %v924
        %v926 = vrot.slane %v925, 2
        %v927 = vadd.f32 %v925, %v926
        %v928 = vrot.slane %v927, 1
        %v929 = vadd.f32 %v927, %v928
        %v930 = vrot.slane %v712, 4
        %v931 = vadd.f32 %v712, %v930
        %v932 = vrot.slane %v931, 2
        %v933 = vadd.f32 %v931, %v932
        %v934 = vrot.slane %v933, 1
        %v935 = vadd.f32 %v933, %v934
        %v936 = vrot.slane %v713, 4
        %v937 = vadd.f32 %v713, %v936
        %v938 = vrot.slane %v937, 2
        %v939 = vadd.f32 %v937, %v938
        %v940 = vrot.slane %v939, 1
        %v941 = vadd.f32 %v939, %v940
        %v942 = vrot.slane %v714, 4
        %v943 = vadd.f32 %v714, %v942
        %v944 = vrot.slane %v943, 2
        %v945 = vadd.f32 %v943, %v944
        %v946 = vrot.slane %v945, 1
        %v947 = vadd.f32 %v945, %v946
        %v948 = vrot.slane %v715, 4
        %v949 = vadd.f32 %v715, %v948
        %v950 = vrot.slane %v949, 2
        %v951 = vadd.f32 %v949, %v950
        %v952 = vrot.slane %v951, 1
        %v953 = vadd.f32 %v951, %v952
        %v954 = vrot.slane %v716, 4
        %v955 = vadd.f32 %v716, %v954
        %v956 = vrot.slane %v955, 2
        %v957 = vadd.f32 %v955, %v956
        %v958 = vrot.slane %v957, 1
        %v959 = vadd.f32 %v957, %v958
        %v960 = vrot.slane %v717, 4
        %v961 = vadd.f32 %v717, %v960
        %v962 = vrot.slane %v961, 2
        %v963 = vadd.f32 %v961, %v962
        %v964 = vrot.slane %v963, 1
        %v965 = vadd.f32 %v963, %v964
        %v966 = vrot.slane %v718, 4
        %v967 = vadd.f32 %v718, %v966
        %v968 = vrot.slane %v967, 2
        %v969 = vadd.f32 %v967, %v968
        %v970 = vrot.slane %v969, 1
        %v971 = vadd.f32 %v969, %v970
        %v972 = vrot.slane %v719, 4
        %v973 = vadd.f32 %v719, %v972
        %v974 = vrot.slane %v973, 2
        %v975 = vadd.f32 %v973, %v974
        %v976 = vrot.slane %v975, 1
        %v977 = vadd.f32 %v975, %v976
        %v978 = vrot.slane %v720, 4
        %v979 = vadd.f32 %v720, %v978
        %v980 = vrot.slane %v979, 2
        %v981 = vadd.f32 %v979, %v980
        %v982 = vrot.slane %v981, 1
        %v983 = vadd.f32 %v981, %v982
        %v984 = vrot.slane %v721, 4
        %v985 = vadd.f32 %v721, %v984
        %v986 = vrot.slane %v985, 2
        %v987 = vadd.f32 %v985, %v986
        %v988 = vrot.slane %v987, 1
        %v989 = vadd.f32 %v987, %v988
        %v990 = vrot.slane %v722, 4
        %v991 = vadd.f32 %v722, %v990
        %v992 = vrot.slane %v991, 2
        %v993 = vadd.f32 %v991, %v992
        %v994 = vrot.slane %v993, 1
        %v995 = vadd.f32 %v993, %v994
        %v996 = vrot.slane %v723, 4
        %v997 = vadd.f32 %v723, %v996
        %v998 = vrot.slane %v997, 2
        %v999 = vadd.f32 %v997, %v998
        %v1000 = vrot.slane %v999, 1
        %v1001 = vadd.f32 %v999, %v1000
        %v1002 = vrot.slane %v724, 4
        %v1003 = vadd.f32 %v724, %v1002
        %v1004 = vrot.slane %v1003, 2
        %v1005 = vadd.f32 %v1003, %v1004
        %v1006 = vrot.slane %v1005, 1
        %v1007 = vadd.f32 %v1005, %v1006
        %v1008 = vrot.slane %v725, 4
        %v1009 = vadd.f32 %v725, %v1008
        %v1010 = vrot.slane %v1009, 2
        %v1011 = vadd.f32 %v1009, %v1010
        %v1012 = vrot.slane %v1011, 1
        %v1013 = vadd.f32 %v1011, %v1012
        %v1014 = vmul.f32 %v731, %v581
        %v1015 = vmul.f32 %v737, %v581
        %v1016 = vmul.f32 %v743, %v581
        %v1017 = vmul.f32 %v749, %v581
        %v1018 = vmul.f32 %v755, %v581
        %v1019 = vmul.f32 %v761, %v581
        %v1020 = vmul.f32 %v767, %v581
        %v1021 = vmul.f32 %v773, %v581
        %v1022 = vmul.f32 %v779, %v581
        %v1023 = vmul.f32 %v785, %v581
        %v1024 = vmul.f32 %v791, %v581
        %v1025 = vmul.f32 %v797, %v581
        %v1026 = vmul.f32 %v803, %v581
        %v1027 = vmul.f32 %v809, %v581
        %v1028 = vmul.f32 %v815, %v581
        %v1029 = vmul.f32 %v821, %v581
        %v1030 = vmul.f32 %v827, %v581
        %v1031 = vmul.f32 %v833, %v581
        %v1032 = vmul.f32 %v839, %v581
        %v1033 = vmul.f32 %v845, %v581
        %v1034 = vmul.f32 %v851, %v581
        %v1035 = vmul.f32 %v857, %v581
        %v1036 = vmul.f32 %v863, %v581
        %v1037 = vmul.f32 %v869, %v581
        %v1038 = vmul.f32 %v875, %v581
        %v1039 = vmul.f32 %v881, %v581
        %v1040 = vmul.f32 %v887, %v581
        %v1041 = vmul.f32 %v893, %v581
        %v1042 = vmul.f32 %v899, %v581
        %v1043 = vmul.f32 %v905, %v581
        %v1044 = vmul.f32 %v911, %v581
        %v1045 = vmul.f32 %v917, %v581
        %v1046 = vmul.f32 %v923, %v581
        %v1047 = vmul.f32 %v929, %v581
        %v1048 = vmul.f32 %v935, %v581
        %v1049 = vmul.f32 %v941, %v581
        %v1050 = vmul.f32 %v947, %v581
        %v1051 = vmul.f32 %v953, %v581
        %v1052 = vmul.f32 %v959, %v581
        %v1053 = vmul.f32 %v965, %v581
        %v1054 = vmul.f32 %v971, %v581
        %v1055 = vmul.f32 %v977, %v581
        %v1056 = vmul.f32 %v983, %v581
        %v1057 = vmul.f32 %v989, %v581
        %v1058 = vmul.f32 %v995, %v581
        %v1059 = vmul.f32 %v1001, %v581
        %v1060 = vmul.f32 %v1007, %v581
        %v1061 = vmul.f32 %v1013, %v581
        %v1062 = vadd.f32 %v1014, 1e-05
        %v1063 = vadd.f32 %v1015, 1e-05
        %v1064 = vadd.f32 %v1016, 1e-05
        %v1065 = vadd.f32 %v1017, 1e-05
        %v1066 = vadd.f32 %v1018, 1e-05
        %v1067 = vadd.f32 %v1019, 1e-05
        %v1068 = vadd.f32 %v1020, 1e-05
        %v1069 = vadd.f32 %v1021, 1e-05
        %v1070 = vadd.f32 %v1022, 1e-05
        %v1071 = vadd.f32 %v1023, 1e-05
        %v1072 = vadd.f32 %v1024, 1e-05
        %v1073 = vadd.f32 %v1025, 1e-05
        %v1074 = vadd.f32 %v1026, 1e-05
        %v1075 = vadd.f32 %v1027, 1e-05
        %v1076 = vadd.f32 %v1028, 1e-05
        %v1077 = vadd.f32 %v1029, 1e-05
        %v1078 = vadd.f32 %v1030, 1e-05
        %v1079 = vadd.f32 %v1031, 1e-05
        %v1080 = vadd.f32 %v1032, 1e-05
        %v1081 = vadd.f32 %v1033, 1e-05
        %v1082 = vadd.f32 %v1034, 1e-05
        %v1083 = vadd.f32 %v1035, 1e-05
        %v1084 = vadd.f32 %v1036, 1e-05
        %v1085 = vadd.f32 %v1037, 1e-05
        %v1086 = vadd.f32 %v1038, 1e-05
        %v1087 = vadd.f32 %v1039, 1e-05
        %v1088 = vadd.f32 %v1040, 1e-05
        %v1089 = vadd.f32 %v1041, 1e-05
        %v1090 = vadd.f32 %v1042, 1e-05
        %v1091 = vadd.f32 %v1043, 1e-05
        %v1092 = vadd.f32 %v1044, 1e-05
        %v1093 = vadd.f32 %v1045, 1e-05
        %v1094 = vadd.f32 %v1046, 1e-05
        %v1095 = vadd.f32 %v1047, 1e-05
        %v1096 = vadd.f32 %v1048, 1e-05
        %v1097 = vadd.f32 %v1049, 1e-05
        %v1098 = vadd.f32 %v1050, 1e-05
        %v1099 = vadd.f32 %v1051, 1e-05
        %v1100 = vadd.f32 %v1052, 1e-05
        %v1101 = vadd.f32 %v1053, 1e-05
        %v1102 = vadd.f32 %v1054, 1e-05
        %v1103 = vadd.f32 %v1055, 1e-05
        %v1104 = vadd.f32 %v1056, 1e-05
        %v1105 = vadd.f32 %v1057, 1e-05
        %v1106 = vadd.f32 %v1058, 1e-05
        %v1107 = vadd.f32 %v1059, 1e-05
        %v1108 = vadd.f32 %v1060, 1e-05
        %v1109 = vadd.f32 %v1061, 1e-05
        %v1110 = vrsqrt.pop %v1062
        %v1111 = vrsqrt.pop %v1063
        %v1112 = vrsqrt.pop %v1064
        %v1113 = vrsqrt.pop %v1065
        %v1114 = vrsqrt.pop %v1066
        %v1115 = vrsqrt.pop %v1067
        %v1116 = vrsqrt.pop %v1068
        %v1117 = vrsqrt.pop %v1069
        %v1118 = vrsqrt.pop %v1070
        %v1119 = vrsqrt.pop %v1071
        %v1120 = vrsqrt.pop %v1072
        %v1121 = vrsqrt.pop %v1073
        %v1122 = vrsqrt.pop %v1074
        %v1123 = vrsqrt.pop %v1075
        %v1124 = vrsqrt.pop %v1076
        %v1125 = vrsqrt.pop %v1077
        %v1126 = vrsqrt.pop %v1078
        %v1127 = vrsqrt.pop %v1079
        %v1128 = vrsqrt.pop %v1080
        %v1129 = vrsqrt.pop %v1081
        %v1130 = vrsqrt.pop %v1082
        %v1131 = vrsqrt.pop %v1083
        %v1132 = vrsqrt.pop %v1084
        %v1133 = vrsqrt.pop %v1085
        %v1134 = vrsqrt.pop %v1086
        %v1135 = vrsqrt.pop %v1087
        %v1136 = vrsqrt.pop %v1088
        %v1137 = vrsqrt.pop %v1089
        %v1138 = vrsqrt.pop %v1090
        %v1139 = vrsqrt.pop %v1091
        %v1140 = vrsqrt.pop %v1092
        %v1141 = vrsqrt.pop %v1093
        %v1142 = vrsqrt.pop %v1094
        %v1143 = vrsqrt.pop %v1095
        %v1144 = vrsqrt.pop %v1096
        %v1145 = vrsqrt.pop %v1097
        %v1146 = vrsqrt.pop %v1098
        %v1147 = vrsqrt.pop %v1099
        %v1148 = vrsqrt.pop %v1100
        %v1149 = vrsqrt.pop %v1101
        %v1150 = vrsqrt.pop %v1102
        %v1151 = vrsqrt.pop %v1103
        %v1152 = vrsqrt.pop %v1104
        %v1153 = vrsqrt.pop %v1105
        %v1154 = vrsqrt.pop %v1106
        %v1155 = vrsqrt.pop %v1107
        %v1156 = vrsqrt.pop %v1108
        %v1157 = vrsqrt.pop %v1109
        %v1158 = vmul.f32 %v630, %v1110
        %v1159 = vmul.f32 %v631, %v1111
        %v1160 = vmul.f32 %v632, %v1112
        %v1161 = vmul.f32 %v633, %v1113
        %v1162 = vmul.f32 %v634, %v1114
        %v1163 = vmul.f32 %v635, %v1115
        %v1164 = vmul.f32 %v636, %v1116
        %v1165 = vmul.f32 %v637, %v1117
        %v1166 = vmul.f32 %v638, %v1118
        %v1167 = vmul.f32 %v639, %v1119
        %v1168 = vmul.f32 %v640, %v1120
        %v1169 = vmul.f32 %v641, %v1121
        %v1170 = vmul.f32 %v642, %v1122
        %v1171 = vmul.f32 %v643, %v1123
        %v1172 = vmul.f32 %v644, %v1124
        %v1173 = vmul.f32 %v645, %v1125
        %v1174 = vmul.f32 %v646, %v1126
        %v1175 = vmul.f32 %v647, %v1127
        %v1176 = vmul.f32 %v648, %v1128
        %v1177 = vmul.f32 %v649, %v1129
        %v1178 = vmul.f32 %v650, %v1130
        %v1179 = vmul.f32 %v651, %v1131
        %v1180 = vmul.f32 %v652, %v1132
        %v1181 = vmul.f32 %v653, %v1133
        %v1182 = vmul.f32 %v654, %v1134
        %v1183 = vmul.f32 %v655, %v1135
        %v1184 = vmul.f32 %v656, %v1136
        %v1185 = vmul.f32 %v657, %v1137
        %v1186 = vmul.f32 %v658, %v1138
        %v1187 = vmul.f32 %v659, %v1139
        %v1188 = vmul.f32 %v660, %v1140
        %v1189 = vmul.f32 %v661, %v1141
        %v1190 = vmul.f32 %v662, %v1142
        %v1191 = vmul.f32 %v663, %v1143
        %v1192 = vmul.f32 %v664, %v1144
        %v1193 = vmul.f32 %v665, %v1145
        %v1194 = vmul.f32 %v666, %v1146
        %v1195 = vmul.f32 %v667, %v1147
        %v1196 = vmul.f32 %v668, %v1148
        %v1197 = vmul.f32 %v669, %v1149
        %v1198 = vmul.f32 %v670, %v1150
        %v1199 = vmul.f32 %v671, %v1151
        %v1200 = vmul.f32 %v672, %v1152
        %v1201 = vmul.f32 %v673, %v1153
        %v1202 = vmul.f32 %v674, %v1154
        %v1203 = vmul.f32 %v675, %v1155
        %v1204 = vmul.f32 %v676, %v1156
        %v1205 = vmul.f32 %v677, %v1157
        %v1206 = vld [vmem:[#allocation2] sm:$0xff]
        %v1207 = vld [vmem:[#allocation2 + $0x8] sm:$0xff]
        %v1208 = vld [vmem:[#allocation2 + $0x10] sm:$0xff]
        %v1209 = vld [vmem:[#allocation2 + $0x18] sm:$0xff]
        %v1210 = vpack.c.bf16 %v1158, %v1158
        %v1211 = vpack.c.bf16 %v1159, %v1159
        %v1212 = vpack.c.bf16 %v1160, %v1160
        %v1213 = vpack.c.bf16 %v1161, %v1161
        %v1214 = vpack.c.bf16 %v1162, %v1162
        %v1215 = vpack.c.bf16 %v1163, %v1163
        %v1216 = vpack.c.bf16 %v1164, %v1164
        %v1217 = vpack.c.bf16 %v1165, %v1165
        %v1218 = vpack.c.bf16 %v1166, %v1166
        %v1219 = vpack.c.bf16 %v1167, %v1167
        %v1220 = vpack.c.bf16 %v1168, %v1168
        %v1221 = vpack.c.bf16 %v1169, %v1169
        %v1222 = vpack.c.bf16 %v1170, %v1170
        %v1223 = vpack.c.bf16 %v1171, %v1171
        %v1224 = vpack.c.bf16 %v1172, %v1172
        %v1225 = vpack.c.bf16 %v1173, %v1173
        %v1226 = vpack.c.bf16 %v1174, %v1174
        %v1227 = vpack.c.bf16 %v1175, %v1175
        %v1228 = vpack.c.bf16 %v1176, %v1176
        %v1229 = vpack.c.bf16 %v1177, %v1177
        %v1230 = vpack.c.bf16 %v1178, %v1178
        %v1231 = vpack.c.bf16 %v1179, %v1179
        %v1232 = vpack.c.bf16 %v1180, %v1180
        %v1233 = vpack.c.bf16 %v1181, %v1181
        %v1234 = vpack.c.bf16 %v1182, %v1182
        %v1235 = vpack.c.bf16 %v1183, %v1183
        %v1236 = vpack.c.bf16 %v1184, %v1184
        %v1237 = vpack.c.bf16 %v1185, %v1185
        %v1238 = vpack.c.bf16 %v1186, %v1186
        %v1239 = vpack.c.bf16 %v1187, %v1187
        %v1240 = vpack.c.bf16 %v1188, %v1188
        %v1241 = vpack.c.bf16 %v1189, %v1189
        %v1242 = vpack.c.bf16 %v1190, %v1190
        %v1243 = vpack.c.bf16 %v1191, %v1191
        %v1244 = vpack.c.bf16 %v1192, %v1192
        %v1245 = vpack.c.bf16 %v1193, %v1193
        %v1246 = vpack.c.bf16 %v1194, %v1194
        %v1247 = vpack.c.bf16 %v1195, %v1195
        %v1248 = vpack.c.bf16 %v1196, %v1196
        %v1249 = vpack.c.bf16 %v1197, %v1197
        %v1250 = vpack.c.bf16 %v1198, %v1198
        %v1251 = vpack.c.bf16 %v1199, %v1199
        %v1252 = vpack.c.bf16 %v1200, %v1200
        %v1253 = vpack.c.bf16 %v1201, %v1201
        %v1254 = vpack.c.bf16 %v1202, %v1202
        %v1255 = vpack.c.bf16 %v1203, %v1203
        %v1256 = vpack.c.bf16 %v1204, %v1204
        %v1257 = vpack.c.bf16 %v1205, %v1205
        %v1258 = vld [vmem:[%s228] sm:$0xff]
        %v1259 = vld [vmem:[%s228 + $0x8] sm:$0xff]
        %v1260 = vld [vmem:[%s228 + $0x10] sm:$0xff]
        %v1261 = vld [vmem:[%s228 + $0x18] sm:$0xff]
        %v1262 = vld [vmem:[%s228 + $0x20] sm:$0xff]
        %v1263 = vld [vmem:[%s228 + $0x28] sm:$0xff]
        %v1264 = vld [vmem:[%s228 + $0x30] sm:$0xff]
        %v1265 = vld [vmem:[%s228 + $0x38] sm:$0xff]
        %v1266 = vld [vmem:[%s228 + $0x40] sm:$0xff]
        %v1267 = vld [vmem:[%s228 + $0x48] sm:$0xff]
        %v1268 = vld [vmem:[%s228 + $0x50] sm:$0xff]
        %v1269 = vld [vmem:[%s228 + $0x58] sm:$0xff]
        %v1270 = vld [vmem:[%s228 + $0x60] sm:$0xff]
        %v1271 = vld [vmem:[%s228 + $0x68] sm:$0xff]
        %v1272 = vld [vmem:[%s228 + $0x70] sm:$0xff]
        %v1273 = vld [vmem:[%s228 + $0x78] sm:$0xff]
        %v1274 = vld [vmem:[%s228 + $0x80] sm:$0xff]
        %v1275 = vld [vmem:[%s228 + $0x88] sm:$0xff]
        %v1276 = vld [vmem:[%s228 + $0x90] sm:$0xff]
        %v1277 = vld [vmem:[%s228 + $0x98] sm:$0xff]
        %v1278 = vld [vmem:[%s228 + $0xa0] sm:$0xff]
        %v1279 = vld [vmem:[%s228 + $0xa8] sm:$0xff]
        %v1280 = vld [vmem:[%s228 + $0xb0] sm:$0xff]
        %v1281 = vld [vmem:[%s228 + $0xb8] sm:$0xff]
        %v1282 = vld [vmem:[%s228 + $0xc0] sm:$0xff]
        %v1283 = vld [vmem:[%s228 + $0xc8] sm:$0xff]
        %v1284 = vld [vmem:[%s228 + $0xd0] sm:$0xff]
        %v1285 = vld [vmem:[%s228 + $0xd8] sm:$0xff]
        %v1286 = vld [vmem:[%s228 + $0xe0] sm:$0xff]
        %v1287 = vld [vmem:[%s228 + $0xe8] sm:$0xff]
        %v1288 = vld [vmem:[%s228 + $0xf0] sm:$0xff]
        %v1289 = vld [vmem:[%s228 + $0xf8] sm:$0xff]
        %v1290 = vld [vmem:[%s228 + $0x100] sm:$0xff]
        %v1291 = vld [vmem:[%s228 + $0x108] sm:$0xff]
        %v1292 = vld [vmem:[%s228 + $0x110] sm:$0xff]
        %v1293 = vld [vmem:[%s228 + $0x118] sm:$0xff]
        %v1294 = vld [vmem:[%s228 + $0x120] sm:$0xff]
        %v1295 = vld [vmem:[%s228 + $0x128] sm:$0xff]
        %v1296 = vld [vmem:[%s228 + $0x130] sm:$0xff]
        %v1297 = vld [vmem:[%s228 + $0x138] sm:$0xff]
        %v1298 = vld [vmem:[%s228 + $0x140] sm:$0xff]
        %v1299 = vld [vmem:[%s228 + $0x148] sm:$0xff]
        %v1300 = vld [vmem:[%s228 + $0x150] sm:$0xff]
        %v1301 = vld [vmem:[%s228 + $0x158] sm:$0xff]
        %v1302 = vld [vmem:[%s228 + $0x160] sm:$0xff]
        %v1303 = vld [vmem:[%s228 + $0x168] sm:$0xff]
        %v1304 = vld [vmem:[%s228 + $0x170] sm:$0xff]
        %v1305 = vld [vmem:[%s228 + $0x178] sm:$0xff]
        %v1306 = vld [vmem:[%s228 + $0x180] sm:$0xff]
        %v1307 = vld [vmem:[%s228 + $0x188] sm:$0xff]
        %v1308 = vld [vmem:[%s228 + $0x190] sm:$0xff]
        %v1309 = vld [vmem:[%s228 + $0x198] sm:$0xff]
        %v1310 = vld [vmem:[%s228 + $0x1a0] sm:$0xff]
        %v1311 = vld [vmem:[%s228 + $0x1a8] sm:$0xff]
        %v1312 = vld [vmem:[%s228 + $0x1b0] sm:$0xff]
        %v1313 = vld [vmem:[%s228 + $0x1b8] sm:$0xff]
        %v1314 = vld [vmem:[%s228 + $0x1c0] sm:$0xff]
        %v1315 = vld [vmem:[%s228 + $0x1c8] sm:$0xff]
        %v1316 = vld [vmem:[%s228 + $0x1d0] sm:$0xff]
        %v1317 = vld [vmem:[%s228 + $0x1d8] sm:$0xff]
        %v1318 = vld [vmem:[%s228 + $0x1e0] sm:$0xff]
        %v1319 = vld [vmem:[%s228 + $0x1e8] sm:$0xff]
        %v1320 = vld [vmem:[%s228 + $0x1f0] sm:$0xff]
        %v1321 = vld [vmem:[%s228 + $0x1f8] sm:$0xff]
        %v1322 = vld [vmem:[%s228 + $0x200] sm:$0xff]
        %v1323 = vld [vmem:[%s228 + $0x208] sm:$0xff]
        %v1324 = vld [vmem:[%s228 + $0x210] sm:$0xff]
        %v1325 = vld [vmem:[%s228 + $0x218] sm:$0xff]
        %v1326 = vld [vmem:[%s228 + $0x220] sm:$0xff]
        %v1327 = vld [vmem:[%s228 + $0x228] sm:$0xff]
        %v1328 = vld [vmem:[%s228 + $0x230] sm:$0xff]
        %v1329 = vld [vmem:[%s228 + $0x238] sm:$0xff]
        %v1330 = vld [vmem:[%s228 + $0x240] sm:$0xff]
        %v1331 = vld [vmem:[%s228 + $0x248] sm:$0xff]
        %v1332 = vld [vmem:[%s228 + $0x250] sm:$0xff]
        %v1333 = vld [vmem:[%s228 + $0x258] sm:$0xff]
        %v1334 = vld [vmem:[%s228 + $0x260] sm:$0xff]
        %v1335 = vld [vmem:[%s228 + $0x268] sm:$0xff]
        %v1336 = vld [vmem:[%s228 + $0x270] sm:$0xff]
        %v1337 = vld [vmem:[%s228 + $0x278] sm:$0xff]
        %v1338 = vld [vmem:[%s228 + $0x280] sm:$0xff]
        %v1339 = vld [vmem:[%s228 + $0x288] sm:$0xff]
        %v1340 = vld [vmem:[%s228 + $0x290] sm:$0xff]
        %v1341 = vld [vmem:[%s228 + $0x298] sm:$0xff]
        %v1342 = vld [vmem:[%s228 + $0x2a0] sm:$0xff]
        %v1343 = vld [vmem:[%s228 + $0x2a8] sm:$0xff]
        %v1344 = vld [vmem:[%s228 + $0x2b0] sm:$0xff]
        %v1345 = vld [vmem:[%s228 + $0x2b8] sm:$0xff]
        %v1346 = vld [vmem:[%s228 + $0x2c0] sm:$0xff]
        %v1347 = vld [vmem:[%s228 + $0x2c8] sm:$0xff]
        %v1348 = vld [vmem:[%s228 + $0x2d0] sm:$0xff]
        %v1349 = vld [vmem:[%s228 + $0x2d8] sm:$0xff]
        %v1350 = vld [vmem:[%s228 + $0x2e0] sm:$0xff]
        %v1351 = vld [vmem:[%s228 + $0x2e8] sm:$0xff]
        %v1352 = vld [vmem:[%s228 + $0x2f0] sm:$0xff]
        %v1353 = vld [vmem:[%s228 + $0x2f8] sm:$0xff]
        %v1354 = vld [vmem:[%s228 + $0x300] sm:$0xff]
        %v1355 = vld [vmem:[%s228 + $0x308] sm:$0xff]
        %v1356 = vld [vmem:[%s228 + $0x310] sm:$0xff]
        %v1357 = vld [vmem:[%s228 + $0x318] sm:$0xff]
        %v1358 = vld [vmem:[%s228 + $0x320] sm:$0xff]
        %v1359 = vld [vmem:[%s228 + $0x328] sm:$0xff]
        %v1360 = vld [vmem:[%s228 + $0x330] sm:$0xff]
        %v1361 = vld [vmem:[%s228 + $0x338] sm:$0xff]
        %v1362 = vld [vmem:[%s228 + $0x340] sm:$0xff]
        %v1363 = vld [vmem:[%s228 + $0x348] sm:$0xff]
        %v1364 = vld [vmem:[%s228 + $0x350] sm:$0xff]
        %v1365 = vld [vmem:[%s228 + $0x358] sm:$0xff]
        %v1366 = vld [vmem:[%s228 + $0x360] sm:$0xff]
        %v1367 = vld [vmem:[%s228 + $0x368] sm:$0xff]
        %v1368 = vld [vmem:[%s228 + $0x370] sm:$0xff]
        %v1369 = vld [vmem:[%s228 + $0x378] sm:$0xff]
        %v1370 = vld [vmem:[%s228 + $0x380] sm:$0xff]
        %v1371 = vld [vmem:[%s228 + $0x388] sm:$0xff]
        %v1372 = vld [vmem:[%s228 + $0x390] sm:$0xff]
        %v1373 = vld [vmem:[%s228 + $0x398] sm:$0xff]
        %v1374 = vld [vmem:[%s228 + $0x3a0] sm:$0xff]
        %v1375 = vld [vmem:[%s228 + $0x3a8] sm:$0xff]
        %v1376 = vld [vmem:[%s228 + $0x3b0] sm:$0xff]
        %v1377 = vld [vmem:[%s228 + $0x3b8] sm:$0xff]
        %v1378 = vld [vmem:[%s228 + $0x3c0] sm:$0xff]
        %v1379 = vld [vmem:[%s228 + $0x3c8] sm:$0xff]
        %v1380 = vld [vmem:[%s228 + $0x3d0] sm:$0xff]
        %v1381 = vld [vmem:[%s228 + $0x3d8] sm:$0xff]
        %v1382 = vld [vmem:[%s228 + $0x3e0] sm:$0xff]
        %v1383 = vld [vmem:[%s228 + $0x3e8] sm:$0xff]
        %v1384 = vld [vmem:[%s228 + $0x3f0] sm:$0xff]
        %v1385 = vld [vmem:[%s228 + $0x3f8] sm:$0xff]
        %v1386 = vld [vmem:[%s228 + $0x400] sm:$0xff]
        %v1387 = vld [vmem:[%s228 + $0x408] sm:$0xff]
        %v1388 = vld [vmem:[%s228 + $0x410] sm:$0xff]
        %v1389 = vld [vmem:[%s228 + $0x418] sm:$0xff]
        %v1390 = vld [vmem:[%s228 + $0x420] sm:$0xff]
        %v1391 = vld [vmem:[%s228 + $0x428] sm:$0xff]
        %v1392 = vld [vmem:[%s228 + $0x430] sm:$0xff]
        %v1393 = vld [vmem:[%s228 + $0x438] sm:$0xff]
        %v1394 = vld [vmem:[%s228 + $0x440] sm:$0xff]
        %v1395 = vld [vmem:[%s228 + $0x448] sm:$0xff]
        %v1396 = vld [vmem:[%s228 + $0x450] sm:$0xff]
        %v1397 = vld [vmem:[%s228 + $0x458] sm:$0xff]
        %v1398 = vld [vmem:[%s228 + $0x460] sm:$0xff]
        %v1399 = vld [vmem:[%s228 + $0x468] sm:$0xff]
        %v1400 = vld [vmem:[%s228 + $0x470] sm:$0xff]
        %v1401 = vld [vmem:[%s228 + $0x478] sm:$0xff]
        %v1402 = vld [vmem:[%s228 + $0x480] sm:$0xff]
        %v1403 = vld [vmem:[%s228 + $0x488] sm:$0xff]
        %v1404 = vld [vmem:[%s228 + $0x490] sm:$0xff]
        %v1405 = vld [vmem:[%s228 + $0x498] sm:$0xff]
        %v1406 = vld [vmem:[%s228 + $0x4a0] sm:$0xff]
        %v1407 = vld [vmem:[%s228 + $0x4a8] sm:$0xff]
        %v1408 = vld [vmem:[%s228 + $0x4b0] sm:$0xff]
        %v1409 = vld [vmem:[%s228 + $0x4b8] sm:$0xff]
        %v1410 = vld [vmem:[%s228 + $0x4c0] sm:$0xff]
        %v1411 = vld [vmem:[%s228 + $0x4c8] sm:$0xff]
        %v1412 = vld [vmem:[%s228 + $0x4d0] sm:$0xff]
        %v1413 = vld [vmem:[%s228 + $0x4d8] sm:$0xff]
        %v1414 = vld [vmem:[%s228 + $0x4e0] sm:$0xff]
        %v1415 = vld [vmem:[%s228 + $0x4e8] sm:$0xff]
        %v1416 = vld [vmem:[%s228 + $0x4f0] sm:$0xff]
        %v1417 = vld [vmem:[%s228 + $0x4f8] sm:$0xff]
        %v1418 = vld [vmem:[%s228 + $0x500] sm:$0xff]
        %v1419 = vld [vmem:[%s228 + $0x508] sm:$0xff]
        %v1420 = vld [vmem:[%s228 + $0x510] sm:$0xff]
        %v1421 = vld [vmem:[%s228 + $0x518] sm:$0xff]
        %v1422 = vld [vmem:[%s228 + $0x520] sm:$0xff]
        %v1423 = vld [vmem:[%s228 + $0x528] sm:$0xff]
        %v1424 = vld [vmem:[%s228 + $0x530] sm:$0xff]
        %v1425 = vld [vmem:[%s228 + $0x538] sm:$0xff]
        %v1426 = vld [vmem:[%s228 + $0x540] sm:$0xff]
        %v1427 = vld [vmem:[%s228 + $0x548] sm:$0xff]
        %v1428 = vld [vmem:[%s228 + $0x550] sm:$0xff]
        %v1429 = vld [vmem:[%s228 + $0x558] sm:$0xff]
        %v1430 = vld [vmem:[%s228 + $0x560] sm:$0xff]
        %v1431 = vld [vmem:[%s228 + $0x568] sm:$0xff]
        %v1432 = vld [vmem:[%s228 + $0x570] sm:$0xff]
        %v1433 = vld [vmem:[%s228 + $0x578] sm:$0xff]
        %v1434 = vld [vmem:[%s228 + $0x580] sm:$0xff]
        %v1435 = vld [vmem:[%s228 + $0x588] sm:$0xff]
        %v1436 = vld [vmem:[%s228 + $0x590] sm:$0xff]
        %v1437 = vld [vmem:[%s228 + $0x598] sm:$0xff]
        %v1438 = vld [vmem:[%s228 + $0x5a0] sm:$0xff]
        %v1439 = vld [vmem:[%s228 + $0x5a8] sm:$0xff]
        %v1440 = vld [vmem:[%s228 + $0x5b0] sm:$0xff]
        %v1441 = vld [vmem:[%s228 + $0x5b8] sm:$0xff]
        %v1442 = vld [vmem:[%s228 + $0x5c0] sm:$0xff]
        %v1443 = vld [vmem:[%s228 + $0x5c8] sm:$0xff]
        %v1444 = vld [vmem:[%s228 + $0x5d0] sm:$0xff]
        %v1445 = vld [vmem:[%s228 + $0x5d8] sm:$0xff]
        %v1446 = vld [vmem:[%s228 + $0x5e0] sm:$0xff]
        %v1447 = vld [vmem:[%s228 + $0x5e8] sm:$0xff]
        %v1448 = vld [vmem:[%s228 + $0x5f0] sm:$0xff]
        %v1449 = vld [vmem:[%s228 + $0x5f8] sm:$0xff]
        %v1450 = vld [vmem:[%s228 + $0x600] sm:$0xff]
        %v1451 = vld [vmem:[%s228 + $0x608] sm:$0xff]
        %v1452 = vld [vmem:[%s228 + $0x610] sm:$0xff]
        %v1453 = vld [vmem:[%s228 + $0x618] sm:$0xff]
        %v1454 = vld [vmem:[%s228 + $0x620] sm:$0xff]
        %v1455 = vld [vmem:[%s228 + $0x628] sm:$0xff]
        %v1456 = vld [vmem:[%s228 + $0x630] sm:$0xff]
        %v1457 = vld [vmem:[%s228 + $0x638] sm:$0xff]
        %v1458 = vld [vmem:[%s228 + $0x640] sm:$0xff]
        %v1459 = vld [vmem:[%s228 + $0x648] sm:$0xff]
        %v1460 = vld [vmem:[%s228 + $0x650] sm:$0xff]
        %v1461 = vld [vmem:[%s228 + $0x658] sm:$0xff]
        %v1462 = vld [vmem:[%s228 + $0x660] sm:$0xff]
        %v1463 = vld [vmem:[%s228 + $0x668] sm:$0xff]
        %v1464 = vld [vmem:[%s228 + $0x670] sm:$0xff]
        %v1465 = vld [vmem:[%s228 + $0x678] sm:$0xff]
        %v1466 = vld [vmem:[%s228 + $0x680] sm:$0xff]
        %v1467 = vld [vmem:[%s228 + $0x688] sm:$0xff]
        %v1468 = vld [vmem:[%s228 + $0x690] sm:$0xff]
        %v1469 = vld [vmem:[%s228 + $0x698] sm:$0xff]
        %v1470 = vld [vmem:[%s228 + $0x6a0] sm:$0xff]
        %v1471 = vld [vmem:[%s228 + $0x6a8] sm:$0xff]
        %v1472 = vld [vmem:[%s228 + $0x6b0] sm:$0xff]
        %v1473 = vld [vmem:[%s228 + $0x6b8] sm:$0xff]
        %v1474 = vld [vmem:[%s228 + $0x6c0] sm:$0xff]
        %v1475 = vld [vmem:[%s228 + $0x6c8] sm:$0xff]
        %v1476 = vld [vmem:[%s228 + $0x6d0] sm:$0xff]
        %v1477 = vld [vmem:[%s228 + $0x6d8] sm:$0xff]
        %v1478 = vld [vmem:[%s228 + $0x6e0] sm:$0xff]
        %v1479 = vld [vmem:[%s228 + $0x6e8] sm:$0xff]
        %v1480 = vld [vmem:[%s228 + $0x6f0] sm:$0xff]
        %v1481 = vld [vmem:[%s228 + $0x6f8] sm:$0xff]
        %v1482 = vld [vmem:[%s228 + $0x700] sm:$0xff]
        %v1483 = vld [vmem:[%s228 + $0x708] sm:$0xff]
        %v1484 = vld [vmem:[%s228 + $0x710] sm:$0xff]
        %v1485 = vld [vmem:[%s228 + $0x718] sm:$0xff]
        %v1486 = vld [vmem:[%s228 + $0x720] sm:$0xff]
        %v1487 = vld [vmem:[%s228 + $0x728] sm:$0xff]
        %v1488 = vld [vmem:[%s228 + $0x730] sm:$0xff]
        %v1489 = vld [vmem:[%s228 + $0x738] sm:$0xff]
        %v1490 = vld [vmem:[%s228 + $0x740] sm:$0xff]
        %v1491 = vld [vmem:[%s228 + $0x748] sm:$0xff]
        %v1492 = vld [vmem:[%s228 + $0x750] sm:$0xff]
        %v1493 = vld [vmem:[%s228 + $0x758] sm:$0xff]
        %v1494 = vld [vmem:[%s228 + $0x760] sm:$0xff]
        %v1495 = vld [vmem:[%s228 + $0x768] sm:$0xff]
        %v1496 = vld [vmem:[%s228 + $0x770] sm:$0xff]
        %v1497 = vld [vmem:[%s228 + $0x778] sm:$0xff]
        %v1498 = vld [vmem:[%s228 + $0x780] sm:$0xff]
        %v1499 = vld [vmem:[%s228 + $0x788] sm:$0xff]
        %v1500 = vld [vmem:[%s228 + $0x790] sm:$0xff]
        %v1501 = vld [vmem:[%s228 + $0x798] sm:$0xff]
        %v1502 = vld [vmem:[%s228 + $0x7a0] sm:$0xff]
        %v1503 = vld [vmem:[%s228 + $0x7a8] sm:$0xff]
        %v1504 = vld [vmem:[%s228 + $0x7b0] sm:$0xff]
        %v1505 = vld [vmem:[%s228 + $0x7b8] sm:$0xff]
        %v1506 = vld [vmem:[%s228 + $0x7c0] sm:$0xff]
        %v1507 = vld [vmem:[%s228 + $0x7c8] sm:$0xff]
        %v1508 = vld [vmem:[%s228 + $0x7d0] sm:$0xff]
        %v1509 = vld [vmem:[%s228 + $0x7d8] sm:$0xff]
        %v1510 = vld [vmem:[%s228 + $0x7e0] sm:$0xff]
        %v1511 = vld [vmem:[%s228 + $0x7e8] sm:$0xff]
        %v1512 = vld [vmem:[%s228 + $0x7f0] sm:$0xff]
        %v1513 = vld [vmem:[%s228 + $0x7f8] sm:$0xff]
        %v1514 = vld [vmem:[%s228 + $0x800] sm:$0xff]
        %v1515 = vld [vmem:[%s228 + $0x808] sm:$0xff]
        %v1516 = vld [vmem:[%s228 + $0x810] sm:$0xff]
        %v1517 = vld [vmem:[%s228 + $0x818] sm:$0xff]
        %v1518 = vld [vmem:[%s228 + $0x820] sm:$0xff]
        %v1519 = vld [vmem:[%s228 + $0x828] sm:$0xff]
        %v1520 = vld [vmem:[%s228 + $0x830] sm:$0xff]
        %v1521 = vld [vmem:[%s228 + $0x838] sm:$0xff]
        %v1522 = vld [vmem:[%s228 + $0x840] sm:$0xff]
        %v1523 = vld [vmem:[%s228 + $0x848] sm:$0xff]
        %v1524 = vld [vmem:[%s228 + $0x850] sm:$0xff]
        %v1525 = vld [vmem:[%s228 + $0x858] sm:$0xff]
        %v1526 = vld [vmem:[%s228 + $0x860] sm:$0xff]
        %v1527 = vld [vmem:[%s228 + $0x868] sm:$0xff]
        %v1528 = vld [vmem:[%s228 + $0x870] sm:$0xff]
        %v1529 = vld [vmem:[%s228 + $0x878] sm:$0xff]
        %v1530 = vld [vmem:[%s228 + $0x880] sm:$0xff]
        %v1531 = vld [vmem:[%s228 + $0x888] sm:$0xff]
        %v1532 = vld [vmem:[%s228 + $0x890] sm:$0xff]
        %v1533 = vld [vmem:[%s228 + $0x898] sm:$0xff]
        %v1534 = vld [vmem:[%s228 + $0x8a0] sm:$0xff]
        %v1535 = vld [vmem:[%s228 + $0x8a8] sm:$0xff]
        %v1536 = vld [vmem:[%s228 + $0x8b0] sm:$0xff]
        %v1537 = vld [vmem:[%s228 + $0x8b8] sm:$0xff]
        %v1538 = vld [vmem:[%s228 + $0x8c0] sm:$0xff]
        %v1539 = vld [vmem:[%s228 + $0x8c8] sm:$0xff]
        %v1540 = vld [vmem:[%s228 + $0x8d0] sm:$0xff]
        %v1541 = vld [vmem:[%s228 + $0x8d8] sm:$0xff]
        %v1542 = vld [vmem:[%s228 + $0x8e0] sm:$0xff]
        %v1543 = vld [vmem:[%s228 + $0x8e8] sm:$0xff]
        %v1544 = vld [vmem:[%s228 + $0x8f0] sm:$0xff]
        %v1545 = vld [vmem:[%s228 + $0x8f8] sm:$0xff]
        %v1546 = vld [vmem:[%s228 + $0x900] sm:$0xff]
        %v1547 = vld [vmem:[%s228 + $0x908] sm:$0xff]
        %v1548 = vld [vmem:[%s228 + $0x910] sm:$0xff]
        %v1549 = vld [vmem:[%s228 + $0x918] sm:$0xff]
        %v1550 = vld [vmem:[%s228 + $0x920] sm:$0xff]
        %v1551 = vld [vmem:[%s228 + $0x928] sm:$0xff]
        %v1552 = vld [vmem:[%s228 + $0x930] sm:$0xff]
        %v1553 = vld [vmem:[%s228 + $0x938] sm:$0xff]
        %v1554 = vld [vmem:[%s228 + $0x940] sm:$0xff]
        %v1555 = vld [vmem:[%s228 + $0x948] sm:$0xff]
        %v1556 = vld [vmem:[%s228 + $0x950] sm:$0xff]
        %v1557 = vld [vmem:[%s228 + $0x958] sm:$0xff]
        %v1558 = vld [vmem:[%s228 + $0x960] sm:$0xff]
        %v1559 = vld [vmem:[%s228 + $0x968] sm:$0xff]
        %v1560 = vld [vmem:[%s228 + $0x970] sm:$0xff]
        %v1561 = vld [vmem:[%s228 + $0x978] sm:$0xff]
        %v1562 = vld [vmem:[%s228 + $0x980] sm:$0xff]
        %v1563 = vld [vmem:[%s228 + $0x988] sm:$0xff]
        %v1564 = vld [vmem:[%s228 + $0x990] sm:$0xff]
        %v1565 = vld [vmem:[%s228 + $0x998] sm:$0xff]
        %v1566 = vld [vmem:[%s228 + $0x9a0] sm:$0xff]
        %v1567 = vld [vmem:[%s228 + $0x9a8] sm:$0xff]
        %v1568 = vld [vmem:[%s228 + $0x9b0] sm:$0xff]
        %v1569 = vld [vmem:[%s228 + $0x9b8] sm:$0xff]
        %v1570 = vld [vmem:[%s228 + $0x9c0] sm:$0xff]
        %v1571 = vld [vmem:[%s228 + $0x9c8] sm:$0xff]
        %v1572 = vld [vmem:[%s228 + $0x9d0] sm:$0xff]
        %v1573 = vld [vmem:[%s228 + $0x9d8] sm:$0xff]
        %v1574 = vld [vmem:[%s228 + $0x9e0] sm:$0xff]
        %v1575 = vld [vmem:[%s228 + $0x9e8] sm:$0xff]
        %v1576 = vld [vmem:[%s228 + $0x9f0] sm:$0xff]
        %v1577 = vld [vmem:[%s228 + $0x9f8] sm:$0xff]
        %v1578 = vld [vmem:[%s228 + $0xa00] sm:$0xff]
        %v1579 = vld [vmem:[%s228 + $0xa08] sm:$0xff]
        %v1580 = vld [vmem:[%s228 + $0xa10] sm:$0xff]
        %v1581 = vld [vmem:[%s228 + $0xa18] sm:$0xff]
        %v1582 = vld [vmem:[%s228 + $0xa20] sm:$0xff]
        %v1583 = vld [vmem:[%s228 + $0xa28] sm:$0xff]
        %v1584 = vld [vmem:[%s228 + $0xa30] sm:$0xff]
        %v1585 = vld [vmem:[%s228 + $0xa38] sm:$0xff]
        %v1586 = vld [vmem:[%s228 + $0xa40] sm:$0xff]
        %v1587 = vld [vmem:[%s228 + $0xa48] sm:$0xff]
        %v1588 = vld [vmem:[%s228 + $0xa50] sm:$0xff]
        %v1589 = vld [vmem:[%s228 + $0xa58] sm:$0xff]
        %v1590 = vld [vmem:[%s228 + $0xa60] sm:$0xff]
        %v1591 = vld [vmem:[%s228 + $0xa68] sm:$0xff]
        %v1592 = vld [vmem:[%s228 + $0xa70] sm:$0xff]
        %v1593 = vld [vmem:[%s228 + $0xa78] sm:$0xff]
        %v1594 = vld [vmem:[%s228 + $0xa80] sm:$0xff]
        %v1595 = vld [vmem:[%s228 + $0xa88] sm:$0xff]
        %v1596 = vld [vmem:[%s228 + $0xa90] sm:$0xff]
        %v1597 = vld [vmem:[%s228 + $0xa98] sm:$0xff]
        %v1598 = vld [vmem:[%s228 + $0xaa0] sm:$0xff]
        %v1599 = vld [vmem:[%s228 + $0xaa8] sm:$0xff]
        %v1600 = vld [vmem:[%s228 + $0xab0] sm:$0xff]
        %v1601 = vld [vmem:[%s228 + $0xab8] sm:$0xff]
        %v1602 = vld [vmem:[%s228 + $0xac0] sm:$0xff]
        %v1603 = vld [vmem:[%s228 + $0xac8] sm:$0xff]
        %v1604 = vld [vmem:[%s228 + $0xad0] sm:$0xff]
        %v1605 = vld [vmem:[%s228 + $0xad8] sm:$0xff]
        %v1606 = vld [vmem:[%s228 + $0xae0] sm:$0xff]
        %v1607 = vld [vmem:[%s228 + $0xae8] sm:$0xff]
        %v1608 = vld [vmem:[%s228 + $0xaf0] sm:$0xff]
        %v1609 = vld [vmem:[%s228 + $0xaf8] sm:$0xff]
        %v1610 = vld [vmem:[%s228 + $0xb00] sm:$0xff]
        %v1611 = vld [vmem:[%s228 + $0xb08] sm:$0xff]
        %v1612 = vld [vmem:[%s228 + $0xb10] sm:$0xff]
        %v1613 = vld [vmem:[%s228 + $0xb18] sm:$0xff]
        %v1614 = vld [vmem:[%s228 + $0xb20] sm:$0xff]
        %v1615 = vld [vmem:[%s228 + $0xb28] sm:$0xff]
        %v1616 = vld [vmem:[%s228 + $0xb30] sm:$0xff]
        %v1617 = vld [vmem:[%s228 + $0xb38] sm:$0xff]
        %v1618 = vld [vmem:[%s228 + $0xb40] sm:$0xff]
        %v1619 = vld [vmem:[%s228 + $0xb48] sm:$0xff]
        %v1620 = vld [vmem:[%s228 + $0xb50] sm:$0xff]
        %v1621 = vld [vmem:[%s228 + $0xb58] sm:$0xff]
        %v1622 = vld [vmem:[%s228 + $0xb60] sm:$0xff]
        %v1623 = vld [vmem:[%s228 + $0xb68] sm:$0xff]
        %v1624 = vld [vmem:[%s228 + $0xb70] sm:$0xff]
        %v1625 = vld [vmem:[%s228 + $0xb78] sm:$0xff]
        %v1626 = vld [vmem:[%s228 + $0xb80] sm:$0xff]
        %v1627 = vld [vmem:[%s228 + $0xb88] sm:$0xff]
        %v1628 = vld [vmem:[%s228 + $0xb90] sm:$0xff]
        %v1629 = vld [vmem:[%s228 + $0xb98] sm:$0xff]
        %v1630 = vld [vmem:[%s228 + $0xba0] sm:$0xff]
        %v1631 = vld [vmem:[%s228 + $0xba8] sm:$0xff]
        %v1632 = vld [vmem:[%s228 + $0xbb0] sm:$0xff]
        %v1633 = vld [vmem:[%s228 + $0xbb8] sm:$0xff]
        %v1634 = vld [vmem:[%s228 + $0xbc0] sm:$0xff]
        %v1635 = vld [vmem:[%s228 + $0xbc8] sm:$0xff]
        %v1636 = vld [vmem:[%s228 + $0xbd0] sm:$0xff]
        %v1637 = vld [vmem:[%s228 + $0xbd8] sm:$0xff]
        %v1638 = vld [vmem:[%s228 + $0xbe0] sm:$0xff]
        %v1639 = vld [vmem:[%s228 + $0xbe8] sm:$0xff]
        %v1640 = vld [vmem:[%s228 + $0xbf0] sm:$0xff]
        %v1641 = vld [vmem:[%s228 + $0xbf8] sm:$0xff]
        %v1642 = vld [vmem:[%s228 + $0xc00] sm:$0xff]
        %v1643 = vld [vmem:[%s228 + $0xc08] sm:$0xff]
        %v1644 = vld [vmem:[%s228 + $0xc10] sm:$0xff]
        %v1645 = vld [vmem:[%s228 + $0xc18] sm:$0xff]
        %v1646 = vld [vmem:[%s228 + $0xc20] sm:$0xff]
        %v1647 = vld [vmem:[%s228 + $0xc28] sm:$0xff]
        %v1648 = vld [vmem:[%s228 + $0xc30] sm:$0xff]
        %v1649 = vld [vmem:[%s228 + $0xc38] sm:$0xff]
        %v1650 = vld [vmem:[%s228 + $0xc40] sm:$0xff]
        %v1651 = vld [vmem:[%s228 + $0xc48] sm:$0xff]
        %v1652 = vld [vmem:[%s228 + $0xc50] sm:$0xff]
        %v1653 = vld [vmem:[%s228 + $0xc58] sm:$0xff]
        %v1654 = vld [vmem:[%s228 + $0xc60] sm:$0xff]
        %v1655 = vld [vmem:[%s228 + $0xc68] sm:$0xff]
        %v1656 = vld [vmem:[%s228 + $0xc70] sm:$0xff]
        %v1657 = vld [vmem:[%s228 + $0xc78] sm:$0xff]
        %v1658 = vld [vmem:[%s228 + $0xc80] sm:$0xff]
        %v1659 = vld [vmem:[%s228 + $0xc88] sm:$0xff]
        %v1660 = vld [vmem:[%s228 + $0xc90] sm:$0xff]
        %v1661 = vld [vmem:[%s228 + $0xc98] sm:$0xff]
        %v1662 = vld [vmem:[%s228 + $0xca0] sm:$0xff]
        %v1663 = vld [vmem:[%s228 + $0xca8] sm:$0xff]
        %v1664 = vld [vmem:[%s228 + $0xcb0] sm:$0xff]
        %v1665 = vld [vmem:[%s228 + $0xcb8] sm:$0xff]
        %v1666 = vld [vmem:[%s228 + $0xcc0] sm:$0xff]
        %v1667 = vld [vmem:[%s228 + $0xcc8] sm:$0xff]
        %v1668 = vld [vmem:[%s228 + $0xcd0] sm:$0xff]
        %v1669 = vld [vmem:[%s228 + $0xcd8] sm:$0xff]
        %v1670 = vld [vmem:[%s228 + $0xce0] sm:$0xff]
        %v1671 = vld [vmem:[%s228 + $0xce8] sm:$0xff]
        %v1672 = vld [vmem:[%s228 + $0xcf0] sm:$0xff]
        %v1673 = vld [vmem:[%s228 + $0xcf8] sm:$0xff]
        %v1674 = vld [vmem:[%s228 + $0xd00] sm:$0xff]
        %v1675 = vld [vmem:[%s228 + $0xd08] sm:$0xff]
        %v1676 = vld [vmem:[%s228 + $0xd10] sm:$0xff]
        %v1677 = vld [vmem:[%s228 + $0xd18] sm:$0xff]
        %v1678 = vld [vmem:[%s228 + $0xd20] sm:$0xff]
        %v1679 = vld [vmem:[%s228 + $0xd28] sm:$0xff]
        %v1680 = vld [vmem:[%s228 + $0xd30] sm:$0xff]
        %v1681 = vld [vmem:[%s228 + $0xd38] sm:$0xff]
        %v1682 = vld [vmem:[%s228 + $0xd40] sm:$0xff]
        %v1683 = vld [vmem:[%s228 + $0xd48] sm:$0xff]
        %v1684 = vld [vmem:[%s228 + $0xd50] sm:$0xff]
        %v1685 = vld [vmem:[%s228 + $0xd58] sm:$0xff]
        %v1686 = vld [vmem:[%s228 + $0xd60] sm:$0xff]
        %v1687 = vld [vmem:[%s228 + $0xd68] sm:$0xff]
        %v1688 = vld [vmem:[%s228 + $0xd70] sm:$0xff]
        %v1689 = vld [vmem:[%s228 + $0xd78] sm:$0xff]
        %v1690 = vld [vmem:[%s228 + $0xd80] sm:$0xff]
        %v1691 = vld [vmem:[%s228 + $0xd88] sm:$0xff]
        %v1692 = vld [vmem:[%s228 + $0xd90] sm:$0xff]
        %v1693 = vld [vmem:[%s228 + $0xd98] sm:$0xff]
        %v1694 = vld [vmem:[%s228 + $0xda0] sm:$0xff]
        %v1695 = vld [vmem:[%s228 + $0xda8] sm:$0xff]
        %v1696 = vld [vmem:[%s228 + $0xdb0] sm:$0xff]
        %v1697 = vld [vmem:[%s228 + $0xdb8] sm:$0xff]
        %v1698 = vld [vmem:[%s228 + $0xdc0] sm:$0xff]
        %v1699 = vld [vmem:[%s228 + $0xdc8] sm:$0xff]
        %v1700 = vld [vmem:[%s228 + $0xdd0] sm:$0xff]
        %v1701 = vld [vmem:[%s228 + $0xdd8] sm:$0xff]
        %v1702 = vld [vmem:[%s228 + $0xde0] sm:$0xff]
        %v1703 = vld [vmem:[%s228 + $0xde8] sm:$0xff]
        %v1704 = vld [vmem:[%s228 + $0xdf0] sm:$0xff]
        %v1705 = vld [vmem:[%s228 + $0xdf8] sm:$0xff]
        %v1706 = vld [vmem:[%s228 + $0xe00] sm:$0xff]
        %v1707 = vld [vmem:[%s228 + $0xe08] sm:$0xff]
        %v1708 = vld [vmem:[%s228 + $0xe10] sm:$0xff]
        %v1709 = vld [vmem:[%s228 + $0xe18] sm:$0xff]
        %v1710 = vld [vmem:[%s228 + $0xe20] sm:$0xff]
        %v1711 = vld [vmem:[%s228 + $0xe28] sm:$0xff]
        %v1712 = vld [vmem:[%s228 + $0xe30] sm:$0xff]
        %v1713 = vld [vmem:[%s228 + $0xe38] sm:$0xff]
        %v1714 = vld [vmem:[%s228 + $0xe40] sm:$0xff]
        %v1715 = vld [vmem:[%s228 + $0xe48] sm:$0xff]
        %v1716 = vld [vmem:[%s228 + $0xe50] sm:$0xff]
        %v1717 = vld [vmem:[%s228 + $0xe58] sm:$0xff]
        %v1718 = vld [vmem:[%s228 + $0xe60] sm:$0xff]
        %v1719 = vld [vmem:[%s228 + $0xe68] sm:$0xff]
        %v1720 = vld [vmem:[%s228 + $0xe70] sm:$0xff]
        %v1721 = vld [vmem:[%s228 + $0xe78] sm:$0xff]
        %v1722 = vld [vmem:[%s228 + $0xe80] sm:$0xff]
        %v1723 = vld [vmem:[%s228 + $0xe88] sm:$0xff]
        %v1724 = vld [vmem:[%s228 + $0xe90] sm:$0xff]
        %v1725 = vld [vmem:[%s228 + $0xe98] sm:$0xff]
        %v1726 = vld [vmem:[%s228 + $0xea0] sm:$0xff]
        %v1727 = vld [vmem:[%s228 + $0xea8] sm:$0xff]
        %v1728 = vld [vmem:[%s228 + $0xeb0] sm:$0xff]
        %v1729 = vld [vmem:[%s228 + $0xeb8] sm:$0xff]
        %v1730 = vld [vmem:[%s228 + $0xec0] sm:$0xff]
        %v1731 = vld [vmem:[%s228 + $0xec8] sm:$0xff]
        %v1732 = vld [vmem:[%s228 + $0xed0] sm:$0xff]
        %v1733 = vld [vmem:[%s228 + $0xed8] sm:$0xff]
        %v1734 = vld [vmem:[%s228 + $0xee0] sm:$0xff]
        %v1735 = vld [vmem:[%s228 + $0xee8] sm:$0xff]
        %v1736 = vld [vmem:[%s228 + $0xef0] sm:$0xff]
        %v1737 = vld [vmem:[%s228 + $0xef8] sm:$0xff]
        %v1738 = vld [vmem:[%s228 + $0xf00] sm:$0xff]
        %v1739 = vld [vmem:[%s228 + $0xf08] sm:$0xff]
        %v1740 = vld [vmem:[%s228 + $0xf10] sm:$0xff]
        %v1741 = vld [vmem:[%s228 + $0xf18] sm:$0xff]
        %v1742 = vld [vmem:[%s228 + $0xf20] sm:$0xff]
        %v1743 = vld [vmem:[%s228 + $0xf28] sm:$0xff]
        %v1744 = vld [vmem:[%s228 + $0xf30] sm:$0xff]
        %v1745 = vld [vmem:[%s228 + $0xf38] sm:$0xff]
        %v1746 = vld [vmem:[%s228 + $0xf40] sm:$0xff]
        %v1747 = vld [vmem:[%s228 + $0xf48] sm:$0xff]
        %v1748 = vld [vmem:[%s228 + $0xf50] sm:$0xff]
        %v1749 = vld [vmem:[%s228 + $0xf58] sm:$0xff]
        %v1750 = vld [vmem:[%s228 + $0xf60] sm:$0xff]
        %v1751 = vld [vmem:[%s228 + $0xf68] sm:$0xff]
        %v1752 = vld [vmem:[%s228 + $0xf70] sm:$0xff]
        %v1753 = vld [vmem:[%s228 + $0xf78] sm:$0xff]
        %v1754 = vld [vmem:[%s228 + $0xf80] sm:$0xff]
        %v1755 = vld [vmem:[%s228 + $0xf88] sm:$0xff]
        %v1756 = vld [vmem:[%s228 + $0xf90] sm:$0xff]
        %v1757 = vld [vmem:[%s228 + $0xf98] sm:$0xff]
        %v1758 = vld [vmem:[%s228 + $0xfa0] sm:$0xff]
        %v1759 = vld [vmem:[%s228 + $0xfa8] sm:$0xff]
        %v1760 = vld [vmem:[%s228 + $0xfb0] sm:$0xff]
        %v1761 = vld [vmem:[%s228 + $0xfb8] sm:$0xff]
        %v1762 = vld [vmem:[%s228 + $0xfc0] sm:$0xff]
        %v1763 = vld [vmem:[%s228 + $0xfc8] sm:$0xff]
        %v1764 = vld [vmem:[%s228 + $0xfd0] sm:$0xff]
        %v1765 = vld [vmem:[%s228 + $0xfd8] sm:$0xff]
        %v1766 = vld [vmem:[%s228 + $0xfe0] sm:$0xff]
        %v1767 = vld [vmem:[%s228 + $0xfe8] sm:$0xff]
        %v1768 = vld [vmem:[%s228 + $0xff0] sm:$0xff]
        %v1769 = vld [vmem:[%s228 + $0xff8] sm:$0xff]
        %v1770 = vld [vmem:[%s228 + $0x1000] sm:$0xff]
        %v1771 = vld [vmem:[%s228 + $0x1008] sm:$0xff]
        %v1772 = vld [vmem:[%s228 + $0x1010] sm:$0xff]
        %v1773 = vld [vmem:[%s228 + $0x1018] sm:$0xff]
        %v1774 = vld [vmem:[%s228 + $0x1020] sm:$0xff]
        %v1775 = vld [vmem:[%s228 + $0x1028] sm:$0xff]
        %v1776 = vld [vmem:[%s228 + $0x1030] sm:$0xff]
        %v1777 = vld [vmem:[%s228 + $0x1038] sm:$0xff]
        %v1778 = vld [vmem:[%s228 + $0x1040] sm:$0xff]
        %v1779 = vld [vmem:[%s228 + $0x1048] sm:$0xff]
        %v1780 = vld [vmem:[%s228 + $0x1050] sm:$0xff]
        %v1781 = vld [vmem:[%s228 + $0x1058] sm:$0xff]
        %v1782 = vld [vmem:[%s228 + $0x1060] sm:$0xff]
        %v1783 = vld [vmem:[%s228 + $0x1068] sm:$0xff]
        %v1784 = vld [vmem:[%s228 + $0x1070] sm:$0xff]
        %v1785 = vld [vmem:[%s228 + $0x1078] sm:$0xff]
        %v1786 = vld [vmem:[%s228 + $0x1080] sm:$0xff]
        %v1787 = vld [vmem:[%s228 + $0x1088] sm:$0xff]
        %v1788 = vld [vmem:[%s228 + $0x1090] sm:$0xff]
        %v1789 = vld [vmem:[%s228 + $0x1098] sm:$0xff]
        %v1790 = vld [vmem:[%s228 + $0x10a0] sm:$0xff]
        %v1791 = vld [vmem:[%s228 + $0x10a8] sm:$0xff]
        %v1792 = vld [vmem:[%s228 + $0x10b0] sm:$0xff]
        %v1793 = vld [vmem:[%s228 + $0x10b8] sm:$0xff]
        %v1794 = vld [vmem:[%s228 + $0x10c0] sm:$0xff]
        %v1795 = vld [vmem:[%s228 + $0x10c8] sm:$0xff]
        %v1796 = vld [vmem:[%s228 + $0x10d0] sm:$0xff]
        %v1797 = vld [vmem:[%s228 + $0x10d8] sm:$0xff]
        %v1798 = vld [vmem:[%s228 + $0x10e0] sm:$0xff]
        %v1799 = vld [vmem:[%s228 + $0x10e8] sm:$0xff]
        %v1800 = vld [vmem:[%s228 + $0x10f0] sm:$0xff]
        %v1801 = vld [vmem:[%s228 + $0x10f8] sm:$0xff]
        %v1802 = vld [vmem:[%s228 + $0x1100] sm:$0xff]
        %v1803 = vld [vmem:[%s228 + $0x1108] sm:$0xff]
        %v1804 = vld [vmem:[%s228 + $0x1110] sm:$0xff]
        %v1805 = vld [vmem:[%s228 + $0x1118] sm:$0xff]
        %v1806 = vld [vmem:[%s228 + $0x1120] sm:$0xff]
        %v1807 = vld [vmem:[%s228 + $0x1128] sm:$0xff]
        %v1808 = vld [vmem:[%s228 + $0x1130] sm:$0xff]
        %v1809 = vld [vmem:[%s228 + $0x1138] sm:$0xff]
        %v1810 = vld [vmem:[%s228 + $0x1140] sm:$0xff]
        %v1811 = vld [vmem:[%s228 + $0x1148] sm:$0xff]
        %v1812 = vld [vmem:[%s228 + $0x1150] sm:$0xff]
        %v1813 = vld [vmem:[%s228 + $0x1158] sm:$0xff]
        %v1814 = vld [vmem:[%s228 + $0x1160] sm:$0xff]
        %v1815 = vld [vmem:[%s228 + $0x1168] sm:$0xff]
        %v1816 = vld [vmem:[%s228 + $0x1170] sm:$0xff]
        %v1817 = vld [vmem:[%s228 + $0x1178] sm:$0xff]
        %v1818 = vld [vmem:[%s228 + $0x1180] sm:$0xff]
        %v1819 = vld [vmem:[%s228 + $0x1188] sm:$0xff]
        %v1820 = vld [vmem:[%s228 + $0x1190] sm:$0xff]
        %v1821 = vld [vmem:[%s228 + $0x1198] sm:$0xff]
        %v1822 = vld [vmem:[%s228 + $0x11a0] sm:$0xff]
        %v1823 = vld [vmem:[%s228 + $0x11a8] sm:$0xff]
        %v1824 = vld [vmem:[%s228 + $0x11b0] sm:$0xff]
        %v1825 = vld [vmem:[%s228 + $0x11b8] sm:$0xff]
        %v1826 = vld [vmem:[%s228 + $0x11c0] sm:$0xff]
        %v1827 = vld [vmem:[%s228 + $0x11c8] sm:$0xff]
        %v1828 = vld [vmem:[%s228 + $0x11d0] sm:$0xff]
        %v1829 = vld [vmem:[%s228 + $0x11d8] sm:$0xff]
        %v1830 = vld [vmem:[%s228 + $0x11e0] sm:$0xff]
        %v1831 = vld [vmem:[%s228 + $0x11e8] sm:$0xff]
        %v1832 = vld [vmem:[%s228 + $0x11f0] sm:$0xff]
        %v1833 = vld [vmem:[%s228 + $0x11f8] sm:$0xff]
        %v1834 = vld [vmem:[%s228 + $0x1200] sm:$0xff]
        %v1835 = vld [vmem:[%s228 + $0x1208] sm:$0xff]
        %v1836 = vld [vmem:[%s228 + $0x1210] sm:$0xff]
        %v1837 = vld [vmem:[%s228 + $0x1218] sm:$0xff]
        %v1838 = vld [vmem:[%s228 + $0x1220] sm:$0xff]
        %v1839 = vld [vmem:[%s228 + $0x1228] sm:$0xff]
        %v1840 = vld [vmem:[%s228 + $0x1230] sm:$0xff]
        %v1841 = vld [vmem:[%s228 + $0x1238] sm:$0xff]
        %v1842 = vld [vmem:[%s228 + $0x1240] sm:$0xff]
        %v1843 = vld [vmem:[%s228 + $0x1248] sm:$0xff]
        %v1844 = vld [vmem:[%s228 + $0x1250] sm:$0xff]
        %v1845 = vld [vmem:[%s228 + $0x1258] sm:$0xff]
        %v1846 = vld [vmem:[%s228 + $0x1260] sm:$0xff]
        %v1847 = vld [vmem:[%s228 + $0x1268] sm:$0xff]
        %v1848 = vld [vmem:[%s228 + $0x1270] sm:$0xff]
        %v1849 = vld [vmem:[%s228 + $0x1278] sm:$0xff]
        %v1850 = vld [vmem:[%s228 + $0x1280] sm:$0xff]
        %v1851 = vld [vmem:[%s228 + $0x1288] sm:$0xff]
        %v1852 = vld [vmem:[%s228 + $0x1290] sm:$0xff]
        %v1853 = vld [vmem:[%s228 + $0x1298] sm:$0xff]
        %v1854 = vld [vmem:[%s228 + $0x12a0] sm:$0xff]
        %v1855 = vld [vmem:[%s228 + $0x12a8] sm:$0xff]
        %v1856 = vld [vmem:[%s228 + $0x12b0] sm:$0xff]
        %v1857 = vld [vmem:[%s228 + $0x12b8] sm:$0xff]
        %v1858 = vld [vmem:[%s228 + $0x12c0] sm:$0xff]
        %v1859 = vld [vmem:[%s228 + $0x12c8] sm:$0xff]
        %v1860 = vld [vmem:[%s228 + $0x12d0] sm:$0xff]
        %v1861 = vld [vmem:[%s228 + $0x12d8] sm:$0xff]
        %v1862 = vld [vmem:[%s228 + $0x12e0] sm:$0xff]
        %v1863 = vld [vmem:[%s228 + $0x12e8] sm:$0xff]
        %v1864 = vld [vmem:[%s228 + $0x12f0] sm:$0xff]
        %v1865 = vld [vmem:[%s228 + $0x12f8] sm:$0xff]
        %v1866 = vld [vmem:[%s228 + $0x1300] sm:$0xff]
        %v1867 = vld [vmem:[%s228 + $0x1308] sm:$0xff]
        %v1868 = vld [vmem:[%s228 + $0x1310] sm:$0xff]
        %v1869 = vld [vmem:[%s228 + $0x1318] sm:$0xff]
        %v1870 = vld [vmem:[%s228 + $0x1320] sm:$0xff]
        %v1871 = vld [vmem:[%s228 + $0x1328] sm:$0xff]
        %v1872 = vld [vmem:[%s228 + $0x1330] sm:$0xff]
        %v1873 = vld [vmem:[%s228 + $0x1338] sm:$0xff]
        %v1874 = vld [vmem:[%s228 + $0x1340] sm:$0xff]
        %v1875 = vld [vmem:[%s228 + $0x1348] sm:$0xff]
        %v1876 = vld [vmem:[%s228 + $0x1350] sm:$0xff]
        %v1877 = vld [vmem:[%s228 + $0x1358] sm:$0xff]
        %v1878 = vld [vmem:[%s228 + $0x1360] sm:$0xff]
        %v1879 = vld [vmem:[%s228 + $0x1368] sm:$0xff]
        %v1880 = vld [vmem:[%s228 + $0x1370] sm:$0xff]
        %v1881 = vld [vmem:[%s228 + $0x1378] sm:$0xff]
        %v1882 = vld [vmem:[%s228 + $0x1380] sm:$0xff]
        %v1883 = vld [vmem:[%s228 + $0x1388] sm:$0xff]
        %v1884 = vld [vmem:[%s228 + $0x1390] sm:$0xff]
        %v1885 = vld [vmem:[%s228 + $0x1398] sm:$0xff]
        %v1886 = vld [vmem:[%s228 + $0x13a0] sm:$0xff]
        %v1887 = vld [vmem:[%s228 + $0x13a8] sm:$0xff]
        %v1888 = vld [vmem:[%s228 + $0x13b0] sm:$0xff]
        %v1889 = vld [vmem:[%s228 + $0x13b8] sm:$0xff]
        %v1890 = vld [vmem:[%s228 + $0x13c0] sm:$0xff]
        %v1891 = vld [vmem:[%s228 + $0x13c8] sm:$0xff]
        %v1892 = vld [vmem:[%s228 + $0x13d0] sm:$0xff]
        %v1893 = vld [vmem:[%s228 + $0x13d8] sm:$0xff]
        %v1894 = vld [vmem:[%s228 + $0x13e0] sm:$0xff]
        %v1895 = vld [vmem:[%s228 + $0x13e8] sm:$0xff]
        %v1896 = vld [vmem:[%s228 + $0x13f0] sm:$0xff]
        %v1897 = vld [vmem:[%s228 + $0x13f8] sm:$0xff]
        %v1898 = vld [vmem:[%s228 + $0x1400] sm:$0xff]
        %v1899 = vld [vmem:[%s228 + $0x1408] sm:$0xff]
        %v1900 = vld [vmem:[%s228 + $0x1410] sm:$0xff]
        %v1901 = vld [vmem:[%s228 + $0x1418] sm:$0xff]
        %v1902 = vld [vmem:[%s228 + $0x1420] sm:$0xff]
        %v1903 = vld [vmem:[%s228 + $0x1428] sm:$0xff]
        %v1904 = vld [vmem:[%s228 + $0x1430] sm:$0xff]
        %v1905 = vld [vmem:[%s228 + $0x1438] sm:$0xff]
        %v1906 = vld [vmem:[%s228 + $0x1440] sm:$0xff]
        %v1907 = vld [vmem:[%s228 + $0x1448] sm:$0xff]
        %v1908 = vld [vmem:[%s228 + $0x1450] sm:$0xff]
        %v1909 = vld [vmem:[%s228 + $0x1458] sm:$0xff]
        %v1910 = vld [vmem:[%s228 + $0x1460] sm:$0xff]
        %v1911 = vld [vmem:[%s228 + $0x1468] sm:$0xff]
        %v1912 = vld [vmem:[%s228 + $0x1470] sm:$0xff]
        %v1913 = vld [vmem:[%s228 + $0x1478] sm:$0xff]
        %v1914 = vld [vmem:[%s228 + $0x1480] sm:$0xff]
        %v1915 = vld [vmem:[%s228 + $0x1488] sm:$0xff]
        %v1916 = vld [vmem:[%s228 + $0x1490] sm:$0xff]
        %v1917 = vld [vmem:[%s228 + $0x1498] sm:$0xff]
        %v1918 = vld [vmem:[%s228 + $0x14a0] sm:$0xff]
        %v1919 = vld [vmem:[%s228 + $0x14a8] sm:$0xff]
        %v1920 = vld [vmem:[%s228 + $0x14b0] sm:$0xff]
        %v1921 = vld [vmem:[%s228 + $0x14b8] sm:$0xff]
        %v1922 = vld [vmem:[%s228 + $0x14c0] sm:$0xff]
        %v1923 = vld [vmem:[%s228 + $0x14c8] sm:$0xff]
        %v1924 = vld [vmem:[%s228 + $0x14d0] sm:$0xff]
        %v1925 = vld [vmem:[%s228 + $0x14d8] sm:$0xff]
        %v1926 = vld [vmem:[%s228 + $0x14e0] sm:$0xff]
        %v1927 = vld [vmem:[%s228 + $0x14e8] sm:$0xff]
        %v1928 = vld [vmem:[%s228 + $0x14f0] sm:$0xff]
        %v1929 = vld [vmem:[%s228 + $0x14f8] sm:$0xff]
        %v1930 = vld [vmem:[%s228 + $0x1500] sm:$0xff]
        %v1931 = vld [vmem:[%s228 + $0x1508] sm:$0xff]
        %v1932 = vld [vmem:[%s228 + $0x1510] sm:$0xff]
        %v1933 = vld [vmem:[%s228 + $0x1518] sm:$0xff]
        %v1934 = vld [vmem:[%s228 + $0x1520] sm:$0xff]
        %v1935 = vld [vmem:[%s228 + $0x1528] sm:$0xff]
        %v1936 = vld [vmem:[%s228 + $0x1530] sm:$0xff]
        %v1937 = vld [vmem:[%s228 + $0x1538] sm:$0xff]
        %v1938 = vld [vmem:[%s228 + $0x1540] sm:$0xff]
        %v1939 = vld [vmem:[%s228 + $0x1548] sm:$0xff]
        %v1940 = vld [vmem:[%s228 + $0x1550] sm:$0xff]
        %v1941 = vld [vmem:[%s228 + $0x1558] sm:$0xff]
        %v1942 = vld [vmem:[%s228 + $0x1560] sm:$0xff]
        %v1943 = vld [vmem:[%s228 + $0x1568] sm:$0xff]
        %v1944 = vld [vmem:[%s228 + $0x1570] sm:$0xff]
        %v1945 = vld [vmem:[%s228 + $0x1578] sm:$0xff]
        %v1946 = vld [vmem:[%s228 + $0x1580] sm:$0xff]
        %v1947 = vld [vmem:[%s228 + $0x1588] sm:$0xff]
        %v1948 = vld [vmem:[%s228 + $0x1590] sm:$0xff]
        %v1949 = vld [vmem:[%s228 + $0x1598] sm:$0xff]
        %v1950 = vld [vmem:[%s228 + $0x15a0] sm:$0xff]
        %v1951 = vld [vmem:[%s228 + $0x15a8] sm:$0xff]
        %v1952 = vld [vmem:[%s228 + $0x15b0] sm:$0xff]
        %v1953 = vld [vmem:[%s228 + $0x15b8] sm:$0xff]
        %v1954 = vld [vmem:[%s228 + $0x15c0] sm:$0xff]
        %v1955 = vld [vmem:[%s228 + $0x15c8] sm:$0xff]
        %v1956 = vld [vmem:[%s228 + $0x15d0] sm:$0xff]
        %v1957 = vld [vmem:[%s228 + $0x15d8] sm:$0xff]
        %v1958 = vld [vmem:[%s228 + $0x15e0] sm:$0xff]
        %v1959 = vld [vmem:[%s228 + $0x15e8] sm:$0xff]
        %v1960 = vld [vmem:[%s228 + $0x15f0] sm:$0xff]
        %v1961 = vld [vmem:[%s228 + $0x15f8] sm:$0xff]
        %v1962 = vld [vmem:[%s228 + $0x1600] sm:$0xff]
        %v1963 = vld [vmem:[%s228 + $0x1608] sm:$0xff]
        %v1964 = vld [vmem:[%s228 + $0x1610] sm:$0xff]
        %v1965 = vld [vmem:[%s228 + $0x1618] sm:$0xff]
        %v1966 = vld [vmem:[%s228 + $0x1620] sm:$0xff]
        %v1967 = vld [vmem:[%s228 + $0x1628] sm:$0xff]
        %v1968 = vld [vmem:[%s228 + $0x1630] sm:$0xff]
        %v1969 = vld [vmem:[%s228 + $0x1638] sm:$0xff]
        %v1970 = vld [vmem:[%s228 + $0x1640] sm:$0xff]
        %v1971 = vld [vmem:[%s228 + $0x1648] sm:$0xff]
        %v1972 = vld [vmem:[%s228 + $0x1650] sm:$0xff]
        %v1973 = vld [vmem:[%s228 + $0x1658] sm:$0xff]
        %v1974 = vld [vmem:[%s228 + $0x1660] sm:$0xff]
        %v1975 = vld [vmem:[%s228 + $0x1668] sm:$0xff]
        %v1976 = vld [vmem:[%s228 + $0x1670] sm:$0xff]
        %v1977 = vld [vmem:[%s228 + $0x1678] sm:$0xff]
        %v1978 = vld [vmem:[%s228 + $0x1680] sm:$0xff]
        %v1979 = vld [vmem:[%s228 + $0x1688] sm:$0xff]
        %v1980 = vld [vmem:[%s228 + $0x1690] sm:$0xff]
        %v1981 = vld [vmem:[%s228 + $0x1698] sm:$0xff]
        %v1982 = vld [vmem:[%s228 + $0x16a0] sm:$0xff]
        %v1983 = vld [vmem:[%s228 + $0x16a8] sm:$0xff]
        %v1984 = vld [vmem:[%s228 + $0x16b0] sm:$0xff]
        %v1985 = vld [vmem:[%s228 + $0x16b8] sm:$0xff]
        %v1986 = vld [vmem:[%s228 + $0x16c0] sm:$0xff]
        %v1987 = vld [vmem:[%s228 + $0x16c8] sm:$0xff]
        %v1988 = vld [vmem:[%s228 + $0x16d0] sm:$0xff]
        %v1989 = vld [vmem:[%s228 + $0x16d8] sm:$0xff]
        %v1990 = vld [vmem:[%s228 + $0x16e0] sm:$0xff]
        %v1991 = vld [vmem:[%s228 + $0x16e8] sm:$0xff]
        %v1992 = vld [vmem:[%s228 + $0x16f0] sm:$0xff]
        %v1993 = vld [vmem:[%s228 + $0x16f8] sm:$0xff]
        %v1994 = vld [vmem:[%s228 + $0x1700] sm:$0xff]
        %v1995 = vld [vmem:[%s228 + $0x1708] sm:$0xff]
        %v1996 = vld [vmem:[%s228 + $0x1710] sm:$0xff]
        %v1997 = vld [vmem:[%s228 + $0x1718] sm:$0xff]
        %v1998 = vld [vmem:[%s228 + $0x1720] sm:$0xff]
        %v1999 = vld [vmem:[%s228 + $0x1728] sm:$0xff]
        %v2000 = vld [vmem:[%s228 + $0x1730] sm:$0xff]
        %v2001 = vld [vmem:[%s228 + $0x1738] sm:$0xff]
        %v2002 = vld [vmem:[%s228 + $0x1740] sm:$0xff]
        %v2003 = vld [vmem:[%s228 + $0x1748] sm:$0xff]
        %v2004 = vld [vmem:[%s228 + $0x1750] sm:$0xff]
        %v2005 = vld [vmem:[%s228 + $0x1758] sm:$0xff]
        %v2006 = vld [vmem:[%s228 + $0x1760] sm:$0xff]
        %v2007 = vld [vmem:[%s228 + $0x1768] sm:$0xff]
        %v2008 = vld [vmem:[%s228 + $0x1770] sm:$0xff]
        %v2009 = vld [vmem:[%s228 + $0x1778] sm:$0xff]
        %v2010 = vld [vmem:[%s228 + $0x1780] sm:$0xff]
        %v2011 = vld [vmem:[%s228 + $0x1788] sm:$0xff]
        %v2012 = vld [vmem:[%s228 + $0x1790] sm:$0xff]
        %v2013 = vld [vmem:[%s228 + $0x1798] sm:$0xff]
        %v2014 = vld [vmem:[%s228 + $0x17a0] sm:$0xff]
        %v2015 = vld [vmem:[%s228 + $0x17a8] sm:$0xff]
        %v2016 = vld [vmem:[%s228 + $0x17b0] sm:$0xff]
        %v2017 = vld [vmem:[%s228 + $0x17b8] sm:$0xff]
        %v2018 = vld [vmem:[%s228 + $0x17c0] sm:$0xff]
        %v2019 = vld [vmem:[%s228 + $0x17c8] sm:$0xff]
        %v2020 = vld [vmem:[%s228 + $0x17d0] sm:$0xff]
        %v2021 = vld [vmem:[%s228 + $0x17d8] sm:$0xff]
        %v2022 = vld [vmem:[%s228 + $0x17e0] sm:$0xff]
        %v2023 = vld [vmem:[%s228 + $0x17e8] sm:$0xff]
        %v2024 = vld [vmem:[%s228 + $0x17f0] sm:$0xff]
        %v2025 = vld [vmem:[%s228 + $0x17f8] sm:$0xff]
        %v2026 = vld [vmem:[%s228 + $0x1800] sm:$0xff]
        %v2027 = vld [vmem:[%s228 + $0x1808] sm:$0xff]
        %v2028 = vld [vmem:[%s228 + $0x1810] sm:$0xff]
        %v2029 = vld [vmem:[%s228 + $0x1818] sm:$0xff]
        %v2030 = vld [vmem:[%s228 + $0x1820] sm:$0xff]
        %v2031 = vld [vmem:[%s228 + $0x1828] sm:$0xff]
        %v2032 = vld [vmem:[%s228 + $0x1830] sm:$0xff]
        %v2033 = vld [vmem:[%s228 + $0x1838] sm:$0xff]
        %v2034 = vld [vmem:[%s228 + $0x1840] sm:$0xff]
        %v2035 = vld [vmem:[%s228 + $0x1848] sm:$0xff]
        %v2036 = vld [vmem:[%s228 + $0x1850] sm:$0xff]
        %v2037 = vld [vmem:[%s228 + $0x1858] sm:$0xff]
        %v2038 = vld [vmem:[%s228 + $0x1860] sm:$0xff]
        %v2039 = vld [vmem:[%s228 + $0x1868] sm:$0xff]
        %v2040 = vld [vmem:[%s228 + $0x1870] sm:$0xff]
        %v2041 = vld [vmem:[%s228 + $0x1878] sm:$0xff]
        %v2042 = vld [vmem:[%s228 + $0x1880] sm:$0xff]
        %v2043 = vld [vmem:[%s228 + $0x1888] sm:$0xff]
        %v2044 = vld [vmem:[%s228 + $0x1890] sm:$0xff]
        %v2045 = vld [vmem:[%s228 + $0x1898] sm:$0xff]
        %v2046 = vld [vmem:[%s228 + $0x18a0] sm:$0xff]
        %v2047 = vld [vmem:[%s228 + $0x18a8] sm:$0xff]
        %v2048 = vld [vmem:[%s228 + $0x18b0] sm:$0xff]
        %v2049 = vld [vmem:[%s228 + $0x18b8] sm:$0xff]
        %v2050 = vld [vmem:[%s228 + $0x18c0] sm:$0xff]
        %v2051 = vld [vmem:[%s228 + $0x18c8] sm:$0xff]
        %v2052 = vld [vmem:[%s228 + $0x18d0] sm:$0xff]
        %v2053 = vld [vmem:[%s228 + $0x18d8] sm:$0xff]
        %v2054 = vld [vmem:[%s228 + $0x18e0] sm:$0xff]
        %v2055 = vld [vmem:[%s228 + $0x18e8] sm:$0xff]
        %v2056 = vld [vmem:[%s228 + $0x18f0] sm:$0xff]
        %v2057 = vld [vmem:[%s228 + $0x18f8] sm:$0xff]
        %v2058 = vld [vmem:[%s228 + $0x1900] sm:$0xff]
        %v2059 = vld [vmem:[%s228 + $0x1908] sm:$0xff]
        %v2060 = vld [vmem:[%s228 + $0x1910] sm:$0xff]
        %v2061 = vld [vmem:[%s228 + $0x1918] sm:$0xff]
        %v2062 = vld [vmem:[%s228 + $0x1920] sm:$0xff]
        %v2063 = vld [vmem:[%s228 + $0x1928] sm:$0xff]
        %v2064 = vld [vmem:[%s228 + $0x1930] sm:$0xff]
        %v2065 = vld [vmem:[%s228 + $0x1938] sm:$0xff]
        %v2066 = vld [vmem:[%s228 + $0x1940] sm:$0xff]
        %v2067 = vld [vmem:[%s228 + $0x1948] sm:$0xff]
        %v2068 = vld [vmem:[%s228 + $0x1950] sm:$0xff]
        %v2069 = vld [vmem:[%s228 + $0x1958] sm:$0xff]
        %v2070 = vld [vmem:[%s228 + $0x1960] sm:$0xff]
        %v2071 = vld [vmem:[%s228 + $0x1968] sm:$0xff]
        %v2072 = vld [vmem:[%s228 + $0x1970] sm:$0xff]
        %v2073 = vld [vmem:[%s228 + $0x1978] sm:$0xff]
        %v2074 = vld [vmem:[%s228 + $0x1980] sm:$0xff]
        %v2075 = vld [vmem:[%s228 + $0x1988] sm:$0xff]
        %v2076 = vld [vmem:[%s228 + $0x1990] sm:$0xff]
        %v2077 = vld [vmem:[%s228 + $0x1998] sm:$0xff]
        %v2078 = vld [vmem:[%s228 + $0x19a0] sm:$0xff]
        %v2079 = vld [vmem:[%s228 + $0x19a8] sm:$0xff]
        %v2080 = vld [vmem:[%s228 + $0x19b0] sm:$0xff]
        %v2081 = vld [vmem:[%s228 + $0x19b8] sm:$0xff]
        %v2082 = vld [vmem:[%s228 + $0x19c0] sm:$0xff]
        %v2083 = vld [vmem:[%s228 + $0x19c8] sm:$0xff]
        %v2084 = vld [vmem:[%s228 + $0x19d0] sm:$0xff]
        %v2085 = vld [vmem:[%s228 + $0x19d8] sm:$0xff]
        %v2086 = vld [vmem:[%s228 + $0x19e0] sm:$0xff]
        %v2087 = vld [vmem:[%s228 + $0x19e8] sm:$0xff]
        %v2088 = vld [vmem:[%s228 + $0x19f0] sm:$0xff]
        %v2089 = vld [vmem:[%s228 + $0x19f8] sm:$0xff]
        %v2090 = vld [vmem:[%s228 + $0x1a00] sm:$0xff]
        %v2091 = vld [vmem:[%s228 + $0x1a08] sm:$0xff]
        %v2092 = vld [vmem:[%s228 + $0x1a10] sm:$0xff]
        %v2093 = vld [vmem:[%s228 + $0x1a18] sm:$0xff]
        %v2094 = vld [vmem:[%s228 + $0x1a20] sm:$0xff]
        %v2095 = vld [vmem:[%s228 + $0x1a28] sm:$0xff]
        %v2096 = vld [vmem:[%s228 + $0x1a30] sm:$0xff]
        %v2097 = vld [vmem:[%s228 + $0x1a38] sm:$0xff]
        %v2098 = vld [vmem:[%s228 + $0x1a40] sm:$0xff]
        %v2099 = vld [vmem:[%s228 + $0x1a48] sm:$0xff]
        %v2100 = vld [vmem:[%s228 + $0x1a50] sm:$0xff]
        %v2101 = vld [vmem:[%s228 + $0x1a58] sm:$0xff]
        %v2102 = vld [vmem:[%s228 + $0x1a60] sm:$0xff]
        %v2103 = vld [vmem:[%s228 + $0x1a68] sm:$0xff]
        %v2104 = vld [vmem:[%s228 + $0x1a70] sm:$0xff]
        %v2105 = vld [vmem:[%s228 + $0x1a78] sm:$0xff]
        %v2106 = vld [vmem:[%s228 + $0x1a80] sm:$0xff]
        %v2107 = vld [vmem:[%s228 + $0x1a88] sm:$0xff]
        %v2108 = vld [vmem:[%s228 + $0x1a90] sm:$0xff]
        %v2109 = vld [vmem:[%s228 + $0x1a98] sm:$0xff]
        %v2110 = vld [vmem:[%s228 + $0x1aa0] sm:$0xff]
        %v2111 = vld [vmem:[%s228 + $0x1aa8] sm:$0xff]
        %v2112 = vld [vmem:[%s228 + $0x1ab0] sm:$0xff]
        %v2113 = vld [vmem:[%s228 + $0x1ab8] sm:$0xff]
        %v2114 = vld [vmem:[%s228 + $0x1ac0] sm:$0xff]
        %v2115 = vld [vmem:[%s228 + $0x1ac8] sm:$0xff]
        %v2116 = vld [vmem:[%s228 + $0x1ad0] sm:$0xff]
        %v2117 = vld [vmem:[%s228 + $0x1ad8] sm:$0xff]
        %v2118 = vld [vmem:[%s228 + $0x1ae0] sm:$0xff]
        %v2119 = vld [vmem:[%s228 + $0x1ae8] sm:$0xff]
        %v2120 = vld [vmem:[%s228 + $0x1af0] sm:$0xff]
        %v2121 = vld [vmem:[%s228 + $0x1af8] sm:$0xff]
        %v2122 = vld [vmem:[%s228 + $0x1b00] sm:$0xff]
        %v2123 = vld [vmem:[%s228 + $0x1b08] sm:$0xff]
        %v2124 = vld [vmem:[%s228 + $0x1b10] sm:$0xff]
        %v2125 = vld [vmem:[%s228 + $0x1b18] sm:$0xff]
        %v2126 = vld [vmem:[%s228 + $0x1b20] sm:$0xff]
        %v2127 = vld [vmem:[%s228 + $0x1b28] sm:$0xff]
        %v2128 = vld [vmem:[%s228 + $0x1b30] sm:$0xff]
        %v2129 = vld [vmem:[%s228 + $0x1b38] sm:$0xff]
        %v2130 = vld [vmem:[%s228 + $0x1b40] sm:$0xff]
        %v2131 = vld [vmem:[%s228 + $0x1b48] sm:$0xff]
        %v2132 = vld [vmem:[%s228 + $0x1b50] sm:$0xff]
        %v2133 = vld [vmem:[%s228 + $0x1b58] sm:$0xff]
        %v2134 = vld [vmem:[%s228 + $0x1b60] sm:$0xff]
        %v2135 = vld [vmem:[%s228 + $0x1b68] sm:$0xff]
        %v2136 = vld [vmem:[%s228 + $0x1b70] sm:$0xff]
        %v2137 = vld [vmem:[%s228 + $0x1b78] sm:$0xff]
        %v2138 = vld [vmem:[%s228 + $0x1b80] sm:$0xff]
        %v2139 = vld [vmem:[%s228 + $0x1b88] sm:$0xff]
        %v2140 = vld [vmem:[%s228 + $0x1b90] sm:$0xff]
        %v2141 = vld [vmem:[%s228 + $0x1b98] sm:$0xff]
        %v2142 = vld [vmem:[%s228 + $0x1ba0] sm:$0xff]
        %v2143 = vld [vmem:[%s228 + $0x1ba8] sm:$0xff]
        %v2144 = vld [vmem:[%s228 + $0x1bb0] sm:$0xff]
        %v2145 = vld [vmem:[%s228 + $0x1bb8] sm:$0xff]
        %v2146 = vld [vmem:[%s228 + $0x1bc0] sm:$0xff]
        %v2147 = vld [vmem:[%s228 + $0x1bc8] sm:$0xff]
        %v2148 = vld [vmem:[%s228 + $0x1bd0] sm:$0xff]
        %v2149 = vld [vmem:[%s228 + $0x1bd8] sm:$0xff]
        %v2150 = vld [vmem:[%s228 + $0x1be0] sm:$0xff]
        %v2151 = vld [vmem:[%s228 + $0x1be8] sm:$0xff]
        %v2152 = vld [vmem:[%s228 + $0x1bf0] sm:$0xff]
        %v2153 = vld [vmem:[%s228 + $0x1bf8] sm:$0xff]
        %v2154 = vld [vmem:[%s228 + $0x1c00] sm:$0xff]
        %v2155 = vld [vmem:[%s228 + $0x1c08] sm:$0xff]
        %v2156 = vld [vmem:[%s228 + $0x1c10] sm:$0xff]
        %v2157 = vld [vmem:[%s228 + $0x1c18] sm:$0xff]
        %v2158 = vld [vmem:[%s228 + $0x1c20] sm:$0xff]
        %v2159 = vld [vmem:[%s228 + $0x1c28] sm:$0xff]
        %v2160 = vld [vmem:[%s228 + $0x1c30] sm:$0xff]
        %v2161 = vld [vmem:[%s228 + $0x1c38] sm:$0xff]
        %v2162 = vld [vmem:[%s228 + $0x1c40] sm:$0xff]
        %v2163 = vld [vmem:[%s228 + $0x1c48] sm:$0xff]
        %v2164 = vld [vmem:[%s228 + $0x1c50] sm:$0xff]
        %v2165 = vld [vmem:[%s228 + $0x1c58] sm:$0xff]
        %v2166 = vld [vmem:[%s228 + $0x1c60] sm:$0xff]
        %v2167 = vld [vmem:[%s228 + $0x1c68] sm:$0xff]
        %v2168 = vld [vmem:[%s228 + $0x1c70] sm:$0xff]
        %v2169 = vld [vmem:[%s228 + $0x1c78] sm:$0xff]
        %v2170 = vld [vmem:[%s228 + $0x1c80] sm:$0xff]
        %v2171 = vld [vmem:[%s228 + $0x1c88] sm:$0xff]
        %v2172 = vld [vmem:[%s228 + $0x1c90] sm:$0xff]
        %v2173 = vld [vmem:[%s228 + $0x1c98] sm:$0xff]
        %v2174 = vld [vmem:[%s228 + $0x1ca0] sm:$0xff]
        %v2175 = vld [vmem:[%s228 + $0x1ca8] sm:$0xff]
        %v2176 = vld [vmem:[%s228 + $0x1cb0] sm:$0xff]
        %v2177 = vld [vmem:[%s228 + $0x1cb8] sm:$0xff]
        %v2178 = vld [vmem:[%s228 + $0x1cc0] sm:$0xff]
        %v2179 = vld [vmem:[%s228 + $0x1cc8] sm:$0xff]
        %v2180 = vld [vmem:[%s228 + $0x1cd0] sm:$0xff]
        %v2181 = vld [vmem:[%s228 + $0x1cd8] sm:$0xff]
        %v2182 = vld [vmem:[%s228 + $0x1ce0] sm:$0xff]
        %v2183 = vld [vmem:[%s228 + $0x1ce8] sm:$0xff]
        %v2184 = vld [vmem:[%s228 + $0x1cf0] sm:$0xff]
        %v2185 = vld [vmem:[%s228 + $0x1cf8] sm:$0xff]
        %v2186 = vld [vmem:[%s228 + $0x1d00] sm:$0xff]
        %v2187 = vld [vmem:[%s228 + $0x1d08] sm:$0xff]
        %v2188 = vld [vmem:[%s228 + $0x1d10] sm:$0xff]
        %v2189 = vld [vmem:[%s228 + $0x1d18] sm:$0xff]
        %v2190 = vld [vmem:[%s228 + $0x1d20] sm:$0xff]
        %v2191 = vld [vmem:[%s228 + $0x1d28] sm:$0xff]
        %v2192 = vld [vmem:[%s228 + $0x1d30] sm:$0xff]
        %v2193 = vld [vmem:[%s228 + $0x1d38] sm:$0xff]
        %v2194 = vld [vmem:[%s228 + $0x1d40] sm:$0xff]
        %v2195 = vld [vmem:[%s228 + $0x1d48] sm:$0xff]
        %v2196 = vld [vmem:[%s228 + $0x1d50] sm:$0xff]
        %v2197 = vld [vmem:[%s228 + $0x1d58] sm:$0xff]
        %v2198 = vld [vmem:[%s228 + $0x1d60] sm:$0xff]
        %v2199 = vld [vmem:[%s228 + $0x1d68] sm:$0xff]
        %v2200 = vld [vmem:[%s228 + $0x1d70] sm:$0xff]
        %v2201 = vld [vmem:[%s228 + $0x1d78] sm:$0xff]
        %v2202 = vld [vmem:[%s228 + $0x1d80] sm:$0xff]
        %v2203 = vld [vmem:[%s228 + $0x1d88] sm:$0xff]
        %v2204 = vld [vmem:[%s228 + $0x1d90] sm:$0xff]
        %v2205 = vld [vmem:[%s228 + $0x1d98] sm:$0xff]
        %v2206 = vld [vmem:[%s228 + $0x1da0] sm:$0xff]
        %v2207 = vld [vmem:[%s228 + $0x1da8] sm:$0xff]
        %v2208 = vld [vmem:[%s228 + $0x1db0] sm:$0xff]
        %v2209 = vld [vmem:[%s228 + $0x1db8] sm:$0xff]
        %v2210 = vld [vmem:[%s228 + $0x1dc0] sm:$0xff]
        %v2211 = vld [vmem:[%s228 + $0x1dc8] sm:$0xff]
        %v2212 = vld [vmem:[%s228 + $0x1dd0] sm:$0xff]
        %v2213 = vld [vmem:[%s228 + $0x1dd8] sm:$0xff]
        %v2214 = vld [vmem:[%s228 + $0x1de0] sm:$0xff]
        %v2215 = vld [vmem:[%s228 + $0x1de8] sm:$0xff]
        %v2216 = vld [vmem:[%s228 + $0x1df0] sm:$0xff]
        %v2217 = vld [vmem:[%s228 + $0x1df8] sm:$0xff]
        %v2218 = vld [vmem:[%s228 + $0x1e00] sm:$0xff]
        %v2219 = vld [vmem:[%s228 + $0x1e08] sm:$0xff]
        %v2220 = vld [vmem:[%s228 + $0x1e10] sm:$0xff]
        %v2221 = vld [vmem:[%s228 + $0x1e18] sm:$0xff]
        %v2222 = vld [vmem:[%s228 + $0x1e20] sm:$0xff]
        %v2223 = vld [vmem:[%s228 + $0x1e28] sm:$0xff]
        %v2224 = vld [vmem:[%s228 + $0x1e30] sm:$0xff]
        %v2225 = vld [vmem:[%s228 + $0x1e38] sm:$0xff]
        %v2226 = vld [vmem:[%s228 + $0x1e40] sm:$0xff]
        %v2227 = vld [vmem:[%s228 + $0x1e48] sm:$0xff]
        %v2228 = vld [vmem:[%s228 + $0x1e50] sm:$0xff]
        %v2229 = vld [vmem:[%s228 + $0x1e58] sm:$0xff]
        %v2230 = vld [vmem:[%s228 + $0x1e60] sm:$0xff]
        %v2231 = vld [vmem:[%s228 + $0x1e68] sm:$0xff]
        %v2232 = vld [vmem:[%s228 + $0x1e70] sm:$0xff]
        %v2233 = vld [vmem:[%s228 + $0x1e78] sm:$0xff]
        %v2234 = vld [vmem:[%s228 + $0x1e80] sm:$0xff]
        %v2235 = vld [vmem:[%s228 + $0x1e88] sm:$0xff]
        %v2236 = vld [vmem:[%s228 + $0x1e90] sm:$0xff]
        %v2237 = vld [vmem:[%s228 + $0x1e98] sm:$0xff]
        %v2238 = vld [vmem:[%s228 + $0x1ea0] sm:$0xff]
        %v2239 = vld [vmem:[%s228 + $0x1ea8] sm:$0xff]
        %v2240 = vld [vmem:[%s228 + $0x1eb0] sm:$0xff]
        %v2241 = vld [vmem:[%s228 + $0x1eb8] sm:$0xff]
        %v2242 = vld [vmem:[%s228 + $0x1ec0] sm:$0xff]
        %v2243 = vld [vmem:[%s228 + $0x1ec8] sm:$0xff]
        %v2244 = vld [vmem:[%s228 + $0x1ed0] sm:$0xff]
        %v2245 = vld [vmem:[%s228 + $0x1ed8] sm:$0xff]
        %v2246 = vld [vmem:[%s228 + $0x1ee0] sm:$0xff]
        %v2247 = vld [vmem:[%s228 + $0x1ee8] sm:$0xff]
        %v2248 = vld [vmem:[%s228 + $0x1ef0] sm:$0xff]
        %v2249 = vld [vmem:[%s228 + $0x1ef8] sm:$0xff]
        %v2250 = vld [vmem:[%s228 + $0x1f00] sm:$0xff]
        %v2251 = vld [vmem:[%s228 + $0x1f08] sm:$0xff]
        %v2252 = vld [vmem:[%s228 + $0x1f10] sm:$0xff]
        %v2253 = vld [vmem:[%s228 + $0x1f18] sm:$0xff]
        %v2254 = vld [vmem:[%s228 + $0x1f20] sm:$0xff]
        %v2255 = vld [vmem:[%s228 + $0x1f28] sm:$0xff]
        %v2256 = vld [vmem:[%s228 + $0x1f30] sm:$0xff]
        %v2257 = vld [vmem:[%s228 + $0x1f38] sm:$0xff]
        %v2258 = vld [vmem:[%s228 + $0x1f40] sm:$0xff]
        %v2259 = vld [vmem:[%s228 + $0x1f48] sm:$0xff]
        %v2260 = vld [vmem:[%s228 + $0x1f50] sm:$0xff]
        %v2261 = vld [vmem:[%s228 + $0x1f58] sm:$0xff]
        %v2262 = vld [vmem:[%s228 + $0x1f60] sm:$0xff]
        %v2263 = vld [vmem:[%s228 + $0x1f68] sm:$0xff]
        %v2264 = vld [vmem:[%s228 + $0x1f70] sm:$0xff]
        %v2265 = vld [vmem:[%s228 + $0x1f78] sm:$0xff]
        %v2266 = vld [vmem:[%s228 + $0x1f80] sm:$0xff]
        %v2267 = vld [vmem:[%s228 + $0x1f88] sm:$0xff]
        %v2268 = vld [vmem:[%s228 + $0x1f90] sm:$0xff]
        %v2269 = vld [vmem:[%s228 + $0x1f98] sm:$0xff]
        %v2270 = vld [vmem:[%s228 + $0x1fa0] sm:$0xff]
        %v2271 = vld [vmem:[%s228 + $0x1fa8] sm:$0xff]
        %v2272 = vld [vmem:[%s228 + $0x1fb0] sm:$0xff]
        %v2273 = vld [vmem:[%s228 + $0x1fb8] sm:$0xff]
        %v2274 = vld [vmem:[%s228 + $0x1fc0] sm:$0xff]
        %v2275 = vld [vmem:[%s228 + $0x1fc8] sm:$0xff]
        %v2276 = vld [vmem:[%s228 + $0x1fd0] sm:$0xff]
        %v2277 = vld [vmem:[%s228 + $0x1fd8] sm:$0xff]
        %v2278 = vld [vmem:[%s228 + $0x1fe0] sm:$0xff]
        %v2279 = vld [vmem:[%s228 + $0x1fe8] sm:$0xff]
        %v2280 = vld [vmem:[%s228 + $0x1ff0] sm:$0xff]
        %v2281 = vld [vmem:[%s228 + $0x1ff8] sm:$0xff]
        %v2282 = vld [vmem:[%s228 + $0x2000] sm:$0xff]
        %v2283 = vld [vmem:[%s228 + $0x2008] sm:$0xff]
        %v2284 = vld [vmem:[%s228 + $0x2010] sm:$0xff]
        %v2285 = vld [vmem:[%s228 + $0x2018] sm:$0xff]
        %v2286 = vld [vmem:[%s228 + $0x2020] sm:$0xff]
        %v2287 = vld [vmem:[%s228 + $0x2028] sm:$0xff]
        %v2288 = vld [vmem:[%s228 + $0x2030] sm:$0xff]
        %v2289 = vld [vmem:[%s228 + $0x2038] sm:$0xff]
        %v2290 = vld [vmem:[%s228 + $0x2040] sm:$0xff]
        %v2291 = vld [vmem:[%s228 + $0x2048] sm:$0xff]
        %v2292 = vld [vmem:[%s228 + $0x2050] sm:$0xff]
        %v2293 = vld [vmem:[%s228 + $0x2058] sm:$0xff]
        %v2294 = vld [vmem:[%s228 + $0x2060] sm:$0xff]
        %v2295 = vld [vmem:[%s228 + $0x2068] sm:$0xff]
        %v2296 = vld [vmem:[%s228 + $0x2070] sm:$0xff]
        %v2297 = vld [vmem:[%s228 + $0x2078] sm:$0xff]
        %v2298 = vld [vmem:[%s228 + $0x2080] sm:$0xff]
        %v2299 = vld [vmem:[%s228 + $0x2088] sm:$0xff]
        %v2300 = vld [vmem:[%s228 + $0x2090] sm:$0xff]
        %v2301 = vld [vmem:[%s228 + $0x2098] sm:$0xff]
        %v2302 = vld [vmem:[%s228 + $0x20a0] sm:$0xff]
        %v2303 = vld [vmem:[%s228 + $0x20a8] sm:$0xff]
        %v2304 = vld [vmem:[%s228 + $0x20b0] sm:$0xff]
        %v2305 = vld [vmem:[%s228 + $0x20b8] sm:$0xff]
        %v2306 = vld [vmem:[%s228 + $0x20c0] sm:$0xff]
        %v2307 = vld [vmem:[%s228 + $0x20c8] sm:$0xff]
        %v2308 = vld [vmem:[%s228 + $0x20d0] sm:$0xff]
        %v2309 = vld [vmem:[%s228 + $0x20d8] sm:$0xff]
        %v2310 = vld [vmem:[%s228 + $0x20e0] sm:$0xff]
        %v2311 = vld [vmem:[%s228 + $0x20e8] sm:$0xff]
        %v2312 = vld [vmem:[%s228 + $0x20f0] sm:$0xff]
        %v2313 = vld [vmem:[%s228 + $0x20f8] sm:$0xff]
        %v2314 = vld [vmem:[%s228 + $0x2100] sm:$0xff]
        %v2315 = vld [vmem:[%s228 + $0x2108] sm:$0xff]
        %v2316 = vld [vmem:[%s228 + $0x2110] sm:$0xff]
        %v2317 = vld [vmem:[%s228 + $0x2118] sm:$0xff]
        %v2318 = vld [vmem:[%s228 + $0x2120] sm:$0xff]
        %v2319 = vld [vmem:[%s228 + $0x2128] sm:$0xff]
        %v2320 = vld [vmem:[%s228 + $0x2130] sm:$0xff]
        %v2321 = vld [vmem:[%s228 + $0x2138] sm:$0xff]
        %v2322 = vld [vmem:[%s228 + $0x2140] sm:$0xff]
        %v2323 = vld [vmem:[%s228 + $0x2148] sm:$0xff]
        %v2324 = vld [vmem:[%s228 + $0x2150] sm:$0xff]
        %v2325 = vld [vmem:[%s228 + $0x2158] sm:$0xff]
        %v2326 = vld [vmem:[%s228 + $0x2160] sm:$0xff]
        %v2327 = vld [vmem:[%s228 + $0x2168] sm:$0xff]
        %v2328 = vld [vmem:[%s228 + $0x2170] sm:$0xff]
        %v2329 = vld [vmem:[%s228 + $0x2178] sm:$0xff]
        %v2330 = vld [vmem:[%s228 + $0x2180] sm:$0xff]
        %v2331 = vld [vmem:[%s228 + $0x2188] sm:$0xff]
        %v2332 = vld [vmem:[%s228 + $0x2190] sm:$0xff]
        %v2333 = vld [vmem:[%s228 + $0x2198] sm:$0xff]
        %v2334 = vld [vmem:[%s228 + $0x21a0] sm:$0xff]
        %v2335 = vld [vmem:[%s228 + $0x21a8] sm:$0xff]
        %v2336 = vld [vmem:[%s228 + $0x21b0] sm:$0xff]
        %v2337 = vld [vmem:[%s228 + $0x21b8] sm:$0xff]
        %v2338 = vld [vmem:[%s228 + $0x21c0] sm:$0xff]
        %v2339 = vld [vmem:[%s228 + $0x21c8] sm:$0xff]
        %v2340 = vld [vmem:[%s228 + $0x21d0] sm:$0xff]
        %v2341 = vld [vmem:[%s228 + $0x21d8] sm:$0xff]
        %v2342 = vld [vmem:[%s228 + $0x21e0] sm:$0xff]
        %v2343 = vld [vmem:[%s228 + $0x21e8] sm:$0xff]
        %v2344 = vld [vmem:[%s228 + $0x21f0] sm:$0xff]
        %v2345 = vld [vmem:[%s228 + $0x21f8] sm:$0xff]
        %v2346 = vld [vmem:[%s228 + $0x2200] sm:$0xff]
        %v2347 = vld [vmem:[%s228 + $0x2208] sm:$0xff]
        %v2348 = vld [vmem:[%s228 + $0x2210] sm:$0xff]
        %v2349 = vld [vmem:[%s228 + $0x2218] sm:$0xff]
        %v2350 = vld [vmem:[%s228 + $0x2220] sm:$0xff]
        %v2351 = vld [vmem:[%s228 + $0x2228] sm:$0xff]
        %v2352 = vld [vmem:[%s228 + $0x2230] sm:$0xff]
        %v2353 = vld [vmem:[%s228 + $0x2238] sm:$0xff]
        %v2354 = vld [vmem:[%s228 + $0x2240] sm:$0xff]
        %v2355 = vld [vmem:[%s228 + $0x2248] sm:$0xff]
        %v2356 = vld [vmem:[%s228 + $0x2250] sm:$0xff]
        %v2357 = vld [vmem:[%s228 + $0x2258] sm:$0xff]
        %v2358 = vld [vmem:[%s228 + $0x2260] sm:$0xff]
        %v2359 = vld [vmem:[%s228 + $0x2268] sm:$0xff]
        %v2360 = vld [vmem:[%s228 + $0x2270] sm:$0xff]
        %v2361 = vld [vmem:[%s228 + $0x2278] sm:$0xff]
        %v2362 = vld [vmem:[%s228 + $0x2280] sm:$0xff]
        %v2363 = vld [vmem:[%s228 + $0x2288] sm:$0xff]
        %v2364 = vld [vmem:[%s228 + $0x2290] sm:$0xff]
        %v2365 = vld [vmem:[%s228 + $0x2298] sm:$0xff]
        %v2366 = vld [vmem:[%s228 + $0x22a0] sm:$0xff]
        %v2367 = vld [vmem:[%s228 + $0x22a8] sm:$0xff]
        %v2368 = vld [vmem:[%s228 + $0x22b0] sm:$0xff]
        %v2369 = vld [vmem:[%s228 + $0x22b8] sm:$0xff]
        %v2370 = vld [vmem:[%s228 + $0x22c0] sm:$0xff]
        %v2371 = vld [vmem:[%s228 + $0x22c8] sm:$0xff]
        %v2372 = vld [vmem:[%s228 + $0x22d0] sm:$0xff]
        %v2373 = vld [vmem:[%s228 + $0x22d8] sm:$0xff]
        %v2374 = vld [vmem:[%s228 + $0x22e0] sm:$0xff]
        %v2375 = vld [vmem:[%s228 + $0x22e8] sm:$0xff]
        %v2376 = vld [vmem:[%s228 + $0x22f0] sm:$0xff]
        %v2377 = vld [vmem:[%s228 + $0x22f8] sm:$0xff]
        %v2378 = vld [vmem:[%s228 + $0x2300] sm:$0xff]
        %v2379 = vld [vmem:[%s228 + $0x2308] sm:$0xff]
        %v2380 = vld [vmem:[%s228 + $0x2310] sm:$0xff]
        %v2381 = vld [vmem:[%s228 + $0x2318] sm:$0xff]
        %v2382 = vld [vmem:[%s228 + $0x2320] sm:$0xff]
        %v2383 = vld [vmem:[%s228 + $0x2328] sm:$0xff]
        %v2384 = vld [vmem:[%s228 + $0x2330] sm:$0xff]
        %v2385 = vld [vmem:[%s228 + $0x2338] sm:$0xff]
        %v2386 = vld [vmem:[%s228 + $0x2340] sm:$0xff]
        %v2387 = vld [vmem:[%s228 + $0x2348] sm:$0xff]
        %v2388 = vld [vmem:[%s228 + $0x2350] sm:$0xff]
        %v2389 = vld [vmem:[%s228 + $0x2358] sm:$0xff]
        %v2390 = vld [vmem:[%s228 + $0x2360] sm:$0xff]
        %v2391 = vld [vmem:[%s228 + $0x2368] sm:$0xff]
        %v2392 = vld [vmem:[%s228 + $0x2370] sm:$0xff]
        %v2393 = vld [vmem:[%s228 + $0x2378] sm:$0xff]
        %v2394 = vld [vmem:[%s228 + $0x2380] sm:$0xff]
        %v2395 = vld [vmem:[%s228 + $0x2388] sm:$0xff]
        %v2396 = vld [vmem:[%s228 + $0x2390] sm:$0xff]
        %v2397 = vld [vmem:[%s228 + $0x2398] sm:$0xff]
        %v2398 = vld [vmem:[%s228 + $0x23a0] sm:$0xff]
        %v2399 = vld [vmem:[%s228 + $0x23a8] sm:$0xff]
        %v2400 = vld [vmem:[%s228 + $0x23b0] sm:$0xff]
        %v2401 = vld [vmem:[%s228 + $0x23b8] sm:$0xff]
        %v2402 = vld [vmem:[%s228 + $0x23c0] sm:$0xff]
        %v2403 = vld [vmem:[%s228 + $0x23c8] sm:$0xff]
        %v2404 = vld [vmem:[%s228 + $0x23d0] sm:$0xff]
        %v2405 = vld [vmem:[%s228 + $0x23d8] sm:$0xff]
        %v2406 = vld [vmem:[%s228 + $0x23e0] sm:$0xff]
        %v2407 = vld [vmem:[%s228 + $0x23e8] sm:$0xff]
        %v2408 = vld [vmem:[%s228 + $0x23f0] sm:$0xff]
        %v2409 = vld [vmem:[%s228 + $0x23f8] sm:$0xff]
        %v2410 = vld [vmem:[%s228 + $0x2400] sm:$0xff]
        %v2411 = vld [vmem:[%s228 + $0x2408] sm:$0xff]
        %v2412 = vld [vmem:[%s228 + $0x2410] sm:$0xff]
        %v2413 = vld [vmem:[%s228 + $0x2418] sm:$0xff]
        %v2414 = vld [vmem:[%s228 + $0x2420] sm:$0xff]
        %v2415 = vld [vmem:[%s228 + $0x2428] sm:$0xff]
        %v2416 = vld [vmem:[%s228 + $0x2430] sm:$0xff]
        %v2417 = vld [vmem:[%s228 + $0x2438] sm:$0xff]
        %v2418 = vld [vmem:[%s228 + $0x2440] sm:$0xff]
        %v2419 = vld [vmem:[%s228 + $0x2448] sm:$0xff]
        %v2420 = vld [vmem:[%s228 + $0x2450] sm:$0xff]
        %v2421 = vld [vmem:[%s228 + $0x2458] sm:$0xff]
        %v2422 = vld [vmem:[%s228 + $0x2460] sm:$0xff]
        %v2423 = vld [vmem:[%s228 + $0x2468] sm:$0xff]
        %v2424 = vld [vmem:[%s228 + $0x2470] sm:$0xff]
        %v2425 = vld [vmem:[%s228 + $0x2478] sm:$0xff]
        %v2426 = vld [vmem:[%s228 + $0x2480] sm:$0xff]
        %v2427 = vld [vmem:[%s228 + $0x2488] sm:$0xff]
        %v2428 = vld [vmem:[%s228 + $0x2490] sm:$0xff]
        %v2429 = vld [vmem:[%s228 + $0x2498] sm:$0xff]
        %v2430 = vld [vmem:[%s228 + $0x24a0] sm:$0xff]
        %v2431 = vld [vmem:[%s228 + $0x24a8] sm:$0xff]
        %v2432 = vld [vmem:[%s228 + $0x24b0] sm:$0xff]
        %v2433 = vld [vmem:[%s228 + $0x24b8] sm:$0xff]
        %v2434 = vld [vmem:[%s228 + $0x24c0] sm:$0xff]
        %v2435 = vld [vmem:[%s228 + $0x24c8] sm:$0xff]
        %v2436 = vld [vmem:[%s228 + $0x24d0] sm:$0xff]
        %v2437 = vld [vmem:[%s228 + $0x24d8] sm:$0xff]
        %v2438 = vld [vmem:[%s228 + $0x24e0] sm:$0xff]
        %v2439 = vld [vmem:[%s228 + $0x24e8] sm:$0xff]
        %v2440 = vld [vmem:[%s228 + $0x24f0] sm:$0xff]
        %v2441 = vld [vmem:[%s228 + $0x24f8] sm:$0xff]
        %v2442 = vld [vmem:[%s228 + $0x2500] sm:$0xff]
        %v2443 = vld [vmem:[%s228 + $0x2508] sm:$0xff]
        %v2444 = vld [vmem:[%s228 + $0x2510] sm:$0xff]
        %v2445 = vld [vmem:[%s228 + $0x2518] sm:$0xff]
        %v2446 = vld [vmem:[%s228 + $0x2520] sm:$0xff]
        %v2447 = vld [vmem:[%s228 + $0x2528] sm:$0xff]
        %v2448 = vld [vmem:[%s228 + $0x2530] sm:$0xff]
        %v2449 = vld [vmem:[%s228 + $0x2538] sm:$0xff]
        %v2450 = vld [vmem:[%s228 + $0x2540] sm:$0xff]
        %v2451 = vld [vmem:[%s228 + $0x2548] sm:$0xff]
        %v2452 = vld [vmem:[%s228 + $0x2550] sm:$0xff]
        %v2453 = vld [vmem:[%s228 + $0x2558] sm:$0xff]
        %v2454 = vld [vmem:[%s228 + $0x2560] sm:$0xff]
        %v2455 = vld [vmem:[%s228 + $0x2568] sm:$0xff]
        %v2456 = vld [vmem:[%s228 + $0x2570] sm:$0xff]
        %v2457 = vld [vmem:[%s228 + $0x2578] sm:$0xff]
        %v2458 = vld [vmem:[%s228 + $0x2580] sm:$0xff]
        %v2459 = vld [vmem:[%s228 + $0x2588] sm:$0xff]
        %v2460 = vld [vmem:[%s228 + $0x2590] sm:$0xff]
        %v2461 = vld [vmem:[%s228 + $0x2598] sm:$0xff]
        %v2462 = vld [vmem:[%s228 + $0x25a0] sm:$0xff]
        %v2463 = vld [vmem:[%s228 + $0x25a8] sm:$0xff]
        %v2464 = vld [vmem:[%s228 + $0x25b0] sm:$0xff]
        %v2465 = vld [vmem:[%s228 + $0x25b8] sm:$0xff]
        %v2466 = vld [vmem:[%s228 + $0x25c0] sm:$0xff]
        %v2467 = vld [vmem:[%s228 + $0x25c8] sm:$0xff]
        %v2468 = vld [vmem:[%s228 + $0x25d0] sm:$0xff]
        %v2469 = vld [vmem:[%s228 + $0x25d8] sm:$0xff]
        %v2470 = vld [vmem:[%s228 + $0x25e0] sm:$0xff]
        %v2471 = vld [vmem:[%s228 + $0x25e8] sm:$0xff]
        %v2472 = vld [vmem:[%s228 + $0x25f0] sm:$0xff]
        %v2473 = vld [vmem:[%s228 + $0x25f8] sm:$0xff]
        %v2474 = vld [vmem:[%s228 + $0x2600] sm:$0xff]
        %v2475 = vld [vmem:[%s228 + $0x2608] sm:$0xff]
        %v2476 = vld [vmem:[%s228 + $0x2610] sm:$0xff]
        %v2477 = vld [vmem:[%s228 + $0x2618] sm:$0xff]
        %v2478 = vld [vmem:[%s228 + $0x2620] sm:$0xff]
        %v2479 = vld [vmem:[%s228 + $0x2628] sm:$0xff]
        %v2480 = vld [vmem:[%s228 + $0x2630] sm:$0xff]
        %v2481 = vld [vmem:[%s228 + $0x2638] sm:$0xff]
        %v2482 = vld [vmem:[%s228 + $0x2640] sm:$0xff]
        %v2483 = vld [vmem:[%s228 + $0x2648] sm:$0xff]
        %v2484 = vld [vmem:[%s228 + $0x2650] sm:$0xff]
        %v2485 = vld [vmem:[%s228 + $0x2658] sm:$0xff]
        %v2486 = vld [vmem:[%s228 + $0x2660] sm:$0xff]
        %v2487 = vld [vmem:[%s228 + $0x2668] sm:$0xff]
        %v2488 = vld [vmem:[%s228 + $0x2670] sm:$0xff]
        %v2489 = vld [vmem:[%s228 + $0x2678] sm:$0xff]
        %v2490 = vld [vmem:[%s228 + $0x2680] sm:$0xff]
        %v2491 = vld [vmem:[%s228 + $0x2688] sm:$0xff]
        %v2492 = vld [vmem:[%s228 + $0x2690] sm:$0xff]
        %v2493 = vld [vmem:[%s228 + $0x2698] sm:$0xff]
        %v2494 = vld [vmem:[%s228 + $0x26a0] sm:$0xff]
        %v2495 = vld [vmem:[%s228 + $0x26a8] sm:$0xff]
        %v2496 = vld [vmem:[%s228 + $0x26b0] sm:$0xff]
        %v2497 = vld [vmem:[%s228 + $0x26b8] sm:$0xff]
        %v2498 = vld [vmem:[%s228 + $0x26c0] sm:$0xff]
        %v2499 = vld [vmem:[%s228 + $0x26c8] sm:$0xff]
        %v2500 = vld [vmem:[%s228 + $0x26d0] sm:$0xff]
        %v2501 = vld [vmem:[%s228 + $0x26d8] sm:$0xff]
        %v2502 = vld [vmem:[%s228 + $0x26e0] sm:$0xff]
        %v2503 = vld [vmem:[%s228 + $0x26e8] sm:$0xff]
        %v2504 = vld [vmem:[%s228 + $0x26f0] sm:$0xff]
        %v2505 = vld [vmem:[%s228 + $0x26f8] sm:$0xff]
        %v2506 = vld [vmem:[%s228 + $0x2700] sm:$0xff]
        %v2507 = vld [vmem:[%s228 + $0x2708] sm:$0xff]
        %v2508 = vld [vmem:[%s228 + $0x2710] sm:$0xff]
        %v2509 = vld [vmem:[%s228 + $0x2718] sm:$0xff]
        %v2510 = vld [vmem:[%s228 + $0x2720] sm:$0xff]
        %v2511 = vld [vmem:[%s228 + $0x2728] sm:$0xff]
        %v2512 = vld [vmem:[%s228 + $0x2730] sm:$0xff]
        %v2513 = vld [vmem:[%s228 + $0x2738] sm:$0xff]
        %v2514 = vld [vmem:[%s228 + $0x2740] sm:$0xff]
        %v2515 = vld [vmem:[%s228 + $0x2748] sm:$0xff]
        %v2516 = vld [vmem:[%s228 + $0x2750] sm:$0xff]
        %v2517 = vld [vmem:[%s228 + $0x2758] sm:$0xff]
        %v2518 = vld [vmem:[%s228 + $0x2760] sm:$0xff]
        %v2519 = vld [vmem:[%s228 + $0x2768] sm:$0xff]
        %v2520 = vld [vmem:[%s228 + $0x2770] sm:$0xff]
        %v2521 = vld [vmem:[%s228 + $0x2778] sm:$0xff]
        %v2522 = vld [vmem:[%s228 + $0x2780] sm:$0xff]
        %v2523 = vld [vmem:[%s228 + $0x2788] sm:$0xff]
        %v2524 = vld [vmem:[%s228 + $0x2790] sm:$0xff]
        %v2525 = vld [vmem:[%s228 + $0x2798] sm:$0xff]
        %v2526 = vld [vmem:[%s228 + $0x27a0] sm:$0xff]
        %v2527 = vld [vmem:[%s228 + $0x27a8] sm:$0xff]
        %v2528 = vld [vmem:[%s228 + $0x27b0] sm:$0xff]
        %v2529 = vld [vmem:[%s228 + $0x27b8] sm:$0xff]
        %v2530 = vld [vmem:[%s228 + $0x27c0] sm:$0xff]
        %v2531 = vld [vmem:[%s228 + $0x27c8] sm:$0xff]
        %v2532 = vld [vmem:[%s228 + $0x27d0] sm:$0xff]
        %v2533 = vld [vmem:[%s228 + $0x27d8] sm:$0xff]
        %v2534 = vld [vmem:[%s228 + $0x27e0] sm:$0xff]
        %v2535 = vld [vmem:[%s228 + $0x27e8] sm:$0xff]
        %v2536 = vld [vmem:[%s228 + $0x27f0] sm:$0xff]
        %v2537 = vld [vmem:[%s228 + $0x27f8] sm:$0xff]
        %v2538 = vld [vmem:[%s228 + $0x2800] sm:$0xff]
        %v2539 = vld [vmem:[%s228 + $0x2808] sm:$0xff]
        %v2540 = vld [vmem:[%s228 + $0x2810] sm:$0xff]
        %v2541 = vld [vmem:[%s228 + $0x2818] sm:$0xff]
        %v2542 = vld [vmem:[%s228 + $0x2820] sm:$0xff]
        %v2543 = vld [vmem:[%s228 + $0x2828] sm:$0xff]
        %v2544 = vld [vmem:[%s228 + $0x2830] sm:$0xff]
        %v2545 = vld [vmem:[%s228 + $0x2838] sm:$0xff]
        %v2546 = vld [vmem:[%s228 + $0x2840] sm:$0xff]
        %v2547 = vld [vmem:[%s228 + $0x2848] sm:$0xff]
        %v2548 = vld [vmem:[%s228 + $0x2850] sm:$0xff]
        %v2549 = vld [vmem:[%s228 + $0x2858] sm:$0xff]
        %v2550 = vld [vmem:[%s228 + $0x2860] sm:$0xff]
        %v2551 = vld [vmem:[%s228 + $0x2868] sm:$0xff]
        %v2552 = vld [vmem:[%s228 + $0x2870] sm:$0xff]
        %v2553 = vld [vmem:[%s228 + $0x2878] sm:$0xff]
        %v2554 = vld [vmem:[%s228 + $0x2880] sm:$0xff]
        %v2555 = vld [vmem:[%s228 + $0x2888] sm:$0xff]
        %v2556 = vld [vmem:[%s228 + $0x2890] sm:$0xff]
        %v2557 = vld [vmem:[%s228 + $0x2898] sm:$0xff]
        %v2558 = vld [vmem:[%s228 + $0x28a0] sm:$0xff]
        %v2559 = vld [vmem:[%s228 + $0x28a8] sm:$0xff]
        %v2560 = vld [vmem:[%s228 + $0x28b0] sm:$0xff]
        %v2561 = vld [vmem:[%s228 + $0x28b8] sm:$0xff]
        %v2562 = vld [vmem:[%s228 + $0x28c0] sm:$0xff]
        %v2563 = vld [vmem:[%s228 + $0x28c8] sm:$0xff]
        %v2564 = vld [vmem:[%s228 + $0x28d0] sm:$0xff]
        %v2565 = vld [vmem:[%s228 + $0x28d8] sm:$0xff]
        %v2566 = vld [vmem:[%s228 + $0x28e0] sm:$0xff]
        %v2567 = vld [vmem:[%s228 + $0x28e8] sm:$0xff]
        %v2568 = vld [vmem:[%s228 + $0x28f0] sm:$0xff]
        %v2569 = vld [vmem:[%s228 + $0x28f8] sm:$0xff]
        %v2570 = vld [vmem:[%s228 + $0x2900] sm:$0xff]
        %v2571 = vld [vmem:[%s228 + $0x2908] sm:$0xff]
        %v2572 = vld [vmem:[%s228 + $0x2910] sm:$0xff]
        %v2573 = vld [vmem:[%s228 + $0x2918] sm:$0xff]
        %v2574 = vld [vmem:[%s228 + $0x2920] sm:$0xff]
        %v2575 = vld [vmem:[%s228 + $0x2928] sm:$0xff]
        %v2576 = vld [vmem:[%s228 + $0x2930] sm:$0xff]
        %v2577 = vld [vmem:[%s228 + $0x2938] sm:$0xff]
        %v2578 = vld [vmem:[%s228 + $0x2940] sm:$0xff]
        %v2579 = vld [vmem:[%s228 + $0x2948] sm:$0xff]
        %v2580 = vld [vmem:[%s228 + $0x2950] sm:$0xff]
        %v2581 = vld [vmem:[%s228 + $0x2958] sm:$0xff]
        %v2582 = vld [vmem:[%s228 + $0x2960] sm:$0xff]
        %v2583 = vld [vmem:[%s228 + $0x2968] sm:$0xff]
        %v2584 = vld [vmem:[%s228 + $0x2970] sm:$0xff]
        %v2585 = vld [vmem:[%s228 + $0x2978] sm:$0xff]
        %v2586 = vld [vmem:[%s228 + $0x2980] sm:$0xff]
        %v2587 = vld [vmem:[%s228 + $0x2988] sm:$0xff]
        %v2588 = vld [vmem:[%s228 + $0x2990] sm:$0xff]
        %v2589 = vld [vmem:[%s228 + $0x2998] sm:$0xff]
        %v2590 = vld [vmem:[%s228 + $0x29a0] sm:$0xff]
        %v2591 = vld [vmem:[%s228 + $0x29a8] sm:$0xff]
        %v2592 = vld [vmem:[%s228 + $0x29b0] sm:$0xff]
        %v2593 = vld [vmem:[%s228 + $0x29b8] sm:$0xff]
        %v2594 = vld [vmem:[%s228 + $0x29c0] sm:$0xff]
        %v2595 = vld [vmem:[%s228 + $0x29c8] sm:$0xff]
        %v2596 = vld [vmem:[%s228 + $0x29d0] sm:$0xff]
        %v2597 = vld [vmem:[%s228 + $0x29d8] sm:$0xff]
        %v2598 = vld [vmem:[%s228 + $0x29e0] sm:$0xff]
        %v2599 = vld [vmem:[%s228 + $0x29e8] sm:$0xff]
        %v2600 = vld [vmem:[%s228 + $0x29f0] sm:$0xff]
        %v2601 = vld [vmem:[%s228 + $0x29f8] sm:$0xff]
        %v2602 = vld [vmem:[%s228 + $0x2a00] sm:$0xff]
        %v2603 = vld [vmem:[%s228 + $0x2a08] sm:$0xff]
        %v2604 = vld [vmem:[%s228 + $0x2a10] sm:$0xff]
        %v2605 = vld [vmem:[%s228 + $0x2a18] sm:$0xff]
        %v2606 = vld [vmem:[%s228 + $0x2a20] sm:$0xff]
        %v2607 = vld [vmem:[%s228 + $0x2a28] sm:$0xff]
        %v2608 = vld [vmem:[%s228 + $0x2a30] sm:$0xff]
        %v2609 = vld [vmem:[%s228 + $0x2a38] sm:$0xff]
        %v2610 = vld [vmem:[%s228 + $0x2a40] sm:$0xff]
        %v2611 = vld [vmem:[%s228 + $0x2a48] sm:$0xff]
        %v2612 = vld [vmem:[%s228 + $0x2a50] sm:$0xff]
        %v2613 = vld [vmem:[%s228 + $0x2a58] sm:$0xff]
        %v2614 = vld [vmem:[%s228 + $0x2a60] sm:$0xff]
        %v2615 = vld [vmem:[%s228 + $0x2a68] sm:$0xff]
        %v2616 = vld [vmem:[%s228 + $0x2a70] sm:$0xff]
        %v2617 = vld [vmem:[%s228 + $0x2a78] sm:$0xff]
        %v2618 = vld [vmem:[%s228 + $0x2a80] sm:$0xff]
        %v2619 = vld [vmem:[%s228 + $0x2a88] sm:$0xff]
        %v2620 = vld [vmem:[%s228 + $0x2a90] sm:$0xff]
        %v2621 = vld [vmem:[%s228 + $0x2a98] sm:$0xff]
        %v2622 = vld [vmem:[%s228 + $0x2aa0] sm:$0xff]
        %v2623 = vld [vmem:[%s228 + $0x2aa8] sm:$0xff]
        %v2624 = vld [vmem:[%s228 + $0x2ab0] sm:$0xff]
        %v2625 = vld [vmem:[%s228 + $0x2ab8] sm:$0xff]
        %v2626 = vld [vmem:[%s228 + $0x2ac0] sm:$0xff]
        %v2627 = vld [vmem:[%s228 + $0x2ac8] sm:$0xff]
        %v2628 = vld [vmem:[%s228 + $0x2ad0] sm:$0xff]
        %v2629 = vld [vmem:[%s228 + $0x2ad8] sm:$0xff]
        %v2630 = vld [vmem:[%s228 + $0x2ae0] sm:$0xff]
        %v2631 = vld [vmem:[%s228 + $0x2ae8] sm:$0xff]
        %v2632 = vld [vmem:[%s228 + $0x2af0] sm:$0xff]
        %v2633 = vld [vmem:[%s228 + $0x2af8] sm:$0xff]
        %v2634 = vld [vmem:[%s228 + $0x2b00] sm:$0xff]
        %v2635 = vld [vmem:[%s228 + $0x2b08] sm:$0xff]
        %v2636 = vld [vmem:[%s228 + $0x2b10] sm:$0xff]
        %v2637 = vld [vmem:[%s228 + $0x2b18] sm:$0xff]
        %v2638 = vld [vmem:[%s228 + $0x2b20] sm:$0xff]
        %v2639 = vld [vmem:[%s228 + $0x2b28] sm:$0xff]
        %v2640 = vld [vmem:[%s228 + $0x2b30] sm:$0xff]
        %v2641 = vld [vmem:[%s228 + $0x2b38] sm:$0xff]
        %v2642 = vld [vmem:[%s228 + $0x2b40] sm:$0xff]
        %v2643 = vld [vmem:[%s228 + $0x2b48] sm:$0xff]
        %v2644 = vld [vmem:[%s228 + $0x2b50] sm:$0xff]
        %v2645 = vld [vmem:[%s228 + $0x2b58] sm:$0xff]
        %v2646 = vld [vmem:[%s228 + $0x2b60] sm:$0xff]
        %v2647 = vld [vmem:[%s228 + $0x2b68] sm:$0xff]
        %v2648 = vld [vmem:[%s228 + $0x2b70] sm:$0xff]
        %v2649 = vld [vmem:[%s228 + $0x2b78] sm:$0xff]
        %v2650 = vld [vmem:[%s228 + $0x2b80] sm:$0xff]
        %v2651 = vld [vmem:[%s228 + $0x2b88] sm:$0xff]
        %v2652 = vld [vmem:[%s228 + $0x2b90] sm:$0xff]
        %v2653 = vld [vmem:[%s228 + $0x2b98] sm:$0xff]
        %v2654 = vld [vmem:[%s228 + $0x2ba0] sm:$0xff]
        %v2655 = vld [vmem:[%s228 + $0x2ba8] sm:$0xff]
        %v2656 = vld [vmem:[%s228 + $0x2bb0] sm:$0xff]
        %v2657 = vld [vmem:[%s228 + $0x2bb8] sm:$0xff]
        %v2658 = vld [vmem:[%s228 + $0x2bc0] sm:$0xff]
        %v2659 = vld [vmem:[%s228 + $0x2bc8] sm:$0xff]
        %v2660 = vld [vmem:[%s228 + $0x2bd0] sm:$0xff]
        %v2661 = vld [vmem:[%s228 + $0x2bd8] sm:$0xff]
        %v2662 = vld [vmem:[%s228 + $0x2be0] sm:$0xff]
        %v2663 = vld [vmem:[%s228 + $0x2be8] sm:$0xff]
        %v2664 = vld [vmem:[%s228 + $0x2bf0] sm:$0xff]
        %v2665 = vld [vmem:[%s228 + $0x2bf8] sm:$0xff]
        %v2666 = vld [vmem:[%s228 + $0x2c00] sm:$0xff]
        %v2667 = vld [vmem:[%s228 + $0x2c08] sm:$0xff]
        %v2668 = vld [vmem:[%s228 + $0x2c10] sm:$0xff]
        %v2669 = vld [vmem:[%s228 + $0x2c18] sm:$0xff]
        %v2670 = vld [vmem:[%s228 + $0x2c20] sm:$0xff]
        %v2671 = vld [vmem:[%s228 + $0x2c28] sm:$0xff]
        %v2672 = vld [vmem:[%s228 + $0x2c30] sm:$0xff]
        %v2673 = vld [vmem:[%s228 + $0x2c38] sm:$0xff]
        %v2674 = vld [vmem:[%s228 + $0x2c40] sm:$0xff]
        %v2675 = vld [vmem:[%s228 + $0x2c48] sm:$0xff]
        %v2676 = vld [vmem:[%s228 + $0x2c50] sm:$0xff]
        %v2677 = vld [vmem:[%s228 + $0x2c58] sm:$0xff]
        %v2678 = vld [vmem:[%s228 + $0x2c60] sm:$0xff]
        %v2679 = vld [vmem:[%s228 + $0x2c68] sm:$0xff]
        %v2680 = vld [vmem:[%s228 + $0x2c70] sm:$0xff]
        %v2681 = vld [vmem:[%s228 + $0x2c78] sm:$0xff]
        %v2682 = vld [vmem:[%s228 + $0x2c80] sm:$0xff]
        %v2683 = vld [vmem:[%s228 + $0x2c88] sm:$0xff]
        %v2684 = vld [vmem:[%s228 + $0x2c90] sm:$0xff]
        %v2685 = vld [vmem:[%s228 + $0x2c98] sm:$0xff]
        %v2686 = vld [vmem:[%s228 + $0x2ca0] sm:$0xff]
        %v2687 = vld [vmem:[%s228 + $0x2ca8] sm:$0xff]
        %v2688 = vld [vmem:[%s228 + $0x2cb0] sm:$0xff]
        %v2689 = vld [vmem:[%s228 + $0x2cb8] sm:$0xff]
        %v2690 = vld [vmem:[%s228 + $0x2cc0] sm:$0xff]
        %v2691 = vld [vmem:[%s228 + $0x2cc8] sm:$0xff]
        %v2692 = vld [vmem:[%s228 + $0x2cd0] sm:$0xff]
        %v2693 = vld [vmem:[%s228 + $0x2cd8] sm:$0xff]
        %v2694 = vld [vmem:[%s228 + $0x2ce0] sm:$0xff]
        %v2695 = vld [vmem:[%s228 + $0x2ce8] sm:$0xff]
        %v2696 = vld [vmem:[%s228 + $0x2cf0] sm:$0xff]
        %v2697 = vld [vmem:[%s228 + $0x2cf8] sm:$0xff]
        %v2698 = vld [vmem:[%s228 + $0x2d00] sm:$0xff]
        %v2699 = vld [vmem:[%s228 + $0x2d08] sm:$0xff]
        %v2700 = vld [vmem:[%s228 + $0x2d10] sm:$0xff]
        %v2701 = vld [vmem:[%s228 + $0x2d18] sm:$0xff]
        %v2702 = vld [vmem:[%s228 + $0x2d20] sm:$0xff]
        %v2703 = vld [vmem:[%s228 + $0x2d28] sm:$0xff]
        %v2704 = vld [vmem:[%s228 + $0x2d30] sm:$0xff]
        %v2705 = vld [vmem:[%s228 + $0x2d38] sm:$0xff]
        %v2706 = vld [vmem:[%s228 + $0x2d40] sm:$0xff]
        %v2707 = vld [vmem:[%s228 + $0x2d48] sm:$0xff]
        %v2708 = vld [vmem:[%s228 + $0x2d50] sm:$0xff]
        %v2709 = vld [vmem:[%s228 + $0x2d58] sm:$0xff]
        %v2710 = vld [vmem:[%s228 + $0x2d60] sm:$0xff]
        %v2711 = vld [vmem:[%s228 + $0x2d68] sm:$0xff]
        %v2712 = vld [vmem:[%s228 + $0x2d70] sm:$0xff]
        %v2713 = vld [vmem:[%s228 + $0x2d78] sm:$0xff]
        %v2714 = vld [vmem:[%s228 + $0x2d80] sm:$0xff]
        %v2715 = vld [vmem:[%s228 + $0x2d88] sm:$0xff]
        %v2716 = vld [vmem:[%s228 + $0x2d90] sm:$0xff]
        %v2717 = vld [vmem:[%s228 + $0x2d98] sm:$0xff]
        %v2718 = vld [vmem:[%s228 + $0x2da0] sm:$0xff]
        %v2719 = vld [vmem:[%s228 + $0x2da8] sm:$0xff]
        %v2720 = vld [vmem:[%s228 + $0x2db0] sm:$0xff]
        %v2721 = vld [vmem:[%s228 + $0x2db8] sm:$0xff]
        %v2722 = vld [vmem:[%s228 + $0x2dc0] sm:$0xff]
        %v2723 = vld [vmem:[%s228 + $0x2dc8] sm:$0xff]
        %v2724 = vld [vmem:[%s228 + $0x2dd0] sm:$0xff]
        %v2725 = vld [vmem:[%s228 + $0x2dd8] sm:$0xff]
        %v2726 = vld [vmem:[%s228 + $0x2de0] sm:$0xff]
        %v2727 = vld [vmem:[%s228 + $0x2de8] sm:$0xff]
        %v2728 = vld [vmem:[%s228 + $0x2df0] sm:$0xff]
        %v2729 = vld [vmem:[%s228 + $0x2df8] sm:$0xff]
        %v2730 = vld [vmem:[%s228 + $0x2e00] sm:$0xff]
        %v2731 = vld [vmem:[%s228 + $0x2e08] sm:$0xff]
        %v2732 = vld [vmem:[%s228 + $0x2e10] sm:$0xff]
        %v2733 = vld [vmem:[%s228 + $0x2e18] sm:$0xff]
        %v2734 = vld [vmem:[%s228 + $0x2e20] sm:$0xff]
        %v2735 = vld [vmem:[%s228 + $0x2e28] sm:$0xff]
        %v2736 = vld [vmem:[%s228 + $0x2e30] sm:$0xff]
        %v2737 = vld [vmem:[%s228 + $0x2e38] sm:$0xff]
        %v2738 = vld [vmem:[%s228 + $0x2e40] sm:$0xff]
        %v2739 = vld [vmem:[%s228 + $0x2e48] sm:$0xff]
        %v2740 = vld [vmem:[%s228 + $0x2e50] sm:$0xff]
        %v2741 = vld [vmem:[%s228 + $0x2e58] sm:$0xff]
        %v2742 = vld [vmem:[%s228 + $0x2e60] sm:$0xff]
        %v2743 = vld [vmem:[%s228 + $0x2e68] sm:$0xff]
        %v2744 = vld [vmem:[%s228 + $0x2e70] sm:$0xff]
        %v2745 = vld [vmem:[%s228 + $0x2e78] sm:$0xff]
        %v2746 = vld [vmem:[%s228 + $0x2e80] sm:$0xff]
        %v2747 = vld [vmem:[%s228 + $0x2e88] sm:$0xff]
        %v2748 = vld [vmem:[%s228 + $0x2e90] sm:$0xff]
        %v2749 = vld [vmem:[%s228 + $0x2e98] sm:$0xff]
        %v2750 = vld [vmem:[%s228 + $0x2ea0] sm:$0xff]
        %v2751 = vld [vmem:[%s228 + $0x2ea8] sm:$0xff]
        %v2752 = vld [vmem:[%s228 + $0x2eb0] sm:$0xff]
        %v2753 = vld [vmem:[%s228 + $0x2eb8] sm:$0xff]
        %v2754 = vld [vmem:[%s228 + $0x2ec0] sm:$0xff]
        %v2755 = vld [vmem:[%s228 + $0x2ec8] sm:$0xff]
        %v2756 = vld [vmem:[%s228 + $0x2ed0] sm:$0xff]
        %v2757 = vld [vmem:[%s228 + $0x2ed8] sm:$0xff]
        %v2758 = vld [vmem:[%s228 + $0x2ee0] sm:$0xff]
        %v2759 = vld [vmem:[%s228 + $0x2ee8] sm:$0xff]
        %v2760 = vld [vmem:[%s228 + $0x2ef0] sm:$0xff]
        %v2761 = vld [vmem:[%s228 + $0x2ef8] sm:$0xff]
        %v2762 = vld [vmem:[%s228 + $0x2f00] sm:$0xff]
        %v2763 = vld [vmem:[%s228 + $0x2f08] sm:$0xff]
        %v2764 = vld [vmem:[%s228 + $0x2f10] sm:$0xff]
        %v2765 = vld [vmem:[%s228 + $0x2f18] sm:$0xff]
        %v2766 = vld [vmem:[%s228 + $0x2f20] sm:$0xff]
        %v2767 = vld [vmem:[%s228 + $0x2f28] sm:$0xff]
        %v2768 = vld [vmem:[%s228 + $0x2f30] sm:$0xff]
        %v2769 = vld [vmem:[%s228 + $0x2f38] sm:$0xff]
        %v2770 = vld [vmem:[%s228 + $0x2f40] sm:$0xff]
        %v2771 = vld [vmem:[%s228 + $0x2f48] sm:$0xff]
        %v2772 = vld [vmem:[%s228 + $0x2f50] sm:$0xff]
        %v2773 = vld [vmem:[%s228 + $0x2f58] sm:$0xff]
        %v2774 = vld [vmem:[%s228 + $0x2f60] sm:$0xff]
        %v2775 = vld [vmem:[%s228 + $0x2f68] sm:$0xff]
        %v2776 = vld [vmem:[%s228 + $0x2f70] sm:$0xff]
        %v2777 = vld [vmem:[%s228 + $0x2f78] sm:$0xff]
        %v2778 = vld [vmem:[%s228 + $0x2f80] sm:$0xff]
        %v2779 = vld [vmem:[%s228 + $0x2f88] sm:$0xff]
        %v2780 = vld [vmem:[%s228 + $0x2f90] sm:$0xff]
        %v2781 = vld [vmem:[%s228 + $0x2f98] sm:$0xff]
        %v2782 = vld [vmem:[%s228 + $0x2fa0] sm:$0xff]
        %v2783 = vld [vmem:[%s228 + $0x2fa8] sm:$0xff]
        %v2784 = vld [vmem:[%s228 + $0x2fb0] sm:$0xff]
        %v2785 = vld [vmem:[%s228 + $0x2fb8] sm:$0xff]
        %v2786 = vld [vmem:[%s228 + $0x2fc0] sm:$0xff]
        %v2787 = vld [vmem:[%s228 + $0x2fc8] sm:$0xff]
        %v2788 = vld [vmem:[%s228 + $0x2fd0] sm:$0xff]
        %v2789 = vld [vmem:[%s228 + $0x2fd8] sm:$0xff]
        %v2790 = vld [vmem:[%s228 + $0x2fe0] sm:$0xff]
        %v2791 = vld [vmem:[%s228 + $0x2fe8] sm:$0xff]
        %v2792 = vld [vmem:[%s228 + $0x2ff0] sm:$0xff]
        %v2793 = vld [vmem:[%s228 + $0x2ff8] sm:$0xff]
        %v4330 = vunpack.c.l.b16 %v1258
        %v4331 = vunpack.c.h.b16 %v1258
        %v4332 = vunpack.c.l.b16 %v1259
        %v4333 = vunpack.c.h.b16 %v1259
        %v4334 = vunpack.c.l.b16 %v1260
        %v4335 = vunpack.c.h.b16 %v1260
        %v4336 = vunpack.c.l.b16 %v1261
        %v4337 = vunpack.c.h.b16 %v1261
        %v4338 = vunpack.c.l.b16 %v1262
        %v4339 = vunpack.c.h.b16 %v1262
        %v4340 = vunpack.c.l.b16 %v1263
        %v4341 = vunpack.c.h.b16 %v1263
        %v4342 = vunpack.c.l.b16 %v1264
        %v4343 = vunpack.c.h.b16 %v1264
        %v4344 = vunpack.c.l.b16 %v1265
        %v4345 = vunpack.c.h.b16 %v1265
        %v4346 = vunpack.c.l.b16 %v1266
        %v4347 = vunpack.c.h.b16 %v1266
        %v4348 = vunpack.c.l.b16 %v1267
        %v4349 = vunpack.c.h.b16 %v1267
        %v4350 = vunpack.c.l.b16 %v1268
        %v4351 = vunpack.c.h.b16 %v1268
        %v4352 = vunpack.c.l.b16 %v1269
        %v4353 = vunpack.c.h.b16 %v1269
        %v4354 = vunpack.c.l.b16 %v1270
        %v4355 = vunpack.c.h.b16 %v1270
        %v4356 = vunpack.c.l.b16 %v1271
        %v4357 = vunpack.c.h.b16 %v1271
        %v4358 = vunpack.c.l.b16 %v1272
        %v4359 = vunpack.c.h.b16 %v1272
        %v4360 = vunpack.c.l.b16 %v1273
        %v4361 = vunpack.c.h.b16 %v1273
        %v4362 = vunpack.c.l.b16 %v1274
        %v4363 = vunpack.c.h.b16 %v1274
        %v4364 = vunpack.c.l.b16 %v1275
        %v4365 = vunpack.c.h.b16 %v1275
        %v4366 = vunpack.c.l.b16 %v1276
        %v4367 = vunpack.c.h.b16 %v1276
        %v4368 = vunpack.c.l.b16 %v1277
        %v4369 = vunpack.c.h.b16 %v1277
        %v4370 = vunpack.c.l.b16 %v1278
        %v4371 = vunpack.c.h.b16 %v1278
        %v4372 = vunpack.c.l.b16 %v1279
        %v4373 = vunpack.c.h.b16 %v1279
        %v4374 = vunpack.c.l.b16 %v1280
        %v4375 = vunpack.c.h.b16 %v1280
        %v4376 = vunpack.c.l.b16 %v1281
        %v4377 = vunpack.c.h.b16 %v1281
        %v4378 = vunpack.c.l.b16 %v1282
        %v4379 = vunpack.c.h.b16 %v1282
        %v4380 = vunpack.c.l.b16 %v1283
        %v4381 = vunpack.c.h.b16 %v1283
        %v4382 = vunpack.c.l.b16 %v1284
        %v4383 = vunpack.c.h.b16 %v1284
        %v4384 = vunpack.c.l.b16 %v1285
        %v4385 = vunpack.c.h.b16 %v1285
        %v4386 = vunpack.c.l.b16 %v1286
        %v4387 = vunpack.c.h.b16 %v1286
        %v4388 = vunpack.c.l.b16 %v1287
        %v4389 = vunpack.c.h.b16 %v1287
        %v4390 = vunpack.c.l.b16 %v1288
        %v4391 = vunpack.c.h.b16 %v1288
        %v4392 = vunpack.c.l.b16 %v1289
        %v4393 = vunpack.c.h.b16 %v1289
        %v4394 = vunpack.c.l.b16 %v1290
        %v4395 = vunpack.c.h.b16 %v1290
        %v4396 = vunpack.c.l.b16 %v1291
        %v4397 = vunpack.c.h.b16 %v1291
        %v4398 = vunpack.c.l.b16 %v1292
        %v4399 = vunpack.c.h.b16 %v1292
        %v4400 = vunpack.c.l.b16 %v1293
        %v4401 = vunpack.c.h.b16 %v1293
        %v4402 = vunpack.c.l.b16 %v1294
        %v4403 = vunpack.c.h.b16 %v1294
        %v4404 = vunpack.c.l.b16 %v1295
        %v4405 = vunpack.c.h.b16 %v1295
        %v4406 = vunpack.c.l.b16 %v1296
        %v4407 = vunpack.c.h.b16 %v1296
        %v4408 = vunpack.c.l.b16 %v1297
        %v4409 = vunpack.c.h.b16 %v1297
        %v4410 = vunpack.c.l.b16 %v1298
        %v4411 = vunpack.c.h.b16 %v1298
        %v4412 = vunpack.c.l.b16 %v1299
        %v4413 = vunpack.c.h.b16 %v1299
        %v4414 = vunpack.c.l.b16 %v1300
        %v4415 = vunpack.c.h.b16 %v1300
        %v4416 = vunpack.c.l.b16 %v1301
        %v4417 = vunpack.c.h.b16 %v1301
        %v4418 = vunpack.c.l.b16 %v1302
        %v4419 = vunpack.c.h.b16 %v1302
        %v4420 = vunpack.c.l.b16 %v1303
        %v4421 = vunpack.c.h.b16 %v1303
        %v4422 = vunpack.c.l.b16 %v1304
        %v4423 = vunpack.c.h.b16 %v1304
        %v4424 = vunpack.c.l.b16 %v1305
        %v4425 = vunpack.c.h.b16 %v1305
        %v4426 = vunpack.c.l.b16 %v1306
        %v4427 = vunpack.c.h.b16 %v1306
        %v4428 = vunpack.c.l.b16 %v1307
        %v4429 = vunpack.c.h.b16 %v1307
        %v4430 = vunpack.c.l.b16 %v1308
        %v4431 = vunpack.c.h.b16 %v1308
        %v4432 = vunpack.c.l.b16 %v1309
        %v4433 = vunpack.c.h.b16 %v1309
        %v4434 = vunpack.c.l.b16 %v1310
        %v4435 = vunpack.c.h.b16 %v1310
        %v4436 = vunpack.c.l.b16 %v1311
        %v4437 = vunpack.c.h.b16 %v1311
        %v4438 = vunpack.c.l.b16 %v1312
        %v4439 = vunpack.c.h.b16 %v1312
        %v4440 = vunpack.c.l.b16 %v1313
        %v4441 = vunpack.c.h.b16 %v1313
        %v4442 = vunpack.c.l.b16 %v1314
        %v4443 = vunpack.c.h.b16 %v1314
        %v4444 = vunpack.c.l.b16 %v1315
        %v4445 = vunpack.c.h.b16 %v1315
        %v4446 = vunpack.c.l.b16 %v1316
        %v4447 = vunpack.c.h.b16 %v1316
        %v4448 = vunpack.c.l.b16 %v1317
        %v4449 = vunpack.c.h.b16 %v1317
        %v4450 = vunpack.c.l.b16 %v1318
        %v4451 = vunpack.c.h.b16 %v1318
        %v4452 = vunpack.c.l.b16 %v1319
        %v4453 = vunpack.c.h.b16 %v1319
        %v4454 = vunpack.c.l.b16 %v1320
        %v4455 = vunpack.c.h.b16 %v1320
        %v4456 = vunpack.c.l.b16 %v1321
        %v4457 = vunpack.c.h.b16 %v1321
        %v4458 = vunpack.c.l.b16 %v1322
        %v4459 = vunpack.c.h.b16 %v1322
        %v4460 = vunpack.c.l.b16 %v1323
        %v4461 = vunpack.c.h.b16 %v1323
        %v4462 = vunpack.c.l.b16 %v1324
        %v4463 = vunpack.c.h.b16 %v1324
        %v4464 = vunpack.c.l.b16 %v1325
        %v4465 = vunpack.c.h.b16 %v1325
        %v4466 = vunpack.c.l.b16 %v1326
        %v4467 = vunpack.c.h.b16 %v1326
        %v4468 = vunpack.c.l.b16 %v1327
        %v4469 = vunpack.c.h.b16 %v1327
        %v4470 = vunpack.c.l.b16 %v1328
        %v4471 = vunpack.c.h.b16 %v1328
        %v4472 = vunpack.c.l.b16 %v1329
        %v4473 = vunpack.c.h.b16 %v1329
        %v4474 = vunpack.c.l.b16 %v1330
        %v4475 = vunpack.c.h.b16 %v1330
        %v4476 = vunpack.c.l.b16 %v1331
        %v4477 = vunpack.c.h.b16 %v1331
        %v4478 = vunpack.c.l.b16 %v1332
        %v4479 = vunpack.c.h.b16 %v1332
        %v4480 = vunpack.c.l.b16 %v1333
        %v4481 = vunpack.c.h.b16 %v1333
        %v4482 = vunpack.c.l.b16 %v1334
        %v4483 = vunpack.c.h.b16 %v1334
        %v4484 = vunpack.c.l.b16 %v1335
        %v4485 = vunpack.c.h.b16 %v1335
        %v4486 = vunpack.c.l.b16 %v1336
        %v4487 = vunpack.c.h.b16 %v1336
        %v4488 = vunpack.c.l.b16 %v1337
        %v4489 = vunpack.c.h.b16 %v1337
        %v4490 = vunpack.c.l.b16 %v1338
        %v4491 = vunpack.c.h.b16 %v1338
        %v4492 = vunpack.c.l.b16 %v1339
        %v4493 = vunpack.c.h.b16 %v1339
        %v4494 = vunpack.c.l.b16 %v1340
        %v4495 = vunpack.c.h.b16 %v1340
        %v4496 = vunpack.c.l.b16 %v1341
        %v4497 = vunpack.c.h.b16 %v1341
        %v4498 = vunpack.c.l.b16 %v1342
        %v4499 = vunpack.c.h.b16 %v1342
        %v4500 = vunpack.c.l.b16 %v1343
        %v4501 = vunpack.c.h.b16 %v1343
        %v4502 = vunpack.c.l.b16 %v1344
        %v4503 = vunpack.c.h.b16 %v1344
        %v4504 = vunpack.c.l.b16 %v1345
        %v4505 = vunpack.c.h.b16 %v1345
        %v4506 = vunpack.c.l.b16 %v1346
        %v4507 = vunpack.c.h.b16 %v1346
        %v4508 = vunpack.c.l.b16 %v1347
        %v4509 = vunpack.c.h.b16 %v1347
        %v4510 = vunpack.c.l.b16 %v1348
        %v4511 = vunpack.c.h.b16 %v1348
        %v4512 = vunpack.c.l.b16 %v1349
        %v4513 = vunpack.c.h.b16 %v1349
        %v4514 = vunpack.c.l.b16 %v1350
        %v4515 = vunpack.c.h.b16 %v1350
        %v4516 = vunpack.c.l.b16 %v1351
        %v4517 = vunpack.c.h.b16 %v1351
        %v4518 = vunpack.c.l.b16 %v1352
        %v4519 = vunpack.c.h.b16 %v1352
        %v4520 = vunpack.c.l.b16 %v1353
        %v4521 = vunpack.c.h.b16 %v1353
        %v4522 = vunpack.c.l.b16 %v1354
        %v4523 = vunpack.c.h.b16 %v1354
        %v4524 = vunpack.c.l.b16 %v1355
        %v4525 = vunpack.c.h.b16 %v1355
        %v4526 = vunpack.c.l.b16 %v1356
        %v4527 = vunpack.c.h.b16 %v1356
        %v4528 = vunpack.c.l.b16 %v1357
        %v4529 = vunpack.c.h.b16 %v1357
        %v4530 = vunpack.c.l.b16 %v1358
        %v4531 = vunpack.c.h.b16 %v1358
        %v4532 = vunpack.c.l.b16 %v1359
        %v4533 = vunpack.c.h.b16 %v1359
        %v4534 = vunpack.c.l.b16 %v1360
        %v4535 = vunpack.c.h.b16 %v1360
        %v4536 = vunpack.c.l.b16 %v1361
        %v4537 = vunpack.c.h.b16 %v1361
        %v4538 = vunpack.c.l.b16 %v1362
        %v4539 = vunpack.c.h.b16 %v1362
        %v4540 = vunpack.c.l.b16 %v1363
        %v4541 = vunpack.c.h.b16 %v1363
        %v4542 = vunpack.c.l.b16 %v1364
        %v4543 = vunpack.c.h.b16 %v1364
        %v4544 = vunpack.c.l.b16 %v1365
        %v4545 = vunpack.c.h.b16 %v1365
        %v4546 = vunpack.c.l.b16 %v1366
        %v4547 = vunpack.c.h.b16 %v1366
        %v4548 = vunpack.c.l.b16 %v1367
        %v4549 = vunpack.c.h.b16 %v1367
        %v4550 = vunpack.c.l.b16 %v1368
        %v4551 = vunpack.c.h.b16 %v1368
        %v4552 = vunpack.c.l.b16 %v1369
        %v4553 = vunpack.c.h.b16 %v1369
        %v4554 = vunpack.c.l.b16 %v1370
        %v4555 = vunpack.c.h.b16 %v1370
        %v4556 = vunpack.c.l.b16 %v1371
        %v4557 = vunpack.c.h.b16 %v1371
        %v4558 = vunpack.c.l.b16 %v1372
        %v4559 = vunpack.c.h.b16 %v1372
        %v4560 = vunpack.c.l.b16 %v1373
        %v4561 = vunpack.c.h.b16 %v1373
        %v4562 = vunpack.c.l.b16 %v1374
        %v4563 = vunpack.c.h.b16 %v1374
        %v4564 = vunpack.c.l.b16 %v1375
        %v4565 = vunpack.c.h.b16 %v1375
        %v4566 = vunpack.c.l.b16 %v1376
        %v4567 = vunpack.c.h.b16 %v1376
        %v4568 = vunpack.c.l.b16 %v1377
        %v4569 = vunpack.c.h.b16 %v1377
        %v4570 = vunpack.c.l.b16 %v1378
        %v4571 = vunpack.c.h.b16 %v1378
        %v4572 = vunpack.c.l.b16 %v1379
        %v4573 = vunpack.c.h.b16 %v1379
        %v4574 = vunpack.c.l.b16 %v1380
        %v4575 = vunpack.c.h.b16 %v1380
        %v4576 = vunpack.c.l.b16 %v1381
        %v4577 = vunpack.c.h.b16 %v1381
        %v4578 = vunpack.c.l.b16 %v1382
        %v4579 = vunpack.c.h.b16 %v1382
        %v4580 = vunpack.c.l.b16 %v1383
        %v4581 = vunpack.c.h.b16 %v1383
        %v4582 = vunpack.c.l.b16 %v1384
        %v4583 = vunpack.c.h.b16 %v1384
        %v4584 = vunpack.c.l.b16 %v1385
        %v4585 = vunpack.c.h.b16 %v1385
        %v4586 = vunpack.c.l.b16 %v1386
        %v4587 = vunpack.c.h.b16 %v1386
        %v4588 = vunpack.c.l.b16 %v1387
        %v4589 = vunpack.c.h.b16 %v1387
        %v4590 = vunpack.c.l.b16 %v1388
        %v4591 = vunpack.c.h.b16 %v1388
        %v4592 = vunpack.c.l.b16 %v1389
        %v4593 = vunpack.c.h.b16 %v1389
        %v4594 = vunpack.c.l.b16 %v1390
        %v4595 = vunpack.c.h.b16 %v1390
        %v4596 = vunpack.c.l.b16 %v1391
        %v4597 = vunpack.c.h.b16 %v1391
        %v4598 = vunpack.c.l.b16 %v1392
        %v4599 = vunpack.c.h.b16 %v1392
        %v4600 = vunpack.c.l.b16 %v1393
        %v4601 = vunpack.c.h.b16 %v1393
        %v4602 = vunpack.c.l.b16 %v1394
        %v4603 = vunpack.c.h.b16 %v1394
        %v4604 = vunpack.c.l.b16 %v1395
        %v4605 = vunpack.c.h.b16 %v1395
        %v4606 = vunpack.c.l.b16 %v1396
        %v4607 = vunpack.c.h.b16 %v1396
        %v4608 = vunpack.c.l.b16 %v1397
        %v4609 = vunpack.c.h.b16 %v1397
        %v4610 = vunpack.c.l.b16 %v1398
        %v4611 = vunpack.c.h.b16 %v1398
        %v4612 = vunpack.c.l.b16 %v1399
        %v4613 = vunpack.c.h.b16 %v1399
        %v4614 = vunpack.c.l.b16 %v1400
        %v4615 = vunpack.c.h.b16 %v1400
        %v4616 = vunpack.c.l.b16 %v1401
        %v4617 = vunpack.c.h.b16 %v1401
        %v4618 = vunpack.c.l.b16 %v1402
        %v4619 = vunpack.c.h.b16 %v1402
        %v4620 = vunpack.c.l.b16 %v1403
        %v4621 = vunpack.c.h.b16 %v1403
        %v4622 = vunpack.c.l.b16 %v1404
        %v4623 = vunpack.c.h.b16 %v1404
        %v4624 = vunpack.c.l.b16 %v1405
        %v4625 = vunpack.c.h.b16 %v1405
        %v4626 = vunpack.c.l.b16 %v1406
        %v4627 = vunpack.c.h.b16 %v1406
        %v4628 = vunpack.c.l.b16 %v1407
        %v4629 = vunpack.c.h.b16 %v1407
        %v4630 = vunpack.c.l.b16 %v1408
        %v4631 = vunpack.c.h.b16 %v1408
        %v4632 = vunpack.c.l.b16 %v1409
        %v4633 = vunpack.c.h.b16 %v1409
        %v4634 = vunpack.c.l.b16 %v1410
        %v4635 = vunpack.c.h.b16 %v1410
        %v4636 = vunpack.c.l.b16 %v1411
        %v4637 = vunpack.c.h.b16 %v1411
        %v4638 = vunpack.c.l.b16 %v1412
        %v4639 = vunpack.c.h.b16 %v1412
        %v4640 = vunpack.c.l.b16 %v1413
        %v4641 = vunpack.c.h.b16 %v1413
        %v4642 = vunpack.c.l.b16 %v1414
        %v4643 = vunpack.c.h.b16 %v1414
        %v4644 = vunpack.c.l.b16 %v1415
        %v4645 = vunpack.c.h.b16 %v1415
        %v4646 = vunpack.c.l.b16 %v1416
        %v4647 = vunpack.c.h.b16 %v1416
        %v4648 = vunpack.c.l.b16 %v1417
        %v4649 = vunpack.c.h.b16 %v1417
        %v4650 = vunpack.c.l.b16 %v1418
        %v4651 = vunpack.c.h.b16 %v1418
        %v4652 = vunpack.c.l.b16 %v1419
        %v4653 = vunpack.c.h.b16 %v1419
        %v4654 = vunpack.c.l.b16 %v1420
        %v4655 = vunpack.c.h.b16 %v1420
        %v4656 = vunpack.c.l.b16 %v1421
        %v4657 = vunpack.c.h.b16 %v1421
        %v4658 = vunpack.c.l.b16 %v1422
        %v4659 = vunpack.c.h.b16 %v1422
        %v4660 = vunpack.c.l.b16 %v1423
        %v4661 = vunpack.c.h.b16 %v1423
        %v4662 = vunpack.c.l.b16 %v1424
        %v4663 = vunpack.c.h.b16 %v1424
        %v4664 = vunpack.c.l.b16 %v1425
        %v4665 = vunpack.c.h.b16 %v1425
        %v4666 = vunpack.c.l.b16 %v1426
        %v4667 = vunpack.c.h.b16 %v1426
        %v4668 = vunpack.c.l.b16 %v1427
        %v4669 = vunpack.c.h.b16 %v1427
        %v4670 = vunpack.c.l.b16 %v1428
        %v4671 = vunpack.c.h.b16 %v1428
        %v4672 = vunpack.c.l.b16 %v1429
        %v4673 = vunpack.c.h.b16 %v1429
        %v4674 = vunpack.c.l.b16 %v1430
        %v4675 = vunpack.c.h.b16 %v1430
        %v4676 = vunpack.c.l.b16 %v1431
        %v4677 = vunpack.c.h.b16 %v1431
        %v4678 = vunpack.c.l.b16 %v1432
        %v4679 = vunpack.c.h.b16 %v1432
        %v4680 = vunpack.c.l.b16 %v1433
        %v4681 = vunpack.c.h.b16 %v1433
        %v4682 = vunpack.c.l.b16 %v1434
        %v4683 = vunpack.c.h.b16 %v1434
        %v4684 = vunpack.c.l.b16 %v1435
        %v4685 = vunpack.c.h.b16 %v1435
        %v4686 = vunpack.c.l.b16 %v1436
        %v4687 = vunpack.c.h.b16 %v1436
        %v4688 = vunpack.c.l.b16 %v1437
        %v4689 = vunpack.c.h.b16 %v1437
        %v4690 = vunpack.c.l.b16 %v1438
        %v4691 = vunpack.c.h.b16 %v1438
        %v4692 = vunpack.c.l.b16 %v1439
        %v4693 = vunpack.c.h.b16 %v1439
        %v4694 = vunpack.c.l.b16 %v1440
        %v4695 = vunpack.c.h.b16 %v1440
        %v4696 = vunpack.c.l.b16 %v1441
        %v4697 = vunpack.c.h.b16 %v1441
        %v4698 = vunpack.c.l.b16 %v1442
        %v4699 = vunpack.c.h.b16 %v1442
        %v4700 = vunpack.c.l.b16 %v1443
        %v4701 = vunpack.c.h.b16 %v1443
        %v4702 = vunpack.c.l.b16 %v1444
        %v4703 = vunpack.c.h.b16 %v1444
        %v4704 = vunpack.c.l.b16 %v1445
        %v4705 = vunpack.c.h.b16 %v1445
        %v4706 = vunpack.c.l.b16 %v1446
        %v4707 = vunpack.c.h.b16 %v1446
        %v4708 = vunpack.c.l.b16 %v1447
        %v4709 = vunpack.c.h.b16 %v1447
        %v4710 = vunpack.c.l.b16 %v1448
        %v4711 = vunpack.c.h.b16 %v1448
        %v4712 = vunpack.c.l.b16 %v1449
        %v4713 = vunpack.c.h.b16 %v1449
        %v4714 = vunpack.c.l.b16 %v1450
        %v4715 = vunpack.c.h.b16 %v1450
        %v4716 = vunpack.c.l.b16 %v1451
        %v4717 = vunpack.c.h.b16 %v1451
        %v4718 = vunpack.c.l.b16 %v1452
        %v4719 = vunpack.c.h.b16 %v1452
        %v4720 = vunpack.c.l.b16 %v1453
        %v4721 = vunpack.c.h.b16 %v1453
        %v4722 = vunpack.c.l.b16 %v1454
        %v4723 = vunpack.c.h.b16 %v1454
        %v4724 = vunpack.c.l.b16 %v1455
        %v4725 = vunpack.c.h.b16 %v1455
        %v4726 = vunpack.c.l.b16 %v1456
        %v4727 = vunpack.c.h.b16 %v1456
        %v4728 = vunpack.c.l.b16 %v1457
        %v4729 = vunpack.c.h.b16 %v1457
        %v4730 = vunpack.c.l.b16 %v1458
        %v4731 = vunpack.c.h.b16 %v1458
        %v4732 = vunpack.c.l.b16 %v1459
        %v4733 = vunpack.c.h.b16 %v1459
        %v4734 = vunpack.c.l.b16 %v1460
        %v4735 = vunpack.c.h.b16 %v1460
        %v4736 = vunpack.c.l.b16 %v1461
        %v4737 = vunpack.c.h.b16 %v1461
        %v4738 = vunpack.c.l.b16 %v1462
        %v4739 = vunpack.c.h.b16 %v1462
        %v4740 = vunpack.c.l.b16 %v1463
        %v4741 = vunpack.c.h.b16 %v1463
        %v4742 = vunpack.c.l.b16 %v1464
        %v4743 = vunpack.c.h.b16 %v1464
        %v4744 = vunpack.c.l.b16 %v1465
        %v4745 = vunpack.c.h.b16 %v1465
        %v4746 = vunpack.c.l.b16 %v1466
        %v4747 = vunpack.c.h.b16 %v1466
        %v4748 = vunpack.c.l.b16 %v1467
        %v4749 = vunpack.c.h.b16 %v1467
        %v4750 = vunpack.c.l.b16 %v1468
        %v4751 = vunpack.c.h.b16 %v1468
        %v4752 = vunpack.c.l.b16 %v1469
        %v4753 = vunpack.c.h.b16 %v1469
        %v4754 = vunpack.c.l.b16 %v1470
        %v4755 = vunpack.c.h.b16 %v1470
        %v4756 = vunpack.c.l.b16 %v1471
        %v4757 = vunpack.c.h.b16 %v1471
        %v4758 = vunpack.c.l.b16 %v1472
        %v4759 = vunpack.c.h.b16 %v1472
        %v4760 = vunpack.c.l.b16 %v1473
        %v4761 = vunpack.c.h.b16 %v1473
        %v4762 = vunpack.c.l.b16 %v1474
        %v4763 = vunpack.c.h.b16 %v1474
        %v4764 = vunpack.c.l.b16 %v1475
        %v4765 = vunpack.c.h.b16 %v1475
        %v4766 = vunpack.c.l.b16 %v1476
        %v4767 = vunpack.c.h.b16 %v1476
        %v4768 = vunpack.c.l.b16 %v1477
        %v4769 = vunpack.c.h.b16 %v1477
        %v4770 = vunpack.c.l.b16 %v1478
        %v4771 = vunpack.c.h.b16 %v1478
        %v4772 = vunpack.c.l.b16 %v1479
        %v4773 = vunpack.c.h.b16 %v1479
        %v4774 = vunpack.c.l.b16 %v1480
        %v4775 = vunpack.c.h.b16 %v1480
        %v4776 = vunpack.c.l.b16 %v1481
        %v4777 = vunpack.c.h.b16 %v1481
        %v4778 = vunpack.c.l.b16 %v1482
        %v4779 = vunpack.c.h.b16 %v1482
        %v4780 = vunpack.c.l.b16 %v1483
        %v4781 = vunpack.c.h.b16 %v1483
        %v4782 = vunpack.c.l.b16 %v1484
        %v4783 = vunpack.c.h.b16 %v1484
        %v4784 = vunpack.c.l.b16 %v1485
        %v4785 = vunpack.c.h.b16 %v1485
        %v4786 = vunpack.c.l.b16 %v1486
        %v4787 = vunpack.c.h.b16 %v1486
        %v4788 = vunpack.c.l.b16 %v1487
        %v4789 = vunpack.c.h.b16 %v1487
        %v4790 = vunpack.c.l.b16 %v1488
        %v4791 = vunpack.c.h.b16 %v1488
        %v4792 = vunpack.c.l.b16 %v1489
        %v4793 = vunpack.c.h.b16 %v1489
        %v4794 = vunpack.c.l.b16 %v1490
        %v4795 = vunpack.c.h.b16 %v1490
        %v4796 = vunpack.c.l.b16 %v1491
        %v4797 = vunpack.c.h.b16 %v1491
        %v4798 = vunpack.c.l.b16 %v1492
        %v4799 = vunpack.c.h.b16 %v1492
        %v4800 = vunpack.c.l.b16 %v1493
        %v4801 = vunpack.c.h.b16 %v1493
        %v4802 = vunpack.c.l.b16 %v1494
        %v4803 = vunpack.c.h.b16 %v1494
        %v4804 = vunpack.c.l.b16 %v1495
        %v4805 = vunpack.c.h.b16 %v1495
        %v4806 = vunpack.c.l.b16 %v1496
        %v4807 = vunpack.c.h.b16 %v1496
        %v4808 = vunpack.c.l.b16 %v1497
        %v4809 = vunpack.c.h.b16 %v1497
        %v4810 = vunpack.c.l.b16 %v1498
        %v4811 = vunpack.c.h.b16 %v1498
        %v4812 = vunpack.c.l.b16 %v1499
        %v4813 = vunpack.c.h.b16 %v1499
        %v4814 = vunpack.c.l.b16 %v1500
        %v4815 = vunpack.c.h.b16 %v1500
        %v4816 = vunpack.c.l.b16 %v1501
        %v4817 = vunpack.c.h.b16 %v1501
        %v4818 = vunpack.c.l.b16 %v1502
        %v4819 = vunpack.c.h.b16 %v1502
        %v4820 = vunpack.c.l.b16 %v1503
        %v4821 = vunpack.c.h.b16 %v1503
        %v4822 = vunpack.c.l.b16 %v1504
        %v4823 = vunpack.c.h.b16 %v1504
        %v4824 = vunpack.c.l.b16 %v1505
        %v4825 = vunpack.c.h.b16 %v1505
        %v4826 = vunpack.c.l.b16 %v1506
        %v4827 = vunpack.c.h.b16 %v1506
        %v4828 = vunpack.c.l.b16 %v1507
        %v4829 = vunpack.c.h.b16 %v1507
        %v4830 = vunpack.c.l.b16 %v1508
        %v4831 = vunpack.c.h.b16 %v1508
        %v4832 = vunpack.c.l.b16 %v1509
        %v4833 = vunpack.c.h.b16 %v1509
        %v4834 = vunpack.c.l.b16 %v1510
        %v4835 = vunpack.c.h.b16 %v1510
        %v4836 = vunpack.c.l.b16 %v1511
        %v4837 = vunpack.c.h.b16 %v1511
        %v4838 = vunpack.c.l.b16 %v1512
        %v4839 = vunpack.c.h.b16 %v1512
        %v4840 = vunpack.c.l.b16 %v1513
        %v4841 = vunpack.c.h.b16 %v1513
        %v4842 = vunpack.c.l.b16 %v1514
        %v4843 = vunpack.c.h.b16 %v1514
        %v4844 = vunpack.c.l.b16 %v1515
        %v4845 = vunpack.c.h.b16 %v1515
        %v4846 = vunpack.c.l.b16 %v1516
        %v4847 = vunpack.c.h.b16 %v1516
        %v4848 = vunpack.c.l.b16 %v1517
        %v4849 = vunpack.c.h.b16 %v1517
        %v4850 = vunpack.c.l.b16 %v1518
        %v4851 = vunpack.c.h.b16 %v1518
        %v4852 = vunpack.c.l.b16 %v1519
        %v4853 = vunpack.c.h.b16 %v1519
        %v4854 = vunpack.c.l.b16 %v1520
        %v4855 = vunpack.c.h.b16 %v1520
        %v4856 = vunpack.c.l.b16 %v1521
        %v4857 = vunpack.c.h.b16 %v1521
        %v4858 = vunpack.c.l.b16 %v1522
        %v4859 = vunpack.c.h.b16 %v1522
        %v4860 = vunpack.c.l.b16 %v1523
        %v4861 = vunpack.c.h.b16 %v1523
        %v4862 = vunpack.c.l.b16 %v1524
        %v4863 = vunpack.c.h.b16 %v1524
        %v4864 = vunpack.c.l.b16 %v1525
        %v4865 = vunpack.c.h.b16 %v1525
        %v4866 = vunpack.c.l.b16 %v1526
        %v4867 = vunpack.c.h.b16 %v1526
        %v4868 = vunpack.c.l.b16 %v1527
        %v4869 = vunpack.c.h.b16 %v1527
        %v4870 = vunpack.c.l.b16 %v1528
        %v4871 = vunpack.c.h.b16 %v1528
        %v4872 = vunpack.c.l.b16 %v1529
        %v4873 = vunpack.c.h.b16 %v1529
        %v4874 = vunpack.c.l.b16 %v1530
        %v4875 = vunpack.c.h.b16 %v1530
        %v4876 = vunpack.c.l.b16 %v1531
        %v4877 = vunpack.c.h.b16 %v1531
        %v4878 = vunpack.c.l.b16 %v1532
        %v4879 = vunpack.c.h.b16 %v1532
        %v4880 = vunpack.c.l.b16 %v1533
        %v4881 = vunpack.c.h.b16 %v1533
        %v4882 = vunpack.c.l.b16 %v1534
        %v4883 = vunpack.c.h.b16 %v1534
        %v4884 = vunpack.c.l.b16 %v1535
        %v4885 = vunpack.c.h.b16 %v1535
        %v4886 = vunpack.c.l.b16 %v1536
        %v4887 = vunpack.c.h.b16 %v1536
        %v4888 = vunpack.c.l.b16 %v1537
        %v4889 = vunpack.c.h.b16 %v1537
        %v4890 = vunpack.c.l.b16 %v1538
        %v4891 = vunpack.c.h.b16 %v1538
        %v4892 = vunpack.c.l.b16 %v1539
        %v4893 = vunpack.c.h.b16 %v1539
        %v4894 = vunpack.c.l.b16 %v1540
        %v4895 = vunpack.c.h.b16 %v1540
        %v4896 = vunpack.c.l.b16 %v1541
        %v4897 = vunpack.c.h.b16 %v1541
        %v4898 = vunpack.c.l.b16 %v1542
        %v4899 = vunpack.c.h.b16 %v1542
        %v4900 = vunpack.c.l.b16 %v1543
        %v4901 = vunpack.c.h.b16 %v1543
        %v4902 = vunpack.c.l.b16 %v1544
        %v4903 = vunpack.c.h.b16 %v1544
        %v4904 = vunpack.c.l.b16 %v1545
        %v4905 = vunpack.c.h.b16 %v1545
        %v4906 = vunpack.c.l.b16 %v1546
        %v4907 = vunpack.c.h.b16 %v1546
        %v4908 = vunpack.c.l.b16 %v1547
        %v4909 = vunpack.c.h.b16 %v1547
        %v4910 = vunpack.c.l.b16 %v1548
        %v4911 = vunpack.c.h.b16 %v1548
        %v4912 = vunpack.c.l.b16 %v1549
        %v4913 = vunpack.c.h.b16 %v1549
        %v4914 = vunpack.c.l.b16 %v1550
        %v4915 = vunpack.c.h.b16 %v1550
        %v4916 = vunpack.c.l.b16 %v1551
        %v4917 = vunpack.c.h.b16 %v1551
        %v4918 = vunpack.c.l.b16 %v1552
        %v4919 = vunpack.c.h.b16 %v1552
        %v4920 = vunpack.c.l.b16 %v1553
        %v4921 = vunpack.c.h.b16 %v1553
        %v4922 = vunpack.c.l.b16 %v1554
        %v4923 = vunpack.c.h.b16 %v1554
        %v4924 = vunpack.c.l.b16 %v1555
        %v4925 = vunpack.c.h.b16 %v1555
        %v4926 = vunpack.c.l.b16 %v1556
        %v4927 = vunpack.c.h.b16 %v1556
        %v4928 = vunpack.c.l.b16 %v1557
        %v4929 = vunpack.c.h.b16 %v1557
        %v4930 = vunpack.c.l.b16 %v1558
        %v4931 = vunpack.c.h.b16 %v1558
        %v4932 = vunpack.c.l.b16 %v1559
        %v4933 = vunpack.c.h.b16 %v1559
        %v4934 = vunpack.c.l.b16 %v1560
        %v4935 = vunpack.c.h.b16 %v1560
        %v4936 = vunpack.c.l.b16 %v1561
        %v4937 = vunpack.c.h.b16 %v1561
        %v4938 = vunpack.c.l.b16 %v1562
        %v4939 = vunpack.c.h.b16 %v1562
        %v4940 = vunpack.c.l.b16 %v1563
        %v4941 = vunpack.c.h.b16 %v1563
        %v4942 = vunpack.c.l.b16 %v1564
        %v4943 = vunpack.c.h.b16 %v1564
        %v4944 = vunpack.c.l.b16 %v1565
        %v4945 = vunpack.c.h.b16 %v1565
        %v4946 = vunpack.c.l.b16 %v1566
        %v4947 = vunpack.c.h.b16 %v1566
        %v4948 = vunpack.c.l.b16 %v1567
        %v4949 = vunpack.c.h.b16 %v1567
        %v4950 = vunpack.c.l.b16 %v1568
        %v4951 = vunpack.c.h.b16 %v1568
        %v4952 = vunpack.c.l.b16 %v1569
        %v4953 = vunpack.c.h.b16 %v1569
        %v4954 = vunpack.c.l.b16 %v1570
        %v4955 = vunpack.c.h.b16 %v1570
        %v4956 = vunpack.c.l.b16 %v1571
        %v4957 = vunpack.c.h.b16 %v1571
        %v4958 = vunpack.c.l.b16 %v1572
        %v4959 = vunpack.c.h.b16 %v1572
        %v4960 = vunpack.c.l.b16 %v1573
        %v4961 = vunpack.c.h.b16 %v1573
        %v4962 = vunpack.c.l.b16 %v1574
        %v4963 = vunpack.c.h.b16 %v1574
        %v4964 = vunpack.c.l.b16 %v1575
        %v4965 = vunpack.c.h.b16 %v1575
        %v4966 = vunpack.c.l.b16 %v1576
        %v4967 = vunpack.c.h.b16 %v1576
        %v4968 = vunpack.c.l.b16 %v1577
        %v4969 = vunpack.c.h.b16 %v1577
        %v4970 = vunpack.c.l.b16 %v1578
        %v4971 = vunpack.c.h.b16 %v1578
        %v4972 = vunpack.c.l.b16 %v1579
        %v4973 = vunpack.c.h.b16 %v1579
        %v4974 = vunpack.c.l.b16 %v1580
        %v4975 = vunpack.c.h.b16 %v1580
        %v4976 = vunpack.c.l.b16 %v1581
        %v4977 = vunpack.c.h.b16 %v1581
        %v4978 = vunpack.c.l.b16 %v1582
        %v4979 = vunpack.c.h.b16 %v1582
        %v4980 = vunpack.c.l.b16 %v1583
        %v4981 = vunpack.c.h.b16 %v1583
        %v4982 = vunpack.c.l.b16 %v1584
        %v4983 = vunpack.c.h.b16 %v1584
        %v4984 = vunpack.c.l.b16 %v1585
        %v4985 = vunpack.c.h.b16 %v1585
        %v4986 = vunpack.c.l.b16 %v1586
        %v4987 = vunpack.c.h.b16 %v1586
        %v4988 = vunpack.c.l.b16 %v1587
        %v4989 = vunpack.c.h.b16 %v1587
        %v4990 = vunpack.c.l.b16 %v1588
        %v4991 = vunpack.c.h.b16 %v1588
        %v4992 = vunpack.c.l.b16 %v1589
        %v4993 = vunpack.c.h.b16 %v1589
        %v4994 = vunpack.c.l.b16 %v1590
        %v4995 = vunpack.c.h.b16 %v1590
        %v4996 = vunpack.c.l.b16 %v1591
        %v4997 = vunpack.c.h.b16 %v1591
        %v4998 = vunpack.c.l.b16 %v1592
        %v4999 = vunpack.c.h.b16 %v1592
        %v5000 = vunpack.c.l.b16 %v1593
        %v5001 = vunpack.c.h.b16 %v1593
        %v5002 = vunpack.c.l.b16 %v1594
        %v5003 = vunpack.c.h.b16 %v1594
        %v5004 = vunpack.c.l.b16 %v1595
        %v5005 = vunpack.c.h.b16 %v1595
        %v5006 = vunpack.c.l.b16 %v1596
        %v5007 = vunpack.c.h.b16 %v1596
        %v5008 = vunpack.c.l.b16 %v1597
        %v5009 = vunpack.c.h.b16 %v1597
        %v5010 = vunpack.c.l.b16 %v1598
        %v5011 = vunpack.c.h.b16 %v1598
        %v5012 = vunpack.c.l.b16 %v1599
        %v5013 = vunpack.c.h.b16 %v1599
        %v5014 = vunpack.c.l.b16 %v1600
        %v5015 = vunpack.c.h.b16 %v1600
        %v5016 = vunpack.c.l.b16 %v1601
        %v5017 = vunpack.c.h.b16 %v1601
        %v5018 = vunpack.c.l.b16 %v1602
        %v5019 = vunpack.c.h.b16 %v1602
        %v5020 = vunpack.c.l.b16 %v1603
        %v5021 = vunpack.c.h.b16 %v1603
        %v5022 = vunpack.c.l.b16 %v1604
        %v5023 = vunpack.c.h.b16 %v1604
        %v5024 = vunpack.c.l.b16 %v1605
        %v5025 = vunpack.c.h.b16 %v1605
        %v5026 = vunpack.c.l.b16 %v1606
        %v5027 = vunpack.c.h.b16 %v1606
        %v5028 = vunpack.c.l.b16 %v1607
        %v5029 = vunpack.c.h.b16 %v1607
        %v5030 = vunpack.c.l.b16 %v1608
        %v5031 = vunpack.c.h.b16 %v1608
        %v5032 = vunpack.c.l.b16 %v1609
        %v5033 = vunpack.c.h.b16 %v1609
        %v5034 = vunpack.c.l.b16 %v1610
        %v5035 = vunpack.c.h.b16 %v1610
        %v5036 = vunpack.c.l.b16 %v1611
        %v5037 = vunpack.c.h.b16 %v1611
        %v5038 = vunpack.c.l.b16 %v1612
        %v5039 = vunpack.c.h.b16 %v1612
        %v5040 = vunpack.c.l.b16 %v1613
        %v5041 = vunpack.c.h.b16 %v1613
        %v5042 = vunpack.c.l.b16 %v1614
        %v5043 = vunpack.c.h.b16 %v1614
        %v5044 = vunpack.c.l.b16 %v1615
        %v5045 = vunpack.c.h.b16 %v1615
        %v5046 = vunpack.c.l.b16 %v1616
        %v5047 = vunpack.c.h.b16 %v1616
        %v5048 = vunpack.c.l.b16 %v1617
        %v5049 = vunpack.c.h.b16 %v1617
        %v5050 = vunpack.c.l.b16 %v1618
        %v5051 = vunpack.c.h.b16 %v1618
        %v5052 = vunpack.c.l.b16 %v1619
        %v5053 = vunpack.c.h.b16 %v1619
        %v5054 = vunpack.c.l.b16 %v1620
        %v5055 = vunpack.c.h.b16 %v1620
        %v5056 = vunpack.c.l.b16 %v1621
        %v5057 = vunpack.c.h.b16 %v1621
        %v5058 = vunpack.c.l.b16 %v1622
        %v5059 = vunpack.c.h.b16 %v1622
        %v5060 = vunpack.c.l.b16 %v1623
        %v5061 = vunpack.c.h.b16 %v1623
        %v5062 = vunpack.c.l.b16 %v1624
        %v5063 = vunpack.c.h.b16 %v1624
        %v5064 = vunpack.c.l.b16 %v1625
        %v5065 = vunpack.c.h.b16 %v1625
        %v5066 = vunpack.c.l.b16 %v1626
        %v5067 = vunpack.c.h.b16 %v1626
        %v5068 = vunpack.c.l.b16 %v1627
        %v5069 = vunpack.c.h.b16 %v1627
        %v5070 = vunpack.c.l.b16 %v1628
        %v5071 = vunpack.c.h.b16 %v1628
        %v5072 = vunpack.c.l.b16 %v1629
        %v5073 = vunpack.c.h.b16 %v1629
        %v5074 = vunpack.c.l.b16 %v1630
        %v5075 = vunpack.c.h.b16 %v1630
        %v5076 = vunpack.c.l.b16 %v1631
        %v5077 = vunpack.c.h.b16 %v1631
        %v5078 = vunpack.c.l.b16 %v1632
        %v5079 = vunpack.c.h.b16 %v1632
        %v5080 = vunpack.c.l.b16 %v1633
        %v5081 = vunpack.c.h.b16 %v1633
        %v5082 = vunpack.c.l.b16 %v1634
        %v5083 = vunpack.c.h.b16 %v1634
        %v5084 = vunpack.c.l.b16 %v1635
        %v5085 = vunpack.c.h.b16 %v1635
        %v5086 = vunpack.c.l.b16 %v1636
        %v5087 = vunpack.c.h.b16 %v1636
        %v5088 = vunpack.c.l.b16 %v1637
        %v5089 = vunpack.c.h.b16 %v1637
        %v5090 = vunpack.c.l.b16 %v1638
        %v5091 = vunpack.c.h.b16 %v1638
        %v5092 = vunpack.c.l.b16 %v1639
        %v5093 = vunpack.c.h.b16 %v1639
        %v5094 = vunpack.c.l.b16 %v1640
        %v5095 = vunpack.c.h.b16 %v1640
        %v5096 = vunpack.c.l.b16 %v1641
        %v5097 = vunpack.c.h.b16 %v1641
        %v5098 = vunpack.c.l.b16 %v1642
        %v5099 = vunpack.c.h.b16 %v1642
        %v5100 = vunpack.c.l.b16 %v1643
        %v5101 = vunpack.c.h.b16 %v1643
        %v5102 = vunpack.c.l.b16 %v1644
        %v5103 = vunpack.c.h.b16 %v1644
        %v5104 = vunpack.c.l.b16 %v1645
        %v5105 = vunpack.c.h.b16 %v1645
        %v5106 = vunpack.c.l.b16 %v1646
        %v5107 = vunpack.c.h.b16 %v1646
        %v5108 = vunpack.c.l.b16 %v1647
        %v5109 = vunpack.c.h.b16 %v1647
        %v5110 = vunpack.c.l.b16 %v1648
        %v5111 = vunpack.c.h.b16 %v1648
        %v5112 = vunpack.c.l.b16 %v1649
        %v5113 = vunpack.c.h.b16 %v1649
        %v5114 = vunpack.c.l.b16 %v1650
        %v5115 = vunpack.c.h.b16 %v1650
        %v5116 = vunpack.c.l.b16 %v1651
        %v5117 = vunpack.c.h.b16 %v1651
        %v5118 = vunpack.c.l.b16 %v1652
        %v5119 = vunpack.c.h.b16 %v1652
        %v5120 = vunpack.c.l.b16 %v1653
        %v5121 = vunpack.c.h.b16 %v1653
        %v5122 = vunpack.c.l.b16 %v1654
        %v5123 = vunpack.c.h.b16 %v1654
        %v5124 = vunpack.c.l.b16 %v1655
        %v5125 = vunpack.c.h.b16 %v1655
        %v5126 = vunpack.c.l.b16 %v1656
        %v5127 = vunpack.c.h.b16 %v1656
        %v5128 = vunpack.c.l.b16 %v1657
        %v5129 = vunpack.c.h.b16 %v1657
        %v5130 = vunpack.c.l.b16 %v1658
        %v5131 = vunpack.c.h.b16 %v1658
        %v5132 = vunpack.c.l.b16 %v1659
        %v5133 = vunpack.c.h.b16 %v1659
        %v5134 = vunpack.c.l.b16 %v1660
        %v5135 = vunpack.c.h.b16 %v1660
        %v5136 = vunpack.c.l.b16 %v1661
        %v5137 = vunpack.c.h.b16 %v1661
        %v5138 = vunpack.c.l.b16 %v1662
        %v5139 = vunpack.c.h.b16 %v1662
        %v5140 = vunpack.c.l.b16 %v1663
        %v5141 = vunpack.c.h.b16 %v1663
        %v5142 = vunpack.c.l.b16 %v1664
        %v5143 = vunpack.c.h.b16 %v1664
        %v5144 = vunpack.c.l.b16 %v1665
        %v5145 = vunpack.c.h.b16 %v1665
        %v5146 = vunpack.c.l.b16 %v1666
        %v5147 = vunpack.c.h.b16 %v1666
        %v5148 = vunpack.c.l.b16 %v1667
        %v5149 = vunpack.c.h.b16 %v1667
        %v5150 = vunpack.c.l.b16 %v1668
        %v5151 = vunpack.c.h.b16 %v1668
        %v5152 = vunpack.c.l.b16 %v1669
        %v5153 = vunpack.c.h.b16 %v1669
        %v5154 = vunpack.c.l.b16 %v1670
        %v5155 = vunpack.c.h.b16 %v1670
        %v5156 = vunpack.c.l.b16 %v1671
        %v5157 = vunpack.c.h.b16 %v1671
        %v5158 = vunpack.c.l.b16 %v1672
        %v5159 = vunpack.c.h.b16 %v1672
        %v5160 = vunpack.c.l.b16 %v1673
        %v5161 = vunpack.c.h.b16 %v1673
        %v5162 = vunpack.c.l.b16 %v1674
        %v5163 = vunpack.c.h.b16 %v1674
        %v5164 = vunpack.c.l.b16 %v1675
        %v5165 = vunpack.c.h.b16 %v1675
        %v5166 = vunpack.c.l.b16 %v1676
        %v5167 = vunpack.c.h.b16 %v1676
        %v5168 = vunpack.c.l.b16 %v1677
        %v5169 = vunpack.c.h.b16 %v1677
        %v5170 = vunpack.c.l.b16 %v1678
        %v5171 = vunpack.c.h.b16 %v1678
        %v5172 = vunpack.c.l.b16 %v1679
        %v5173 = vunpack.c.h.b16 %v1679
        %v5174 = vunpack.c.l.b16 %v1680
        %v5175 = vunpack.c.h.b16 %v1680
        %v5176 = vunpack.c.l.b16 %v1681
        %v5177 = vunpack.c.h.b16 %v1681
        %v5178 = vunpack.c.l.b16 %v1682
        %v5179 = vunpack.c.h.b16 %v1682
        %v5180 = vunpack.c.l.b16 %v1683
        %v5181 = vunpack.c.h.b16 %v1683
        %v5182 = vunpack.c.l.b16 %v1684
        %v5183 = vunpack.c.h.b16 %v1684
        %v5184 = vunpack.c.l.b16 %v1685
        %v5185 = vunpack.c.h.b16 %v1685
        %v5186 = vunpack.c.l.b16 %v1686
        %v5187 = vunpack.c.h.b16 %v1686
        %v5188 = vunpack.c.l.b16 %v1687
        %v5189 = vunpack.c.h.b16 %v1687
        %v5190 = vunpack.c.l.b16 %v1688
        %v5191 = vunpack.c.h.b16 %v1688
        %v5192 = vunpack.c.l.b16 %v1689
        %v5193 = vunpack.c.h.b16 %v1689
        %v5194 = vunpack.c.l.b16 %v1690
        %v5195 = vunpack.c.h.b16 %v1690
        %v5196 = vunpack.c.l.b16 %v1691
        %v5197 = vunpack.c.h.b16 %v1691
        %v5198 = vunpack.c.l.b16 %v1692
        %v5199 = vunpack.c.h.b16 %v1692
        %v5200 = vunpack.c.l.b16 %v1693
        %v5201 = vunpack.c.h.b16 %v1693
        %v5202 = vunpack.c.l.b16 %v1694
        %v5203 = vunpack.c.h.b16 %v1694
        %v5204 = vunpack.c.l.b16 %v1695
        %v5205 = vunpack.c.h.b16 %v1695
        %v5206 = vunpack.c.l.b16 %v1696
        %v5207 = vunpack.c.h.b16 %v1696
        %v5208 = vunpack.c.l.b16 %v1697
        %v5209 = vunpack.c.h.b16 %v1697
        %v5210 = vunpack.c.l.b16 %v1698
        %v5211 = vunpack.c.h.b16 %v1698
        %v5212 = vunpack.c.l.b16 %v1699
        %v5213 = vunpack.c.h.b16 %v1699
        %v5214 = vunpack.c.l.b16 %v1700
        %v5215 = vunpack.c.h.b16 %v1700
        %v5216 = vunpack.c.l.b16 %v1701
        %v5217 = vunpack.c.h.b16 %v1701
        %v5218 = vunpack.c.l.b16 %v1702
        %v5219 = vunpack.c.h.b16 %v1702
        %v5220 = vunpack.c.l.b16 %v1703
        %v5221 = vunpack.c.h.b16 %v1703
        %v5222 = vunpack.c.l.b16 %v1704
        %v5223 = vunpack.c.h.b16 %v1704
        %v5224 = vunpack.c.l.b16 %v1705
        %v5225 = vunpack.c.h.b16 %v1705
        %v5226 = vunpack.c.l.b16 %v1706
        %v5227 = vunpack.c.h.b16 %v1706
        %v5228 = vunpack.c.l.b16 %v1707
        %v5229 = vunpack.c.h.b16 %v1707
        %v5230 = vunpack.c.l.b16 %v1708
        %v5231 = vunpack.c.h.b16 %v1708
        %v5232 = vunpack.c.l.b16 %v1709
        %v5233 = vunpack.c.h.b16 %v1709
        %v5234 = vunpack.c.l.b16 %v1710
        %v5235 = vunpack.c.h.b16 %v1710
        %v5236 = vunpack.c.l.b16 %v1711
        %v5237 = vunpack.c.h.b16 %v1711
        %v5238 = vunpack.c.l.b16 %v1712
        %v5239 = vunpack.c.h.b16 %v1712
        %v5240 = vunpack.c.l.b16 %v1713
        %v5241 = vunpack.c.h.b16 %v1713
        %v5242 = vunpack.c.l.b16 %v1714
        %v5243 = vunpack.c.h.b16 %v1714
        %v5244 = vunpack.c.l.b16 %v1715
        %v5245 = vunpack.c.h.b16 %v1715
        %v5246 = vunpack.c.l.b16 %v1716
        %v5247 = vunpack.c.h.b16 %v1716
        %v5248 = vunpack.c.l.b16 %v1717
        %v5249 = vunpack.c.h.b16 %v1717
        %v5250 = vunpack.c.l.b16 %v1718
        %v5251 = vunpack.c.h.b16 %v1718
        %v5252 = vunpack.c.l.b16 %v1719
        %v5253 = vunpack.c.h.b16 %v1719
        %v5254 = vunpack.c.l.b16 %v1720
        %v5255 = vunpack.c.h.b16 %v1720
        %v5256 = vunpack.c.l.b16 %v1721
        %v5257 = vunpack.c.h.b16 %v1721
        %v5258 = vunpack.c.l.b16 %v1722
        %v5259 = vunpack.c.h.b16 %v1722
        %v5260 = vunpack.c.l.b16 %v1723
        %v5261 = vunpack.c.h.b16 %v1723
        %v5262 = vunpack.c.l.b16 %v1724
        %v5263 = vunpack.c.h.b16 %v1724
        %v5264 = vunpack.c.l.b16 %v1725
        %v5265 = vunpack.c.h.b16 %v1725
        %v5266 = vunpack.c.l.b16 %v1726
        %v5267 = vunpack.c.h.b16 %v1726
        %v5268 = vunpack.c.l.b16 %v1727
        %v5269 = vunpack.c.h.b16 %v1727
        %v5270 = vunpack.c.l.b16 %v1728
        %v5271 = vunpack.c.h.b16 %v1728
        %v5272 = vunpack.c.l.b16 %v1729
        %v5273 = vunpack.c.h.b16 %v1729
        %v5274 = vunpack.c.l.b16 %v1730
        %v5275 = vunpack.c.h.b16 %v1730
        %v5276 = vunpack.c.l.b16 %v1731
        %v5277 = vunpack.c.h.b16 %v1731
        %v5278 = vunpack.c.l.b16 %v1732
        %v5279 = vunpack.c.h.b16 %v1732
        %v5280 = vunpack.c.l.b16 %v1733
        %v5281 = vunpack.c.h.b16 %v1733
        %v5282 = vunpack.c.l.b16 %v1734
        %v5283 = vunpack.c.h.b16 %v1734
        %v5284 = vunpack.c.l.b16 %v1735
        %v5285 = vunpack.c.h.b16 %v1735
        %v5286 = vunpack.c.l.b16 %v1736
        %v5287 = vunpack.c.h.b16 %v1736
        %v5288 = vunpack.c.l.b16 %v1737
        %v5289 = vunpack.c.h.b16 %v1737
        %v5290 = vunpack.c.l.b16 %v1738
        %v5291 = vunpack.c.h.b16 %v1738
        %v5292 = vunpack.c.l.b16 %v1739
        %v5293 = vunpack.c.h.b16 %v1739
        %v5294 = vunpack.c.l.b16 %v1740
        %v5295 = vunpack.c.h.b16 %v1740
        %v5296 = vunpack.c.l.b16 %v1741
        %v5297 = vunpack.c.h.b16 %v1741
        %v5298 = vunpack.c.l.b16 %v1742
        %v5299 = vunpack.c.h.b16 %v1742
        %v5300 = vunpack.c.l.b16 %v1743
        %v5301 = vunpack.c.h.b16 %v1743
        %v5302 = vunpack.c.l.b16 %v1744
        %v5303 = vunpack.c.h.b16 %v1744
        %v5304 = vunpack.c.l.b16 %v1745
        %v5305 = vunpack.c.h.b16 %v1745
        %v5306 = vunpack.c.l.b16 %v1746
        %v5307 = vunpack.c.h.b16 %v1746
        %v5308 = vunpack.c.l.b16 %v1747
        %v5309 = vunpack.c.h.b16 %v1747
        %v5310 = vunpack.c.l.b16 %v1748
        %v5311 = vunpack.c.h.b16 %v1748
        %v5312 = vunpack.c.l.b16 %v1749
        %v5313 = vunpack.c.h.b16 %v1749
        %v5314 = vunpack.c.l.b16 %v1750
        %v5315 = vunpack.c.h.b16 %v1750
        %v5316 = vunpack.c.l.b16 %v1751
        %v5317 = vunpack.c.h.b16 %v1751
        %v5318 = vunpack.c.l.b16 %v1752
        %v5319 = vunpack.c.h.b16 %v1752
        %v5320 = vunpack.c.l.b16 %v1753
        %v5321 = vunpack.c.h.b16 %v1753
        %v5322 = vunpack.c.l.b16 %v1754
        %v5323 = vunpack.c.h.b16 %v1754
        %v5324 = vunpack.c.l.b16 %v1755
        %v5325 = vunpack.c.h.b16 %v1755
        %v5326 = vunpack.c.l.b16 %v1756
        %v5327 = vunpack.c.h.b16 %v1756
        %v5328 = vunpack.c.l.b16 %v1757
        %v5329 = vunpack.c.h.b16 %v1757
        %v5330 = vunpack.c.l.b16 %v1758
        %v5331 = vunpack.c.h.b16 %v1758
        %v5332 = vunpack.c.l.b16 %v1759
        %v5333 = vunpack.c.h.b16 %v1759
        %v5334 = vunpack.c.l.b16 %v1760
        %v5335 = vunpack.c.h.b16 %v1760
        %v5336 = vunpack.c.l.b16 %v1761
        %v5337 = vunpack.c.h.b16 %v1761
        %v5338 = vunpack.c.l.b16 %v1762
        %v5339 = vunpack.c.h.b16 %v1762
        %v5340 = vunpack.c.l.b16 %v1763
        %v5341 = vunpack.c.h.b16 %v1763
        %v5342 = vunpack.c.l.b16 %v1764
        %v5343 = vunpack.c.h.b16 %v1764
        %v5344 = vunpack.c.l.b16 %v1765
        %v5345 = vunpack.c.h.b16 %v1765
        %v5346 = vunpack.c.l.b16 %v1766
        %v5347 = vunpack.c.h.b16 %v1766
        %v5348 = vunpack.c.l.b16 %v1767
        %v5349 = vunpack.c.h.b16 %v1767
        %v5350 = vunpack.c.l.b16 %v1768
        %v5351 = vunpack.c.h.b16 %v1768
        %v5352 = vunpack.c.l.b16 %v1769
        %v5353 = vunpack.c.h.b16 %v1769
        %v5354 = vunpack.c.l.b16 %v1770
        %v5355 = vunpack.c.h.b16 %v1770
        %v5356 = vunpack.c.l.b16 %v1771
        %v5357 = vunpack.c.h.b16 %v1771
        %v5358 = vunpack.c.l.b16 %v1772
        %v5359 = vunpack.c.h.b16 %v1772
        %v5360 = vunpack.c.l.b16 %v1773
        %v5361 = vunpack.c.h.b16 %v1773
        %v5362 = vunpack.c.l.b16 %v1774
        %v5363 = vunpack.c.h.b16 %v1774
        %v5364 = vunpack.c.l.b16 %v1775
        %v5365 = vunpack.c.h.b16 %v1775
        %v5366 = vunpack.c.l.b16 %v1776
        %v5367 = vunpack.c.h.b16 %v1776
        %v5368 = vunpack.c.l.b16 %v1777
        %v5369 = vunpack.c.h.b16 %v1777
        %v5370 = vunpack.c.l.b16 %v1778
        %v5371 = vunpack.c.h.b16 %v1778
        %v5372 = vunpack.c.l.b16 %v1779
        %v5373 = vunpack.c.h.b16 %v1779
        %v5374 = vunpack.c.l.b16 %v1780
        %v5375 = vunpack.c.h.b16 %v1780
        %v5376 = vunpack.c.l.b16 %v1781
        %v5377 = vunpack.c.h.b16 %v1781
        %v5378 = vunpack.c.l.b16 %v1782
        %v5379 = vunpack.c.h.b16 %v1782
        %v5380 = vunpack.c.l.b16 %v1783
        %v5381 = vunpack.c.h.b16 %v1783
        %v5382 = vunpack.c.l.b16 %v1784
        %v5383 = vunpack.c.h.b16 %v1784
        %v5384 = vunpack.c.l.b16 %v1785
        %v5385 = vunpack.c.h.b16 %v1785
        %v5386 = vunpack.c.l.b16 %v1786
        %v5387 = vunpack.c.h.b16 %v1786
        %v5388 = vunpack.c.l.b16 %v1787
        %v5389 = vunpack.c.h.b16 %v1787
        %v5390 = vunpack.c.l.b16 %v1788
        %v5391 = vunpack.c.h.b16 %v1788
        %v5392 = vunpack.c.l.b16 %v1789
        %v5393 = vunpack.c.h.b16 %v1789
        %v5394 = vunpack.c.l.b16 %v1790
        %v5395 = vunpack.c.h.b16 %v1790
        %v5396 = vunpack.c.l.b16 %v1791
        %v5397 = vunpack.c.h.b16 %v1791
        %v5398 = vunpack.c.l.b16 %v1792
        %v5399 = vunpack.c.h.b16 %v1792
        %v5400 = vunpack.c.l.b16 %v1793
        %v5401 = vunpack.c.h.b16 %v1793
        %v5402 = vunpack.c.l.b16 %v1794
        %v5403 = vunpack.c.h.b16 %v1794
        %v5404 = vunpack.c.l.b16 %v1795
        %v5405 = vunpack.c.h.b16 %v1795
        %v5406 = vunpack.c.l.b16 %v1796
        %v5407 = vunpack.c.h.b16 %v1796
        %v5408 = vunpack.c.l.b16 %v1797
        %v5409 = vunpack.c.h.b16 %v1797
        %v5410 = vunpack.c.l.b16 %v1798
        %v5411 = vunpack.c.h.b16 %v1798
        %v5412 = vunpack.c.l.b16 %v1799
        %v5413 = vunpack.c.h.b16 %v1799
        %v5414 = vunpack.c.l.b16 %v1800
        %v5415 = vunpack.c.h.b16 %v1800
        %v5416 = vunpack.c.l.b16 %v1801
        %v5417 = vunpack.c.h.b16 %v1801
        %v5418 = vunpack.c.l.b16 %v1802
        %v5419 = vunpack.c.h.b16 %v1802
        %v5420 = vunpack.c.l.b16 %v1803
        %v5421 = vunpack.c.h.b16 %v1803
        %v5422 = vunpack.c.l.b16 %v1804
        %v5423 = vunpack.c.h.b16 %v1804
        %v5424 = vunpack.c.l.b16 %v1805
        %v5425 = vunpack.c.h.b16 %v1805
        %v5426 = vunpack.c.l.b16 %v1806
        %v5427 = vunpack.c.h.b16 %v1806
        %v5428 = vunpack.c.l.b16 %v1807
        %v5429 = vunpack.c.h.b16 %v1807
        %v5430 = vunpack.c.l.b16 %v1808
        %v5431 = vunpack.c.h.b16 %v1808
        %v5432 = vunpack.c.l.b16 %v1809
        %v5433 = vunpack.c.h.b16 %v1809
        %v5434 = vunpack.c.l.b16 %v1810
        %v5435 = vunpack.c.h.b16 %v1810
        %v5436 = vunpack.c.l.b16 %v1811
        %v5437 = vunpack.c.h.b16 %v1811
        %v5438 = vunpack.c.l.b16 %v1812
        %v5439 = vunpack.c.h.b16 %v1812
        %v5440 = vunpack.c.l.b16 %v1813
        %v5441 = vunpack.c.h.b16 %v1813
        %v5442 = vunpack.c.l.b16 %v1814
        %v5443 = vunpack.c.h.b16 %v1814
        %v5444 = vunpack.c.l.b16 %v1815
        %v5445 = vunpack.c.h.b16 %v1815
        %v5446 = vunpack.c.l.b16 %v1816
        %v5447 = vunpack.c.h.b16 %v1816
        %v5448 = vunpack.c.l.b16 %v1817
        %v5449 = vunpack.c.h.b16 %v1817
        %v5450 = vunpack.c.l.b16 %v1818
        %v5451 = vunpack.c.h.b16 %v1818
        %v5452 = vunpack.c.l.b16 %v1819
        %v5453 = vunpack.c.h.b16 %v1819
        %v5454 = vunpack.c.l.b16 %v1820
        %v5455 = vunpack.c.h.b16 %v1820
        %v5456 = vunpack.c.l.b16 %v1821
        %v5457 = vunpack.c.h.b16 %v1821
        %v5458 = vunpack.c.l.b16 %v1822
        %v5459 = vunpack.c.h.b16 %v1822
        %v5460 = vunpack.c.l.b16 %v1823
        %v5461 = vunpack.c.h.b16 %v1823
        %v5462 = vunpack.c.l.b16 %v1824
        %v5463 = vunpack.c.h.b16 %v1824
        %v5464 = vunpack.c.l.b16 %v1825
        %v5465 = vunpack.c.h.b16 %v1825
        %v5466 = vunpack.c.l.b16 %v1826
        %v5467 = vunpack.c.h.b16 %v1826
        %v5468 = vunpack.c.l.b16 %v1827
        %v5469 = vunpack.c.h.b16 %v1827
        %v5470 = vunpack.c.l.b16 %v1828
        %v5471 = vunpack.c.h.b16 %v1828
        %v5472 = vunpack.c.l.b16 %v1829
        %v5473 = vunpack.c.h.b16 %v1829
        %v5474 = vunpack.c.l.b16 %v1830
        %v5475 = vunpack.c.h.b16 %v1830
        %v5476 = vunpack.c.l.b16 %v1831
        %v5477 = vunpack.c.h.b16 %v1831
        %v5478 = vunpack.c.l.b16 %v1832
        %v5479 = vunpack.c.h.b16 %v1832
        %v5480 = vunpack.c.l.b16 %v1833
        %v5481 = vunpack.c.h.b16 %v1833
        %v5482 = vunpack.c.l.b16 %v1834
        %v5483 = vunpack.c.h.b16 %v1834
        %v5484 = vunpack.c.l.b16 %v1835
        %v5485 = vunpack.c.h.b16 %v1835
        %v5486 = vunpack.c.l.b16 %v1836
        %v5487 = vunpack.c.h.b16 %v1836
        %v5488 = vunpack.c.l.b16 %v1837
        %v5489 = vunpack.c.h.b16 %v1837
        %v5490 = vunpack.c.l.b16 %v1838
        %v5491 = vunpack.c.h.b16 %v1838
        %v5492 = vunpack.c.l.b16 %v1839
        %v5493 = vunpack.c.h.b16 %v1839
        %v5494 = vunpack.c.l.b16 %v1840
        %v5495 = vunpack.c.h.b16 %v1840
        %v5496 = vunpack.c.l.b16 %v1841
        %v5497 = vunpack.c.h.b16 %v1841
        %v5498 = vunpack.c.l.b16 %v1842
        %v5499 = vunpack.c.h.b16 %v1842
        %v5500 = vunpack.c.l.b16 %v1843
        %v5501 = vunpack.c.h.b16 %v1843
        %v5502 = vunpack.c.l.b16 %v1844
        %v5503 = vunpack.c.h.b16 %v1844
        %v5504 = vunpack.c.l.b16 %v1845
        %v5505 = vunpack.c.h.b16 %v1845
        %v5506 = vunpack.c.l.b16 %v1846
        %v5507 = vunpack.c.h.b16 %v1846
        %v5508 = vunpack.c.l.b16 %v1847
        %v5509 = vunpack.c.h.b16 %v1847
        %v5510 = vunpack.c.l.b16 %v1848
        %v5511 = vunpack.c.h.b16 %v1848
        %v5512 = vunpack.c.l.b16 %v1849
        %v5513 = vunpack.c.h.b16 %v1849
        %v5514 = vunpack.c.l.b16 %v1850
        %v5515 = vunpack.c.h.b16 %v1850
        %v5516 = vunpack.c.l.b16 %v1851
        %v5517 = vunpack.c.h.b16 %v1851
        %v5518 = vunpack.c.l.b16 %v1852
        %v5519 = vunpack.c.h.b16 %v1852
        %v5520 = vunpack.c.l.b16 %v1853
        %v5521 = vunpack.c.h.b16 %v1853
        %v5522 = vunpack.c.l.b16 %v1854
        %v5523 = vunpack.c.h.b16 %v1854
        %v5524 = vunpack.c.l.b16 %v1855
        %v5525 = vunpack.c.h.b16 %v1855
        %v5526 = vunpack.c.l.b16 %v1856
        %v5527 = vunpack.c.h.b16 %v1856
        %v5528 = vunpack.c.l.b16 %v1857
        %v5529 = vunpack.c.h.b16 %v1857
        %v5530 = vunpack.c.l.b16 %v1858
        %v5531 = vunpack.c.h.b16 %v1858
        %v5532 = vunpack.c.l.b16 %v1859
        %v5533 = vunpack.c.h.b16 %v1859
        %v5534 = vunpack.c.l.b16 %v1860
        %v5535 = vunpack.c.h.b16 %v1860
        %v5536 = vunpack.c.l.b16 %v1861
        %v5537 = vunpack.c.h.b16 %v1861
        %v5538 = vunpack.c.l.b16 %v1862
        %v5539 = vunpack.c.h.b16 %v1862
        %v5540 = vunpack.c.l.b16 %v1863
        %v5541 = vunpack.c.h.b16 %v1863
        %v5542 = vunpack.c.l.b16 %v1864
        %v5543 = vunpack.c.h.b16 %v1864
        %v5544 = vunpack.c.l.b16 %v1865
        %v5545 = vunpack.c.h.b16 %v1865
        %v5546 = vunpack.c.l.b16 %v1866
        %v5547 = vunpack.c.h.b16 %v1866
        %v5548 = vunpack.c.l.b16 %v1867
        %v5549 = vunpack.c.h.b16 %v1867
        %v5550 = vunpack.c.l.b16 %v1868
        %v5551 = vunpack.c.h.b16 %v1868
        %v5552 = vunpack.c.l.b16 %v1869
        %v5553 = vunpack.c.h.b16 %v1869
        %v5554 = vunpack.c.l.b16 %v1870
        %v5555 = vunpack.c.h.b16 %v1870
        %v5556 = vunpack.c.l.b16 %v1871
        %v5557 = vunpack.c.h.b16 %v1871
        %v5558 = vunpack.c.l.b16 %v1872
        %v5559 = vunpack.c.h.b16 %v1872
        %v5560 = vunpack.c.l.b16 %v1873
        %v5561 = vunpack.c.h.b16 %v1873
        %v5562 = vunpack.c.l.b16 %v1874
        %v5563 = vunpack.c.h.b16 %v1874
        %v5564 = vunpack.c.l.b16 %v1875
        %v5565 = vunpack.c.h.b16 %v1875
        %v5566 = vunpack.c.l.b16 %v1876
        %v5567 = vunpack.c.h.b16 %v1876
        %v5568 = vunpack.c.l.b16 %v1877
        %v5569 = vunpack.c.h.b16 %v1877
        %v5570 = vunpack.c.l.b16 %v1878
        %v5571 = vunpack.c.h.b16 %v1878
        %v5572 = vunpack.c.l.b16 %v1879
        %v5573 = vunpack.c.h.b16 %v1879
        %v5574 = vunpack.c.l.b16 %v1880
        %v5575 = vunpack.c.h.b16 %v1880
        %v5576 = vunpack.c.l.b16 %v1881
        %v5577 = vunpack.c.h.b16 %v1881
        %v5578 = vunpack.c.l.b16 %v1882
        %v5579 = vunpack.c.h.b16 %v1882
        %v5580 = vunpack.c.l.b16 %v1883
        %v5581 = vunpack.c.h.b16 %v1883
        %v5582 = vunpack.c.l.b16 %v1884
        %v5583 = vunpack.c.h.b16 %v1884
        %v5584 = vunpack.c.l.b16 %v1885
        %v5585 = vunpack.c.h.b16 %v1885
        %v5586 = vunpack.c.l.b16 %v1886
        %v5587 = vunpack.c.h.b16 %v1886
        %v5588 = vunpack.c.l.b16 %v1887
        %v5589 = vunpack.c.h.b16 %v1887
        %v5590 = vunpack.c.l.b16 %v1888
        %v5591 = vunpack.c.h.b16 %v1888
        %v5592 = vunpack.c.l.b16 %v1889
        %v5593 = vunpack.c.h.b16 %v1889
        %v5594 = vunpack.c.l.b16 %v1890
        %v5595 = vunpack.c.h.b16 %v1890
        %v5596 = vunpack.c.l.b16 %v1891
        %v5597 = vunpack.c.h.b16 %v1891
        %v5598 = vunpack.c.l.b16 %v1892
        %v5599 = vunpack.c.h.b16 %v1892
        %v5600 = vunpack.c.l.b16 %v1893
        %v5601 = vunpack.c.h.b16 %v1893
        %v5602 = vunpack.c.l.b16 %v1894
        %v5603 = vunpack.c.h.b16 %v1894
        %v5604 = vunpack.c.l.b16 %v1895
        %v5605 = vunpack.c.h.b16 %v1895
        %v5606 = vunpack.c.l.b16 %v1896
        %v5607 = vunpack.c.h.b16 %v1896
        %v5608 = vunpack.c.l.b16 %v1897
        %v5609 = vunpack.c.h.b16 %v1897
        %v5610 = vunpack.c.l.b16 %v1898
        %v5611 = vunpack.c.h.b16 %v1898
        %v5612 = vunpack.c.l.b16 %v1899
        %v5613 = vunpack.c.h.b16 %v1899
        %v5614 = vunpack.c.l.b16 %v1900
        %v5615 = vunpack.c.h.b16 %v1900
        %v5616 = vunpack.c.l.b16 %v1901
        %v5617 = vunpack.c.h.b16 %v1901
        %v5618 = vunpack.c.l.b16 %v1902
        %v5619 = vunpack.c.h.b16 %v1902
        %v5620 = vunpack.c.l.b16 %v1903
        %v5621 = vunpack.c.h.b16 %v1903
        %v5622 = vunpack.c.l.b16 %v1904
        %v5623 = vunpack.c.h.b16 %v1904
        %v5624 = vunpack.c.l.b16 %v1905
        %v5625 = vunpack.c.h.b16 %v1905
        %v5626 = vunpack.c.l.b16 %v1906
        %v5627 = vunpack.c.h.b16 %v1906
        %v5628 = vunpack.c.l.b16 %v1907
        %v5629 = vunpack.c.h.b16 %v1907
        %v5630 = vunpack.c.l.b16 %v1908
        %v5631 = vunpack.c.h.b16 %v1908
        %v5632 = vunpack.c.l.b16 %v1909
        %v5633 = vunpack.c.h.b16 %v1909
        %v5634 = vunpack.c.l.b16 %v1910
        %v5635 = vunpack.c.h.b16 %v1910
        %v5636 = vunpack.c.l.b16 %v1911
        %v5637 = vunpack.c.h.b16 %v1911
        %v5638 = vunpack.c.l.b16 %v1912
        %v5639 = vunpack.c.h.b16 %v1912
        %v5640 = vunpack.c.l.b16 %v1913
        %v5641 = vunpack.c.h.b16 %v1913
        %v5642 = vunpack.c.l.b16 %v1914
        %v5643 = vunpack.c.h.b16 %v1914
        %v5644 = vunpack.c.l.b16 %v1915
        %v5645 = vunpack.c.h.b16 %v1915
        %v5646 = vunpack.c.l.b16 %v1916
        %v5647 = vunpack.c.h.b16 %v1916
        %v5648 = vunpack.c.l.b16 %v1917
        %v5649 = vunpack.c.h.b16 %v1917
        %v5650 = vunpack.c.l.b16 %v1918
        %v5651 = vunpack.c.h.b16 %v1918
        %v5652 = vunpack.c.l.b16 %v1919
        %v5653 = vunpack.c.h.b16 %v1919
        %v5654 = vunpack.c.l.b16 %v1920
        %v5655 = vunpack.c.h.b16 %v1920
        %v5656 = vunpack.c.l.b16 %v1921
        %v5657 = vunpack.c.h.b16 %v1921
        %v5658 = vunpack.c.l.b16 %v1922
        %v5659 = vunpack.c.h.b16 %v1922
        %v5660 = vunpack.c.l.b16 %v1923
        %v5661 = vunpack.c.h.b16 %v1923
        %v5662 = vunpack.c.l.b16 %v1924
        %v5663 = vunpack.c.h.b16 %v1924
        %v5664 = vunpack.c.l.b16 %v1925
        %v5665 = vunpack.c.h.b16 %v1925
        %v5666 = vunpack.c.l.b16 %v1926
        %v5667 = vunpack.c.h.b16 %v1926
        %v5668 = vunpack.c.l.b16 %v1927
        %v5669 = vunpack.c.h.b16 %v1927
        %v5670 = vunpack.c.l.b16 %v1928
        %v5671 = vunpack.c.h.b16 %v1928
        %v5672 = vunpack.c.l.b16 %v1929
        %v5673 = vunpack.c.h.b16 %v1929
        %v5674 = vunpack.c.l.b16 %v1930
        %v5675 = vunpack.c.h.b16 %v1930
        %v5676 = vunpack.c.l.b16 %v1931
        %v5677 = vunpack.c.h.b16 %v1931
        %v5678 = vunpack.c.l.b16 %v1932
        %v5679 = vunpack.c.h.b16 %v1932
        %v5680 = vunpack.c.l.b16 %v1933
        %v5681 = vunpack.c.h.b16 %v1933
        %v5682 = vunpack.c.l.b16 %v1934
        %v5683 = vunpack.c.h.b16 %v1934
        %v5684 = vunpack.c.l.b16 %v1935
        %v5685 = vunpack.c.h.b16 %v1935
        %v5686 = vunpack.c.l.b16 %v1936
        %v5687 = vunpack.c.h.b16 %v1936
        %v5688 = vunpack.c.l.b16 %v1937
        %v5689 = vunpack.c.h.b16 %v1937
        %v5690 = vunpack.c.l.b16 %v1938
        %v5691 = vunpack.c.h.b16 %v1938
        %v5692 = vunpack.c.l.b16 %v1939
        %v5693 = vunpack.c.h.b16 %v1939
        %v5694 = vunpack.c.l.b16 %v1940
        %v5695 = vunpack.c.h.b16 %v1940
        %v5696 = vunpack.c.l.b16 %v1941
        %v5697 = vunpack.c.h.b16 %v1941
        %v5698 = vunpack.c.l.b16 %v1942
        %v5699 = vunpack.c.h.b16 %v1942
        %v5700 = vunpack.c.l.b16 %v1943
        %v5701 = vunpack.c.h.b16 %v1943
        %v5702 = vunpack.c.l.b16 %v1944
        %v5703 = vunpack.c.h.b16 %v1944
        %v5704 = vunpack.c.l.b16 %v1945
        %v5705 = vunpack.c.h.b16 %v1945
        %v5706 = vunpack.c.l.b16 %v1946
        %v5707 = vunpack.c.h.b16 %v1946
        %v5708 = vunpack.c.l.b16 %v1947
        %v5709 = vunpack.c.h.b16 %v1947
        %v5710 = vunpack.c.l.b16 %v1948
        %v5711 = vunpack.c.h.b16 %v1948
        %v5712 = vunpack.c.l.b16 %v1949
        %v5713 = vunpack.c.h.b16 %v1949
        %v5714 = vunpack.c.l.b16 %v1950
        %v5715 = vunpack.c.h.b16 %v1950
        %v5716 = vunpack.c.l.b16 %v1951
        %v5717 = vunpack.c.h.b16 %v1951
        %v5718 = vunpack.c.l.b16 %v1952
        %v5719 = vunpack.c.h.b16 %v1952
        %v5720 = vunpack.c.l.b16 %v1953
        %v5721 = vunpack.c.h.b16 %v1953
        %v5722 = vunpack.c.l.b16 %v1954
        %v5723 = vunpack.c.h.b16 %v1954
        %v5724 = vunpack.c.l.b16 %v1955
        %v5725 = vunpack.c.h.b16 %v1955
        %v5726 = vunpack.c.l.b16 %v1956
        %v5727 = vunpack.c.h.b16 %v1956
        %v5728 = vunpack.c.l.b16 %v1957
        %v5729 = vunpack.c.h.b16 %v1957
        %v5730 = vunpack.c.l.b16 %v1958
        %v5731 = vunpack.c.h.b16 %v1958
        %v5732 = vunpack.c.l.b16 %v1959
        %v5733 = vunpack.c.h.b16 %v1959
        %v5734 = vunpack.c.l.b16 %v1960
        %v5735 = vunpack.c.h.b16 %v1960
        %v5736 = vunpack.c.l.b16 %v1961
        %v5737 = vunpack.c.h.b16 %v1961
        %v5738 = vunpack.c.l.b16 %v1962
        %v5739 = vunpack.c.h.b16 %v1962
        %v5740 = vunpack.c.l.b16 %v1963
        %v5741 = vunpack.c.h.b16 %v1963
        %v5742 = vunpack.c.l.b16 %v1964
        %v5743 = vunpack.c.h.b16 %v1964
        %v5744 = vunpack.c.l.b16 %v1965
        %v5745 = vunpack.c.h.b16 %v1965
        %v5746 = vunpack.c.l.b16 %v1966
        %v5747 = vunpack.c.h.b16 %v1966
        %v5748 = vunpack.c.l.b16 %v1967
        %v5749 = vunpack.c.h.b16 %v1967
        %v5750 = vunpack.c.l.b16 %v1968
        %v5751 = vunpack.c.h.b16 %v1968
        %v5752 = vunpack.c.l.b16 %v1969
        %v5753 = vunpack.c.h.b16 %v1969
        %v5754 = vunpack.c.l.b16 %v1970
        %v5755 = vunpack.c.h.b16 %v1970
        %v5756 = vunpack.c.l.b16 %v1971
        %v5757 = vunpack.c.h.b16 %v1971
        %v5758 = vunpack.c.l.b16 %v1972
        %v5759 = vunpack.c.h.b16 %v1972
        %v5760 = vunpack.c.l.b16 %v1973
        %v5761 = vunpack.c.h.b16 %v1973
        %v5762 = vunpack.c.l.b16 %v1974
        %v5763 = vunpack.c.h.b16 %v1974
        %v5764 = vunpack.c.l.b16 %v1975
        %v5765 = vunpack.c.h.b16 %v1975
        %v5766 = vunpack.c.l.b16 %v1976
        %v5767 = vunpack.c.h.b16 %v1976
        %v5768 = vunpack.c.l.b16 %v1977
        %v5769 = vunpack.c.h.b16 %v1977
        %v5770 = vunpack.c.l.b16 %v1978
        %v5771 = vunpack.c.h.b16 %v1978
        %v5772 = vunpack.c.l.b16 %v1979
        %v5773 = vunpack.c.h.b16 %v1979
        %v5774 = vunpack.c.l.b16 %v1980
        %v5775 = vunpack.c.h.b16 %v1980
        %v5776 = vunpack.c.l.b16 %v1981
        %v5777 = vunpack.c.h.b16 %v1981
        %v5778 = vunpack.c.l.b16 %v1982
        %v5779 = vunpack.c.h.b16 %v1982
        %v5780 = vunpack.c.l.b16 %v1983
        %v5781 = vunpack.c.h.b16 %v1983
        %v5782 = vunpack.c.l.b16 %v1984
        %v5783 = vunpack.c.h.b16 %v1984
        %v5784 = vunpack.c.l.b16 %v1985
        %v5785 = vunpack.c.h.b16 %v1985
        %v5786 = vunpack.c.l.b16 %v1986
        %v5787 = vunpack.c.h.b16 %v1986
        %v5788 = vunpack.c.l.b16 %v1987
        %v5789 = vunpack.c.h.b16 %v1987
        %v5790 = vunpack.c.l.b16 %v1988
        %v5791 = vunpack.c.h.b16 %v1988
        %v5792 = vunpack.c.l.b16 %v1989
        %v5793 = vunpack.c.h.b16 %v1989
        %v5794 = vunpack.c.l.b16 %v1990
        %v5795 = vunpack.c.h.b16 %v1990
        %v5796 = vunpack.c.l.b16 %v1991
        %v5797 = vunpack.c.h.b16 %v1991
        %v5798 = vunpack.c.l.b16 %v1992
        %v5799 = vunpack.c.h.b16 %v1992
        %v5800 = vunpack.c.l.b16 %v1993
        %v5801 = vunpack.c.h.b16 %v1993
        %v5802 = vunpack.c.l.b16 %v1994
        %v5803 = vunpack.c.h.b16 %v1994
        %v5804 = vunpack.c.l.b16 %v1995
        %v5805 = vunpack.c.h.b16 %v1995
        %v5806 = vunpack.c.l.b16 %v1996
        %v5807 = vunpack.c.h.b16 %v1996
        %v5808 = vunpack.c.l.b16 %v1997
        %v5809 = vunpack.c.h.b16 %v1997
        %v5810 = vunpack.c.l.b16 %v1998
        %v5811 = vunpack.c.h.b16 %v1998
        %v5812 = vunpack.c.l.b16 %v1999
        %v5813 = vunpack.c.h.b16 %v1999
        %v5814 = vunpack.c.l.b16 %v2000
        %v5815 = vunpack.c.h.b16 %v2000
        %v5816 = vunpack.c.l.b16 %v2001
        %v5817 = vunpack.c.h.b16 %v2001
        %v5818 = vunpack.c.l.b16 %v2002
        %v5819 = vunpack.c.h.b16 %v2002
        %v5820 = vunpack.c.l.b16 %v2003
        %v5821 = vunpack.c.h.b16 %v2003
        %v5822 = vunpack.c.l.b16 %v2004
        %v5823 = vunpack.c.h.b16 %v2004
        %v5824 = vunpack.c.l.b16 %v2005
        %v5825 = vunpack.c.h.b16 %v2005
        %v5826 = vunpack.c.l.b16 %v2006
        %v5827 = vunpack.c.h.b16 %v2006
        %v5828 = vunpack.c.l.b16 %v2007
        %v5829 = vunpack.c.h.b16 %v2007
        %v5830 = vunpack.c.l.b16 %v2008
        %v5831 = vunpack.c.h.b16 %v2008
        %v5832 = vunpack.c.l.b16 %v2009
        %v5833 = vunpack.c.h.b16 %v2009
        %v5834 = vunpack.c.l.b16 %v2010
        %v5835 = vunpack.c.h.b16 %v2010
        %v5836 = vunpack.c.l.b16 %v2011
        %v5837 = vunpack.c.h.b16 %v2011
        %v5838 = vunpack.c.l.b16 %v2012
        %v5839 = vunpack.c.h.b16 %v2012
        %v5840 = vunpack.c.l.b16 %v2013
        %v5841 = vunpack.c.h.b16 %v2013
        %v5842 = vunpack.c.l.b16 %v2014
        %v5843 = vunpack.c.h.b16 %v2014
        %v5844 = vunpack.c.l.b16 %v2015
        %v5845 = vunpack.c.h.b16 %v2015
        %v5846 = vunpack.c.l.b16 %v2016
        %v5847 = vunpack.c.h.b16 %v2016
        %v5848 = vunpack.c.l.b16 %v2017
        %v5849 = vunpack.c.h.b16 %v2017
        %v5850 = vunpack.c.l.b16 %v2018
        %v5851 = vunpack.c.h.b16 %v2018
        %v5852 = vunpack.c.l.b16 %v2019
        %v5853 = vunpack.c.h.b16 %v2019
        %v5854 = vunpack.c.l.b16 %v2020
        %v5855 = vunpack.c.h.b16 %v2020
        %v5856 = vunpack.c.l.b16 %v2021
        %v5857 = vunpack.c.h.b16 %v2021
        %v5858 = vunpack.c.l.b16 %v2022
        %v5859 = vunpack.c.h.b16 %v2022
        %v5860 = vunpack.c.l.b16 %v2023
        %v5861 = vunpack.c.h.b16 %v2023
        %v5862 = vunpack.c.l.b16 %v2024
        %v5863 = vunpack.c.h.b16 %v2024
        %v5864 = vunpack.c.l.b16 %v2025
        %v5865 = vunpack.c.h.b16 %v2025
        %v5866 = vunpack.c.l.b16 %v2026
        %v5867 = vunpack.c.h.b16 %v2026
        %v5868 = vunpack.c.l.b16 %v2027
        %v5869 = vunpack.c.h.b16 %v2027
        %v5870 = vunpack.c.l.b16 %v2028
        %v5871 = vunpack.c.h.b16 %v2028
        %v5872 = vunpack.c.l.b16 %v2029
        %v5873 = vunpack.c.h.b16 %v2029
        %v5874 = vunpack.c.l.b16 %v2030
        %v5875 = vunpack.c.h.b16 %v2030
        %v5876 = vunpack.c.l.b16 %v2031
        %v5877 = vunpack.c.h.b16 %v2031
        %v5878 = vunpack.c.l.b16 %v2032
        %v5879 = vunpack.c.h.b16 %v2032
        %v5880 = vunpack.c.l.b16 %v2033
        %v5881 = vunpack.c.h.b16 %v2033
        %v5882 = vunpack.c.l.b16 %v2034
        %v5883 = vunpack.c.h.b16 %v2034
        %v5884 = vunpack.c.l.b16 %v2035
        %v5885 = vunpack.c.h.b16 %v2035
        %v5886 = vunpack.c.l.b16 %v2036
        %v5887 = vunpack.c.h.b16 %v2036
        %v5888 = vunpack.c.l.b16 %v2037
        %v5889 = vunpack.c.h.b16 %v2037
        %v5890 = vunpack.c.l.b16 %v2038
        %v5891 = vunpack.c.h.b16 %v2038
        %v5892 = vunpack.c.l.b16 %v2039
        %v5893 = vunpack.c.h.b16 %v2039
        %v5894 = vunpack.c.l.b16 %v2040
        %v5895 = vunpack.c.h.b16 %v2040
        %v5896 = vunpack.c.l.b16 %v2041
        %v5897 = vunpack.c.h.b16 %v2041
        %v5898 = vunpack.c.l.b16 %v2042
        %v5899 = vunpack.c.h.b16 %v2042
        %v5900 = vunpack.c.l.b16 %v2043
        %v5901 = vunpack.c.h.b16 %v2043
        %v5902 = vunpack.c.l.b16 %v2044
        %v5903 = vunpack.c.h.b16 %v2044
        %v5904 = vunpack.c.l.b16 %v2045
        %v5905 = vunpack.c.h.b16 %v2045
        %v5906 = vunpack.c.l.b16 %v2046
        %v5907 = vunpack.c.h.b16 %v2046
        %v5908 = vunpack.c.l.b16 %v2047
        %v5909 = vunpack.c.h.b16 %v2047
        %v5910 = vunpack.c.l.b16 %v2048
        %v5911 = vunpack.c.h.b16 %v2048
        %v5912 = vunpack.c.l.b16 %v2049
        %v5913 = vunpack.c.h.b16 %v2049
        %v5914 = vunpack.c.l.b16 %v2050
        %v5915 = vunpack.c.h.b16 %v2050
        %v5916 = vunpack.c.l.b16 %v2051
        %v5917 = vunpack.c.h.b16 %v2051
        %v5918 = vunpack.c.l.b16 %v2052
        %v5919 = vunpack.c.h.b16 %v2052
        %v5920 = vunpack.c.l.b16 %v2053
        %v5921 = vunpack.c.h.b16 %v2053
        %v5922 = vunpack.c.l.b16 %v2054
        %v5923 = vunpack.c.h.b16 %v2054
        %v5924 = vunpack.c.l.b16 %v2055
        %v5925 = vunpack.c.h.b16 %v2055
        %v5926 = vunpack.c.l.b16 %v2056
        %v5927 = vunpack.c.h.b16 %v2056
        %v5928 = vunpack.c.l.b16 %v2057
        %v5929 = vunpack.c.h.b16 %v2057
        %v5930 = vunpack.c.l.b16 %v2058
        %v5931 = vunpack.c.h.b16 %v2058
        %v5932 = vunpack.c.l.b16 %v2059
        %v5933 = vunpack.c.h.b16 %v2059
        %v5934 = vunpack.c.l.b16 %v2060
        %v5935 = vunpack.c.h.b16 %v2060
        %v5936 = vunpack.c.l.b16 %v2061
        %v5937 = vunpack.c.h.b16 %v2061
        %v5938 = vunpack.c.l.b16 %v2062
        %v5939 = vunpack.c.h.b16 %v2062
        %v5940 = vunpack.c.l.b16 %v2063
        %v5941 = vunpack.c.h.b16 %v2063
        %v5942 = vunpack.c.l.b16 %v2064
        %v5943 = vunpack.c.h.b16 %v2064
        %v5944 = vunpack.c.l.b16 %v2065
        %v5945 = vunpack.c.h.b16 %v2065
        %v5946 = vunpack.c.l.b16 %v2066
        %v5947 = vunpack.c.h.b16 %v2066
        %v5948 = vunpack.c.l.b16 %v2067
        %v5949 = vunpack.c.h.b16 %v2067
        %v5950 = vunpack.c.l.b16 %v2068
        %v5951 = vunpack.c.h.b16 %v2068
        %v5952 = vunpack.c.l.b16 %v2069
        %v5953 = vunpack.c.h.b16 %v2069
        %v5954 = vunpack.c.l.b16 %v2070
        %v5955 = vunpack.c.h.b16 %v2070
        %v5956 = vunpack.c.l.b16 %v2071
        %v5957 = vunpack.c.h.b16 %v2071
        %v5958 = vunpack.c.l.b16 %v2072
        %v5959 = vunpack.c.h.b16 %v2072
        %v5960 = vunpack.c.l.b16 %v2073
        %v5961 = vunpack.c.h.b16 %v2073
        %v5962 = vunpack.c.l.b16 %v2074
        %v5963 = vunpack.c.h.b16 %v2074
        %v5964 = vunpack.c.l.b16 %v2075
        %v5965 = vunpack.c.h.b16 %v2075
        %v5966 = vunpack.c.l.b16 %v2076
        %v5967 = vunpack.c.h.b16 %v2076
        %v5968 = vunpack.c.l.b16 %v2077
        %v5969 = vunpack.c.h.b16 %v2077
        %v5970 = vunpack.c.l.b16 %v2078
        %v5971 = vunpack.c.h.b16 %v2078
        %v5972 = vunpack.c.l.b16 %v2079
        %v5973 = vunpack.c.h.b16 %v2079
        %v5974 = vunpack.c.l.b16 %v2080
        %v5975 = vunpack.c.h.b16 %v2080
        %v5976 = vunpack.c.l.b16 %v2081
        %v5977 = vunpack.c.h.b16 %v2081
        %v5978 = vunpack.c.l.b16 %v2082
        %v5979 = vunpack.c.h.b16 %v2082
        %v5980 = vunpack.c.l.b16 %v2083
        %v5981 = vunpack.c.h.b16 %v2083
        %v5982 = vunpack.c.l.b16 %v2084
        %v5983 = vunpack.c.h.b16 %v2084
        %v5984 = vunpack.c.l.b16 %v2085
        %v5985 = vunpack.c.h.b16 %v2085
        %v5986 = vunpack.c.l.b16 %v2086
        %v5987 = vunpack.c.h.b16 %v2086
        %v5988 = vunpack.c.l.b16 %v2087
        %v5989 = vunpack.c.h.b16 %v2087
        %v5990 = vunpack.c.l.b16 %v2088
        %v5991 = vunpack.c.h.b16 %v2088
        %v5992 = vunpack.c.l.b16 %v2089
        %v5993 = vunpack.c.h.b16 %v2089
        %v5994 = vunpack.c.l.b16 %v2090
        %v5995 = vunpack.c.h.b16 %v2090
        %v5996 = vunpack.c.l.b16 %v2091
        %v5997 = vunpack.c.h.b16 %v2091
        %v5998 = vunpack.c.l.b16 %v2092
        %v5999 = vunpack.c.h.b16 %v2092
        %v6000 = vunpack.c.l.b16 %v2093
        %v6001 = vunpack.c.h.b16 %v2093
        %v6002 = vunpack.c.l.b16 %v2094
        %v6003 = vunpack.c.h.b16 %v2094
        %v6004 = vunpack.c.l.b16 %v2095
        %v6005 = vunpack.c.h.b16 %v2095
        %v6006 = vunpack.c.l.b16 %v2096
        %v6007 = vunpack.c.h.b16 %v2096
        %v6008 = vunpack.c.l.b16 %v2097
        %v6009 = vunpack.c.h.b16 %v2097
        %v6010 = vunpack.c.l.b16 %v2098
        %v6011 = vunpack.c.h.b16 %v2098
        %v6012 = vunpack.c.l.b16 %v2099
        %v6013 = vunpack.c.h.b16 %v2099
        %v6014 = vunpack.c.l.b16 %v2100
        %v6015 = vunpack.c.h.b16 %v2100
        %v6016 = vunpack.c.l.b16 %v2101
        %v6017 = vunpack.c.h.b16 %v2101
        %v6018 = vunpack.c.l.b16 %v2102
        %v6019 = vunpack.c.h.b16 %v2102
        %v6020 = vunpack.c.l.b16 %v2103
        %v6021 = vunpack.c.h.b16 %v2103
        %v6022 = vunpack.c.l.b16 %v2104
        %v6023 = vunpack.c.h.b16 %v2104
        %v6024 = vunpack.c.l.b16 %v2105
        %v6025 = vunpack.c.h.b16 %v2105
        %v6026 = vunpack.c.l.b16 %v2106
        %v6027 = vunpack.c.h.b16 %v2106
        %v6028 = vunpack.c.l.b16 %v2107
        %v6029 = vunpack.c.h.b16 %v2107
        %v6030 = vunpack.c.l.b16 %v2108
        %v6031 = vunpack.c.h.b16 %v2108
        %v6032 = vunpack.c.l.b16 %v2109
        %v6033 = vunpack.c.h.b16 %v2109
        %v6034 = vunpack.c.l.b16 %v2110
        %v6035 = vunpack.c.h.b16 %v2110
        %v6036 = vunpack.c.l.b16 %v2111
        %v6037 = vunpack.c.h.b16 %v2111
        %v6038 = vunpack.c.l.b16 %v2112
        %v6039 = vunpack.c.h.b16 %v2112
        %v6040 = vunpack.c.l.b16 %v2113
        %v6041 = vunpack.c.h.b16 %v2113
        %v6042 = vunpack.c.l.b16 %v2114
        %v6043 = vunpack.c.h.b16 %v2114
        %v6044 = vunpack.c.l.b16 %v2115
        %v6045 = vunpack.c.h.b16 %v2115
        %v6046 = vunpack.c.l.b16 %v2116
        %v6047 = vunpack.c.h.b16 %v2116
        %v6048 = vunpack.c.l.b16 %v2117
        %v6049 = vunpack.c.h.b16 %v2117
        %v6050 = vunpack.c.l.b16 %v2118
        %v6051 = vunpack.c.h.b16 %v2118
        %v6052 = vunpack.c.l.b16 %v2119
        %v6053 = vunpack.c.h.b16 %v2119
        %v6054 = vunpack.c.l.b16 %v2120
        %v6055 = vunpack.c.h.b16 %v2120
        %v6056 = vunpack.c.l.b16 %v2121
        %v6057 = vunpack.c.h.b16 %v2121
        %v6058 = vunpack.c.l.b16 %v2122
        %v6059 = vunpack.c.h.b16 %v2122
        %v6060 = vunpack.c.l.b16 %v2123
        %v6061 = vunpack.c.h.b16 %v2123
        %v6062 = vunpack.c.l.b16 %v2124
        %v6063 = vunpack.c.h.b16 %v2124
        %v6064 = vunpack.c.l.b16 %v2125
        %v6065 = vunpack.c.h.b16 %v2125
        %v6066 = vunpack.c.l.b16 %v2126
        %v6067 = vunpack.c.h.b16 %v2126
        %v6068 = vunpack.c.l.b16 %v2127
        %v6069 = vunpack.c.h.b16 %v2127
        %v6070 = vunpack.c.l.b16 %v2128
        %v6071 = vunpack.c.h.b16 %v2128
        %v6072 = vunpack.c.l.b16 %v2129
        %v6073 = vunpack.c.h.b16 %v2129
        %v6074 = vunpack.c.l.b16 %v2130
        %v6075 = vunpack.c.h.b16 %v2130
        %v6076 = vunpack.c.l.b16 %v2131
        %v6077 = vunpack.c.h.b16 %v2131
        %v6078 = vunpack.c.l.b16 %v2132
        %v6079 = vunpack.c.h.b16 %v2132
        %v6080 = vunpack.c.l.b16 %v2133
        %v6081 = vunpack.c.h.b16 %v2133
        %v6082 = vunpack.c.l.b16 %v2134
        %v6083 = vunpack.c.h.b16 %v2134
        %v6084 = vunpack.c.l.b16 %v2135
        %v6085 = vunpack.c.h.b16 %v2135
        %v6086 = vunpack.c.l.b16 %v2136
        %v6087 = vunpack.c.h.b16 %v2136
        %v6088 = vunpack.c.l.b16 %v2137
        %v6089 = vunpack.c.h.b16 %v2137
        %v6090 = vunpack.c.l.b16 %v2138
        %v6091 = vunpack.c.h.b16 %v2138
        %v6092 = vunpack.c.l.b16 %v2139
        %v6093 = vunpack.c.h.b16 %v2139
        %v6094 = vunpack.c.l.b16 %v2140
        %v6095 = vunpack.c.h.b16 %v2140
        %v6096 = vunpack.c.l.b16 %v2141
        %v6097 = vunpack.c.h.b16 %v2141
        %v6098 = vunpack.c.l.b16 %v2142
        %v6099 = vunpack.c.h.b16 %v2142
        %v6100 = vunpack.c.l.b16 %v2143
        %v6101 = vunpack.c.h.b16 %v2143
        %v6102 = vunpack.c.l.b16 %v2144
        %v6103 = vunpack.c.h.b16 %v2144
        %v6104 = vunpack.c.l.b16 %v2145
        %v6105 = vunpack.c.h.b16 %v2145
        %v6106 = vunpack.c.l.b16 %v2146
        %v6107 = vunpack.c.h.b16 %v2146
        %v6108 = vunpack.c.l.b16 %v2147
        %v6109 = vunpack.c.h.b16 %v2147
        %v6110 = vunpack.c.l.b16 %v2148
        %v6111 = vunpack.c.h.b16 %v2148
        %v6112 = vunpack.c.l.b16 %v2149
        %v6113 = vunpack.c.h.b16 %v2149
        %v6114 = vunpack.c.l.b16 %v2150
        %v6115 = vunpack.c.h.b16 %v2150
        %v6116 = vunpack.c.l.b16 %v2151
        %v6117 = vunpack.c.h.b16 %v2151
        %v6118 = vunpack.c.l.b16 %v2152
        %v6119 = vunpack.c.h.b16 %v2152
        %v6120 = vunpack.c.l.b16 %v2153
        %v6121 = vunpack.c.h.b16 %v2153
        %v6122 = vunpack.c.l.b16 %v2154
        %v6123 = vunpack.c.h.b16 %v2154
        %v6124 = vunpack.c.l.b16 %v2155
        %v6125 = vunpack.c.h.b16 %v2155
        %v6126 = vunpack.c.l.b16 %v2156
        %v6127 = vunpack.c.h.b16 %v2156
        %v6128 = vunpack.c.l.b16 %v2157
        %v6129 = vunpack.c.h.b16 %v2157
        %v6130 = vunpack.c.l.b16 %v2158
        %v6131 = vunpack.c.h.b16 %v2158
        %v6132 = vunpack.c.l.b16 %v2159
        %v6133 = vunpack.c.h.b16 %v2159
        %v6134 = vunpack.c.l.b16 %v2160
        %v6135 = vunpack.c.h.b16 %v2160
        %v6136 = vunpack.c.l.b16 %v2161
        %v6137 = vunpack.c.h.b16 %v2161
        %v6138 = vunpack.c.l.b16 %v2162
        %v6139 = vunpack.c.h.b16 %v2162
        %v6140 = vunpack.c.l.b16 %v2163
        %v6141 = vunpack.c.h.b16 %v2163
        %v6142 = vunpack.c.l.b16 %v2164
        %v6143 = vunpack.c.h.b16 %v2164
        %v6144 = vunpack.c.l.b16 %v2165
        %v6145 = vunpack.c.h.b16 %v2165
        %v6146 = vunpack.c.l.b16 %v2166
        %v6147 = vunpack.c.h.b16 %v2166
        %v6148 = vunpack.c.l.b16 %v2167
        %v6149 = vunpack.c.h.b16 %v2167
        %v6150 = vunpack.c.l.b16 %v2168
        %v6151 = vunpack.c.h.b16 %v2168
        %v6152 = vunpack.c.l.b16 %v2169
        %v6153 = vunpack.c.h.b16 %v2169
        %v6154 = vunpack.c.l.b16 %v2170
        %v6155 = vunpack.c.h.b16 %v2170
        %v6156 = vunpack.c.l.b16 %v2171
        %v6157 = vunpack.c.h.b16 %v2171
        %v6158 = vunpack.c.l.b16 %v2172
        %v6159 = vunpack.c.h.b16 %v2172
        %v6160 = vunpack.c.l.b16 %v2173
        %v6161 = vunpack.c.h.b16 %v2173
        %v6162 = vunpack.c.l.b16 %v2174
        %v6163 = vunpack.c.h.b16 %v2174
        %v6164 = vunpack.c.l.b16 %v2175
        %v6165 = vunpack.c.h.b16 %v2175
        %v6166 = vunpack.c.l.b16 %v2176
        %v6167 = vunpack.c.h.b16 %v2176
        %v6168 = vunpack.c.l.b16 %v2177
        %v6169 = vunpack.c.h.b16 %v2177
        %v6170 = vunpack.c.l.b16 %v2178
        %v6171 = vunpack.c.h.b16 %v2178
        %v6172 = vunpack.c.l.b16 %v2179
        %v6173 = vunpack.c.h.b16 %v2179
        %v6174 = vunpack.c.l.b16 %v2180
        %v6175 = vunpack.c.h.b16 %v2180
        %v6176 = vunpack.c.l.b16 %v2181
        %v6177 = vunpack.c.h.b16 %v2181
        %v6178 = vunpack.c.l.b16 %v2182
        %v6179 = vunpack.c.h.b16 %v2182
        %v6180 = vunpack.c.l.b16 %v2183
        %v6181 = vunpack.c.h.b16 %v2183
        %v6182 = vunpack.c.l.b16 %v2184
        %v6183 = vunpack.c.h.b16 %v2184
        %v6184 = vunpack.c.l.b16 %v2185
        %v6185 = vunpack.c.h.b16 %v2185
        %v6186 = vunpack.c.l.b16 %v2186
        %v6187 = vunpack.c.h.b16 %v2186
        %v6188 = vunpack.c.l.b16 %v2187
        %v6189 = vunpack.c.h.b16 %v2187
        %v6190 = vunpack.c.l.b16 %v2188
        %v6191 = vunpack.c.h.b16 %v2188
        %v6192 = vunpack.c.l.b16 %v2189
        %v6193 = vunpack.c.h.b16 %v2189
        %v6194 = vunpack.c.l.b16 %v2190
        %v6195 = vunpack.c.h.b16 %v2190
        %v6196 = vunpack.c.l.b16 %v2191
        %v6197 = vunpack.c.h.b16 %v2191
        %v6198 = vunpack.c.l.b16 %v2192
        %v6199 = vunpack.c.h.b16 %v2192
        %v6200 = vunpack.c.l.b16 %v2193
        %v6201 = vunpack.c.h.b16 %v2193
        %v6202 = vunpack.c.l.b16 %v2194
        %v6203 = vunpack.c.h.b16 %v2194
        %v6204 = vunpack.c.l.b16 %v2195
        %v6205 = vunpack.c.h.b16 %v2195
        %v6206 = vunpack.c.l.b16 %v2196
        %v6207 = vunpack.c.h.b16 %v2196
        %v6208 = vunpack.c.l.b16 %v2197
        %v6209 = vunpack.c.h.b16 %v2197
        %v6210 = vunpack.c.l.b16 %v2198
        %v6211 = vunpack.c.h.b16 %v2198
        %v6212 = vunpack.c.l.b16 %v2199
        %v6213 = vunpack.c.h.b16 %v2199
        %v6214 = vunpack.c.l.b16 %v2200
        %v6215 = vunpack.c.h.b16 %v2200
        %v6216 = vunpack.c.l.b16 %v2201
        %v6217 = vunpack.c.h.b16 %v2201
        %v6218 = vunpack.c.l.b16 %v2202
        %v6219 = vunpack.c.h.b16 %v2202
        %v6220 = vunpack.c.l.b16 %v2203
        %v6221 = vunpack.c.h.b16 %v2203
        %v6222 = vunpack.c.l.b16 %v2204
        %v6223 = vunpack.c.h.b16 %v2204
        %v6224 = vunpack.c.l.b16 %v2205
        %v6225 = vunpack.c.h.b16 %v2205
        %v6226 = vunpack.c.l.b16 %v2206
        %v6227 = vunpack.c.h.b16 %v2206
        %v6228 = vunpack.c.l.b16 %v2207
        %v6229 = vunpack.c.h.b16 %v2207
        %v6230 = vunpack.c.l.b16 %v2208
        %v6231 = vunpack.c.h.b16 %v2208
        %v6232 = vunpack.c.l.b16 %v2209
        %v6233 = vunpack.c.h.b16 %v2209
        %v6234 = vunpack.c.l.b16 %v2210
        %v6235 = vunpack.c.h.b16 %v2210
        %v6236 = vunpack.c.l.b16 %v2211
        %v6237 = vunpack.c.h.b16 %v2211
        %v6238 = vunpack.c.l.b16 %v2212
        %v6239 = vunpack.c.h.b16 %v2212
        %v6240 = vunpack.c.l.b16 %v2213
        %v6241 = vunpack.c.h.b16 %v2213
        %v6242 = vunpack.c.l.b16 %v2214
        %v6243 = vunpack.c.h.b16 %v2214
        %v6244 = vunpack.c.l.b16 %v2215
        %v6245 = vunpack.c.h.b16 %v2215
        %v6246 = vunpack.c.l.b16 %v2216
        %v6247 = vunpack.c.h.b16 %v2216
        %v6248 = vunpack.c.l.b16 %v2217
        %v6249 = vunpack.c.h.b16 %v2217
        %v6250 = vunpack.c.l.b16 %v2218
        %v6251 = vunpack.c.h.b16 %v2218
        %v6252 = vunpack.c.l.b16 %v2219
        %v6253 = vunpack.c.h.b16 %v2219
        %v6254 = vunpack.c.l.b16 %v2220
        %v6255 = vunpack.c.h.b16 %v2220
        %v6256 = vunpack.c.l.b16 %v2221
        %v6257 = vunpack.c.h.b16 %v2221
        %v6258 = vunpack.c.l.b16 %v2222
        %v6259 = vunpack.c.h.b16 %v2222
        %v6260 = vunpack.c.l.b16 %v2223
        %v6261 = vunpack.c.h.b16 %v2223
        %v6262 = vunpack.c.l.b16 %v2224
        %v6263 = vunpack.c.h.b16 %v2224
        %v6264 = vunpack.c.l.b16 %v2225
        %v6265 = vunpack.c.h.b16 %v2225
        %v6266 = vunpack.c.l.b16 %v2226
        %v6267 = vunpack.c.h.b16 %v2226
        %v6268 = vunpack.c.l.b16 %v2227
        %v6269 = vunpack.c.h.b16 %v2227
        %v6270 = vunpack.c.l.b16 %v2228
        %v6271 = vunpack.c.h.b16 %v2228
        %v6272 = vunpack.c.l.b16 %v2229
        %v6273 = vunpack.c.h.b16 %v2229
        %v6274 = vunpack.c.l.b16 %v2230
        %v6275 = vunpack.c.h.b16 %v2230
        %v6276 = vunpack.c.l.b16 %v2231
        %v6277 = vunpack.c.h.b16 %v2231
        %v6278 = vunpack.c.l.b16 %v2232
        %v6279 = vunpack.c.h.b16 %v2232
        %v6280 = vunpack.c.l.b16 %v2233
        %v6281 = vunpack.c.h.b16 %v2233
        %v6282 = vunpack.c.l.b16 %v2234
        %v6283 = vunpack.c.h.b16 %v2234
        %v6284 = vunpack.c.l.b16 %v2235
        %v6285 = vunpack.c.h.b16 %v2235
        %v6286 = vunpack.c.l.b16 %v2236
        %v6287 = vunpack.c.h.b16 %v2236
        %v6288 = vunpack.c.l.b16 %v2237
        %v6289 = vunpack.c.h.b16 %v2237
        %v6290 = vunpack.c.l.b16 %v2238
        %v6291 = vunpack.c.h.b16 %v2238
        %v6292 = vunpack.c.l.b16 %v2239
        %v6293 = vunpack.c.h.b16 %v2239
        %v6294 = vunpack.c.l.b16 %v2240
        %v6295 = vunpack.c.h.b16 %v2240
        %v6296 = vunpack.c.l.b16 %v2241
        %v6297 = vunpack.c.h.b16 %v2241
        %v6298 = vunpack.c.l.b16 %v2242
        %v6299 = vunpack.c.h.b16 %v2242
        %v6300 = vunpack.c.l.b16 %v2243
        %v6301 = vunpack.c.h.b16 %v2243
        %v6302 = vunpack.c.l.b16 %v2244
        %v6303 = vunpack.c.h.b16 %v2244
        %v6304 = vunpack.c.l.b16 %v2245
        %v6305 = vunpack.c.h.b16 %v2245
        %v6306 = vunpack.c.l.b16 %v2246
        %v6307 = vunpack.c.h.b16 %v2246
        %v6308 = vunpack.c.l.b16 %v2247
        %v6309 = vunpack.c.h.b16 %v2247
        %v6310 = vunpack.c.l.b16 %v2248
        %v6311 = vunpack.c.h.b16 %v2248
        %v6312 = vunpack.c.l.b16 %v2249
        %v6313 = vunpack.c.h.b16 %v2249
        %v6314 = vunpack.c.l.b16 %v2250
        %v6315 = vunpack.c.h.b16 %v2250
        %v6316 = vunpack.c.l.b16 %v2251
        %v6317 = vunpack.c.h.b16 %v2251
        %v6318 = vunpack.c.l.b16 %v2252
        %v6319 = vunpack.c.h.b16 %v2252
        %v6320 = vunpack.c.l.b16 %v2253
        %v6321 = vunpack.c.h.b16 %v2253
        %v6322 = vunpack.c.l.b16 %v2254
        %v6323 = vunpack.c.h.b16 %v2254
        %v6324 = vunpack.c.l.b16 %v2255
        %v6325 = vunpack.c.h.b16 %v2255
        %v6326 = vunpack.c.l.b16 %v2256
        %v6327 = vunpack.c.h.b16 %v2256
        %v6328 = vunpack.c.l.b16 %v2257
        %v6329 = vunpack.c.h.b16 %v2257
        %v6330 = vunpack.c.l.b16 %v2258
        %v6331 = vunpack.c.h.b16 %v2258
        %v6332 = vunpack.c.l.b16 %v2259
        %v6333 = vunpack.c.h.b16 %v2259
        %v6334 = vunpack.c.l.b16 %v2260
        %v6335 = vunpack.c.h.b16 %v2260
        %v6336 = vunpack.c.l.b16 %v2261
        %v6337 = vunpack.c.h.b16 %v2261
        %v6338 = vunpack.c.l.b16 %v2262
        %v6339 = vunpack.c.h.b16 %v2262
        %v6340 = vunpack.c.l.b16 %v2263
        %v6341 = vunpack.c.h.b16 %v2263
        %v6342 = vunpack.c.l.b16 %v2264
        %v6343 = vunpack.c.h.b16 %v2264
        %v6344 = vunpack.c.l.b16 %v2265
        %v6345 = vunpack.c.h.b16 %v2265
        %v6346 = vunpack.c.l.b16 %v2266
        %v6347 = vunpack.c.h.b16 %v2266
        %v6348 = vunpack.c.l.b16 %v2267
        %v6349 = vunpack.c.h.b16 %v2267
        %v6350 = vunpack.c.l.b16 %v2268
        %v6351 = vunpack.c.h.b16 %v2268
        %v6352 = vunpack.c.l.b16 %v2269
        %v6353 = vunpack.c.h.b16 %v2269
        %v6354 = vunpack.c.l.b16 %v2270
        %v6355 = vunpack.c.h.b16 %v2270
        %v6356 = vunpack.c.l.b16 %v2271
        %v6357 = vunpack.c.h.b16 %v2271
        %v6358 = vunpack.c.l.b16 %v2272
        %v6359 = vunpack.c.h.b16 %v2272
        %v6360 = vunpack.c.l.b16 %v2273
        %v6361 = vunpack.c.h.b16 %v2273
        %v6362 = vunpack.c.l.b16 %v2274
        %v6363 = vunpack.c.h.b16 %v2274
        %v6364 = vunpack.c.l.b16 %v2275
        %v6365 = vunpack.c.h.b16 %v2275
        %v6366 = vunpack.c.l.b16 %v2276
        %v6367 = vunpack.c.h.b16 %v2276
        %v6368 = vunpack.c.l.b16 %v2277
        %v6369 = vunpack.c.h.b16 %v2277
        %v6370 = vunpack.c.l.b16 %v2278
        %v6371 = vunpack.c.h.b16 %v2278
        %v6372 = vunpack.c.l.b16 %v2279
        %v6373 = vunpack.c.h.b16 %v2279
        %v6374 = vunpack.c.l.b16 %v2280
        %v6375 = vunpack.c.h.b16 %v2280
        %v6376 = vunpack.c.l.b16 %v2281
        %v6377 = vunpack.c.h.b16 %v2281
        %v6378 = vunpack.c.l.b16 %v2282
        %v6379 = vunpack.c.h.b16 %v2282
        %v6380 = vunpack.c.l.b16 %v2283
        %v6381 = vunpack.c.h.b16 %v2283
        %v6382 = vunpack.c.l.b16 %v2284
        %v6383 = vunpack.c.h.b16 %v2284
        %v6384 = vunpack.c.l.b16 %v2285
        %v6385 = vunpack.c.h.b16 %v2285
        %v6386 = vunpack.c.l.b16 %v2286
        %v6387 = vunpack.c.h.b16 %v2286
        %v6388 = vunpack.c.l.b16 %v2287
        %v6389 = vunpack.c.h.b16 %v2287
        %v6390 = vunpack.c.l.b16 %v2288
        %v6391 = vunpack.c.h.b16 %v2288
        %v6392 = vunpack.c.l.b16 %v2289
        %v6393 = vunpack.c.h.b16 %v2289
        %v6394 = vunpack.c.l.b16 %v2290
        %v6395 = vunpack.c.h.b16 %v2290
        %v6396 = vunpack.c.l.b16 %v2291
        %v6397 = vunpack.c.h.b16 %v2291
        %v6398 = vunpack.c.l.b16 %v2292
        %v6399 = vunpack.c.h.b16 %v2292
        %v6400 = vunpack.c.l.b16 %v2293
        %v6401 = vunpack.c.h.b16 %v2293
        %v6402 = vunpack.c.l.b16 %v2294
        %v6403 = vunpack.c.h.b16 %v2294
        %v6404 = vunpack.c.l.b16 %v2295
        %v6405 = vunpack.c.h.b16 %v2295
        %v6406 = vunpack.c.l.b16 %v2296
        %v6407 = vunpack.c.h.b16 %v2296
        %v6408 = vunpack.c.l.b16 %v2297
        %v6409 = vunpack.c.h.b16 %v2297
        %v6410 = vunpack.c.l.b16 %v2298
        %v6411 = vunpack.c.h.b16 %v2298
        %v6412 = vunpack.c.l.b16 %v2299
        %v6413 = vunpack.c.h.b16 %v2299
        %v6414 = vunpack.c.l.b16 %v2300
        %v6415 = vunpack.c.h.b16 %v2300
        %v6416 = vunpack.c.l.b16 %v2301
        %v6417 = vunpack.c.h.b16 %v2301
        %v6418 = vunpack.c.l.b16 %v2302
        %v6419 = vunpack.c.h.b16 %v2302
        %v6420 = vunpack.c.l.b16 %v2303
        %v6421 = vunpack.c.h.b16 %v2303
        %v6422 = vunpack.c.l.b16 %v2304
        %v6423 = vunpack.c.h.b16 %v2304
        %v6424 = vunpack.c.l.b16 %v2305
        %v6425 = vunpack.c.h.b16 %v2305
        %v6426 = vunpack.c.l.b16 %v2306
        %v6427 = vunpack.c.h.b16 %v2306
        %v6428 = vunpack.c.l.b16 %v2307
        %v6429 = vunpack.c.h.b16 %v2307
        %v6430 = vunpack.c.l.b16 %v2308
        %v6431 = vunpack.c.h.b16 %v2308
        %v6432 = vunpack.c.l.b16 %v2309
        %v6433 = vunpack.c.h.b16 %v2309
        %v6434 = vunpack.c.l.b16 %v2310
        %v6435 = vunpack.c.h.b16 %v2310
        %v6436 = vunpack.c.l.b16 %v2311
        %v6437 = vunpack.c.h.b16 %v2311
        %v6438 = vunpack.c.l.b16 %v2312
        %v6439 = vunpack.c.h.b16 %v2312
        %v6440 = vunpack.c.l.b16 %v2313
        %v6441 = vunpack.c.h.b16 %v2313
        %v6442 = vunpack.c.l.b16 %v2314
        %v6443 = vunpack.c.h.b16 %v2314
        %v6444 = vunpack.c.l.b16 %v2315
        %v6445 = vunpack.c.h.b16 %v2315
        %v6446 = vunpack.c.l.b16 %v2316
        %v6447 = vunpack.c.h.b16 %v2316
        %v6448 = vunpack.c.l.b16 %v2317
        %v6449 = vunpack.c.h.b16 %v2317
        %v6450 = vunpack.c.l.b16 %v2318
        %v6451 = vunpack.c.h.b16 %v2318
        %v6452 = vunpack.c.l.b16 %v2319
        %v6453 = vunpack.c.h.b16 %v2319
        %v6454 = vunpack.c.l.b16 %v2320
        %v6455 = vunpack.c.h.b16 %v2320
        %v6456 = vunpack.c.l.b16 %v2321
        %v6457 = vunpack.c.h.b16 %v2321
        %v6458 = vunpack.c.l.b16 %v2322
        %v6459 = vunpack.c.h.b16 %v2322
        %v6460 = vunpack.c.l.b16 %v2323
        %v6461 = vunpack.c.h.b16 %v2323
        %v6462 = vunpack.c.l.b16 %v2324
        %v6463 = vunpack.c.h.b16 %v2324
        %v6464 = vunpack.c.l.b16 %v2325
        %v6465 = vunpack.c.h.b16 %v2325
        %v6466 = vunpack.c.l.b16 %v2326
        %v6467 = vunpack.c.h.b16 %v2326
        %v6468 = vunpack.c.l.b16 %v2327
        %v6469 = vunpack.c.h.b16 %v2327
        %v6470 = vunpack.c.l.b16 %v2328
        %v6471 = vunpack.c.h.b16 %v2328
        %v6472 = vunpack.c.l.b16 %v2329
        %v6473 = vunpack.c.h.b16 %v2329
        %v6474 = vunpack.c.l.b16 %v2330
        %v6475 = vunpack.c.h.b16 %v2330
        %v6476 = vunpack.c.l.b16 %v2331
        %v6477 = vunpack.c.h.b16 %v2331
        %v6478 = vunpack.c.l.b16 %v2332
        %v6479 = vunpack.c.h.b16 %v2332
        %v6480 = vunpack.c.l.b16 %v2333
        %v6481 = vunpack.c.h.b16 %v2333
        %v6482 = vunpack.c.l.b16 %v2334
        %v6483 = vunpack.c.h.b16 %v2334
        %v6484 = vunpack.c.l.b16 %v2335
        %v6485 = vunpack.c.h.b16 %v2335
        %v6486 = vunpack.c.l.b16 %v2336
        %v6487 = vunpack.c.h.b16 %v2336
        %v6488 = vunpack.c.l.b16 %v2337
        %v6489 = vunpack.c.h.b16 %v2337
        %v6490 = vunpack.c.l.b16 %v2338
        %v6491 = vunpack.c.h.b16 %v2338
        %v6492 = vunpack.c.l.b16 %v2339
        %v6493 = vunpack.c.h.b16 %v2339
        %v6494 = vunpack.c.l.b16 %v2340
        %v6495 = vunpack.c.h.b16 %v2340
        %v6496 = vunpack.c.l.b16 %v2341
        %v6497 = vunpack.c.h.b16 %v2341
        %v6498 = vunpack.c.l.b16 %v2342
        %v6499 = vunpack.c.h.b16 %v2342
        %v6500 = vunpack.c.l.b16 %v2343
        %v6501 = vunpack.c.h.b16 %v2343
        %v6502 = vunpack.c.l.b16 %v2344
        %v6503 = vunpack.c.h.b16 %v2344
        %v6504 = vunpack.c.l.b16 %v2345
        %v6505 = vunpack.c.h.b16 %v2345
        %v6506 = vunpack.c.l.b16 %v2346
        %v6507 = vunpack.c.h.b16 %v2346
        %v6508 = vunpack.c.l.b16 %v2347
        %v6509 = vunpack.c.h.b16 %v2347
        %v6510 = vunpack.c.l.b16 %v2348
        %v6511 = vunpack.c.h.b16 %v2348
        %v6512 = vunpack.c.l.b16 %v2349
        %v6513 = vunpack.c.h.b16 %v2349
        %v6514 = vunpack.c.l.b16 %v2350
        %v6515 = vunpack.c.h.b16 %v2350
        %v6516 = vunpack.c.l.b16 %v2351
        %v6517 = vunpack.c.h.b16 %v2351
        %v6518 = vunpack.c.l.b16 %v2352
        %v6519 = vunpack.c.h.b16 %v2352
        %v6520 = vunpack.c.l.b16 %v2353
        %v6521 = vunpack.c.h.b16 %v2353
        %v6522 = vunpack.c.l.b16 %v2354
        %v6523 = vunpack.c.h.b16 %v2354
        %v6524 = vunpack.c.l.b16 %v2355
        %v6525 = vunpack.c.h.b16 %v2355
        %v6526 = vunpack.c.l.b16 %v2356
        %v6527 = vunpack.c.h.b16 %v2356
        %v6528 = vunpack.c.l.b16 %v2357
        %v6529 = vunpack.c.h.b16 %v2357
        %v6530 = vunpack.c.l.b16 %v2358
        %v6531 = vunpack.c.h.b16 %v2358
        %v6532 = vunpack.c.l.b16 %v2359
        %v6533 = vunpack.c.h.b16 %v2359
        %v6534 = vunpack.c.l.b16 %v2360
        %v6535 = vunpack.c.h.b16 %v2360
        %v6536 = vunpack.c.l.b16 %v2361
        %v6537 = vunpack.c.h.b16 %v2361
        %v6538 = vunpack.c.l.b16 %v2362
        %v6539 = vunpack.c.h.b16 %v2362
        %v6540 = vunpack.c.l.b16 %v2363
        %v6541 = vunpack.c.h.b16 %v2363
        %v6542 = vunpack.c.l.b16 %v2364
        %v6543 = vunpack.c.h.b16 %v2364
        %v6544 = vunpack.c.l.b16 %v2365
        %v6545 = vunpack.c.h.b16 %v2365
        %v6546 = vunpack.c.l.b16 %v2366
        %v6547 = vunpack.c.h.b16 %v2366
        %v6548 = vunpack.c.l.b16 %v2367
        %v6549 = vunpack.c.h.b16 %v2367
        %v6550 = vunpack.c.l.b16 %v2368
        %v6551 = vunpack.c.h.b16 %v2368
        %v6552 = vunpack.c.l.b16 %v2369
        %v6553 = vunpack.c.h.b16 %v2369
        %v6554 = vunpack.c.l.b16 %v2370
        %v6555 = vunpack.c.h.b16 %v2370
        %v6556 = vunpack.c.l.b16 %v2371
        %v6557 = vunpack.c.h.b16 %v2371
        %v6558 = vunpack.c.l.b16 %v2372
        %v6559 = vunpack.c.h.b16 %v2372
        %v6560 = vunpack.c.l.b16 %v2373
        %v6561 = vunpack.c.h.b16 %v2373
        %v6562 = vunpack.c.l.b16 %v2374
        %v6563 = vunpack.c.h.b16 %v2374
        %v6564 = vunpack.c.l.b16 %v2375
        %v6565 = vunpack.c.h.b16 %v2375
        %v6566 = vunpack.c.l.b16 %v2376
        %v6567 = vunpack.c.h.b16 %v2376
        %v6568 = vunpack.c.l.b16 %v2377
        %v6569 = vunpack.c.h.b16 %v2377
        %v6570 = vunpack.c.l.b16 %v2378
        %v6571 = vunpack.c.h.b16 %v2378
        %v6572 = vunpack.c.l.b16 %v2379
        %v6573 = vunpack.c.h.b16 %v2379
        %v6574 = vunpack.c.l.b16 %v2380
        %v6575 = vunpack.c.h.b16 %v2380
        %v6576 = vunpack.c.l.b16 %v2381
        %v6577 = vunpack.c.h.b16 %v2381
        %v6578 = vunpack.c.l.b16 %v2382
        %v6579 = vunpack.c.h.b16 %v2382
        %v6580 = vunpack.c.l.b16 %v2383
        %v6581 = vunpack.c.h.b16 %v2383
        %v6582 = vunpack.c.l.b16 %v2384
        %v6583 = vunpack.c.h.b16 %v2384
        %v6584 = vunpack.c.l.b16 %v2385
        %v6585 = vunpack.c.h.b16 %v2385
        %v6586 = vunpack.c.l.b16 %v2386
        %v6587 = vunpack.c.h.b16 %v2386
        %v6588 = vunpack.c.l.b16 %v2387
        %v6589 = vunpack.c.h.b16 %v2387
        %v6590 = vunpack.c.l.b16 %v2388
        %v6591 = vunpack.c.h.b16 %v2388
        %v6592 = vunpack.c.l.b16 %v2389
        %v6593 = vunpack.c.h.b16 %v2389
        %v6594 = vunpack.c.l.b16 %v2390
        %v6595 = vunpack.c.h.b16 %v2390
        %v6596 = vunpack.c.l.b16 %v2391
        %v6597 = vunpack.c.h.b16 %v2391
        %v6598 = vunpack.c.l.b16 %v2392
        %v6599 = vunpack.c.h.b16 %v2392
        %v6600 = vunpack.c.l.b16 %v2393
        %v6601 = vunpack.c.h.b16 %v2393
        %v6602 = vunpack.c.l.b16 %v2394
        %v6603 = vunpack.c.h.b16 %v2394
        %v6604 = vunpack.c.l.b16 %v2395
        %v6605 = vunpack.c.h.b16 %v2395
        %v6606 = vunpack.c.l.b16 %v2396
        %v6607 = vunpack.c.h.b16 %v2396
        %v6608 = vunpack.c.l.b16 %v2397
        %v6609 = vunpack.c.h.b16 %v2397
        %v6610 = vunpack.c.l.b16 %v2398
        %v6611 = vunpack.c.h.b16 %v2398
        %v6612 = vunpack.c.l.b16 %v2399
        %v6613 = vunpack.c.h.b16 %v2399
        %v6614 = vunpack.c.l.b16 %v2400
        %v6615 = vunpack.c.h.b16 %v2400
        %v6616 = vunpack.c.l.b16 %v2401
        %v6617 = vunpack.c.h.b16 %v2401
        %v6618 = vunpack.c.l.b16 %v2402
        %v6619 = vunpack.c.h.b16 %v2402
        %v6620 = vunpack.c.l.b16 %v2403
        %v6621 = vunpack.c.h.b16 %v2403
        %v6622 = vunpack.c.l.b16 %v2404
        %v6623 = vunpack.c.h.b16 %v2404
        %v6624 = vunpack.c.l.b16 %v2405
        %v6625 = vunpack.c.h.b16 %v2405
        %v6626 = vunpack.c.l.b16 %v2406
        %v6627 = vunpack.c.h.b16 %v2406
        %v6628 = vunpack.c.l.b16 %v2407
        %v6629 = vunpack.c.h.b16 %v2407
        %v6630 = vunpack.c.l.b16 %v2408
        %v6631 = vunpack.c.h.b16 %v2408
        %v6632 = vunpack.c.l.b16 %v2409
        %v6633 = vunpack.c.h.b16 %v2409
        %v6634 = vunpack.c.l.b16 %v2410
        %v6635 = vunpack.c.h.b16 %v2410
        %v6636 = vunpack.c.l.b16 %v2411
        %v6637 = vunpack.c.h.b16 %v2411
        %v6638 = vunpack.c.l.b16 %v2412
        %v6639 = vunpack.c.h.b16 %v2412
        %v6640 = vunpack.c.l.b16 %v2413
        %v6641 = vunpack.c.h.b16 %v2413
        %v6642 = vunpack.c.l.b16 %v2414
        %v6643 = vunpack.c.h.b16 %v2414
        %v6644 = vunpack.c.l.b16 %v2415
        %v6645 = vunpack.c.h.b16 %v2415
        %v6646 = vunpack.c.l.b16 %v2416
        %v6647 = vunpack.c.h.b16 %v2416
        %v6648 = vunpack.c.l.b16 %v2417
        %v6649 = vunpack.c.h.b16 %v2417
        %v6650 = vunpack.c.l.b16 %v2418
        %v6651 = vunpack.c.h.b16 %v2418
        %v6652 = vunpack.c.l.b16 %v2419
        %v6653 = vunpack.c.h.b16 %v2419
        %v6654 = vunpack.c.l.b16 %v2420
        %v6655 = vunpack.c.h.b16 %v2420
        %v6656 = vunpack.c.l.b16 %v2421
        %v6657 = vunpack.c.h.b16 %v2421
        %v6658 = vunpack.c.l.b16 %v2422
        %v6659 = vunpack.c.h.b16 %v2422
        %v6660 = vunpack.c.l.b16 %v2423
        %v6661 = vunpack.c.h.b16 %v2423
        %v6662 = vunpack.c.l.b16 %v2424
        %v6663 = vunpack.c.h.b16 %v2424
        %v6664 = vunpack.c.l.b16 %v2425
        %v6665 = vunpack.c.h.b16 %v2425
        %v6666 = vunpack.c.l.b16 %v2426
        %v6667 = vunpack.c.h.b16 %v2426
        %v6668 = vunpack.c.l.b16 %v2427
        %v6669 = vunpack.c.h.b16 %v2427
        %v6670 = vunpack.c.l.b16 %v2428
        %v6671 = vunpack.c.h.b16 %v2428
        %v6672 = vunpack.c.l.b16 %v2429
        %v6673 = vunpack.c.h.b16 %v2429
        %v6674 = vunpack.c.l.b16 %v2430
        %v6675 = vunpack.c.h.b16 %v2430
        %v6676 = vunpack.c.l.b16 %v2431
        %v6677 = vunpack.c.h.b16 %v2431
        %v6678 = vunpack.c.l.b16 %v2432
        %v6679 = vunpack.c.h.b16 %v2432
        %v6680 = vunpack.c.l.b16 %v2433
        %v6681 = vunpack.c.h.b16 %v2433
        %v6682 = vunpack.c.l.b16 %v2434
        %v6683 = vunpack.c.h.b16 %v2434
        %v6684 = vunpack.c.l.b16 %v2435
        %v6685 = vunpack.c.h.b16 %v2435
        %v6686 = vunpack.c.l.b16 %v2436
        %v6687 = vunpack.c.h.b16 %v2436
        %v6688 = vunpack.c.l.b16 %v2437
        %v6689 = vunpack.c.h.b16 %v2437
        %v6690 = vunpack.c.l.b16 %v2438
        %v6691 = vunpack.c.h.b16 %v2438
        %v6692 = vunpack.c.l.b16 %v2439
        %v6693 = vunpack.c.h.b16 %v2439
        %v6694 = vunpack.c.l.b16 %v2440
        %v6695 = vunpack.c.h.b16 %v2440
        %v6696 = vunpack.c.l.b16 %v2441
        %v6697 = vunpack.c.h.b16 %v2441
        %v6698 = vunpack.c.l.b16 %v2442
        %v6699 = vunpack.c.h.b16 %v2442
        %v6700 = vunpack.c.l.b16 %v2443
        %v6701 = vunpack.c.h.b16 %v2443
        %v6702 = vunpack.c.l.b16 %v2444
        %v6703 = vunpack.c.h.b16 %v2444
        %v6704 = vunpack.c.l.b16 %v2445
        %v6705 = vunpack.c.h.b16 %v2445
        %v6706 = vunpack.c.l.b16 %v2446
        %v6707 = vunpack.c.h.b16 %v2446
        %v6708 = vunpack.c.l.b16 %v2447
        %v6709 = vunpack.c.h.b16 %v2447
        %v6710 = vunpack.c.l.b16 %v2448
        %v6711 = vunpack.c.h.b16 %v2448
        %v6712 = vunpack.c.l.b16 %v2449
        %v6713 = vunpack.c.h.b16 %v2449
        %v6714 = vunpack.c.l.b16 %v2450
        %v6715 = vunpack.c.h.b16 %v2450
        %v6716 = vunpack.c.l.b16 %v2451
        %v6717 = vunpack.c.h.b16 %v2451
        %v6718 = vunpack.c.l.b16 %v2452
        %v6719 = vunpack.c.h.b16 %v2452
        %v6720 = vunpack.c.l.b16 %v2453
        %v6721 = vunpack.c.h.b16 %v2453
        %v6722 = vunpack.c.l.b16 %v2454
        %v6723 = vunpack.c.h.b16 %v2454
        %v6724 = vunpack.c.l.b16 %v2455
        %v6725 = vunpack.c.h.b16 %v2455
        %v6726 = vunpack.c.l.b16 %v2456
        %v6727 = vunpack.c.h.b16 %v2456
        %v6728 = vunpack.c.l.b16 %v2457
        %v6729 = vunpack.c.h.b16 %v2457
        %v6730 = vunpack.c.l.b16 %v2458
        %v6731 = vunpack.c.h.b16 %v2458
        %v6732 = vunpack.c.l.b16 %v2459
        %v6733 = vunpack.c.h.b16 %v2459
        %v6734 = vunpack.c.l.b16 %v2460
        %v6735 = vunpack.c.h.b16 %v2460
        %v6736 = vunpack.c.l.b16 %v2461
        %v6737 = vunpack.c.h.b16 %v2461
        %v6738 = vunpack.c.l.b16 %v2462
        %v6739 = vunpack.c.h.b16 %v2462
        %v6740 = vunpack.c.l.b16 %v2463
        %v6741 = vunpack.c.h.b16 %v2463
        %v6742 = vunpack.c.l.b16 %v2464
        %v6743 = vunpack.c.h.b16 %v2464
        %v6744 = vunpack.c.l.b16 %v2465
        %v6745 = vunpack.c.h.b16 %v2465
        %v6746 = vunpack.c.l.b16 %v2466
        %v6747 = vunpack.c.h.b16 %v2466
        %v6748 = vunpack.c.l.b16 %v2467
        %v6749 = vunpack.c.h.b16 %v2467
        %v6750 = vunpack.c.l.b16 %v2468
        %v6751 = vunpack.c.h.b16 %v2468
        %v6752 = vunpack.c.l.b16 %v2469
        %v6753 = vunpack.c.h.b16 %v2469
        %v6754 = vunpack.c.l.b16 %v2470
        %v6755 = vunpack.c.h.b16 %v2470
        %v6756 = vunpack.c.l.b16 %v2471
        %v6757 = vunpack.c.h.b16 %v2471
        %v6758 = vunpack.c.l.b16 %v2472
        %v6759 = vunpack.c.h.b16 %v2472
        %v6760 = vunpack.c.l.b16 %v2473
        %v6761 = vunpack.c.h.b16 %v2473
        %v6762 = vunpack.c.l.b16 %v2474
        %v6763 = vunpack.c.h.b16 %v2474
        %v6764 = vunpack.c.l.b16 %v2475
        %v6765 = vunpack.c.h.b16 %v2475
        %v6766 = vunpack.c.l.b16 %v2476
        %v6767 = vunpack.c.h.b16 %v2476
        %v6768 = vunpack.c.l.b16 %v2477
        %v6769 = vunpack.c.h.b16 %v2477
        %v6770 = vunpack.c.l.b16 %v2478
        %v6771 = vunpack.c.h.b16 %v2478
        %v6772 = vunpack.c.l.b16 %v2479
        %v6773 = vunpack.c.h.b16 %v2479
        %v6774 = vunpack.c.l.b16 %v2480
        %v6775 = vunpack.c.h.b16 %v2480
        %v6776 = vunpack.c.l.b16 %v2481
        %v6777 = vunpack.c.h.b16 %v2481
        %v6778 = vunpack.c.l.b16 %v2482
        %v6779 = vunpack.c.h.b16 %v2482
        %v6780 = vunpack.c.l.b16 %v2483
        %v6781 = vunpack.c.h.b16 %v2483
        %v6782 = vunpack.c.l.b16 %v2484
        %v6783 = vunpack.c.h.b16 %v2484
        %v6784 = vunpack.c.l.b16 %v2485
        %v6785 = vunpack.c.h.b16 %v2485
        %v6786 = vunpack.c.l.b16 %v2486
        %v6787 = vunpack.c.h.b16 %v2486
        %v6788 = vunpack.c.l.b16 %v2487
        %v6789 = vunpack.c.h.b16 %v2487
        %v6790 = vunpack.c.l.b16 %v2488
        %v6791 = vunpack.c.h.b16 %v2488
        %v6792 = vunpack.c.l.b16 %v2489
        %v6793 = vunpack.c.h.b16 %v2489
        %v6794 = vunpack.c.l.b16 %v2490
        %v6795 = vunpack.c.h.b16 %v2490
        %v6796 = vunpack.c.l.b16 %v2491
        %v6797 = vunpack.c.h.b16 %v2491
        %v6798 = vunpack.c.l.b16 %v2492
        %v6799 = vunpack.c.h.b16 %v2492
        %v6800 = vunpack.c.l.b16 %v2493
        %v6801 = vunpack.c.h.b16 %v2493
        %v6802 = vunpack.c.l.b16 %v2494
        %v6803 = vunpack.c.h.b16 %v2494
        %v6804 = vunpack.c.l.b16 %v2495
        %v6805 = vunpack.c.h.b16 %v2495
        %v6806 = vunpack.c.l.b16 %v2496
        %v6807 = vunpack.c.h.b16 %v2496
        %v6808 = vunpack.c.l.b16 %v2497
        %v6809 = vunpack.c.h.b16 %v2497
        %v6810 = vunpack.c.l.b16 %v2498
        %v6811 = vunpack.c.h.b16 %v2498
        %v6812 = vunpack.c.l.b16 %v2499
        %v6813 = vunpack.c.h.b16 %v2499
        %v6814 = vunpack.c.l.b16 %v2500
        %v6815 = vunpack.c.h.b16 %v2500
        %v6816 = vunpack.c.l.b16 %v2501
        %v6817 = vunpack.c.h.b16 %v2501
        %v6818 = vunpack.c.l.b16 %v2502
        %v6819 = vunpack.c.h.b16 %v2502
        %v6820 = vunpack.c.l.b16 %v2503
        %v6821 = vunpack.c.h.b16 %v2503
        %v6822 = vunpack.c.l.b16 %v2504
        %v6823 = vunpack.c.h.b16 %v2504
        %v6824 = vunpack.c.l.b16 %v2505
        %v6825 = vunpack.c.h.b16 %v2505
        %v6826 = vunpack.c.l.b16 %v2506
        %v6827 = vunpack.c.h.b16 %v2506
        %v6828 = vunpack.c.l.b16 %v2507
        %v6829 = vunpack.c.h.b16 %v2507
        %v6830 = vunpack.c.l.b16 %v2508
        %v6831 = vunpack.c.h.b16 %v2508
        %v6832 = vunpack.c.l.b16 %v2509
        %v6833 = vunpack.c.h.b16 %v2509
        %v6834 = vunpack.c.l.b16 %v2510
        %v6835 = vunpack.c.h.b16 %v2510
        %v6836 = vunpack.c.l.b16 %v2511
        %v6837 = vunpack.c.h.b16 %v2511
        %v6838 = vunpack.c.l.b16 %v2512
        %v6839 = vunpack.c.h.b16 %v2512
        %v6840 = vunpack.c.l.b16 %v2513
        %v6841 = vunpack.c.h.b16 %v2513
        %v6842 = vunpack.c.l.b16 %v2514
        %v6843 = vunpack.c.h.b16 %v2514
        %v6844 = vunpack.c.l.b16 %v2515
        %v6845 = vunpack.c.h.b16 %v2515
        %v6846 = vunpack.c.l.b16 %v2516
        %v6847 = vunpack.c.h.b16 %v2516
        %v6848 = vunpack.c.l.b16 %v2517
        %v6849 = vunpack.c.h.b16 %v2517
        %v6850 = vunpack.c.l.b16 %v2518
        %v6851 = vunpack.c.h.b16 %v2518
        %v6852 = vunpack.c.l.b16 %v2519
        %v6853 = vunpack.c.h.b16 %v2519
        %v6854 = vunpack.c.l.b16 %v2520
        %v6855 = vunpack.c.h.b16 %v2520
        %v6856 = vunpack.c.l.b16 %v2521
        %v6857 = vunpack.c.h.b16 %v2521
        %v6858 = vunpack.c.l.b16 %v2522
        %v6859 = vunpack.c.h.b16 %v2522
        %v6860 = vunpack.c.l.b16 %v2523
        %v6861 = vunpack.c.h.b16 %v2523
        %v6862 = vunpack.c.l.b16 %v2524
        %v6863 = vunpack.c.h.b16 %v2524
        %v6864 = vunpack.c.l.b16 %v2525
        %v6865 = vunpack.c.h.b16 %v2525
        %v6866 = vunpack.c.l.b16 %v2526
        %v6867 = vunpack.c.h.b16 %v2526
        %v6868 = vunpack.c.l.b16 %v2527
        %v6869 = vunpack.c.h.b16 %v2527
        %v6870 = vunpack.c.l.b16 %v2528
        %v6871 = vunpack.c.h.b16 %v2528
        %v6872 = vunpack.c.l.b16 %v2529
        %v6873 = vunpack.c.h.b16 %v2529
        %v6874 = vunpack.c.l.b16 %v2530
        %v6875 = vunpack.c.h.b16 %v2530
        %v6876 = vunpack.c.l.b16 %v2531
        %v6877 = vunpack.c.h.b16 %v2531
        %v6878 = vunpack.c.l.b16 %v2532
        %v6879 = vunpack.c.h.b16 %v2532
        %v6880 = vunpack.c.l.b16 %v2533
        %v6881 = vunpack.c.h.b16 %v2533
        %v6882 = vunpack.c.l.b16 %v2534
        %v6883 = vunpack.c.h.b16 %v2534
        %v6884 = vunpack.c.l.b16 %v2535
        %v6885 = vunpack.c.h.b16 %v2535
        %v6886 = vunpack.c.l.b16 %v2536
        %v6887 = vunpack.c.h.b16 %v2536
        %v6888 = vunpack.c.l.b16 %v2537
        %v6889 = vunpack.c.h.b16 %v2537
        %v6890 = vunpack.c.l.b16 %v2538
        %v6891 = vunpack.c.h.b16 %v2538
        %v6892 = vunpack.c.l.b16 %v2539
        %v6893 = vunpack.c.h.b16 %v2539
        %v6894 = vunpack.c.l.b16 %v2540
        %v6895 = vunpack.c.h.b16 %v2540
        %v6896 = vunpack.c.l.b16 %v2541
        %v6897 = vunpack.c.h.b16 %v2541
        %v6898 = vunpack.c.l.b16 %v2542
        %v6899 = vunpack.c.h.b16 %v2542
        %v6900 = vunpack.c.l.b16 %v2543
        %v6901 = vunpack.c.h.b16 %v2543
        %v6902 = vunpack.c.l.b16 %v2544
        %v6903 = vunpack.c.h.b16 %v2544
        %v6904 = vunpack.c.l.b16 %v2545
        %v6905 = vunpack.c.h.b16 %v2545
        %v6906 = vunpack.c.l.b16 %v2546
        %v6907 = vunpack.c.h.b16 %v2546
        %v6908 = vunpack.c.l.b16 %v2547
        %v6909 = vunpack.c.h.b16 %v2547
        %v6910 = vunpack.c.l.b16 %v2548
        %v6911 = vunpack.c.h.b16 %v2548
        %v6912 = vunpack.c.l.b16 %v2549
        %v6913 = vunpack.c.h.b16 %v2549
        %v6914 = vunpack.c.l.b16 %v2550
        %v6915 = vunpack.c.h.b16 %v2550
        %v6916 = vunpack.c.l.b16 %v2551
        %v6917 = vunpack.c.h.b16 %v2551
        %v6918 = vunpack.c.l.b16 %v2552
        %v6919 = vunpack.c.h.b16 %v2552
        %v6920 = vunpack.c.l.b16 %v2553
        %v6921 = vunpack.c.h.b16 %v2553
        %v6922 = vunpack.c.l.b16 %v2554
        %v6923 = vunpack.c.h.b16 %v2554
        %v6924 = vunpack.c.l.b16 %v2555
        %v6925 = vunpack.c.h.b16 %v2555
        %v6926 = vunpack.c.l.b16 %v2556
        %v6927 = vunpack.c.h.b16 %v2556
        %v6928 = vunpack.c.l.b16 %v2557
        %v6929 = vunpack.c.h.b16 %v2557
        %v6930 = vunpack.c.l.b16 %v2558
        %v6931 = vunpack.c.h.b16 %v2558
        %v6932 = vunpack.c.l.b16 %v2559
        %v6933 = vunpack.c.h.b16 %v2559
        %v6934 = vunpack.c.l.b16 %v2560
        %v6935 = vunpack.c.h.b16 %v2560
        %v6936 = vunpack.c.l.b16 %v2561
        %v6937 = vunpack.c.h.b16 %v2561
        %v6938 = vunpack.c.l.b16 %v2562
        %v6939 = vunpack.c.h.b16 %v2562
        %v6940 = vunpack.c.l.b16 %v2563
        %v6941 = vunpack.c.h.b16 %v2563
        %v6942 = vunpack.c.l.b16 %v2564
        %v6943 = vunpack.c.h.b16 %v2564
        %v6944 = vunpack.c.l.b16 %v2565
        %v6945 = vunpack.c.h.b16 %v2565
        %v6946 = vunpack.c.l.b16 %v2566
        %v6947 = vunpack.c.h.b16 %v2566
        %v6948 = vunpack.c.l.b16 %v2567
        %v6949 = vunpack.c.h.b16 %v2567
        %v6950 = vunpack.c.l.b16 %v2568
        %v6951 = vunpack.c.h.b16 %v2568
        %v6952 = vunpack.c.l.b16 %v2569
        %v6953 = vunpack.c.h.b16 %v2569
        %v6954 = vunpack.c.l.b16 %v2570
        %v6955 = vunpack.c.h.b16 %v2570
        %v6956 = vunpack.c.l.b16 %v2571
        %v6957 = vunpack.c.h.b16 %v2571
        %v6958 = vunpack.c.l.b16 %v2572
        %v6959 = vunpack.c.h.b16 %v2572
        %v6960 = vunpack.c.l.b16 %v2573
        %v6961 = vunpack.c.h.b16 %v2573
        %v6962 = vunpack.c.l.b16 %v2574
        %v6963 = vunpack.c.h.b16 %v2574
        %v6964 = vunpack.c.l.b16 %v2575
        %v6965 = vunpack.c.h.b16 %v2575
        %v6966 = vunpack.c.l.b16 %v2576
        %v6967 = vunpack.c.h.b16 %v2576
        %v6968 = vunpack.c.l.b16 %v2577
        %v6969 = vunpack.c.h.b16 %v2577
        %v6970 = vunpack.c.l.b16 %v2578
        %v6971 = vunpack.c.h.b16 %v2578
        %v6972 = vunpack.c.l.b16 %v2579
        %v6973 = vunpack.c.h.b16 %v2579
        %v6974 = vunpack.c.l.b16 %v2580
        %v6975 = vunpack.c.h.b16 %v2580
        %v6976 = vunpack.c.l.b16 %v2581
        %v6977 = vunpack.c.h.b16 %v2581
        %v6978 = vunpack.c.l.b16 %v2582
        %v6979 = vunpack.c.h.b16 %v2582
        %v6980 = vunpack.c.l.b16 %v2583
        %v6981 = vunpack.c.h.b16 %v2583
        %v6982 = vunpack.c.l.b16 %v2584
        %v6983 = vunpack.c.h.b16 %v2584
        %v6984 = vunpack.c.l.b16 %v2585
        %v6985 = vunpack.c.h.b16 %v2585
        %v6986 = vunpack.c.l.b16 %v2586
        %v6987 = vunpack.c.h.b16 %v2586
        %v6988 = vunpack.c.l.b16 %v2587
        %v6989 = vunpack.c.h.b16 %v2587
        %v6990 = vunpack.c.l.b16 %v2588
        %v6991 = vunpack.c.h.b16 %v2588
        %v6992 = vunpack.c.l.b16 %v2589
        %v6993 = vunpack.c.h.b16 %v2589
        %v6994 = vunpack.c.l.b16 %v2590
        %v6995 = vunpack.c.h.b16 %v2590
        %v6996 = vunpack.c.l.b16 %v2591
        %v6997 = vunpack.c.h.b16 %v2591
        %v6998 = vunpack.c.l.b16 %v2592
        %v6999 = vunpack.c.h.b16 %v2592
        %v7000 = vunpack.c.l.b16 %v2593
        %v7001 = vunpack.c.h.b16 %v2593
        %v7002 = vunpack.c.l.b16 %v2594
        %v7003 = vunpack.c.h.b16 %v2594
        %v7004 = vunpack.c.l.b16 %v2595
        %v7005 = vunpack.c.h.b16 %v2595
        %v7006 = vunpack.c.l.b16 %v2596
        %v7007 = vunpack.c.h.b16 %v2596
        %v7008 = vunpack.c.l.b16 %v2597
        %v7009 = vunpack.c.h.b16 %v2597
        %v7010 = vunpack.c.l.b16 %v2598
        %v7011 = vunpack.c.h.b16 %v2598
        %v7012 = vunpack.c.l.b16 %v2599
        %v7013 = vunpack.c.h.b16 %v2599
        %v7014 = vunpack.c.l.b16 %v2600
        %v7015 = vunpack.c.h.b16 %v2600
        %v7016 = vunpack.c.l.b16 %v2601
        %v7017 = vunpack.c.h.b16 %v2601
        %v7018 = vunpack.c.l.b16 %v2602
        %v7019 = vunpack.c.h.b16 %v2602
        %v7020 = vunpack.c.l.b16 %v2603
        %v7021 = vunpack.c.h.b16 %v2603
        %v7022 = vunpack.c.l.b16 %v2604
        %v7023 = vunpack.c.h.b16 %v2604
        %v7024 = vunpack.c.l.b16 %v2605
        %v7025 = vunpack.c.h.b16 %v2605
        %v7026 = vunpack.c.l.b16 %v2606
        %v7027 = vunpack.c.h.b16 %v2606
        %v7028 = vunpack.c.l.b16 %v2607
        %v7029 = vunpack.c.h.b16 %v2607
        %v7030 = vunpack.c.l.b16 %v2608
        %v7031 = vunpack.c.h.b16 %v2608
        %v7032 = vunpack.c.l.b16 %v2609
        %v7033 = vunpack.c.h.b16 %v2609
        %v7034 = vunpack.c.l.b16 %v2610
        %v7035 = vunpack.c.h.b16 %v2610
        %v7036 = vunpack.c.l.b16 %v2611
        %v7037 = vunpack.c.h.b16 %v2611
        %v7038 = vunpack.c.l.b16 %v2612
        %v7039 = vunpack.c.h.b16 %v2612
        %v7040 = vunpack.c.l.b16 %v2613
        %v7041 = vunpack.c.h.b16 %v2613
        %v7042 = vunpack.c.l.b16 %v2614
        %v7043 = vunpack.c.h.b16 %v2614
        %v7044 = vunpack.c.l.b16 %v2615
        %v7045 = vunpack.c.h.b16 %v2615
        %v7046 = vunpack.c.l.b16 %v2616
        %v7047 = vunpack.c.h.b16 %v2616
        %v7048 = vunpack.c.l.b16 %v2617
        %v7049 = vunpack.c.h.b16 %v2617
        %v7050 = vunpack.c.l.b16 %v2618
        %v7051 = vunpack.c.h.b16 %v2618
        %v7052 = vunpack.c.l.b16 %v2619
        %v7053 = vunpack.c.h.b16 %v2619
        %v7054 = vunpack.c.l.b16 %v2620
        %v7055 = vunpack.c.h.b16 %v2620
        %v7056 = vunpack.c.l.b16 %v2621
        %v7057 = vunpack.c.h.b16 %v2621
        %v7058 = vunpack.c.l.b16 %v2622
        %v7059 = vunpack.c.h.b16 %v2622
        %v7060 = vunpack.c.l.b16 %v2623
        %v7061 = vunpack.c.h.b16 %v2623
        %v7062 = vunpack.c.l.b16 %v2624
        %v7063 = vunpack.c.h.b16 %v2624
        %v7064 = vunpack.c.l.b16 %v2625
        %v7065 = vunpack.c.h.b16 %v2625
        %v7066 = vunpack.c.l.b16 %v2626
        %v7067 = vunpack.c.h.b16 %v2626
        %v7068 = vunpack.c.l.b16 %v2627
        %v7069 = vunpack.c.h.b16 %v2627
        %v7070 = vunpack.c.l.b16 %v2628
        %v7071 = vunpack.c.h.b16 %v2628
        %v7072 = vunpack.c.l.b16 %v2629
        %v7073 = vunpack.c.h.b16 %v2629
        %v7074 = vunpack.c.l.b16 %v2630
        %v7075 = vunpack.c.h.b16 %v2630
        %v7076 = vunpack.c.l.b16 %v2631
        %v7077 = vunpack.c.h.b16 %v2631
        %v7078 = vunpack.c.l.b16 %v2632
        %v7079 = vunpack.c.h.b16 %v2632
        %v7080 = vunpack.c.l.b16 %v2633
        %v7081 = vunpack.c.h.b16 %v2633
        %v7082 = vunpack.c.l.b16 %v2634
        %v7083 = vunpack.c.h.b16 %v2634
        %v7084 = vunpack.c.l.b16 %v2635
        %v7085 = vunpack.c.h.b16 %v2635
        %v7086 = vunpack.c.l.b16 %v2636
        %v7087 = vunpack.c.h.b16 %v2636
        %v7088 = vunpack.c.l.b16 %v2637
        %v7089 = vunpack.c.h.b16 %v2637
        %v7090 = vunpack.c.l.b16 %v2638
        %v7091 = vunpack.c.h.b16 %v2638
        %v7092 = vunpack.c.l.b16 %v2639
        %v7093 = vunpack.c.h.b16 %v2639
        %v7094 = vunpack.c.l.b16 %v2640
        %v7095 = vunpack.c.h.b16 %v2640
        %v7096 = vunpack.c.l.b16 %v2641
        %v7097 = vunpack.c.h.b16 %v2641
        %v7098 = vunpack.c.l.b16 %v2642
        %v7099 = vunpack.c.h.b16 %v2642
        %v7100 = vunpack.c.l.b16 %v2643
        %v7101 = vunpack.c.h.b16 %v2643
        %v7102 = vunpack.c.l.b16 %v2644
        %v7103 = vunpack.c.h.b16 %v2644
        %v7104 = vunpack.c.l.b16 %v2645
        %v7105 = vunpack.c.h.b16 %v2645
        %v7106 = vunpack.c.l.b16 %v2646
        %v7107 = vunpack.c.h.b16 %v2646
        %v7108 = vunpack.c.l.b16 %v2647
        %v7109 = vunpack.c.h.b16 %v2647
        %v7110 = vunpack.c.l.b16 %v2648
        %v7111 = vunpack.c.h.b16 %v2648
        %v7112 = vunpack.c.l.b16 %v2649
        %v7113 = vunpack.c.h.b16 %v2649
        %v7114 = vunpack.c.l.b16 %v2650
        %v7115 = vunpack.c.h.b16 %v2650
        %v7116 = vunpack.c.l.b16 %v2651
        %v7117 = vunpack.c.h.b16 %v2651
        %v7118 = vunpack.c.l.b16 %v2652
        %v7119 = vunpack.c.h.b16 %v2652
        %v7120 = vunpack.c.l.b16 %v2653
        %v7121 = vunpack.c.h.b16 %v2653
        %v7122 = vunpack.c.l.b16 %v2654
        %v7123 = vunpack.c.h.b16 %v2654
        %v7124 = vunpack.c.l.b16 %v2655
        %v7125 = vunpack.c.h.b16 %v2655
        %v7126 = vunpack.c.l.b16 %v2656
        %v7127 = vunpack.c.h.b16 %v2656
        %v7128 = vunpack.c.l.b16 %v2657
        %v7129 = vunpack.c.h.b16 %v2657
        %v7130 = vunpack.c.l.b16 %v2658
        %v7131 = vunpack.c.h.b16 %v2658
        %v7132 = vunpack.c.l.b16 %v2659
        %v7133 = vunpack.c.h.b16 %v2659
        %v7134 = vunpack.c.l.b16 %v2660
        %v7135 = vunpack.c.h.b16 %v2660
        %v7136 = vunpack.c.l.b16 %v2661
        %v7137 = vunpack.c.h.b16 %v2661
        %v7138 = vunpack.c.l.b16 %v2662
        %v7139 = vunpack.c.h.b16 %v2662
        %v7140 = vunpack.c.l.b16 %v2663
        %v7141 = vunpack.c.h.b16 %v2663
        %v7142 = vunpack.c.l.b16 %v2664
        %v7143 = vunpack.c.h.b16 %v2664
        %v7144 = vunpack.c.l.b16 %v2665
        %v7145 = vunpack.c.h.b16 %v2665
        %v7146 = vunpack.c.l.b16 %v2666
        %v7147 = vunpack.c.h.b16 %v2666
        %v7148 = vunpack.c.l.b16 %v2667
        %v7149 = vunpack.c.h.b16 %v2667
        %v7150 = vunpack.c.l.b16 %v2668
        %v7151 = vunpack.c.h.b16 %v2668
        %v7152 = vunpack.c.l.b16 %v2669
        %v7153 = vunpack.c.h.b16 %v2669
        %v7154 = vunpack.c.l.b16 %v2670
        %v7155 = vunpack.c.h.b16 %v2670
        %v7156 = vunpack.c.l.b16 %v2671
        %v7157 = vunpack.c.h.b16 %v2671
        %v7158 = vunpack.c.l.b16 %v2672
        %v7159 = vunpack.c.h.b16 %v2672
        %v7160 = vunpack.c.l.b16 %v2673
        %v7161 = vunpack.c.h.b16 %v2673
        %v7162 = vunpack.c.l.b16 %v2674
        %v7163 = vunpack.c.h.b16 %v2674
        %v7164 = vunpack.c.l.b16 %v2675
        %v7165 = vunpack.c.h.b16 %v2675
        %v7166 = vunpack.c.l.b16 %v2676
        %v7167 = vunpack.c.h.b16 %v2676
        %v7168 = vunpack.c.l.b16 %v2677
        %v7169 = vunpack.c.h.b16 %v2677
        %v7170 = vunpack.c.l.b16 %v2678
        %v7171 = vunpack.c.h.b16 %v2678
        %v7172 = vunpack.c.l.b16 %v2679
        %v7173 = vunpack.c.h.b16 %v2679
        %v7174 = vunpack.c.l.b16 %v2680
        %v7175 = vunpack.c.h.b16 %v2680
        %v7176 = vunpack.c.l.b16 %v2681
        %v7177 = vunpack.c.h.b16 %v2681
        %v7178 = vunpack.c.l.b16 %v2682
        %v7179 = vunpack.c.h.b16 %v2682
        %v7180 = vunpack.c.l.b16 %v2683
        %v7181 = vunpack.c.h.b16 %v2683
        %v7182 = vunpack.c.l.b16 %v2684
        %v7183 = vunpack.c.h.b16 %v2684
        %v7184 = vunpack.c.l.b16 %v2685
        %v7185 = vunpack.c.h.b16 %v2685
        %v7186 = vunpack.c.l.b16 %v2686
        %v7187 = vunpack.c.h.b16 %v2686
        %v7188 = vunpack.c.l.b16 %v2687
        %v7189 = vunpack.c.h.b16 %v2687
        %v7190 = vunpack.c.l.b16 %v2688
        %v7191 = vunpack.c.h.b16 %v2688
        %v7192 = vunpack.c.l.b16 %v2689
        %v7193 = vunpack.c.h.b16 %v2689
        %v7194 = vunpack.c.l.b16 %v2690
        %v7195 = vunpack.c.h.b16 %v2690
        %v7196 = vunpack.c.l.b16 %v2691
        %v7197 = vunpack.c.h.b16 %v2691
        %v7198 = vunpack.c.l.b16 %v2692
        %v7199 = vunpack.c.h.b16 %v2692
        %v7200 = vunpack.c.l.b16 %v2693
        %v7201 = vunpack.c.h.b16 %v2693
        %v7202 = vunpack.c.l.b16 %v2694
        %v7203 = vunpack.c.h.b16 %v2694
        %v7204 = vunpack.c.l.b16 %v2695
        %v7205 = vunpack.c.h.b16 %v2695
        %v7206 = vunpack.c.l.b16 %v2696
        %v7207 = vunpack.c.h.b16 %v2696
        %v7208 = vunpack.c.l.b16 %v2697
        %v7209 = vunpack.c.h.b16 %v2697
        %v7210 = vunpack.c.l.b16 %v2698
        %v7211 = vunpack.c.h.b16 %v2698
        %v7212 = vunpack.c.l.b16 %v2699
        %v7213 = vunpack.c.h.b16 %v2699
        %v7214 = vunpack.c.l.b16 %v2700
        %v7215 = vunpack.c.h.b16 %v2700
        %v7216 = vunpack.c.l.b16 %v2701
        %v7217 = vunpack.c.h.b16 %v2701
        %v7218 = vunpack.c.l.b16 %v2702
        %v7219 = vunpack.c.h.b16 %v2702
        %v7220 = vunpack.c.l.b16 %v2703
        %v7221 = vunpack.c.h.b16 %v2703
        %v7222 = vunpack.c.l.b16 %v2704
        %v7223 = vunpack.c.h.b16 %v2704
        %v7224 = vunpack.c.l.b16 %v2705
        %v7225 = vunpack.c.h.b16 %v2705
        %v7226 = vunpack.c.l.b16 %v2706
        %v7227 = vunpack.c.h.b16 %v2706
        %v7228 = vunpack.c.l.b16 %v2707
        %v7229 = vunpack.c.h.b16 %v2707
        %v7230 = vunpack.c.l.b16 %v2708
        %v7231 = vunpack.c.h.b16 %v2708
        %v7232 = vunpack.c.l.b16 %v2709
        %v7233 = vunpack.c.h.b16 %v2709
        %v7234 = vunpack.c.l.b16 %v2710
        %v7235 = vunpack.c.h.b16 %v2710
        %v7236 = vunpack.c.l.b16 %v2711
        %v7237 = vunpack.c.h.b16 %v2711
        %v7238 = vunpack.c.l.b16 %v2712
        %v7239 = vunpack.c.h.b16 %v2712
        %v7240 = vunpack.c.l.b16 %v2713
        %v7241 = vunpack.c.h.b16 %v2713
        %v7242 = vunpack.c.l.b16 %v2714
        %v7243 = vunpack.c.h.b16 %v2714
        %v7244 = vunpack.c.l.b16 %v2715
        %v7245 = vunpack.c.h.b16 %v2715
        %v7246 = vunpack.c.l.b16 %v2716
        %v7247 = vunpack.c.h.b16 %v2716
        %v7248 = vunpack.c.l.b16 %v2717
        %v7249 = vunpack.c.h.b16 %v2717
        %v7250 = vunpack.c.l.b16 %v2718
        %v7251 = vunpack.c.h.b16 %v2718
        %v7252 = vunpack.c.l.b16 %v2719
        %v7253 = vunpack.c.h.b16 %v2719
        %v7254 = vunpack.c.l.b16 %v2720
        %v7255 = vunpack.c.h.b16 %v2720
        %v7256 = vunpack.c.l.b16 %v2721
        %v7257 = vunpack.c.h.b16 %v2721
        %v7258 = vunpack.c.l.b16 %v2722
        %v7259 = vunpack.c.h.b16 %v2722
        %v7260 = vunpack.c.l.b16 %v2723
        %v7261 = vunpack.c.h.b16 %v2723
        %v7262 = vunpack.c.l.b16 %v2724
        %v7263 = vunpack.c.h.b16 %v2724
        %v7264 = vunpack.c.l.b16 %v2725
        %v7265 = vunpack.c.h.b16 %v2725
        %v7266 = vunpack.c.l.b16 %v2726
        %v7267 = vunpack.c.h.b16 %v2726
        %v7268 = vunpack.c.l.b16 %v2727
        %v7269 = vunpack.c.h.b16 %v2727
        %v7270 = vunpack.c.l.b16 %v2728
        %v7271 = vunpack.c.h.b16 %v2728
        %v7272 = vunpack.c.l.b16 %v2729
        %v7273 = vunpack.c.h.b16 %v2729
        %v7274 = vunpack.c.l.b16 %v2730
        %v7275 = vunpack.c.h.b16 %v2730
        %v7276 = vunpack.c.l.b16 %v2731
        %v7277 = vunpack.c.h.b16 %v2731
        %v7278 = vunpack.c.l.b16 %v2732
        %v7279 = vunpack.c.h.b16 %v2732
        %v7280 = vunpack.c.l.b16 %v2733
        %v7281 = vunpack.c.h.b16 %v2733
        %v7282 = vunpack.c.l.b16 %v2734
        %v7283 = vunpack.c.h.b16 %v2734
        %v7284 = vunpack.c.l.b16 %v2735
        %v7285 = vunpack.c.h.b16 %v2735
        %v7286 = vunpack.c.l.b16 %v2736
        %v7287 = vunpack.c.h.b16 %v2736
        %v7288 = vunpack.c.l.b16 %v2737
        %v7289 = vunpack.c.h.b16 %v2737
        %v7290 = vunpack.c.l.b16 %v2738
        %v7291 = vunpack.c.h.b16 %v2738
        %v7292 = vunpack.c.l.b16 %v2739
        %v7293 = vunpack.c.h.b16 %v2739
        %v7294 = vunpack.c.l.b16 %v2740
        %v7295 = vunpack.c.h.b16 %v2740
        %v7296 = vunpack.c.l.b16 %v2741
        %v7297 = vunpack.c.h.b16 %v2741
        %v7298 = vunpack.c.l.b16 %v2742
        %v7299 = vunpack.c.h.b16 %v2742
        %v7300 = vunpack.c.l.b16 %v2743
        %v7301 = vunpack.c.h.b16 %v2743
        %v7302 = vunpack.c.l.b16 %v2744
        %v7303 = vunpack.c.h.b16 %v2744
        %v7304 = vunpack.c.l.b16 %v2745
        %v7305 = vunpack.c.h.b16 %v2745
        %v7306 = vunpack.c.l.b16 %v2746
        %v7307 = vunpack.c.h.b16 %v2746
        %v7308 = vunpack.c.l.b16 %v2747
        %v7309 = vunpack.c.h.b16 %v2747
        %v7310 = vunpack.c.l.b16 %v2748
        %v7311 = vunpack.c.h.b16 %v2748
        %v7312 = vunpack.c.l.b16 %v2749
        %v7313 = vunpack.c.h.b16 %v2749
        %v7314 = vunpack.c.l.b16 %v2750
        %v7315 = vunpack.c.h.b16 %v2750
        %v7316 = vunpack.c.l.b16 %v2751
        %v7317 = vunpack.c.h.b16 %v2751
        %v7318 = vunpack.c.l.b16 %v2752
        %v7319 = vunpack.c.h.b16 %v2752
        %v7320 = vunpack.c.l.b16 %v2753
        %v7321 = vunpack.c.h.b16 %v2753
        %v7322 = vunpack.c.l.b16 %v2754
        %v7323 = vunpack.c.h.b16 %v2754
        %v7324 = vunpack.c.l.b16 %v2755
        %v7325 = vunpack.c.h.b16 %v2755
        %v7326 = vunpack.c.l.b16 %v2756
        %v7327 = vunpack.c.h.b16 %v2756
        %v7328 = vunpack.c.l.b16 %v2757
        %v7329 = vunpack.c.h.b16 %v2757
        %v7330 = vunpack.c.l.b16 %v2758
        %v7331 = vunpack.c.h.b16 %v2758
        %v7332 = vunpack.c.l.b16 %v2759
        %v7333 = vunpack.c.h.b16 %v2759
        %v7334 = vunpack.c.l.b16 %v2760
        %v7335 = vunpack.c.h.b16 %v2760
        %v7336 = vunpack.c.l.b16 %v2761
        %v7337 = vunpack.c.h.b16 %v2761
        %v7338 = vunpack.c.l.b16 %v2762
        %v7339 = vunpack.c.h.b16 %v2762
        %v7340 = vunpack.c.l.b16 %v2763
        %v7341 = vunpack.c.h.b16 %v2763
        %v7342 = vunpack.c.l.b16 %v2764
        %v7343 = vunpack.c.h.b16 %v2764
        %v7344 = vunpack.c.l.b16 %v2765
        %v7345 = vunpack.c.h.b16 %v2765
        %v7346 = vunpack.c.l.b16 %v2766
        %v7347 = vunpack.c.h.b16 %v2766
        %v7348 = vunpack.c.l.b16 %v2767
        %v7349 = vunpack.c.h.b16 %v2767
        %v7350 = vunpack.c.l.b16 %v2768
        %v7351 = vunpack.c.h.b16 %v2768
        %v7352 = vunpack.c.l.b16 %v2769
        %v7353 = vunpack.c.h.b16 %v2769
        %v7354 = vunpack.c.l.b16 %v2770
        %v7355 = vunpack.c.h.b16 %v2770
        %v7356 = vunpack.c.l.b16 %v2771
        %v7357 = vunpack.c.h.b16 %v2771
        %v7358 = vunpack.c.l.b16 %v2772
        %v7359 = vunpack.c.h.b16 %v2772
        %v7360 = vunpack.c.l.b16 %v2773
        %v7361 = vunpack.c.h.b16 %v2773
        %v7362 = vunpack.c.l.b16 %v2774
        %v7363 = vunpack.c.h.b16 %v2774
        %v7364 = vunpack.c.l.b16 %v2775
        %v7365 = vunpack.c.h.b16 %v2775
        %v7366 = vunpack.c.l.b16 %v2776
        %v7367 = vunpack.c.h.b16 %v2776
        %v7368 = vunpack.c.l.b16 %v2777
        %v7369 = vunpack.c.h.b16 %v2777
        %v7370 = vunpack.c.l.b16 %v2778
        %v7371 = vunpack.c.h.b16 %v2778
        %v7372 = vunpack.c.l.b16 %v2779
        %v7373 = vunpack.c.h.b16 %v2779
        %v7374 = vunpack.c.l.b16 %v2780
        %v7375 = vunpack.c.h.b16 %v2780
        %v7376 = vunpack.c.l.b16 %v2781
        %v7377 = vunpack.c.h.b16 %v2781
        %v7378 = vunpack.c.l.b16 %v2782
        %v7379 = vunpack.c.h.b16 %v2782
        %v7380 = vunpack.c.l.b16 %v2783
        %v7381 = vunpack.c.h.b16 %v2783
        %v7382 = vunpack.c.l.b16 %v2784
        %v7383 = vunpack.c.h.b16 %v2784
        %v7384 = vunpack.c.l.b16 %v2785
        %v7385 = vunpack.c.h.b16 %v2785
        %v7386 = vunpack.c.l.b16 %v2786
        %v7387 = vunpack.c.h.b16 %v2786
        %v7388 = vunpack.c.l.b16 %v2787
        %v7389 = vunpack.c.h.b16 %v2787
        %v7390 = vunpack.c.l.b16 %v2788
        %v7391 = vunpack.c.h.b16 %v2788
        %v7392 = vunpack.c.l.b16 %v2789
        %v7393 = vunpack.c.h.b16 %v2789
        %v7394 = vunpack.c.l.b16 %v2790
        %v7395 = vunpack.c.h.b16 %v2790
        %v7396 = vunpack.c.l.b16 %v2791
        %v7397 = vunpack.c.h.b16 %v2791
        %v7398 = vunpack.c.l.b16 %v2792
        %v7399 = vunpack.c.h.b16 %v2792
        %v7400 = vunpack.c.l.b16 %v2793
        %v7401 = vunpack.c.h.b16 %v2793
        %v7402 = vpack.c.b16 %v4334, %v4330
        %v7403 = vpack.c.b16 %v4335, %v4331
        %v7404 = vpack.c.b16 %v4336, %v4332
        %v7405 = vpack.c.b16 %v4337, %v4333
        %v7406 = vpack.c.b16 %v4342, %v4338
        %v7407 = vpack.c.b16 %v4343, %v4339
        %v7408 = vpack.c.b16 %v4344, %v4340
        %v7409 = vpack.c.b16 %v4345, %v4341
        %v7410 = vpack.c.b16 %v4350, %v4346
        %v7411 = vpack.c.b16 %v4351, %v4347
        %v7412 = vpack.c.b16 %v4352, %v4348
        %v7413 = vpack.c.b16 %v4353, %v4349
        %v7414 = vpack.c.b16 %v4358, %v4354
        %v7415 = vpack.c.b16 %v4359, %v4355
        %v7416 = vpack.c.b16 %v4360, %v4356
        %v7417 = vpack.c.b16 %v4361, %v4357
        %v7418 = vpack.c.b16 %v4366, %v4362
        %v7419 = vpack.c.b16 %v4367, %v4363
        %v7420 = vpack.c.b16 %v4368, %v4364
        %v7421 = vpack.c.b16 %v4369, %v4365
        %v7422 = vpack.c.b16 %v4374, %v4370
        %v7423 = vpack.c.b16 %v4375, %v4371
        %v7424 = vpack.c.b16 %v4376, %v4372
        %v7425 = vpack.c.b16 %v4377, %v4373
        %v7426 = vpack.c.b16 %v4382, %v4378
        %v7427 = vpack.c.b16 %v4383, %v4379
        %v7428 = vpack.c.b16 %v4384, %v4380
        %v7429 = vpack.c.b16 %v4385, %v4381
        %v7430 = vpack.c.b16 %v4390, %v4386
        %v7431 = vpack.c.b16 %v4391, %v4387
        %v7432 = vpack.c.b16 %v4392, %v4388
        %v7433 = vpack.c.b16 %v4393, %v4389
        %v7434 = vpack.c.b16 %v4398, %v4394
        %v7435 = vpack.c.b16 %v4399, %v4395
        %v7436 = vpack.c.b16 %v4400, %v4396
        %v7437 = vpack.c.b16 %v4401, %v4397
        %v7438 = vpack.c.b16 %v4406, %v4402
        %v7439 = vpack.c.b16 %v4407, %v4403
        %v7440 = vpack.c.b16 %v4408, %v4404
        %v7441 = vpack.c.b16 %v4409, %v4405
        %v7442 = vpack.c.b16 %v4414, %v4410
        %v7443 = vpack.c.b16 %v4415, %v4411
        %v7444 = vpack.c.b16 %v4416, %v4412
        %v7445 = vpack.c.b16 %v4417, %v4413
        %v7446 = vpack.c.b16 %v4422, %v4418
        %v7447 = vpack.c.b16 %v4423, %v4419
        %v7448 = vpack.c.b16 %v4424, %v4420
        %v7449 = vpack.c.b16 %v4425, %v4421
        %v7450 = vpack.c.b16 %v4430, %v4426
        %v7451 = vpack.c.b16 %v4431, %v4427
        %v7452 = vpack.c.b16 %v4432, %v4428
        %v7453 = vpack.c.b16 %v4433, %v4429
        %v7454 = vpack.c.b16 %v4438, %v4434
        %v7455 = vpack.c.b16 %v4439, %v4435
        %v7456 = vpack.c.b16 %v4440, %v4436
        %v7457 = vpack.c.b16 %v4441, %v4437
        %v7458 = vpack.c.b16 %v4446, %v4442
        %v7459 = vpack.c.b16 %v4447, %v4443
        %v7460 = vpack.c.b16 %v4448, %v4444
        %v7461 = vpack.c.b16 %v4449, %v4445
        %v7462 = vpack.c.b16 %v4454, %v4450
        %v7463 = vpack.c.b16 %v4455, %v4451
        %v7464 = vpack.c.b16 %v4456, %v4452
        %v7465 = vpack.c.b16 %v4457, %v4453
        %v7466 = vpack.c.b16 %v4462, %v4458
        %v7467 = vpack.c.b16 %v4463, %v4459
        %v7468 = vpack.c.b16 %v4464, %v4460
        %v7469 = vpack.c.b16 %v4465, %v4461
        %v7470 = vpack.c.b16 %v4470, %v4466
        %v7471 = vpack.c.b16 %v4471, %v4467
        %v7472 = vpack.c.b16 %v4472, %v4468
        %v7473 = vpack.c.b16 %v4473, %v4469
        %v7474 = vpack.c.b16 %v4478, %v4474
        %v7475 = vpack.c.b16 %v4479, %v4475
        %v7476 = vpack.c.b16 %v4480, %v4476
        %v7477 = vpack.c.b16 %v4481, %v4477
        %v7478 = vpack.c.b16 %v4486, %v4482
        %v7479 = vpack.c.b16 %v4487, %v4483
        %v7480 = vpack.c.b16 %v4488, %v4484
        %v7481 = vpack.c.b16 %v4489, %v4485
        %v7482 = vpack.c.b16 %v4494, %v4490
        %v7483 = vpack.c.b16 %v4495, %v4491
        %v7484 = vpack.c.b16 %v4496, %v4492
        %v7485 = vpack.c.b16 %v4497, %v4493
        %v7486 = vpack.c.b16 %v4502, %v4498
        %v7487 = vpack.c.b16 %v4503, %v4499
        %v7488 = vpack.c.b16 %v4504, %v4500
        %v7489 = vpack.c.b16 %v4505, %v4501
        %v7490 = vpack.c.b16 %v4510, %v4506
        %v7491 = vpack.c.b16 %v4511, %v4507
        %v7492 = vpack.c.b16 %v4512, %v4508
        %v7493 = vpack.c.b16 %v4513, %v4509
        %v7494 = vpack.c.b16 %v4518, %v4514
        %v7495 = vpack.c.b16 %v4519, %v4515
        %v7496 = vpack.c.b16 %v4520, %v4516
        %v7497 = vpack.c.b16 %v4521, %v4517
        %v7498 = vpack.c.b16 %v4526, %v4522
        %v7499 = vpack.c.b16 %v4527, %v4523
        %v7500 = vpack.c.b16 %v4528, %v4524
        %v7501 = vpack.c.b16 %v4529, %v4525
        %v7502 = vpack.c.b16 %v4534, %v4530
        %v7503 = vpack.c.b16 %v4535, %v4531
        %v7504 = vpack.c.b16 %v4536, %v4532
        %v7505 = vpack.c.b16 %v4537, %v4533
        %v7506 = vpack.c.b16 %v4542, %v4538
        %v7507 = vpack.c.b16 %v4543, %v4539
        %v7508 = vpack.c.b16 %v4544, %v4540
        %v7509 = vpack.c.b16 %v4545, %v4541
        %v7510 = vpack.c.b16 %v4550, %v4546
        %v7511 = vpack.c.b16 %v4551, %v4547
        %v7512 = vpack.c.b16 %v4552, %v4548
        %v7513 = vpack.c.b16 %v4553, %v4549
        %v7514 = vpack.c.b16 %v4558, %v4554
        %v7515 = vpack.c.b16 %v4559, %v4555
        %v7516 = vpack.c.b16 %v4560, %v4556
        %v7517 = vpack.c.b16 %v4561, %v4557
        %v7518 = vpack.c.b16 %v4566, %v4562
        %v7519 = vpack.c.b16 %v4567, %v4563
        %v7520 = vpack.c.b16 %v4568, %v4564
        %v7521 = vpack.c.b16 %v4569, %v4565
        %v7522 = vpack.c.b16 %v4574, %v4570
        %v7523 = vpack.c.b16 %v4575, %v4571
        %v7524 = vpack.c.b16 %v4576, %v4572
        %v7525 = vpack.c.b16 %v4577, %v4573
        %v7526 = vpack.c.b16 %v4582, %v4578
        %v7527 = vpack.c.b16 %v4583, %v4579
        %v7528 = vpack.c.b16 %v4584, %v4580
        %v7529 = vpack.c.b16 %v4585, %v4581
        %v7530 = vpack.c.b16 %v4590, %v4586
        %v7531 = vpack.c.b16 %v4591, %v4587
        %v7532 = vpack.c.b16 %v4592, %v4588
        %v7533 = vpack.c.b16 %v4593, %v4589
        %v7534 = vpack.c.b16 %v4598, %v4594
        %v7535 = vpack.c.b16 %v4599, %v4595
        %v7536 = vpack.c.b16 %v4600, %v4596
        %v7537 = vpack.c.b16 %v4601, %v4597
        %v7538 = vpack.c.b16 %v4606, %v4602
        %v7539 = vpack.c.b16 %v4607, %v4603
        %v7540 = vpack.c.b16 %v4608, %v4604
        %v7541 = vpack.c.b16 %v4609, %v4605
        %v7542 = vpack.c.b16 %v4614, %v4610
        %v7543 = vpack.c.b16 %v4615, %v4611
        %v7544 = vpack.c.b16 %v4616, %v4612
        %v7545 = vpack.c.b16 %v4617, %v4613
        %v7546 = vpack.c.b16 %v4622, %v4618
        %v7547 = vpack.c.b16 %v4623, %v4619
        %v7548 = vpack.c.b16 %v4624, %v4620
        %v7549 = vpack.c.b16 %v4625, %v4621
        %v7550 = vpack.c.b16 %v4630, %v4626
        %v7551 = vpack.c.b16 %v4631, %v4627
        %v7552 = vpack.c.b16 %v4632, %v4628
        %v7553 = vpack.c.b16 %v4633, %v4629
        %v7554 = vpack.c.b16 %v4638, %v4634
        %v7555 = vpack.c.b16 %v4639, %v4635
        %v7556 = vpack.c.b16 %v4640, %v4636
        %v7557 = vpack.c.b16 %v4641, %v4637
        %v7558 = vpack.c.b16 %v4646, %v4642
        %v7559 = vpack.c.b16 %v4647, %v4643
        %v7560 = vpack.c.b16 %v4648, %v4644
        %v7561 = vpack.c.b16 %v4649, %v4645
        %v7562 = vpack.c.b16 %v4654, %v4650
        %v7563 = vpack.c.b16 %v4655, %v4651
        %v7564 = vpack.c.b16 %v4656, %v4652
        %v7565 = vpack.c.b16 %v4657, %v4653
        %v7566 = vpack.c.b16 %v4662, %v4658
        %v7567 = vpack.c.b16 %v4663, %v4659
        %v7568 = vpack.c.b16 %v4664, %v4660
        %v7569 = vpack.c.b16 %v4665, %v4661
        %v7570 = vpack.c.b16 %v4670, %v4666
        %v7571 = vpack.c.b16 %v4671, %v4667
        %v7572 = vpack.c.b16 %v4672, %v4668
        %v7573 = vpack.c.b16 %v4673, %v4669
        %v7574 = vpack.c.b16 %v4678, %v4674
        %v7575 = vpack.c.b16 %v4679, %v4675
        %v7576 = vpack.c.b16 %v4680, %v4676
        %v7577 = vpack.c.b16 %v4681, %v4677
        %v7578 = vpack.c.b16 %v4686, %v4682
        %v7579 = vpack.c.b16 %v4687, %v4683
        %v7580 = vpack.c.b16 %v4688, %v4684
        %v7581 = vpack.c.b16 %v4689, %v4685
        %v7582 = vpack.c.b16 %v4694, %v4690
        %v7583 = vpack.c.b16 %v4695, %v4691
        %v7584 = vpack.c.b16 %v4696, %v4692
        %v7585 = vpack.c.b16 %v4697, %v4693
        %v7586 = vpack.c.b16 %v4702, %v4698
        %v7587 = vpack.c.b16 %v4703, %v4699
        %v7588 = vpack.c.b16 %v4704, %v4700
        %v7589 = vpack.c.b16 %v4705, %v4701
        %v7590 = vpack.c.b16 %v4710, %v4706
        %v7591 = vpack.c.b16 %v4711, %v4707
        %v7592 = vpack.c.b16 %v4712, %v4708
        %v7593 = vpack.c.b16 %v4713, %v4709
        %v7594 = vpack.c.b16 %v4718, %v4714
        %v7595 = vpack.c.b16 %v4719, %v4715
        %v7596 = vpack.c.b16 %v4720, %v4716
        %v7597 = vpack.c.b16 %v4721, %v4717
        %v7598 = vpack.c.b16 %v4726, %v4722
        %v7599 = vpack.c.b16 %v4727, %v4723
        %v7600 = vpack.c.b16 %v4728, %v4724
        %v7601 = vpack.c.b16 %v4729, %v4725
        %v7602 = vpack.c.b16 %v4734, %v4730
        %v7603 = vpack.c.b16 %v4735, %v4731
        %v7604 = vpack.c.b16 %v4736, %v4732
        %v7605 = vpack.c.b16 %v4737, %v4733
        %v7606 = vpack.c.b16 %v4742, %v4738
        %v7607 = vpack.c.b16 %v4743, %v4739
        %v7608 = vpack.c.b16 %v4744, %v4740
        %v7609 = vpack.c.b16 %v4745, %v4741
        %v7610 = vpack.c.b16 %v4750, %v4746
        %v7611 = vpack.c.b16 %v4751, %v4747
        %v7612 = vpack.c.b16 %v4752, %v4748
        %v7613 = vpack.c.b16 %v4753, %v4749
        %v7614 = vpack.c.b16 %v4758, %v4754
        %v7615 = vpack.c.b16 %v4759, %v4755
        %v7616 = vpack.c.b16 %v4760, %v4756
        %v7617 = vpack.c.b16 %v4761, %v4757
        %v7618 = vpack.c.b16 %v4766, %v4762
        %v7619 = vpack.c.b16 %v4767, %v4763
        %v7620 = vpack.c.b16 %v4768, %v4764
        %v7621 = vpack.c.b16 %v4769, %v4765
        %v7622 = vpack.c.b16 %v4774, %v4770
        %v7623 = vpack.c.b16 %v4775, %v4771
        %v7624 = vpack.c.b16 %v4776, %v4772
        %v7625 = vpack.c.b16 %v4777, %v4773
        %v7626 = vpack.c.b16 %v4782, %v4778
        %v7627 = vpack.c.b16 %v4783, %v4779
        %v7628 = vpack.c.b16 %v4784, %v4780
        %v7629 = vpack.c.b16 %v4785, %v4781
        %v7630 = vpack.c.b16 %v4790, %v4786
        %v7631 = vpack.c.b16 %v4791, %v4787
        %v7632 = vpack.c.b16 %v4792, %v4788
        %v7633 = vpack.c.b16 %v4793, %v4789
        %v7634 = vpack.c.b16 %v4798, %v4794
        %v7635 = vpack.c.b16 %v4799, %v4795
        %v7636 = vpack.c.b16 %v4800, %v4796
        %v7637 = vpack.c.b16 %v4801, %v4797
        %v7638 = vpack.c.b16 %v4806, %v4802
        %v7639 = vpack.c.b16 %v4807, %v4803
        %v7640 = vpack.c.b16 %v4808, %v4804
        %v7641 = vpack.c.b16 %v4809, %v4805
        %v7642 = vpack.c.b16 %v4814, %v4810
        %v7643 = vpack.c.b16 %v4815, %v4811
        %v7644 = vpack.c.b16 %v4816, %v4812
        %v7645 = vpack.c.b16 %v4817, %v4813
        %v7646 = vpack.c.b16 %v4822, %v4818
        %v7647 = vpack.c.b16 %v4823, %v4819
        %v7648 = vpack.c.b16 %v4824, %v4820
        %v7649 = vpack.c.b16 %v4825, %v4821
        %v7650 = vpack.c.b16 %v4830, %v4826
        %v7651 = vpack.c.b16 %v4831, %v4827
        %v7652 = vpack.c.b16 %v4832, %v4828
        %v7653 = vpack.c.b16 %v4833, %v4829
        %v7654 = vpack.c.b16 %v4838, %v4834
        %v7655 = vpack.c.b16 %v4839, %v4835
        %v7656 = vpack.c.b16 %v4840, %v4836
        %v7657 = vpack.c.b16 %v4841, %v4837
        %v7658 = vpack.c.b16 %v4846, %v4842
        %v7659 = vpack.c.b16 %v4847, %v4843
        %v7660 = vpack.c.b16 %v4848, %v4844
        %v7661 = vpack.c.b16 %v4849, %v4845
        %v7662 = vpack.c.b16 %v4854, %v4850
        %v7663 = vpack.c.b16 %v4855, %v4851
        %v7664 = vpack.c.b16 %v4856, %v4852
        %v7665 = vpack.c.b16 %v4857, %v4853
        %v7666 = vpack.c.b16 %v4862, %v4858
        %v7667 = vpack.c.b16 %v4863, %v4859
        %v7668 = vpack.c.b16 %v4864, %v4860
        %v7669 = vpack.c.b16 %v4865, %v4861
        %v7670 = vpack.c.b16 %v4870, %v4866
        %v7671 = vpack.c.b16 %v4871, %v4867
        %v7672 = vpack.c.b16 %v4872, %v4868
        %v7673 = vpack.c.b16 %v4873, %v4869
        %v7674 = vpack.c.b16 %v4878, %v4874
        %v7675 = vpack.c.b16 %v4879, %v4875
        %v7676 = vpack.c.b16 %v4880, %v4876
        %v7677 = vpack.c.b16 %v4881, %v4877
        %v7678 = vpack.c.b16 %v4886, %v4882
        %v7679 = vpack.c.b16 %v4887, %v4883
        %v7680 = vpack.c.b16 %v4888, %v4884
        %v7681 = vpack.c.b16 %v4889, %v4885
        %v7682 = vpack.c.b16 %v4894, %v4890
        %v7683 = vpack.c.b16 %v4895, %v4891
        %v7684 = vpack.c.b16 %v4896, %v4892
        %v7685 = vpack.c.b16 %v4897, %v4893
        %v7686 = vpack.c.b16 %v4902, %v4898
        %v7687 = vpack.c.b16 %v4903, %v4899
        %v7688 = vpack.c.b16 %v4904, %v4900
        %v7689 = vpack.c.b16 %v4905, %v4901
        %v7690 = vpack.c.b16 %v4910, %v4906
        %v7691 = vpack.c.b16 %v4911, %v4907
        %v7692 = vpack.c.b16 %v4912, %v4908
        %v7693 = vpack.c.b16 %v4913, %v4909
        %v7694 = vpack.c.b16 %v4918, %v4914
        %v7695 = vpack.c.b16 %v4919, %v4915
        %v7696 = vpack.c.b16 %v4920, %v4916
        %v7697 = vpack.c.b16 %v4921, %v4917
        %v7698 = vpack.c.b16 %v4926, %v4922
        %v7699 = vpack.c.b16 %v4927, %v4923
        %v7700 = vpack.c.b16 %v4928, %v4924
        %v7701 = vpack.c.b16 %v4929, %v4925
        %v7702 = vpack.c.b16 %v4934, %v4930
        %v7703 = vpack.c.b16 %v4935, %v4931
        %v7704 = vpack.c.b16 %v4936, %v4932
        %v7705 = vpack.c.b16 %v4937, %v4933
        %v7706 = vpack.c.b16 %v4942, %v4938
        %v7707 = vpack.c.b16 %v4943, %v4939
        %v7708 = vpack.c.b16 %v4944, %v4940
        %v7709 = vpack.c.b16 %v4945, %v4941
        %v7710 = vpack.c.b16 %v4950, %v4946
        %v7711 = vpack.c.b16 %v4951, %v4947
        %v7712 = vpack.c.b16 %v4952, %v4948
        %v7713 = vpack.c.b16 %v4953, %v4949
        %v7714 = vpack.c.b16 %v4958, %v4954
        %v7715 = vpack.c.b16 %v4959, %v4955
        %v7716 = vpack.c.b16 %v4960, %v4956
        %v7717 = vpack.c.b16 %v4961, %v4957
        %v7718 = vpack.c.b16 %v4966, %v4962
        %v7719 = vpack.c.b16 %v4967, %v4963
        %v7720 = vpack.c.b16 %v4968, %v4964
        %v7721 = vpack.c.b16 %v4969, %v4965
        %v7722 = vpack.c.b16 %v4974, %v4970
        %v7723 = vpack.c.b16 %v4975, %v4971
        %v7724 = vpack.c.b16 %v4976, %v4972
        %v7725 = vpack.c.b16 %v4977, %v4973
        %v7726 = vpack.c.b16 %v4982, %v4978
        %v7727 = vpack.c.b16 %v4983, %v4979
        %v7728 = vpack.c.b16 %v4984, %v4980
        %v7729 = vpack.c.b16 %v4985, %v4981
        %v7730 = vpack.c.b16 %v4990, %v4986
        %v7731 = vpack.c.b16 %v4991, %v4987
        %v7732 = vpack.c.b16 %v4992, %v4988
        %v7733 = vpack.c.b16 %v4993, %v4989
        %v7734 = vpack.c.b16 %v4998, %v4994
        %v7735 = vpack.c.b16 %v4999, %v4995
        %v7736 = vpack.c.b16 %v5000, %v4996
        %v7737 = vpack.c.b16 %v5001, %v4997
        %v7738 = vpack.c.b16 %v5006, %v5002
        %v7739 = vpack.c.b16 %v5007, %v5003
        %v7740 = vpack.c.b16 %v5008, %v5004
        %v7741 = vpack.c.b16 %v5009, %v5005
        %v7742 = vpack.c.b16 %v5014, %v5010
        %v7743 = vpack.c.b16 %v5015, %v5011
        %v7744 = vpack.c.b16 %v5016, %v5012
        %v7745 = vpack.c.b16 %v5017, %v5013
        %v7746 = vpack.c.b16 %v5022, %v5018
        %v7747 = vpack.c.b16 %v5023, %v5019
        %v7748 = vpack.c.b16 %v5024, %v5020
        %v7749 = vpack.c.b16 %v5025, %v5021
        %v7750 = vpack.c.b16 %v5030, %v5026
        %v7751 = vpack.c.b16 %v5031, %v5027
        %v7752 = vpack.c.b16 %v5032, %v5028
        %v7753 = vpack.c.b16 %v5033, %v5029
        %v7754 = vpack.c.b16 %v5038, %v5034
        %v7755 = vpack.c.b16 %v5039, %v5035
        %v7756 = vpack.c.b16 %v5040, %v5036
        %v7757 = vpack.c.b16 %v5041, %v5037
        %v7758 = vpack.c.b16 %v5046, %v5042
        %v7759 = vpack.c.b16 %v5047, %v5043
        %v7760 = vpack.c.b16 %v5048, %v5044
        %v7761 = vpack.c.b16 %v5049, %v5045
        %v7762 = vpack.c.b16 %v5054, %v5050
        %v7763 = vpack.c.b16 %v5055, %v5051
        %v7764 = vpack.c.b16 %v5056, %v5052
        %v7765 = vpack.c.b16 %v5057, %v5053
        %v7766 = vpack.c.b16 %v5062, %v5058
        %v7767 = vpack.c.b16 %v5063, %v5059
        %v7768 = vpack.c.b16 %v5064, %v5060
        %v7769 = vpack.c.b16 %v5065, %v5061
        %v7770 = vpack.c.b16 %v5070, %v5066
        %v7771 = vpack.c.b16 %v5071, %v5067
        %v7772 = vpack.c.b16 %v5072, %v5068
        %v7773 = vpack.c.b16 %v5073, %v5069
        %v7774 = vpack.c.b16 %v5078, %v5074
        %v7775 = vpack.c.b16 %v5079, %v5075
        %v7776 = vpack.c.b16 %v5080, %v5076
        %v7777 = vpack.c.b16 %v5081, %v5077
        %v7778 = vpack.c.b16 %v5086, %v5082
        %v7779 = vpack.c.b16 %v5087, %v5083
        %v7780 = vpack.c.b16 %v5088, %v5084
        %v7781 = vpack.c.b16 %v5089, %v5085
        %v7782 = vpack.c.b16 %v5094, %v5090
        %v7783 = vpack.c.b16 %v5095, %v5091
        %v7784 = vpack.c.b16 %v5096, %v5092
        %v7785 = vpack.c.b16 %v5097, %v5093
        %v7786 = vpack.c.b16 %v5102, %v5098
        %v7787 = vpack.c.b16 %v5103, %v5099
        %v7788 = vpack.c.b16 %v5104, %v5100
        %v7789 = vpack.c.b16 %v5105, %v5101
        %v7790 = vpack.c.b16 %v5110, %v5106
        %v7791 = vpack.c.b16 %v5111, %v5107
        %v7792 = vpack.c.b16 %v5112, %v5108
        %v7793 = vpack.c.b16 %v5113, %v5109
        %v7794 = vpack.c.b16 %v5118, %v5114
        %v7795 = vpack.c.b16 %v5119, %v5115
        %v7796 = vpack.c.b16 %v5120, %v5116
        %v7797 = vpack.c.b16 %v5121, %v5117
        %v7798 = vpack.c.b16 %v5126, %v5122
        %v7799 = vpack.c.b16 %v5127, %v5123
        %v7800 = vpack.c.b16 %v5128, %v5124
        %v7801 = vpack.c.b16 %v5129, %v5125
        %v7802 = vpack.c.b16 %v5134, %v5130
        %v7803 = vpack.c.b16 %v5135, %v5131
        %v7804 = vpack.c.b16 %v5136, %v5132
        %v7805 = vpack.c.b16 %v5137, %v5133
        %v7806 = vpack.c.b16 %v5142, %v5138
        %v7807 = vpack.c.b16 %v5143, %v5139
        %v7808 = vpack.c.b16 %v5144, %v5140
        %v7809 = vpack.c.b16 %v5145, %v5141
        %v7810 = vpack.c.b16 %v5150, %v5146
        %v7811 = vpack.c.b16 %v5151, %v5147
        %v7812 = vpack.c.b16 %v5152, %v5148
        %v7813 = vpack.c.b16 %v5153, %v5149
        %v7814 = vpack.c.b16 %v5158, %v5154
        %v7815 = vpack.c.b16 %v5159, %v5155
        %v7816 = vpack.c.b16 %v5160, %v5156
        %v7817 = vpack.c.b16 %v5161, %v5157
        %v7818 = vpack.c.b16 %v5166, %v5162
        %v7819 = vpack.c.b16 %v5167, %v5163
        %v7820 = vpack.c.b16 %v5168, %v5164
        %v7821 = vpack.c.b16 %v5169, %v5165
        %v7822 = vpack.c.b16 %v5174, %v5170
        %v7823 = vpack.c.b16 %v5175, %v5171
        %v7824 = vpack.c.b16 %v5176, %v5172
        %v7825 = vpack.c.b16 %v5177, %v5173
        %v7826 = vpack.c.b16 %v5182, %v5178
        %v7827 = vpack.c.b16 %v5183, %v5179
        %v7828 = vpack.c.b16 %v5184, %v5180
        %v7829 = vpack.c.b16 %v5185, %v5181
        %v7830 = vpack.c.b16 %v5190, %v5186
        %v7831 = vpack.c.b16 %v5191, %v5187
        %v7832 = vpack.c.b16 %v5192, %v5188
        %v7833 = vpack.c.b16 %v5193, %v5189
        %v7834 = vpack.c.b16 %v5198, %v5194
        %v7835 = vpack.c.b16 %v5199, %v5195
        %v7836 = vpack.c.b16 %v5200, %v5196
        %v7837 = vpack.c.b16 %v5201, %v5197
        %v7838 = vpack.c.b16 %v5206, %v5202
        %v7839 = vpack.c.b16 %v5207, %v5203
        %v7840 = vpack.c.b16 %v5208, %v5204
        %v7841 = vpack.c.b16 %v5209, %v5205
        %v7842 = vpack.c.b16 %v5214, %v5210
        %v7843 = vpack.c.b16 %v5215, %v5211
        %v7844 = vpack.c.b16 %v5216, %v5212
        %v7845 = vpack.c.b16 %v5217, %v5213
        %v7846 = vpack.c.b16 %v5222, %v5218
        %v7847 = vpack.c.b16 %v5223, %v5219
        %v7848 = vpack.c.b16 %v5224, %v5220
        %v7849 = vpack.c.b16 %v5225, %v5221
        %v7850 = vpack.c.b16 %v5230, %v5226
        %v7851 = vpack.c.b16 %v5231, %v5227
        %v7852 = vpack.c.b16 %v5232, %v5228
        %v7853 = vpack.c.b16 %v5233, %v5229
        %v7854 = vpack.c.b16 %v5238, %v5234
        %v7855 = vpack.c.b16 %v5239, %v5235
        %v7856 = vpack.c.b16 %v5240, %v5236
        %v7857 = vpack.c.b16 %v5241, %v5237
        %v7858 = vpack.c.b16 %v5246, %v5242
        %v7859 = vpack.c.b16 %v5247, %v5243
        %v7860 = vpack.c.b16 %v5248, %v5244
        %v7861 = vpack.c.b16 %v5249, %v5245
        %v7862 = vpack.c.b16 %v5254, %v5250
        %v7863 = vpack.c.b16 %v5255, %v5251
        %v7864 = vpack.c.b16 %v5256, %v5252
        %v7865 = vpack.c.b16 %v5257, %v5253
        %v7866 = vpack.c.b16 %v5262, %v5258
        %v7867 = vpack.c.b16 %v5263, %v5259
        %v7868 = vpack.c.b16 %v5264, %v5260
        %v7869 = vpack.c.b16 %v5265, %v5261
        %v7870 = vpack.c.b16 %v5270, %v5266
        %v7871 = vpack.c.b16 %v5271, %v5267
        %v7872 = vpack.c.b16 %v5272, %v5268
        %v7873 = vpack.c.b16 %v5273, %v5269
        %v7874 = vpack.c.b16 %v5278, %v5274
        %v7875 = vpack.c.b16 %v5279, %v5275
        %v7876 = vpack.c.b16 %v5280, %v5276
        %v7877 = vpack.c.b16 %v5281, %v5277
        %v7878 = vpack.c.b16 %v5286, %v5282
        %v7879 = vpack.c.b16 %v5287, %v5283
        %v7880 = vpack.c.b16 %v5288, %v5284
        %v7881 = vpack.c.b16 %v5289, %v5285
        %v7882 = vpack.c.b16 %v5294, %v5290
        %v7883 = vpack.c.b16 %v5295, %v5291
        %v7884 = vpack.c.b16 %v5296, %v5292
        %v7885 = vpack.c.b16 %v5297, %v5293
        %v7886 = vpack.c.b16 %v5302, %v5298
        %v7887 = vpack.c.b16 %v5303, %v5299
        %v7888 = vpack.c.b16 %v5304, %v5300
        %v7889 = vpack.c.b16 %v5305, %v5301
        %v7890 = vpack.c.b16 %v5310, %v5306
        %v7891 = vpack.c.b16 %v5311, %v5307
        %v7892 = vpack.c.b16 %v5312, %v5308
        %v7893 = vpack.c.b16 %v5313, %v5309
        %v7894 = vpack.c.b16 %v5318, %v5314
        %v7895 = vpack.c.b16 %v5319, %v5315
        %v7896 = vpack.c.b16 %v5320, %v5316
        %v7897 = vpack.c.b16 %v5321, %v5317
        %v7898 = vpack.c.b16 %v5326, %v5322
        %v7899 = vpack.c.b16 %v5327, %v5323
        %v7900 = vpack.c.b16 %v5328, %v5324
        %v7901 = vpack.c.b16 %v5329, %v5325
        %v7902 = vpack.c.b16 %v5334, %v5330
        %v7903 = vpack.c.b16 %v5335, %v5331
        %v7904 = vpack.c.b16 %v5336, %v5332
        %v7905 = vpack.c.b16 %v5337, %v5333
        %v7906 = vpack.c.b16 %v5342, %v5338
        %v7907 = vpack.c.b16 %v5343, %v5339
        %v7908 = vpack.c.b16 %v5344, %v5340
        %v7909 = vpack.c.b16 %v5345, %v5341
        %v7910 = vpack.c.b16 %v5350, %v5346
        %v7911 = vpack.c.b16 %v5351, %v5347
        %v7912 = vpack.c.b16 %v5352, %v5348
        %v7913 = vpack.c.b16 %v5353, %v5349
        %v7914 = vpack.c.b16 %v5358, %v5354
        %v7915 = vpack.c.b16 %v5359, %v5355
        %v7916 = vpack.c.b16 %v5360, %v5356
        %v7917 = vpack.c.b16 %v5361, %v5357
        %v7918 = vpack.c.b16 %v5366, %v5362
        %v7919 = vpack.c.b16 %v5367, %v5363
        %v7920 = vpack.c.b16 %v5368, %v5364
        %v7921 = vpack.c.b16 %v5369, %v5365
        %v7922 = vpack.c.b16 %v5374, %v5370
        %v7923 = vpack.c.b16 %v5375, %v5371
        %v7924 = vpack.c.b16 %v5376, %v5372
        %v7925 = vpack.c.b16 %v5377, %v5373
        %v7926 = vpack.c.b16 %v5382, %v5378
        %v7927 = vpack.c.b16 %v5383, %v5379
        %v7928 = vpack.c.b16 %v5384, %v5380
        %v7929 = vpack.c.b16 %v5385, %v5381
        %v7930 = vpack.c.b16 %v5390, %v5386
        %v7931 = vpack.c.b16 %v5391, %v5387
        %v7932 = vpack.c.b16 %v5392, %v5388
        %v7933 = vpack.c.b16 %v5393, %v5389
        %v7934 = vpack.c.b16 %v5398, %v5394
        %v7935 = vpack.c.b16 %v5399, %v5395
        %v7936 = vpack.c.b16 %v5400, %v5396
        %v7937 = vpack.c.b16 %v5401, %v5397
        %v7938 = vpack.c.b16 %v5406, %v5402
        %v7939 = vpack.c.b16 %v5407, %v5403
        %v7940 = vpack.c.b16 %v5408, %v5404
        %v7941 = vpack.c.b16 %v5409, %v5405
        %v7942 = vpack.c.b16 %v5414, %v5410
        %v7943 = vpack.c.b16 %v5415, %v5411
        %v7944 = vpack.c.b16 %v5416, %v5412
        %v7945 = vpack.c.b16 %v5417, %v5413
        %v7946 = vpack.c.b16 %v5422, %v5418
        %v7947 = vpack.c.b16 %v5423, %v5419
        %v7948 = vpack.c.b16 %v5424, %v5420
        %v7949 = vpack.c.b16 %v5425, %v5421
        %v7950 = vpack.c.b16 %v5430, %v5426
        %v7951 = vpack.c.b16 %v5431, %v5427
        %v7952 = vpack.c.b16 %v5432, %v5428
        %v7953 = vpack.c.b16 %v5433, %v5429
        %v7954 = vpack.c.b16 %v5438, %v5434
        %v7955 = vpack.c.b16 %v5439, %v5435
        %v7956 = vpack.c.b16 %v5440, %v5436
        %v7957 = vpack.c.b16 %v5441, %v5437
        %v7958 = vpack.c.b16 %v5446, %v5442
        %v7959 = vpack.c.b16 %v5447, %v5443
        %v7960 = vpack.c.b16 %v5448, %v5444
        %v7961 = vpack.c.b16 %v5449, %v5445
        %v7962 = vpack.c.b16 %v5454, %v5450
        %v7963 = vpack.c.b16 %v5455, %v5451
        %v7964 = vpack.c.b16 %v5456, %v5452
        %v7965 = vpack.c.b16 %v5457, %v5453
        %v7966 = vpack.c.b16 %v5462, %v5458
        %v7967 = vpack.c.b16 %v5463, %v5459
        %v7968 = vpack.c.b16 %v5464, %v5460
        %v7969 = vpack.c.b16 %v5465, %v5461
        %v7970 = vpack.c.b16 %v5470, %v5466
        %v7971 = vpack.c.b16 %v5471, %v5467
        %v7972 = vpack.c.b16 %v5472, %v5468
        %v7973 = vpack.c.b16 %v5473, %v5469
        %v7974 = vpack.c.b16 %v5478, %v5474
        %v7975 = vpack.c.b16 %v5479, %v5475
        %v7976 = vpack.c.b16 %v5480, %v5476
        %v7977 = vpack.c.b16 %v5481, %v5477
        %v7978 = vpack.c.b16 %v5486, %v5482
        %v7979 = vpack.c.b16 %v5487, %v5483
        %v7980 = vpack.c.b16 %v5488, %v5484
        %v7981 = vpack.c.b16 %v5489, %v5485
        %v7982 = vpack.c.b16 %v5494, %v5490
        %v7983 = vpack.c.b16 %v5495, %v5491
        %v7984 = vpack.c.b16 %v5496, %v5492
        %v7985 = vpack.c.b16 %v5497, %v5493
        %v7986 = vpack.c.b16 %v5502, %v5498
        %v7987 = vpack.c.b16 %v5503, %v5499
        %v7988 = vpack.c.b16 %v5504, %v5500
        %v7989 = vpack.c.b16 %v5505, %v5501
        %v7990 = vpack.c.b16 %v5510, %v5506
        %v7991 = vpack.c.b16 %v5511, %v5507
        %v7992 = vpack.c.b16 %v5512, %v5508
        %v7993 = vpack.c.b16 %v5513, %v5509
        %v7994 = vpack.c.b16 %v5518, %v5514
        %v7995 = vpack.c.b16 %v5519, %v5515
        %v7996 = vpack.c.b16 %v5520, %v5516
        %v7997 = vpack.c.b16 %v5521, %v5517
        %v7998 = vpack.c.b16 %v5526, %v5522
        %v7999 = vpack.c.b16 %v5527, %v5523
        %v8000 = vpack.c.b16 %v5528, %v5524
        %v8001 = vpack.c.b16 %v5529, %v5525
        %v8002 = vpack.c.b16 %v5534, %v5530
        %v8003 = vpack.c.b16 %v5535, %v5531
        %v8004 = vpack.c.b16 %v5536, %v5532
        %v8005 = vpack.c.b16 %v5537, %v5533
        %v8006 = vpack.c.b16 %v5542, %v5538
        %v8007 = vpack.c.b16 %v5543, %v5539
        %v8008 = vpack.c.b16 %v5544, %v5540
        %v8009 = vpack.c.b16 %v5545, %v5541
        %v8010 = vpack.c.b16 %v5550, %v5546
        %v8011 = vpack.c.b16 %v5551, %v5547
        %v8012 = vpack.c.b16 %v5552, %v5548
        %v8013 = vpack.c.b16 %v5553, %v5549
        %v8014 = vpack.c.b16 %v5558, %v5554
        %v8015 = vpack.c.b16 %v5559, %v5555
        %v8016 = vpack.c.b16 %v5560, %v5556
        %v8017 = vpack.c.b16 %v5561, %v5557
        %v8018 = vpack.c.b16 %v5566, %v5562
        %v8019 = vpack.c.b16 %v5567, %v5563
        %v8020 = vpack.c.b16 %v5568, %v5564
        %v8021 = vpack.c.b16 %v5569, %v5565
        %v8022 = vpack.c.b16 %v5574, %v5570
        %v8023 = vpack.c.b16 %v5575, %v5571
        %v8024 = vpack.c.b16 %v5576, %v5572
        %v8025 = vpack.c.b16 %v5577, %v5573
        %v8026 = vpack.c.b16 %v5582, %v5578
        %v8027 = vpack.c.b16 %v5583, %v5579
        %v8028 = vpack.c.b16 %v5584, %v5580
        %v8029 = vpack.c.b16 %v5585, %v5581
        %v8030 = vpack.c.b16 %v5590, %v5586
        %v8031 = vpack.c.b16 %v5591, %v5587
        %v8032 = vpack.c.b16 %v5592, %v5588
        %v8033 = vpack.c.b16 %v5593, %v5589
        %v8034 = vpack.c.b16 %v5598, %v5594
        %v8035 = vpack.c.b16 %v5599, %v5595
        %v8036 = vpack.c.b16 %v5600, %v5596
        %v8037 = vpack.c.b16 %v5601, %v5597
        %v8038 = vpack.c.b16 %v5606, %v5602
        %v8039 = vpack.c.b16 %v5607, %v5603
        %v8040 = vpack.c.b16 %v5608, %v5604
        %v8041 = vpack.c.b16 %v5609, %v5605
        %v8042 = vpack.c.b16 %v5614, %v5610
        %v8043 = vpack.c.b16 %v5615, %v5611
        %v8044 = vpack.c.b16 %v5616, %v5612
        %v8045 = vpack.c.b16 %v5617, %v5613
        %v8046 = vpack.c.b16 %v5622, %v5618
        %v8047 = vpack.c.b16 %v5623, %v5619
        %v8048 = vpack.c.b16 %v5624, %v5620
        %v8049 = vpack.c.b16 %v5625, %v5621
        %v8050 = vpack.c.b16 %v5630, %v5626
        %v8051 = vpack.c.b16 %v5631, %v5627
        %v8052 = vpack.c.b16 %v5632, %v5628
        %v8053 = vpack.c.b16 %v5633, %v5629
        %v8054 = vpack.c.b16 %v5638, %v5634
        %v8055 = vpack.c.b16 %v5639, %v5635
        %v8056 = vpack.c.b16 %v5640, %v5636
        %v8057 = vpack.c.b16 %v5641, %v5637
        %v8058 = vpack.c.b16 %v5646, %v5642
        %v8059 = vpack.c.b16 %v5647, %v5643
        %v8060 = vpack.c.b16 %v5648, %v5644
        %v8061 = vpack.c.b16 %v5649, %v5645
        %v8062 = vpack.c.b16 %v5654, %v5650
        %v8063 = vpack.c.b16 %v5655, %v5651
        %v8064 = vpack.c.b16 %v5656, %v5652
        %v8065 = vpack.c.b16 %v5657, %v5653
        %v8066 = vpack.c.b16 %v5662, %v5658
        %v8067 = vpack.c.b16 %v5663, %v5659
        %v8068 = vpack.c.b16 %v5664, %v5660
        %v8069 = vpack.c.b16 %v5665, %v5661
        %v8070 = vpack.c.b16 %v5670, %v5666
        %v8071 = vpack.c.b16 %v5671, %v5667
        %v8072 = vpack.c.b16 %v5672, %v5668
        %v8073 = vpack.c.b16 %v5673, %v5669
        %v8074 = vpack.c.b16 %v5678, %v5674
        %v8075 = vpack.c.b16 %v5679, %v5675
        %v8076 = vpack.c.b16 %v5680, %v5676
        %v8077 = vpack.c.b16 %v5681, %v5677
        %v8078 = vpack.c.b16 %v5686, %v5682
        %v8079 = vpack.c.b16 %v5687, %v5683
        %v8080 = vpack.c.b16 %v5688, %v5684
        %v8081 = vpack.c.b16 %v5689, %v5685
        %v8082 = vpack.c.b16 %v5694, %v5690
        %v8083 = vpack.c.b16 %v5695, %v5691
        %v8084 = vpack.c.b16 %v5696, %v5692
        %v8085 = vpack.c.b16 %v5697, %v5693
        %v8086 = vpack.c.b16 %v5702, %v5698
        %v8087 = vpack.c.b16 %v5703, %v5699
        %v8088 = vpack.c.b16 %v5704, %v5700
        %v8089 = vpack.c.b16 %v5705, %v5701
        %v8090 = vpack.c.b16 %v5710, %v5706
        %v8091 = vpack.c.b16 %v5711, %v5707
        %v8092 = vpack.c.b16 %v5712, %v5708
        %v8093 = vpack.c.b16 %v5713, %v5709
        %v8094 = vpack.c.b16 %v5718, %v5714
        %v8095 = vpack.c.b16 %v5719, %v5715
        %v8096 = vpack.c.b16 %v5720, %v5716
        %v8097 = vpack.c.b16 %v5721, %v5717
        %v8098 = vpack.c.b16 %v5726, %v5722
        %v8099 = vpack.c.b16 %v5727, %v5723
        %v8100 = vpack.c.b16 %v5728, %v5724
        %v8101 = vpack.c.b16 %v5729, %v5725
        %v8102 = vpack.c.b16 %v5734, %v5730
        %v8103 = vpack.c.b16 %v5735, %v5731
        %v8104 = vpack.c.b16 %v5736, %v5732
        %v8105 = vpack.c.b16 %v5737, %v5733
        %v8106 = vpack.c.b16 %v5742, %v5738
        %v8107 = vpack.c.b16 %v5743, %v5739
        %v8108 = vpack.c.b16 %v5744, %v5740
        %v8109 = vpack.c.b16 %v5745, %v5741
        %v8110 = vpack.c.b16 %v5750, %v5746
        %v8111 = vpack.c.b16 %v5751, %v5747
        %v8112 = vpack.c.b16 %v5752, %v5748
        %v8113 = vpack.c.b16 %v5753, %v5749
        %v8114 = vpack.c.b16 %v5758, %v5754
        %v8115 = vpack.c.b16 %v5759, %v5755
        %v8116 = vpack.c.b16 %v5760, %v5756
        %v8117 = vpack.c.b16 %v5761, %v5757
        %v8118 = vpack.c.b16 %v5766, %v5762
        %v8119 = vpack.c.b16 %v5767, %v5763
        %v8120 = vpack.c.b16 %v5768, %v5764
        %v8121 = vpack.c.b16 %v5769, %v5765
        %v8122 = vpack.c.b16 %v5774, %v5770
        %v8123 = vpack.c.b16 %v5775, %v5771
        %v8124 = vpack.c.b16 %v5776, %v5772
        %v8125 = vpack.c.b16 %v5777, %v5773
        %v8126 = vpack.c.b16 %v5782, %v5778
        %v8127 = vpack.c.b16 %v5783, %v5779
        %v8128 = vpack.c.b16 %v5784, %v5780
        %v8129 = vpack.c.b16 %v5785, %v5781
        %v8130 = vpack.c.b16 %v5790, %v5786
        %v8131 = vpack.c.b16 %v5791, %v5787
        %v8132 = vpack.c.b16 %v5792, %v5788
        %v8133 = vpack.c.b16 %v5793, %v5789
        %v8134 = vpack.c.b16 %v5798, %v5794
        %v8135 = vpack.c.b16 %v5799, %v5795
        %v8136 = vpack.c.b16 %v5800, %v5796
        %v8137 = vpack.c.b16 %v5801, %v5797
        %v8138 = vpack.c.b16 %v5806, %v5802
        %v8139 = vpack.c.b16 %v5807, %v5803
        %v8140 = vpack.c.b16 %v5808, %v5804
        %v8141 = vpack.c.b16 %v5809, %v5805
        %v8142 = vpack.c.b16 %v5814, %v5810
        %v8143 = vpack.c.b16 %v5815, %v5811
        %v8144 = vpack.c.b16 %v5816, %v5812
        %v8145 = vpack.c.b16 %v5817, %v5813
        %v8146 = vpack.c.b16 %v5822, %v5818
        %v8147 = vpack.c.b16 %v5823, %v5819
        %v8148 = vpack.c.b16 %v5824, %v5820
        %v8149 = vpack.c.b16 %v5825, %v5821
        %v8150 = vpack.c.b16 %v5830, %v5826
        %v8151 = vpack.c.b16 %v5831, %v5827
        %v8152 = vpack.c.b16 %v5832, %v5828
        %v8153 = vpack.c.b16 %v5833, %v5829
        %v8154 = vpack.c.b16 %v5838, %v5834
        %v8155 = vpack.c.b16 %v5839, %v5835
        %v8156 = vpack.c.b16 %v5840, %v5836
        %v8157 = vpack.c.b16 %v5841, %v5837
        %v8158 = vpack.c.b16 %v5846, %v5842
        %v8159 = vpack.c.b16 %v5847, %v5843
        %v8160 = vpack.c.b16 %v5848, %v5844
        %v8161 = vpack.c.b16 %v5849, %v5845
        %v8162 = vpack.c.b16 %v5854, %v5850
        %v8163 = vpack.c.b16 %v5855, %v5851
        %v8164 = vpack.c.b16 %v5856, %v5852
        %v8165 = vpack.c.b16 %v5857, %v5853
        %v8166 = vpack.c.b16 %v5862, %v5858
        %v8167 = vpack.c.b16 %v5863, %v5859
        %v8168 = vpack.c.b16 %v5864, %v5860
        %v8169 = vpack.c.b16 %v5865, %v5861
        %v8170 = vpack.c.b16 %v5870, %v5866
        %v8171 = vpack.c.b16 %v5871, %v5867
        %v8172 = vpack.c.b16 %v5872, %v5868
        %v8173 = vpack.c.b16 %v5873, %v5869
        %v8174 = vpack.c.b16 %v5878, %v5874
        %v8175 = vpack.c.b16 %v5879, %v5875
        %v8176 = vpack.c.b16 %v5880, %v5876
        %v8177 = vpack.c.b16 %v5881, %v5877
        %v8178 = vpack.c.b16 %v5886, %v5882
        %v8179 = vpack.c.b16 %v5887, %v5883
        %v8180 = vpack.c.b16 %v5888, %v5884
        %v8181 = vpack.c.b16 %v5889, %v5885
        %v8182 = vpack.c.b16 %v5894, %v5890
        %v8183 = vpack.c.b16 %v5895, %v5891
        %v8184 = vpack.c.b16 %v5896, %v5892
        %v8185 = vpack.c.b16 %v5897, %v5893
        %v8186 = vpack.c.b16 %v5902, %v5898
        %v8187 = vpack.c.b16 %v5903, %v5899
        %v8188 = vpack.c.b16 %v5904, %v5900
        %v8189 = vpack.c.b16 %v5905, %v5901
        %v8190 = vpack.c.b16 %v5910, %v5906
        %v8191 = vpack.c.b16 %v5911, %v5907
        %v8192 = vpack.c.b16 %v5912, %v5908
        %v8193 = vpack.c.b16 %v5913, %v5909
        %v8194 = vpack.c.b16 %v5918, %v5914
        %v8195 = vpack.c.b16 %v5919, %v5915
        %v8196 = vpack.c.b16 %v5920, %v5916
        %v8197 = vpack.c.b16 %v5921, %v5917
        %v8198 = vpack.c.b16 %v5926, %v5922
        %v8199 = vpack.c.b16 %v5927, %v5923
        %v8200 = vpack.c.b16 %v5928, %v5924
        %v8201 = vpack.c.b16 %v5929, %v5925
        %v8202 = vpack.c.b16 %v5934, %v5930
        %v8203 = vpack.c.b16 %v5935, %v5931
        %v8204 = vpack.c.b16 %v5936, %v5932
        %v8205 = vpack.c.b16 %v5937, %v5933
        %v8206 = vpack.c.b16 %v5942, %v5938
        %v8207 = vpack.c.b16 %v5943, %v5939
        %v8208 = vpack.c.b16 %v5944, %v5940
        %v8209 = vpack.c.b16 %v5945, %v5941
        %v8210 = vpack.c.b16 %v5950, %v5946
        %v8211 = vpack.c.b16 %v5951, %v5947
        %v8212 = vpack.c.b16 %v5952, %v5948
        %v8213 = vpack.c.b16 %v5953, %v5949
        %v8214 = vpack.c.b16 %v5958, %v5954
        %v8215 = vpack.c.b16 %v5959, %v5955
        %v8216 = vpack.c.b16 %v5960, %v5956
        %v8217 = vpack.c.b16 %v5961, %v5957
        %v8218 = vpack.c.b16 %v5966, %v5962
        %v8219 = vpack.c.b16 %v5967, %v5963
        %v8220 = vpack.c.b16 %v5968, %v5964
        %v8221 = vpack.c.b16 %v5969, %v5965
        %v8222 = vpack.c.b16 %v5974, %v5970
        %v8223 = vpack.c.b16 %v5975, %v5971
        %v8224 = vpack.c.b16 %v5976, %v5972
        %v8225 = vpack.c.b16 %v5977, %v5973
        %v8226 = vpack.c.b16 %v5982, %v5978
        %v8227 = vpack.c.b16 %v5983, %v5979
        %v8228 = vpack.c.b16 %v5984, %v5980
        %v8229 = vpack.c.b16 %v5985, %v5981
        %v8230 = vpack.c.b16 %v5990, %v5986
        %v8231 = vpack.c.b16 %v5991, %v5987
        %v8232 = vpack.c.b16 %v5992, %v5988
        %v8233 = vpack.c.b16 %v5993, %v5989
        %v8234 = vpack.c.b16 %v5998, %v5994
        %v8235 = vpack.c.b16 %v5999, %v5995
        %v8236 = vpack.c.b16 %v6000, %v5996
        %v8237 = vpack.c.b16 %v6001, %v5997
        %v8238 = vpack.c.b16 %v6006, %v6002
        %v8239 = vpack.c.b16 %v6007, %v6003
        %v8240 = vpack.c.b16 %v6008, %v6004
        %v8241 = vpack.c.b16 %v6009, %v6005
        %v8242 = vpack.c.b16 %v6014, %v6010
        %v8243 = vpack.c.b16 %v6015, %v6011
        %v8244 = vpack.c.b16 %v6016, %v6012
        %v8245 = vpack.c.b16 %v6017, %v6013
        %v8246 = vpack.c.b16 %v6022, %v6018
        %v8247 = vpack.c.b16 %v6023, %v6019
        %v8248 = vpack.c.b16 %v6024, %v6020
        %v8249 = vpack.c.b16 %v6025, %v6021
        %v8250 = vpack.c.b16 %v6030, %v6026
        %v8251 = vpack.c.b16 %v6031, %v6027
        %v8252 = vpack.c.b16 %v6032, %v6028
        %v8253 = vpack.c.b16 %v6033, %v6029
        %v8254 = vpack.c.b16 %v6038, %v6034
        %v8255 = vpack.c.b16 %v6039, %v6035
        %v8256 = vpack.c.b16 %v6040, %v6036
        %v8257 = vpack.c.b16 %v6041, %v6037
        %v8258 = vpack.c.b16 %v6046, %v6042
        %v8259 = vpack.c.b16 %v6047, %v6043
        %v8260 = vpack.c.b16 %v6048, %v6044
        %v8261 = vpack.c.b16 %v6049, %v6045
        %v8262 = vpack.c.b16 %v6054, %v6050
        %v8263 = vpack.c.b16 %v6055, %v6051
        %v8264 = vpack.c.b16 %v6056, %v6052
        %v8265 = vpack.c.b16 %v6057, %v6053
        %v8266 = vpack.c.b16 %v6062, %v6058
        %v8267 = vpack.c.b16 %v6063, %v6059
        %v8268 = vpack.c.b16 %v6064, %v6060
        %v8269 = vpack.c.b16 %v6065, %v6061
        %v8270 = vpack.c.b16 %v6070, %v6066
        %v8271 = vpack.c.b16 %v6071, %v6067
        %v8272 = vpack.c.b16 %v6072, %v6068
        %v8273 = vpack.c.b16 %v6073, %v6069
        %v8274 = vpack.c.b16 %v6078, %v6074
        %v8275 = vpack.c.b16 %v6079, %v6075
        %v8276 = vpack.c.b16 %v6080, %v6076
        %v8277 = vpack.c.b16 %v6081, %v6077
        %v8278 = vpack.c.b16 %v6086, %v6082
        %v8279 = vpack.c.b16 %v6087, %v6083
        %v8280 = vpack.c.b16 %v6088, %v6084
        %v8281 = vpack.c.b16 %v6089, %v6085
        %v8282 = vpack.c.b16 %v6094, %v6090
        %v8283 = vpack.c.b16 %v6095, %v6091
        %v8284 = vpack.c.b16 %v6096, %v6092
        %v8285 = vpack.c.b16 %v6097, %v6093
        %v8286 = vpack.c.b16 %v6102, %v6098
        %v8287 = vpack.c.b16 %v6103, %v6099
        %v8288 = vpack.c.b16 %v6104, %v6100
        %v8289 = vpack.c.b16 %v6105, %v6101
        %v8290 = vpack.c.b16 %v6110, %v6106
        %v8291 = vpack.c.b16 %v6111, %v6107
        %v8292 = vpack.c.b16 %v6112, %v6108
        %v8293 = vpack.c.b16 %v6113, %v6109
        %v8294 = vpack.c.b16 %v6118, %v6114
        %v8295 = vpack.c.b16 %v6119, %v6115
        %v8296 = vpack.c.b16 %v6120, %v6116
        %v8297 = vpack.c.b16 %v6121, %v6117
        %v8298 = vpack.c.b16 %v6126, %v6122
        %v8299 = vpack.c.b16 %v6127, %v6123
        %v8300 = vpack.c.b16 %v6128, %v6124
        %v8301 = vpack.c.b16 %v6129, %v6125
        %v8302 = vpack.c.b16 %v6134, %v6130
        %v8303 = vpack.c.b16 %v6135, %v6131
        %v8304 = vpack.c.b16 %v6136, %v6132
        %v8305 = vpack.c.b16 %v6137, %v6133
        %v8306 = vpack.c.b16 %v6142, %v6138
        %v8307 = vpack.c.b16 %v6143, %v6139
        %v8308 = vpack.c.b16 %v6144, %v6140
        %v8309 = vpack.c.b16 %v6145, %v6141
        %v8310 = vpack.c.b16 %v6150, %v6146
        %v8311 = vpack.c.b16 %v6151, %v6147
        %v8312 = vpack.c.b16 %v6152, %v6148
        %v8313 = vpack.c.b16 %v6153, %v6149
        %v8314 = vpack.c.b16 %v6158, %v6154
        %v8315 = vpack.c.b16 %v6159, %v6155
        %v8316 = vpack.c.b16 %v6160, %v6156
        %v8317 = vpack.c.b16 %v6161, %v6157
        %v8318 = vpack.c.b16 %v6166, %v6162
        %v8319 = vpack.c.b16 %v6167, %v6163
        %v8320 = vpack.c.b16 %v6168, %v6164
        %v8321 = vpack.c.b16 %v6169, %v6165
        %v8322 = vpack.c.b16 %v6174, %v6170
        %v8323 = vpack.c.b16 %v6175, %v6171
        %v8324 = vpack.c.b16 %v6176, %v6172
        %v8325 = vpack.c.b16 %v6177, %v6173
        %v8326 = vpack.c.b16 %v6182, %v6178
        %v8327 = vpack.c.b16 %v6183, %v6179
        %v8328 = vpack.c.b16 %v6184, %v6180
        %v8329 = vpack.c.b16 %v6185, %v6181
        %v8330 = vpack.c.b16 %v6190, %v6186
        %v8331 = vpack.c.b16 %v6191, %v6187
        %v8332 = vpack.c.b16 %v6192, %v6188
        %v8333 = vpack.c.b16 %v6193, %v6189
        %v8334 = vpack.c.b16 %v6198, %v6194
        %v8335 = vpack.c.b16 %v6199, %v6195
        %v8336 = vpack.c.b16 %v6200, %v6196
        %v8337 = vpack.c.b16 %v6201, %v6197
        %v8338 = vpack.c.b16 %v6206, %v6202
        %v8339 = vpack.c.b16 %v6207, %v6203
        %v8340 = vpack.c.b16 %v6208, %v6204
        %v8341 = vpack.c.b16 %v6209, %v6205
        %v8342 = vpack.c.b16 %v6214, %v6210
        %v8343 = vpack.c.b16 %v6215, %v6211
        %v8344 = vpack.c.b16 %v6216, %v6212
        %v8345 = vpack.c.b16 %v6217, %v6213
        %v8346 = vpack.c.b16 %v6222, %v6218
        %v8347 = vpack.c.b16 %v6223, %v6219
        %v8348 = vpack.c.b16 %v6224, %v6220
        %v8349 = vpack.c.b16 %v6225, %v6221
        %v8350 = vpack.c.b16 %v6230, %v6226
        %v8351 = vpack.c.b16 %v6231, %v6227
        %v8352 = vpack.c.b16 %v6232, %v6228
        %v8353 = vpack.c.b16 %v6233, %v6229
        %v8354 = vpack.c.b16 %v6238, %v6234
        %v8355 = vpack.c.b16 %v6239, %v6235
        %v8356 = vpack.c.b16 %v6240, %v6236
        %v8357 = vpack.c.b16 %v6241, %v6237
        %v8358 = vpack.c.b16 %v6246, %v6242
        %v8359 = vpack.c.b16 %v6247, %v6243
        %v8360 = vpack.c.b16 %v6248, %v6244
        %v8361 = vpack.c.b16 %v6249, %v6245
        %v8362 = vpack.c.b16 %v6254, %v6250
        %v8363 = vpack.c.b16 %v6255, %v6251
        %v8364 = vpack.c.b16 %v6256, %v6252
        %v8365 = vpack.c.b16 %v6257, %v6253
        %v8366 = vpack.c.b16 %v6262, %v6258
        %v8367 = vpack.c.b16 %v6263, %v6259
        %v8368 = vpack.c.b16 %v6264, %v6260
        %v8369 = vpack.c.b16 %v6265, %v6261
        %v8370 = vpack.c.b16 %v6270, %v6266
        %v8371 = vpack.c.b16 %v6271, %v6267
        %v8372 = vpack.c.b16 %v6272, %v6268
        %v8373 = vpack.c.b16 %v6273, %v6269
        %v8374 = vpack.c.b16 %v6278, %v6274
        %v8375 = vpack.c.b16 %v6279, %v6275
        %v8376 = vpack.c.b16 %v6280, %v6276
        %v8377 = vpack.c.b16 %v6281, %v6277
        %v8378 = vpack.c.b16 %v6286, %v6282
        %v8379 = vpack.c.b16 %v6287, %v6283
        %v8380 = vpack.c.b16 %v6288, %v6284
        %v8381 = vpack.c.b16 %v6289, %v6285
        %v8382 = vpack.c.b16 %v6294, %v6290
        %v8383 = vpack.c.b16 %v6295, %v6291
        %v8384 = vpack.c.b16 %v6296, %v6292
        %v8385 = vpack.c.b16 %v6297, %v6293
        %v8386 = vpack.c.b16 %v6302, %v6298
        %v8387 = vpack.c.b16 %v6303, %v6299
        %v8388 = vpack.c.b16 %v6304, %v6300
        %v8389 = vpack.c.b16 %v6305, %v6301
        %v8390 = vpack.c.b16 %v6310, %v6306
        %v8391 = vpack.c.b16 %v6311, %v6307
        %v8392 = vpack.c.b16 %v6312, %v6308
        %v8393 = vpack.c.b16 %v6313, %v6309
        %v8394 = vpack.c.b16 %v6318, %v6314
        %v8395 = vpack.c.b16 %v6319, %v6315
        %v8396 = vpack.c.b16 %v6320, %v6316
        %v8397 = vpack.c.b16 %v6321, %v6317
        %v8398 = vpack.c.b16 %v6326, %v6322
        %v8399 = vpack.c.b16 %v6327, %v6323
        %v8400 = vpack.c.b16 %v6328, %v6324
        %v8401 = vpack.c.b16 %v6329, %v6325
        %v8402 = vpack.c.b16 %v6334, %v6330
        %v8403 = vpack.c.b16 %v6335, %v6331
        %v8404 = vpack.c.b16 %v6336, %v6332
        %v8405 = vpack.c.b16 %v6337, %v6333
        %v8406 = vpack.c.b16 %v6342, %v6338
        %v8407 = vpack.c.b16 %v6343, %v6339
        %v8408 = vpack.c.b16 %v6344, %v6340
        %v8409 = vpack.c.b16 %v6345, %v6341
        %v8410 = vpack.c.b16 %v6350, %v6346
        %v8411 = vpack.c.b16 %v6351, %v6347
        %v8412 = vpack.c.b16 %v6352, %v6348
        %v8413 = vpack.c.b16 %v6353, %v6349
        %v8414 = vpack.c.b16 %v6358, %v6354
        %v8415 = vpack.c.b16 %v6359, %v6355
        %v8416 = vpack.c.b16 %v6360, %v6356
        %v8417 = vpack.c.b16 %v6361, %v6357
        %v8418 = vpack.c.b16 %v6366, %v6362
        %v8419 = vpack.c.b16 %v6367, %v6363
        %v8420 = vpack.c.b16 %v6368, %v6364
        %v8421 = vpack.c.b16 %v6369, %v6365
        %v8422 = vpack.c.b16 %v6374, %v6370
        %v8423 = vpack.c.b16 %v6375, %v6371
        %v8424 = vpack.c.b16 %v6376, %v6372
        %v8425 = vpack.c.b16 %v6377, %v6373
        %v8426 = vpack.c.b16 %v6382, %v6378
        %v8427 = vpack.c.b16 %v6383, %v6379
        %v8428 = vpack.c.b16 %v6384, %v6380
        %v8429 = vpack.c.b16 %v6385, %v6381
        %v8430 = vpack.c.b16 %v6390, %v6386
        %v8431 = vpack.c.b16 %v6391, %v6387
        %v8432 = vpack.c.b16 %v6392, %v6388
        %v8433 = vpack.c.b16 %v6393, %v6389
        %v8434 = vpack.c.b16 %v6398, %v6394
        %v8435 = vpack.c.b16 %v6399, %v6395
        %v8436 = vpack.c.b16 %v6400, %v6396
        %v8437 = vpack.c.b16 %v6401, %v6397
        %v8438 = vpack.c.b16 %v6406, %v6402
        %v8439 = vpack.c.b16 %v6407, %v6403
        %v8440 = vpack.c.b16 %v6408, %v6404
        %v8441 = vpack.c.b16 %v6409, %v6405
        %v8442 = vpack.c.b16 %v6414, %v6410
        %v8443 = vpack.c.b16 %v6415, %v6411
        %v8444 = vpack.c.b16 %v6416, %v6412
        %v8445 = vpack.c.b16 %v6417, %v6413
        %v8446 = vpack.c.b16 %v6422, %v6418
        %v8447 = vpack.c.b16 %v6423, %v6419
        %v8448 = vpack.c.b16 %v6424, %v6420
        %v8449 = vpack.c.b16 %v6425, %v6421
        %v8450 = vpack.c.b16 %v6430, %v6426
        %v8451 = vpack.c.b16 %v6431, %v6427
        %v8452 = vpack.c.b16 %v6432, %v6428
        %v8453 = vpack.c.b16 %v6433, %v6429
        %v8454 = vpack.c.b16 %v6438, %v6434
        %v8455 = vpack.c.b16 %v6439, %v6435
        %v8456 = vpack.c.b16 %v6440, %v6436
        %v8457 = vpack.c.b16 %v6441, %v6437
        %v8458 = vpack.c.b16 %v6446, %v6442
        %v8459 = vpack.c.b16 %v6447, %v6443
        %v8460 = vpack.c.b16 %v6448, %v6444
        %v8461 = vpack.c.b16 %v6449, %v6445
        %v8462 = vpack.c.b16 %v6454, %v6450
        %v8463 = vpack.c.b16 %v6455, %v6451
        %v8464 = vpack.c.b16 %v6456, %v6452
        %v8465 = vpack.c.b16 %v6457, %v6453
        %v8466 = vpack.c.b16 %v6462, %v6458
        %v8467 = vpack.c.b16 %v6463, %v6459
        %v8468 = vpack.c.b16 %v6464, %v6460
        %v8469 = vpack.c.b16 %v6465, %v6461
        %v8470 = vpack.c.b16 %v6470, %v6466
        %v8471 = vpack.c.b16 %v6471, %v6467
        %v8472 = vpack.c.b16 %v6472, %v6468
        %v8473 = vpack.c.b16 %v6473, %v6469
        %v8474 = vpack.c.b16 %v6478, %v6474
        %v8475 = vpack.c.b16 %v6479, %v6475
        %v8476 = vpack.c.b16 %v6480, %v6476
        %v8477 = vpack.c.b16 %v6481, %v6477
        %v8478 = vpack.c.b16 %v6486, %v6482
        %v8479 = vpack.c.b16 %v6487, %v6483
        %v8480 = vpack.c.b16 %v6488, %v6484
        %v8481 = vpack.c.b16 %v6489, %v6485
        %v8482 = vpack.c.b16 %v6494, %v6490
        %v8483 = vpack.c.b16 %v6495, %v6491
        %v8484 = vpack.c.b16 %v6496, %v6492
        %v8485 = vpack.c.b16 %v6497, %v6493
        %v8486 = vpack.c.b16 %v6502, %v6498
        %v8487 = vpack.c.b16 %v6503, %v6499
        %v8488 = vpack.c.b16 %v6504, %v6500
        %v8489 = vpack.c.b16 %v6505, %v6501
        %v8490 = vpack.c.b16 %v6510, %v6506
        %v8491 = vpack.c.b16 %v6511, %v6507
        %v8492 = vpack.c.b16 %v6512, %v6508
        %v8493 = vpack.c.b16 %v6513, %v6509
        %v8494 = vpack.c.b16 %v6518, %v6514
        %v8495 = vpack.c.b16 %v6519, %v6515
        %v8496 = vpack.c.b16 %v6520, %v6516
        %v8497 = vpack.c.b16 %v6521, %v6517
        %v8498 = vpack.c.b16 %v6526, %v6522
        %v8499 = vpack.c.b16 %v6527, %v6523
        %v8500 = vpack.c.b16 %v6528, %v6524
        %v8501 = vpack.c.b16 %v6529, %v6525
        %v8502 = vpack.c.b16 %v6534, %v6530
        %v8503 = vpack.c.b16 %v6535, %v6531
        %v8504 = vpack.c.b16 %v6536, %v6532
        %v8505 = vpack.c.b16 %v6537, %v6533
        %v8506 = vpack.c.b16 %v6542, %v6538
        %v8507 = vpack.c.b16 %v6543, %v6539
        %v8508 = vpack.c.b16 %v6544, %v6540
        %v8509 = vpack.c.b16 %v6545, %v6541
        %v8510 = vpack.c.b16 %v6550, %v6546
        %v8511 = vpack.c.b16 %v6551, %v6547
        %v8512 = vpack.c.b16 %v6552, %v6548
        %v8513 = vpack.c.b16 %v6553, %v6549
        %v8514 = vpack.c.b16 %v6558, %v6554
        %v8515 = vpack.c.b16 %v6559, %v6555
        %v8516 = vpack.c.b16 %v6560, %v6556
        %v8517 = vpack.c.b16 %v6561, %v6557
        %v8518 = vpack.c.b16 %v6566, %v6562
        %v8519 = vpack.c.b16 %v6567, %v6563
        %v8520 = vpack.c.b16 %v6568, %v6564
        %v8521 = vpack.c.b16 %v6569, %v6565
        %v8522 = vpack.c.b16 %v6574, %v6570
        %v8523 = vpack.c.b16 %v6575, %v6571
        %v8524 = vpack.c.b16 %v6576, %v6572
        %v8525 = vpack.c.b16 %v6577, %v6573
        %v8526 = vpack.c.b16 %v6582, %v6578
        %v8527 = vpack.c.b16 %v6583, %v6579
        %v8528 = vpack.c.b16 %v6584, %v6580
        %v8529 = vpack.c.b16 %v6585, %v6581
        %v8530 = vpack.c.b16 %v6590, %v6586
        %v8531 = vpack.c.b16 %v6591, %v6587
        %v8532 = vpack.c.b16 %v6592, %v6588
        %v8533 = vpack.c.b16 %v6593, %v6589
        %v8534 = vpack.c.b16 %v6598, %v6594
        %v8535 = vpack.c.b16 %v6599, %v6595
        %v8536 = vpack.c.b16 %v6600, %v6596
        %v8537 = vpack.c.b16 %v6601, %v6597
        %v8538 = vpack.c.b16 %v6606, %v6602
        %v8539 = vpack.c.b16 %v6607, %v6603
        %v8540 = vpack.c.b16 %v6608, %v6604
        %v8541 = vpack.c.b16 %v6609, %v6605
        %v8542 = vpack.c.b16 %v6614, %v6610
        %v8543 = vpack.c.b16 %v6615, %v6611
        %v8544 = vpack.c.b16 %v6616, %v6612
        %v8545 = vpack.c.b16 %v6617, %v6613
        %v8546 = vpack.c.b16 %v6622, %v6618
        %v8547 = vpack.c.b16 %v6623, %v6619
        %v8548 = vpack.c.b16 %v6624, %v6620
        %v8549 = vpack.c.b16 %v6625, %v6621
        %v8550 = vpack.c.b16 %v6630, %v6626
        %v8551 = vpack.c.b16 %v6631, %v6627
        %v8552 = vpack.c.b16 %v6632, %v6628
        %v8553 = vpack.c.b16 %v6633, %v6629
        %v8554 = vpack.c.b16 %v6638, %v6634
        %v8555 = vpack.c.b16 %v6639, %v6635
        %v8556 = vpack.c.b16 %v6640, %v6636
        %v8557 = vpack.c.b16 %v6641, %v6637
        %v8558 = vpack.c.b16 %v6646, %v6642
        %v8559 = vpack.c.b16 %v6647, %v6643
        %v8560 = vpack.c.b16 %v6648, %v6644
        %v8561 = vpack.c.b16 %v6649, %v6645
        %v8562 = vpack.c.b16 %v6654, %v6650
        %v8563 = vpack.c.b16 %v6655, %v6651
        %v8564 = vpack.c.b16 %v6656, %v6652
        %v8565 = vpack.c.b16 %v6657, %v6653
        %v8566 = vpack.c.b16 %v6662, %v6658
        %v8567 = vpack.c.b16 %v6663, %v6659
        %v8568 = vpack.c.b16 %v6664, %v6660
        %v8569 = vpack.c.b16 %v6665, %v6661
        %v8570 = vpack.c.b16 %v6670, %v6666
        %v8571 = vpack.c.b16 %v6671, %v6667
        %v8572 = vpack.c.b16 %v6672, %v6668
        %v8573 = vpack.c.b16 %v6673, %v6669
        %v8574 = vpack.c.b16 %v6678, %v6674
        %v8575 = vpack.c.b16 %v6679, %v6675
        %v8576 = vpack.c.b16 %v6680, %v6676
        %v8577 = vpack.c.b16 %v6681, %v6677
        %v8578 = vpack.c.b16 %v6686, %v6682
        %v8579 = vpack.c.b16 %v6687, %v6683
        %v8580 = vpack.c.b16 %v6688, %v6684
        %v8581 = vpack.c.b16 %v6689, %v6685
        %v8582 = vpack.c.b16 %v6694, %v6690
        %v8583 = vpack.c.b16 %v6695, %v6691
        %v8584 = vpack.c.b16 %v6696, %v6692
        %v8585 = vpack.c.b16 %v6697, %v6693
        %v8586 = vpack.c.b16 %v6702, %v6698
        %v8587 = vpack.c.b16 %v6703, %v6699
        %v8588 = vpack.c.b16 %v6704, %v6700
        %v8589 = vpack.c.b16 %v6705, %v6701
        %v8590 = vpack.c.b16 %v6710, %v6706
        %v8591 = vpack.c.b16 %v6711, %v6707
        %v8592 = vpack.c.b16 %v6712, %v6708
        %v8593 = vpack.c.b16 %v6713, %v6709
        %v8594 = vpack.c.b16 %v6718, %v6714
        %v8595 = vpack.c.b16 %v6719, %v6715
        %v8596 = vpack.c.b16 %v6720, %v6716
        %v8597 = vpack.c.b16 %v6721, %v6717
        %v8598 = vpack.c.b16 %v6726, %v6722
        %v8599 = vpack.c.b16 %v6727, %v6723
        %v8600 = vpack.c.b16 %v6728, %v6724
        %v8601 = vpack.c.b16 %v6729, %v6725
        %v8602 = vpack.c.b16 %v6734, %v6730
        %v8603 = vpack.c.b16 %v6735, %v6731
        %v8604 = vpack.c.b16 %v6736, %v6732
        %v8605 = vpack.c.b16 %v6737, %v6733
        %v8606 = vpack.c.b16 %v6742, %v6738
        %v8607 = vpack.c.b16 %v6743, %v6739
        %v8608 = vpack.c.b16 %v6744, %v6740
        %v8609 = vpack.c.b16 %v6745, %v6741
        %v8610 = vpack.c.b16 %v6750, %v6746
        %v8611 = vpack.c.b16 %v6751, %v6747
        %v8612 = vpack.c.b16 %v6752, %v6748
        %v8613 = vpack.c.b16 %v6753, %v6749
        %v8614 = vpack.c.b16 %v6758, %v6754
        %v8615 = vpack.c.b16 %v6759, %v6755
        %v8616 = vpack.c.b16 %v6760, %v6756
        %v8617 = vpack.c.b16 %v6761, %v6757
        %v8618 = vpack.c.b16 %v6766, %v6762
        %v8619 = vpack.c.b16 %v6767, %v6763
        %v8620 = vpack.c.b16 %v6768, %v6764
        %v8621 = vpack.c.b16 %v6769, %v6765
        %v8622 = vpack.c.b16 %v6774, %v6770
        %v8623 = vpack.c.b16 %v6775, %v6771
        %v8624 = vpack.c.b16 %v6776, %v6772
        %v8625 = vpack.c.b16 %v6777, %v6773
        %v8626 = vpack.c.b16 %v6782, %v6778
        %v8627 = vpack.c.b16 %v6783, %v6779
        %v8628 = vpack.c.b16 %v6784, %v6780
        %v8629 = vpack.c.b16 %v6785, %v6781
        %v8630 = vpack.c.b16 %v6790, %v6786
        %v8631 = vpack.c.b16 %v6791, %v6787
        %v8632 = vpack.c.b16 %v6792, %v6788
        %v8633 = vpack.c.b16 %v6793, %v6789
        %v8634 = vpack.c.b16 %v6798, %v6794
        %v8635 = vpack.c.b16 %v6799, %v6795
        %v8636 = vpack.c.b16 %v6800, %v6796
        %v8637 = vpack.c.b16 %v6801, %v6797
        %v8638 = vpack.c.b16 %v6806, %v6802
        %v8639 = vpack.c.b16 %v6807, %v6803
        %v8640 = vpack.c.b16 %v6808, %v6804
        %v8641 = vpack.c.b16 %v6809, %v6805
        %v8642 = vpack.c.b16 %v6814, %v6810
        %v8643 = vpack.c.b16 %v6815, %v6811
        %v8644 = vpack.c.b16 %v6816, %v6812
        %v8645 = vpack.c.b16 %v6817, %v6813
        %v8646 = vpack.c.b16 %v6822, %v6818
        %v8647 = vpack.c.b16 %v6823, %v6819
        %v8648 = vpack.c.b16 %v6824, %v6820
        %v8649 = vpack.c.b16 %v6825, %v6821
        %v8650 = vpack.c.b16 %v6830, %v6826
        %v8651 = vpack.c.b16 %v6831, %v6827
        %v8652 = vpack.c.b16 %v6832, %v6828
        %v8653 = vpack.c.b16 %v6833, %v6829
        %v8654 = vpack.c.b16 %v6838, %v6834
        %v8655 = vpack.c.b16 %v6839, %v6835
        %v8656 = vpack.c.b16 %v6840, %v6836
        %v8657 = vpack.c.b16 %v6841, %v6837
        %v8658 = vpack.c.b16 %v6846, %v6842
        %v8659 = vpack.c.b16 %v6847, %v6843
        %v8660 = vpack.c.b16 %v6848, %v6844
        %v8661 = vpack.c.b16 %v6849, %v6845
        %v8662 = vpack.c.b16 %v6854, %v6850
        %v8663 = vpack.c.b16 %v6855, %v6851
        %v8664 = vpack.c.b16 %v6856, %v6852
        %v8665 = vpack.c.b16 %v6857, %v6853
        %v8666 = vpack.c.b16 %v6862, %v6858
        %v8667 = vpack.c.b16 %v6863, %v6859
        %v8668 = vpack.c.b16 %v6864, %v6860
        %v8669 = vpack.c.b16 %v6865, %v6861
        %v8670 = vpack.c.b16 %v6870, %v6866
        %v8671 = vpack.c.b16 %v6871, %v6867
        %v8672 = vpack.c.b16 %v6872, %v6868
        %v8673 = vpack.c.b16 %v6873, %v6869
        %v8674 = vpack.c.b16 %v6878, %v6874
        %v8675 = vpack.c.b16 %v6879, %v6875
        %v8676 = vpack.c.b16 %v6880, %v6876
        %v8677 = vpack.c.b16 %v6881, %v6877
        %v8678 = vpack.c.b16 %v6886, %v6882
        %v8679 = vpack.c.b16 %v6887, %v6883
        %v8680 = vpack.c.b16 %v6888, %v6884
        %v8681 = vpack.c.b16 %v6889, %v6885
        %v8682 = vpack.c.b16 %v6894, %v6890
        %v8683 = vpack.c.b16 %v6895, %v6891
        %v8684 = vpack.c.b16 %v6896, %v6892
        %v8685 = vpack.c.b16 %v6897, %v6893
        %v8686 = vpack.c.b16 %v6902, %v6898
        %v8687 = vpack.c.b16 %v6903, %v6899
        %v8688 = vpack.c.b16 %v6904, %v6900
        %v8689 = vpack.c.b16 %v6905, %v6901
        %v8690 = vpack.c.b16 %v6910, %v6906
        %v8691 = vpack.c.b16 %v6911, %v6907
        %v8692 = vpack.c.b16 %v6912, %v6908
        %v8693 = vpack.c.b16 %v6913, %v6909
        %v8694 = vpack.c.b16 %v6918, %v6914
        %v8695 = vpack.c.b16 %v6919, %v6915
        %v8696 = vpack.c.b16 %v6920, %v6916
        %v8697 = vpack.c.b16 %v6921, %v6917
        %v8698 = vpack.c.b16 %v6926, %v6922
        %v8699 = vpack.c.b16 %v6927, %v6923
        %v8700 = vpack.c.b16 %v6928, %v6924
        %v8701 = vpack.c.b16 %v6929, %v6925
        %v8702 = vpack.c.b16 %v6934, %v6930
        %v8703 = vpack.c.b16 %v6935, %v6931
        %v8704 = vpack.c.b16 %v6936, %v6932
        %v8705 = vpack.c.b16 %v6937, %v6933
        %v8706 = vpack.c.b16 %v6942, %v6938
        %v8707 = vpack.c.b16 %v6943, %v6939
        %v8708 = vpack.c.b16 %v6944, %v6940
        %v8709 = vpack.c.b16 %v6945, %v6941
        %v8710 = vpack.c.b16 %v6950, %v6946
        %v8711 = vpack.c.b16 %v6951, %v6947
        %v8712 = vpack.c.b16 %v6952, %v6948
        %v8713 = vpack.c.b16 %v6953, %v6949
        %v8714 = vpack.c.b16 %v6958, %v6954
        %v8715 = vpack.c.b16 %v6959, %v6955
        %v8716 = vpack.c.b16 %v6960, %v6956
        %v8717 = vpack.c.b16 %v6961, %v6957
        %v8718 = vpack.c.b16 %v6966, %v6962
        %v8719 = vpack.c.b16 %v6967, %v6963
        %v8720 = vpack.c.b16 %v6968, %v6964
        %v8721 = vpack.c.b16 %v6969, %v6965
        %v8722 = vpack.c.b16 %v6974, %v6970
        %v8723 = vpack.c.b16 %v6975, %v6971
        %v8724 = vpack.c.b16 %v6976, %v6972
        %v8725 = vpack.c.b16 %v6977, %v6973
        %v8726 = vpack.c.b16 %v6982, %v6978
        %v8727 = vpack.c.b16 %v6983, %v6979
        %v8728 = vpack.c.b16 %v6984, %v6980
        %v8729 = vpack.c.b16 %v6985, %v6981
        %v8730 = vpack.c.b16 %v6990, %v6986
        %v8731 = vpack.c.b16 %v6991, %v6987
        %v8732 = vpack.c.b16 %v6992, %v6988
        %v8733 = vpack.c.b16 %v6993, %v6989
        %v8734 = vpack.c.b16 %v6998, %v6994
        %v8735 = vpack.c.b16 %v6999, %v6995
        %v8736 = vpack.c.b16 %v7000, %v6996
        %v8737 = vpack.c.b16 %v7001, %v6997
        %v8738 = vpack.c.b16 %v7006, %v7002
        %v8739 = vpack.c.b16 %v7007, %v7003
        %v8740 = vpack.c.b16 %v7008, %v7004
        %v8741 = vpack.c.b16 %v7009, %v7005
        %v8742 = vpack.c.b16 %v7014, %v7010
        %v8743 = vpack.c.b16 %v7015, %v7011
        %v8744 = vpack.c.b16 %v7016, %v7012
        %v8745 = vpack.c.b16 %v7017, %v7013
        %v8746 = vpack.c.b16 %v7022, %v7018
        %v8747 = vpack.c.b16 %v7023, %v7019
        %v8748 = vpack.c.b16 %v7024, %v7020
        %v8749 = vpack.c.b16 %v7025, %v7021
        %v8750 = vpack.c.b16 %v7030, %v7026
        %v8751 = vpack.c.b16 %v7031, %v7027
        %v8752 = vpack.c.b16 %v7032, %v7028
        %v8753 = vpack.c.b16 %v7033, %v7029
        %v8754 = vpack.c.b16 %v7038, %v7034
        %v8755 = vpack.c.b16 %v7039, %v7035
        %v8756 = vpack.c.b16 %v7040, %v7036
        %v8757 = vpack.c.b16 %v7041, %v7037
        %v8758 = vpack.c.b16 %v7046, %v7042
        %v8759 = vpack.c.b16 %v7047, %v7043
        %v8760 = vpack.c.b16 %v7048, %v7044
        %v8761 = vpack.c.b16 %v7049, %v7045
        %v8762 = vpack.c.b16 %v7054, %v7050
        %v8763 = vpack.c.b16 %v7055, %v7051
        %v8764 = vpack.c.b16 %v7056, %v7052
        %v8765 = vpack.c.b16 %v7057, %v7053
        %v8766 = vpack.c.b16 %v7062, %v7058
        %v8767 = vpack.c.b16 %v7063, %v7059
        %v8768 = vpack.c.b16 %v7064, %v7060
        %v8769 = vpack.c.b16 %v7065, %v7061
        %v8770 = vpack.c.b16 %v7070, %v7066
        %v8771 = vpack.c.b16 %v7071, %v7067
        %v8772 = vpack.c.b16 %v7072, %v7068
        %v8773 = vpack.c.b16 %v7073, %v7069
        %v8774 = vpack.c.b16 %v7078, %v7074
        %v8775 = vpack.c.b16 %v7079, %v7075
        %v8776 = vpack.c.b16 %v7080, %v7076
        %v8777 = vpack.c.b16 %v7081, %v7077
        %v8778 = vpack.c.b16 %v7086, %v7082
        %v8779 = vpack.c.b16 %v7087, %v7083
        %v8780 = vpack.c.b16 %v7088, %v7084
        %v8781 = vpack.c.b16 %v7089, %v7085
        %v8782 = vpack.c.b16 %v7094, %v7090
        %v8783 = vpack.c.b16 %v7095, %v7091
        %v8784 = vpack.c.b16 %v7096, %v7092
        %v8785 = vpack.c.b16 %v7097, %v7093
        %v8786 = vpack.c.b16 %v7102, %v7098
        %v8787 = vpack.c.b16 %v7103, %v7099
        %v8788 = vpack.c.b16 %v7104, %v7100
        %v8789 = vpack.c.b16 %v7105, %v7101
        %v8790 = vpack.c.b16 %v7110, %v7106
        %v8791 = vpack.c.b16 %v7111, %v7107
        %v8792 = vpack.c.b16 %v7112, %v7108
        %v8793 = vpack.c.b16 %v7113, %v7109
        %v8794 = vpack.c.b16 %v7118, %v7114
        %v8795 = vpack.c.b16 %v7119, %v7115
        %v8796 = vpack.c.b16 %v7120, %v7116
        %v8797 = vpack.c.b16 %v7121, %v7117
        %v8798 = vpack.c.b16 %v7126, %v7122
        %v8799 = vpack.c.b16 %v7127, %v7123
        %v8800 = vpack.c.b16 %v7128, %v7124
        %v8801 = vpack.c.b16 %v7129, %v7125
        %v8802 = vpack.c.b16 %v7134, %v7130
        %v8803 = vpack.c.b16 %v7135, %v7131
        %v8804 = vpack.c.b16 %v7136, %v7132
        %v8805 = vpack.c.b16 %v7137, %v7133
        %v8806 = vpack.c.b16 %v7142, %v7138
        %v8807 = vpack.c.b16 %v7143, %v7139
        %v8808 = vpack.c.b16 %v7144, %v7140
        %v8809 = vpack.c.b16 %v7145, %v7141
        %v8810 = vpack.c.b16 %v7150, %v7146
        %v8811 = vpack.c.b16 %v7151, %v7147
        %v8812 = vpack.c.b16 %v7152, %v7148
        %v8813 = vpack.c.b16 %v7153, %v7149
        %v8814 = vpack.c.b16 %v7158, %v7154
        %v8815 = vpack.c.b16 %v7159, %v7155
        %v8816 = vpack.c.b16 %v7160, %v7156
        %v8817 = vpack.c.b16 %v7161, %v7157
        %v8818 = vpack.c.b16 %v7166, %v7162
        %v8819 = vpack.c.b16 %v7167, %v7163
        %v8820 = vpack.c.b16 %v7168, %v7164
        %v8821 = vpack.c.b16 %v7169, %v7165
        %v8822 = vpack.c.b16 %v7174, %v7170
        %v8823 = vpack.c.b16 %v7175, %v7171
        %v8824 = vpack.c.b16 %v7176, %v7172
        %v8825 = vpack.c.b16 %v7177, %v7173
        %v8826 = vpack.c.b16 %v7182, %v7178
        %v8827 = vpack.c.b16 %v7183, %v7179
        %v8828 = vpack.c.b16 %v7184, %v7180
        %v8829 = vpack.c.b16 %v7185, %v7181
        %v8830 = vpack.c.b16 %v7190, %v7186
        %v8831 = vpack.c.b16 %v7191, %v7187
        %v8832 = vpack.c.b16 %v7192, %v7188
        %v8833 = vpack.c.b16 %v7193, %v7189
        %v8834 = vpack.c.b16 %v7198, %v7194
        %v8835 = vpack.c.b16 %v7199, %v7195
        %v8836 = vpack.c.b16 %v7200, %v7196
        %v8837 = vpack.c.b16 %v7201, %v7197
        %v8838 = vpack.c.b16 %v7206, %v7202
        %v8839 = vpack.c.b16 %v7207, %v7203
        %v8840 = vpack.c.b16 %v7208, %v7204
        %v8841 = vpack.c.b16 %v7209, %v7205
        %v8842 = vpack.c.b16 %v7214, %v7210
        %v8843 = vpack.c.b16 %v7215, %v7211
        %v8844 = vpack.c.b16 %v7216, %v7212
        %v8845 = vpack.c.b16 %v7217, %v7213
        %v8846 = vpack.c.b16 %v7222, %v7218
        %v8847 = vpack.c.b16 %v7223, %v7219
        %v8848 = vpack.c.b16 %v7224, %v7220
        %v8849 = vpack.c.b16 %v7225, %v7221
        %v8850 = vpack.c.b16 %v7230, %v7226
        %v8851 = vpack.c.b16 %v7231, %v7227
        %v8852 = vpack.c.b16 %v7232, %v7228
        %v8853 = vpack.c.b16 %v7233, %v7229
        %v8854 = vpack.c.b16 %v7238, %v7234
        %v8855 = vpack.c.b16 %v7239, %v7235
        %v8856 = vpack.c.b16 %v7240, %v7236
        %v8857 = vpack.c.b16 %v7241, %v7237
        %v8858 = vpack.c.b16 %v7246, %v7242
        %v8859 = vpack.c.b16 %v7247, %v7243
        %v8860 = vpack.c.b16 %v7248, %v7244
        %v8861 = vpack.c.b16 %v7249, %v7245
        %v8862 = vpack.c.b16 %v7254, %v7250
        %v8863 = vpack.c.b16 %v7255, %v7251
        %v8864 = vpack.c.b16 %v7256, %v7252
        %v8865 = vpack.c.b16 %v7257, %v7253
        %v8866 = vpack.c.b16 %v7262, %v7258
        %v8867 = vpack.c.b16 %v7263, %v7259
        %v8868 = vpack.c.b16 %v7264, %v7260
        %v8869 = vpack.c.b16 %v7265, %v7261
        %v8870 = vpack.c.b16 %v7270, %v7266
        %v8871 = vpack.c.b16 %v7271, %v7267
        %v8872 = vpack.c.b16 %v7272, %v7268
        %v8873 = vpack.c.b16 %v7273, %v7269
        %v8874 = vpack.c.b16 %v7278, %v7274
        %v8875 = vpack.c.b16 %v7279, %v7275
        %v8876 = vpack.c.b16 %v7280, %v7276
        %v8877 = vpack.c.b16 %v7281, %v7277
        %v8878 = vpack.c.b16 %v7286, %v7282
        %v8879 = vpack.c.b16 %v7287, %v7283
        %v8880 = vpack.c.b16 %v7288, %v7284
        %v8881 = vpack.c.b16 %v7289, %v7285
        %v8882 = vpack.c.b16 %v7294, %v7290
        %v8883 = vpack.c.b16 %v7295, %v7291
        %v8884 = vpack.c.b16 %v7296, %v7292
        %v8885 = vpack.c.b16 %v7297, %v7293
        %v8886 = vpack.c.b16 %v7302, %v7298
        %v8887 = vpack.c.b16 %v7303, %v7299
        %v8888 = vpack.c.b16 %v7304, %v7300
        %v8889 = vpack.c.b16 %v7305, %v7301
        %v8890 = vpack.c.b16 %v7310, %v7306
        %v8891 = vpack.c.b16 %v7311, %v7307
        %v8892 = vpack.c.b16 %v7312, %v7308
        %v8893 = vpack.c.b16 %v7313, %v7309
        %v8894 = vpack.c.b16 %v7318, %v7314
        %v8895 = vpack.c.b16 %v7319, %v7315
        %v8896 = vpack.c.b16 %v7320, %v7316
        %v8897 = vpack.c.b16 %v7321, %v7317
        %v8898 = vpack.c.b16 %v7326, %v7322
        %v8899 = vpack.c.b16 %v7327, %v7323
        %v8900 = vpack.c.b16 %v7328, %v7324
        %v8901 = vpack.c.b16 %v7329, %v7325
        %v8902 = vpack.c.b16 %v7334, %v7330
        %v8903 = vpack.c.b16 %v7335, %v7331
        %v8904 = vpack.c.b16 %v7336, %v7332
        %v8905 = vpack.c.b16 %v7337, %v7333
        %v8906 = vpack.c.b16 %v7342, %v7338
        %v8907 = vpack.c.b16 %v7343, %v7339
        %v8908 = vpack.c.b16 %v7344, %v7340
        %v8909 = vpack.c.b16 %v7345, %v7341
        %v8910 = vpack.c.b16 %v7350, %v7346
        %v8911 = vpack.c.b16 %v7351, %v7347
        %v8912 = vpack.c.b16 %v7352, %v7348
        %v8913 = vpack.c.b16 %v7353, %v7349
        %v8914 = vpack.c.b16 %v7358, %v7354
        %v8915 = vpack.c.b16 %v7359, %v7355
        %v8916 = vpack.c.b16 %v7360, %v7356
        %v8917 = vpack.c.b16 %v7361, %v7357
        %v8918 = vpack.c.b16 %v7366, %v7362
        %v8919 = vpack.c.b16 %v7367, %v7363
        %v8920 = vpack.c.b16 %v7368, %v7364
        %v8921 = vpack.c.b16 %v7369, %v7365
        %v8922 = vpack.c.b16 %v7374, %v7370
        %v8923 = vpack.c.b16 %v7375, %v7371
        %v8924 = vpack.c.b16 %v7376, %v7372
        %v8925 = vpack.c.b16 %v7377, %v7373
        %v8926 = vpack.c.b16 %v7382, %v7378
        %v8927 = vpack.c.b16 %v7383, %v7379
        %v8928 = vpack.c.b16 %v7384, %v7380
        %v8929 = vpack.c.b16 %v7385, %v7381
        %v8930 = vpack.c.b16 %v7390, %v7386
        %v8931 = vpack.c.b16 %v7391, %v7387
        %v8932 = vpack.c.b16 %v7392, %v7388
        %v8933 = vpack.c.b16 %v7393, %v7389
        %v8934 = vpack.c.b16 %v7398, %v7394
        %v8935 = vpack.c.b16 %v7399, %v7395
        %v8936 = vpack.c.b16 %v7400, %v7396
        %v8937 = vpack.c.b16 %v7401, %v7397
        %10474 = vmatprep.subr.bf16.mxu0 %v7403
        %10475 = vmatpush1.bf16.msra.mxu0 %v7402
        %10476 = vmatprep.subr.bf16.mxu0 %v7407
        %10477 = vmatpush1.bf16.msra.mxu0 %v7406
        %10478 = vmatprep.subr.bf16.mxu0 %v7411
        %10479 = vmatpush1.bf16.msra.mxu0 %v7410
        %10480 = vmatprep.subr.bf16.mxu0 %v7415
        %10481 = vmatpush1.bf16.msra.mxu0 %v7414
        %10482 = vmatprep.subr.bf16.mxu0 %v7419
        %10483 = vmatpush1.bf16.msra.mxu0 %v7418
        %10484 = vmatprep.subr.bf16.mxu0 %v7423
        %10485 = vmatpush1.bf16.msra.mxu0 %v7422
        %10486 = vmatprep.subr.bf16.mxu0 %v7427
        %10487 = vmatpush1.bf16.msra.mxu0 %v7426
        %10488 = vmatprep.subr.bf16.mxu0 %v7431
        %10489 = vmatpush1.bf16.msra.mxu0 %v7430
        %10490 = vmatprep.subr.bf16.mxu0 %v7435
        %10491 = vmatpush1.bf16.msra.mxu0 %v7434
        %10492 = vmatprep.subr.bf16.mxu0 %v7439
        %10493 = vmatpush1.bf16.msra.mxu0 %v7438
        %10494 = vmatprep.subr.bf16.mxu0 %v7443
        %10495 = vmatpush1.bf16.msra.mxu0 %v7442
        %10496 = vmatprep.subr.bf16.mxu0 %v7447
        %10497 = vmatpush1.bf16.msra.mxu0 %v7446
        %10498 = vmatprep.subr.bf16.mxu0 %v7451
        %10499 = vmatpush1.bf16.msra.mxu0 %v7450
        %10500 = vmatprep.subr.bf16.mxu0 %v7455
        %10501 = vmatpush1.bf16.msra.mxu0 %v7454
        %10502 = vmatprep.subr.bf16.mxu0 %v7459
        %10503 = vmatpush1.bf16.msra.mxu0 %v7458
        %10504 = vmatprep.subr.bf16.mxu0 %v7463
        %10505 = vmatpush1.bf16.msra.mxu0 %v7462
        %10506 = vmatprep.mubr.bf16.mxu0 %v1211
        %10507 = vmatmul.mubr.bf16.gmra.mrb[0].mxu0 %v1210
        %v10508 = vpop.f32.mrb[0].mxu0
        %v10509 = vadd.f32 0.0, %v10508
        %v10510 = vpop.f32.mrb[0].mxu0
        %v10511 = vadd.f32 0.0, %v10510
        %v10512 = vpop.f32.mrb[0].mxu0
        %v10513 = vpop.f32.mrb[0].mxu0
        %10514 = vdwg.mxu0
        %10515 = vmatprep.subr.bf16.mxu0 %v7467
        %10516 = vmatpush1.bf16.msra.mxu0 %v7466
        %10517 = vmatprep.subr.bf16.mxu0 %v7471
        %10518 = vmatpush1.bf16.msra.mxu0 %v7470
        %10519 = vmatprep.subr.bf16.mxu0 %v7475
        %10520 = vmatpush1.bf16.msra.mxu0 %v7474
        %10521 = vmatprep.subr.bf16.mxu0 %v7479
        %10522 = vmatpush1.bf16.msra.mxu0 %v7478
        %10523 = vmatprep.subr.bf16.mxu0 %v7483
        %10524 = vmatpush1.bf16.msra.mxu0 %v7482
        %10525 = vmatprep.subr.bf16.mxu0 %v7487
        %10526 = vmatpush1.bf16.msra.mxu0 %v7486
        %10527 = vmatprep.subr.bf16.mxu0 %v7491
        %10528 = vmatpush1.bf16.msra.mxu0 %v7490
        %10529 = vmatprep.subr.bf16.mxu0 %v7495
        %10530 = vmatpush1.bf16.msra.mxu0 %v7494
        %10531 = vmatprep.subr.bf16.mxu0 %v7499
        %10532 = vmatpush1.bf16.msra.mxu0 %v7498
        %10533 = vmatprep.subr.bf16.mxu0 %v7503
        %10534 = vmatpush1.bf16.msra.mxu0 %v7502
        %10535 = vmatprep.subr.bf16.mxu0 %v7507
        %10536 = vmatpush1.bf16.msra.mxu0 %v7506
        %10537 = vmatprep.subr.bf16.mxu0 %v7511
        %10538 = vmatpush1.bf16.msra.mxu0 %v7510
        %10539 = vmatprep.subr.bf16.mxu0 %v7515
        %10540 = vmatpush1.bf16.msra.mxu0 %v7514
        %10541 = vmatprep.subr.bf16.mxu0 %v7519
        %10542 = vmatpush1.bf16.msra.mxu0 %v7518
        %10543 = vmatprep.subr.bf16.mxu0 %v7523
        %10544 = vmatpush1.bf16.msra.mxu0 %v7522
        %10545 = vmatprep.subr.bf16.mxu0 %v7527
        %10546 = vmatpush1.bf16.msra.mxu0 %v7526
        %10547 = vmatprep.mubr.bf16.mxu0 %v1213
        %10548 = vmatmul.mubr.bf16.gmra.mrb[0].mxu0 %v1212
        %v10549 = vpop.f32.mrb[0].mxu0
        %v10550 = vadd.f32 %v10509, %v10549
        %v10551 = vpop.f32.mrb[0].mxu0
        %v10552 = vadd.f32 %v10511, %v10551
        %v10553 = vpop.f32.mrb[0].mxu0
        %v10554 = vpop.f32.mrb[0].mxu0
        %10555 = vdwg.mxu0
        %10556 = vmatprep.subr.bf16.mxu0 %v7531
        %10557 = vmatpush1.bf16.msra.mxu0 %v7530
        %10558 = vmatprep.subr.bf16.mxu0 %v7535
        %10559 = vmatpush1.bf16.msra.mxu0 %v7534
        %10560 = vmatprep.subr.bf16.mxu0 %v7539
        %10561 = vmatpush1.bf16.msra.mxu0 %v7538
        %10562 = vmatprep.subr.bf16.mxu0 %v7543
        %10563 = vmatpush1.bf16.msra.mxu0 %v7542
        %10564 = vmatprep.subr.bf16.mxu0 %v7547
        %10565 = vmatpush1.bf16.msra.mxu0 %v7546
        %10566 = vmatprep.subr.bf16.mxu0 %v7551
        %10567 = vmatpush1.bf16.msra.mxu0 %v7550
        %10568 = vmatprep.subr.bf16.mxu0 %v7555
        %10569 = vmatpush1.bf16.msra.mxu0 %v7554
        %10570 = vmatprep.subr.bf16.mxu0 %v7559
        %10571 = vmatpush1.bf16.msra.mxu0 %v7558
        %10572 = vmatprep.subr.bf16.mxu0 %v7563
        %10573 = vmatpush1.bf16.msra.mxu0 %v7562
        %10574 = vmatprep.subr.bf16.mxu0 %v7567
        %10575 = vmatpush1.bf16.msra.mxu0 %v7566
        %10576 = vmatprep.subr.bf16.mxu0 %v7571
        %10577 = vmatpush1.bf16.msra.mxu0 %v7570
        %10578 = vmatprep.subr.bf16.mxu0 %v7575
        %10579 = vmatpush1.bf16.msra.mxu0 %v7574
        %10580 = vmatprep.subr.bf16.mxu0 %v7579
        %10581 = vmatpush1.bf16.msra.mxu0 %v7578
        %10582 = vmatprep.subr.bf16.mxu0 %v7583
        %10583 = vmatpush1.bf16.msra.mxu0 %v7582
        %10584 = vmatprep.subr.bf16.mxu0 %v7587
        %10585 = vmatpush1.bf16.msra.mxu0 %v7586
        %10586 = vmatprep.subr.bf16.mxu0 %v7591
        %10587 = vmatpush1.bf16.msra.mxu0 %v7590
        %10588 = vmatprep.mubr.bf16.mxu0 %v1215
        %10589 = vmatmul.mubr.bf16.gmra.mrb[0].mxu0 %v1214
        %v10590 = vpop.f32.mrb[0].mxu0
        %v10591 = vadd.f32 %v10550, %v10590
        %v10592 = vpop.f32.mrb[0].mxu0
        %v10593 = vadd.f32 %v10552, %v10592
        %v10594 = vpop.f32.mrb[0].mxu0
        %v10595 = vpop.f32.mrb[0].mxu0
        %10596 = vdwg.mxu0
        %10597 = vmatprep.subr.bf16.mxu0 %v7595
        %10598 = vmatpush1.bf16.msra.mxu0 %v7594
        %10599 = vmatprep.subr.bf16.mxu0 %v7599
        %10600 = vmatpush1.bf16.msra.mxu0 %v7598
        %10601 = vmatprep.subr.bf16.mxu0 %v7603
        %10602 = vmatpush1.bf16.msra.mxu0 %v7602
        %10603 = vmatprep.subr.bf16.mxu0 %v7607
        %10604 = vmatpush1.bf16.msra.mxu0 %v7606
        %10605 = vmatprep.subr.bf16.mxu0 %v7611
        %10606 = vmatpush1.bf16.msra.mxu0 %v7610
        %10607 = vmatprep.subr.bf16.mxu0 %v7615
        %10608 = vmatpush1.bf16.msra.mxu0 %v7614
        %10609 = vmatprep.subr.bf16.mxu0 %v7619
        %10610 = vmatpush1.bf16.msra.mxu0 %v7618
        %10611 = vmatprep.subr.bf16.mxu0 %v7623
        %10612 = vmatpush1.bf16.msra.mxu0 %v7622
        %10613 = vmatprep.subr.bf16.mxu0 %v7627
        %10614 = vmatpush1.bf16.msra.mxu0 %v7626
        %10615 = vmatprep.subr.bf16.mxu0 %v7631
        %10616 = vmatpush1.bf16.msra.mxu0 %v7630
        %10617 = vmatprep.subr.bf16.mxu0 %v7635
        %10618 = vmatpush1.bf16.msra.mxu0 %v7634
        %10619 = vmatprep.subr.bf16.mxu0 %v7639
        %10620 = vmatpush1.bf16.msra.mxu0 %v7638
        %10621 = vmatprep.subr.bf16.mxu0 %v7643
        %10622 = vmatpush1.bf16.msra.mxu0 %v7642
        %10623 = vmatprep.subr.bf16.mxu0 %v7647
        %10624 = vmatpush1.bf16.msra.mxu0 %v7646
        %10625 = vmatprep.subr.bf16.mxu0 %v7651
        %10626 = vmatpush1.bf16.msra.mxu0 %v7650
        %10627 = vmatprep.subr.bf16.mxu0 %v7655
        %10628 = vmatpush1.bf16.msra.mxu0 %v7654
        %10629 = vmatprep.mubr.bf16.mxu0 %v1217
        %10630 = vmatmul.mubr.bf16.gmra.mrb[0].mxu0 %v1216
        %v10631 = vpop.f32.mrb[0].mxu0
        %v10632 = vadd.f32 %v10591, %v10631
        %v10633 = vpop.f32.mrb[0].mxu0
        %v10634 = vadd.f32 %v10593, %v10633
        %v10635 = vpop.f32.mrb[0].mxu0
        %v10636 = vpop.f32.mrb[0].mxu0
        %10637 = vdwg.mxu0
        %10638 = vmatprep.subr.bf16.mxu0 %v7659
        %10639 = vmatpush1.bf16.msra.mxu0 %v7658
        %10640 = vmatprep.subr.bf16.mxu0 %v7663
        %10641 = vmatpush1.bf16.msra.mxu0 %v7662
        %10642 = vmatprep.subr.bf16.mxu0 %v7667
        %10643 = vmatpush1.bf16.msra.mxu0 %v7666
        %10644 = vmatprep.subr.bf16.mxu0 %v7671
        %10645 = vmatpush1.bf16.msra.mxu0 %v7670
        %10646 = vmatprep.subr.bf16.mxu0 %v7675
        %10647 = vmatpush1.bf16.msra.mxu0 %v7674
        %10648 = vmatprep.subr.bf16.mxu0 %v7679
        %10649 = vmatpush1.bf16.msra.mxu0 %v7678
        %10650 = vmatprep.subr.bf16.mxu0 %v7683
        %10651 = vmatpush1.bf16.msra.mxu0 %v7682
        %10652 = vmatprep.subr.bf16.mxu0 %v7687
        %10653 = vmatpush1.bf16.msra.mxu0 %v7686
        %10654 = vmatprep.subr.bf16.mxu0 %v7691
        %10655 = vmatpush1.bf16.msra.mxu0 %v7690
        %10656 = vmatprep.subr.bf16.mxu0 %v7695
        %10657 = vmatpush1.bf16.msra.mxu0 %v7694
        %10658 = vmatprep.subr.bf16.mxu0 %v7699
        %10659 = vmatpush1.bf16.msra.mxu0 %v7698
        %10660 = vmatprep.subr.bf16.mxu0 %v7703
        %10661 = vmatpush1.bf16.msra.mxu0 %v7702
        %10662 = vmatprep.subr.bf16.mxu0 %v7707
        %10663 = vmatpush1.bf16.msra.mxu0 %v7706
        %10664 = vmatprep.subr.bf16.mxu0 %v7711
        %10665 = vmatpush1.bf16.msra.mxu0 %v7710
        %10666 = vmatprep.subr.bf16.mxu0 %v7715
        %10667 = vmatpush1.bf16.msra.mxu0 %v7714
        %10668 = vmatprep.subr.bf16.mxu0 %v7719
        %10669 = vmatpush1.bf16.msra.mxu0 %v7718
        %10670 = vmatprep.mubr.bf16.mxu0 %v1219
        %10671 = vmatmul.mubr.bf16.gmra.mrb[0].mxu0 %v1218
        %v10672 = vpop.f32.mrb[0].mxu0
        %v10673 = vadd.f32 %v10632, %v10672
        %v10674 = vpop.f32.mrb[0].mxu0
        %v10675 = vadd.f32 %v10634, %v10674
        %v10676 = vpop.f32.mrb[0].mxu0
        %v10677 = vpop.f32.mrb[0].mxu0
        %10678 = vdwg.mxu0
        %10679 = vmatprep.subr.bf16.mxu0 %v7723
        %10680 = vmatpush1.bf16.msra.mxu0 %v7722
        %10681 = vmatprep.subr.bf16.mxu0 %v7727
        %10682 = vmatpush1.bf16.msra.mxu0 %v7726
        %10683 = vmatprep.subr.bf16.mxu0 %v7731
        %10684 = vmatpush1.bf16.msra.mxu0 %v7730
        %10685 = vmatprep.subr.bf16.mxu0 %v7735
        %10686 = vmatpush1.bf16.msra.mxu0 %v7734
        %10687 = vmatprep.subr.bf16.mxu0 %v7739
        %10688 = vmatpush1.bf16.msra.mxu0 %v7738
        %10689 = vmatprep.subr.bf16.mxu0 %v7743
        %10690 = vmatpush1.bf16.msra.mxu0 %v7742
        %10691 = vmatprep.subr.bf16.mxu0 %v7747
        %10692 = vmatpush1.bf16.msra.mxu0 %v7746
        %10693 = vmatprep.subr.bf16.mxu0 %v7751
        %10694 = vmatpush1.bf16.msra.mxu0 %v7750
        %10695 = vmatprep.subr.bf16.mxu0 %v7755
        %10696 = vmatpush1.bf16.msra.mxu0 %v7754
        %10697 = vmatprep.subr.bf16.mxu0 %v7759
        %10698 = vmatpush1.bf16.msra.mxu0 %v7758
        %10699 = vmatprep.subr.bf16.mxu0 %v7763
        %10700 = vmatpush1.bf16.msra.mxu0 %v7762
        %10701 = vmatprep.subr.bf16.mxu0 %v7767
        %10702 = vmatpush1.bf16.msra.mxu0 %v7766
        %10703 = vmatprep.subr.bf16.mxu0 %v7771
        %10704 = vmatpush1.bf16.msra.mxu0 %v7770
        %10705 = vmatprep.subr.bf16.mxu0 %v7775
        %10706 = vmatpush1.bf16.msra.mxu0 %v7774
        %10707 = vmatprep.subr.bf16.mxu0 %v7779
        %10708 = vmatpush1.bf16.msra.mxu0 %v7778
        %10709 = vmatprep.subr.bf16.mxu0 %v7783
        %10710 = vmatpush1.bf16.msra.mxu0 %v7782
        %10711 = vmatprep.mubr.bf16.mxu0 %v1221
        %10712 = vmatmul.mubr.bf16.gmra.mrb[0].mxu0 %v1220
        %v10713 = vpop.f32.mrb[0].mxu0
        %v10714 = vadd.f32 %v10673, %v10713
        %v10715 = vpop.f32.mrb[0].mxu0
        %v10716 = vadd.f32 %v10675, %v10715
        %v10717 = vpop.f32.mrb[0].mxu0
        %v10718 = vpop.f32.mrb[0].mxu0
        %10719 = vdwg.mxu0
        %10720 = vmatprep.subr.bf16.mxu0 %v7787
        %10721 = vmatpush1.bf16.msra.mxu0 %v7786
        %10722 = vmatprep.subr.bf16.mxu0 %v7791
        %10723 = vmatpush1.bf16.msra.mxu0 %v7790
        %10724 = vmatprep.subr.bf16.mxu0 %v7795
        %10725 = vmatpush1.bf16.msra.mxu0 %v7794
        %10726 = vmatprep.subr.bf16.mxu0 %v7799
        %10727 = vmatpush1.bf16.msra.mxu0 %v7798
        %10728 = vmatprep.subr.bf16.mxu0 %v7803
        %10729 = vmatpush1.bf16.msra.mxu0 %v7802
        %10730 = vmatprep.subr.bf16.mxu0 %v7807
        %10731 = vmatpush1.bf16.msra.mxu0 %v7806
        %10732 = vmatprep.subr.bf16.mxu0 %v7811
        %10733 = vmatpush1.bf16.msra.mxu0 %v7810
        %10734 = vmatprep.subr.bf16.mxu0 %v7815
        %10735 = vmatpush1.bf16.msra.mxu0 %v7814
        %10736 = vmatprep.subr.bf16.mxu0 %v7819
        %10737 = vmatpush1.bf16.msra.mxu0 %v7818
        %10738 = vmatprep.subr.bf16.mxu0 %v7823
        %10739 = vmatpush1.bf16.msra.mxu0 %v7822
        %10740 = vmatprep.subr.bf16.mxu0 %v7827
        %10741 = vmatpush1.bf16.msra.mxu0 %v7826
        %10742 = vmatprep.subr.bf16.mxu0 %v7831
        %10743 = vmatpush1.bf16.msra.mxu0 %v7830
        %10744 = vmatprep.subr.bf16.mxu0 %v7835
        %10745 = vmatpush1.bf16.msra.mxu0 %v7834
        %10746 = vmatprep.subr.bf16.mxu0 %v7839
        %10747 = vmatpush1.bf16.msra.mxu0 %v7838
        %10748 = vmatprep.subr.bf16.mxu0 %v7843
        %10749 = vmatpush1.bf16.msra.mxu0 %v7842
        %10750 = vmatprep.subr.bf16.mxu0 %v7847
        %10751 = vmatpush1.bf16.msra.mxu0 %v7846
        %10752 = vmatprep.mubr.bf16.mxu0 %v1223
        %10753 = vmatmul.mubr.bf16.gmra.mrb[0].mxu0 %v1222
        %v10754 = vpop.f32.mrb[0].mxu0
        %v10755 = vadd.f32 %v10714, %v10754
        %v10756 = vpop.f32.mrb[0].mxu0
        %v10757 = vadd.f32 %v10716, %v10756
        %v10758 = vpop.f32.mrb[0].mxu0
        %v10759 = vpop.f32.mrb[0].mxu0
        %10760 = vdwg.mxu0
        %10761 = vmatprep.subr.bf16.mxu0 %v7851
        %10762 = vmatpush1.bf16.msra.mxu0 %v7850
        %10763 = vmatprep.subr.bf16.mxu0 %v7855
        %10764 = vmatpush1.bf16.msra.mxu0 %v7854
        %10765 = vmatprep.subr.bf16.mxu0 %v7859
        %10766 = vmatpush1.bf16.msra.mxu0 %v7858
        %10767 = vmatprep.subr.bf16.mxu0 %v7863
        %10768 = vmatpush1.bf16.msra.mxu0 %v7862
        %10769 = vmatprep.subr.bf16.mxu0 %v7867
        %10770 = vmatpush1.bf16.msra.mxu0 %v7866
        %10771 = vmatprep.subr.bf16.mxu0 %v7871
        %10772 = vmatpush1.bf16.msra.mxu0 %v7870
        %10773 = vmatprep.subr.bf16.mxu0 %v7875
        %10774 = vmatpush1.bf16.msra.mxu0 %v7874
        %10775 = vmatprep.subr.bf16.mxu0 %v7879
        %10776 = vmatpush1.bf16.msra.mxu0 %v7878
        %10777 = vmatprep.subr.bf16.mxu0 %v7883
        %10778 = vmatpush1.bf16.msra.mxu0 %v7882
        %10779 = vmatprep.subr.bf16.mxu0 %v7887
        %10780 = vmatpush1.bf16.msra.mxu0 %v7886
        %10781 = vmatprep.subr.bf16.mxu0 %v7891
        %10782 = vmatpush1.bf16.msra.mxu0 %v7890
        %10783 = vmatprep.subr.bf16.mxu0 %v7895
        %10784 = vmatpush1.bf16.msra.mxu0 %v7894
        %10785 = vmatprep.subr.bf16.mxu0 %v7899
        %10786 = vmatpush1.bf16.msra.mxu0 %v7898
        %10787 = vmatprep.subr.bf16.mxu0 %v7903
        %10788 = vmatpush1.bf16.msra.mxu0 %v7902
        %10789 = vmatprep.subr.bf16.mxu0 %v7907
        %10790 = vmatpush1.bf16.msra.mxu0 %v7906
        %10791 = vmatprep.subr.bf16.mxu0 %v7911
        %10792 = vmatpush1.bf16.msra.mxu0 %v7910
        %10793 = vmatprep.mubr.bf16.mxu0 %v1225
        %10794 = vmatmul.mubr.bf16.gmra.mrb[0].mxu0 %v1224
        %v10795 = vpop.f32.mrb[0].mxu0
        %v10796 = vadd.f32 %v10755, %v10795
        %v10797 = vpop.f32.mrb[0].mxu0
        %v10798 = vadd.f32 %v10757, %v10797
        %v10799 = vpop.f32.mrb[0].mxu0
        %v10800 = vpop.f32.mrb[0].mxu0
        %10801 = vdwg.mxu0
        %10802 = vmatprep.subr.bf16.mxu0 %v7915
        %10803 = vmatpush1.bf16.msra.mxu0 %v7914
        %10804 = vmatprep.subr.bf16.mxu0 %v7919
        %10805 = vmatpush1.bf16.msra.mxu0 %v7918
        %10806 = vmatprep.subr.bf16.mxu0 %v7923
        %10807 = vmatpush1.bf16.msra.mxu0 %v7922
        %10808 = vmatprep.subr.bf16.mxu0 %v7927
        %10809 = vmatpush1.bf16.msra.mxu0 %v7926
        %10810 = vmatprep.subr.bf16.mxu0 %v7931
        %10811 = vmatpush1.bf16.msra.mxu0 %v7930
        %10812 = vmatprep.subr.bf16.mxu0 %v7935
        %10813 = vmatpush1.bf16.msra.mxu0 %v7934
        %10814 = vmatprep.subr.bf16.mxu0 %v7939
        %10815 = vmatpush1.bf16.msra.mxu0 %v7938
        %10816 = vmatprep.subr.bf16.mxu0 %v7943
        %10817 = vmatpush1.bf16.msra.mxu0 %v7942
        %10818 = vmatprep.subr.bf16.mxu0 %v7947
        %10819 = vmatpush1.bf16.msra.mxu0 %v7946
        %10820 = vmatprep.subr.bf16.mxu0 %v7951
        %10821 = vmatpush1.bf16.msra.mxu0 %v7950
        %10822 = vmatprep.subr.bf16.mxu0 %v7955
        %10823 = vmatpush1.bf16.msra.mxu0 %v7954
        %10824 = vmatprep.subr.bf16.mxu0 %v7959
        %10825 = vmatpush1.bf16.msra.mxu0 %v7958
        %10826 = vmatprep.subr.bf16.mxu0 %v7963
        %10827 = vmatpush1.bf16.msra.mxu0 %v7962
        %10828 = vmatprep.subr.bf16.mxu0 %v7967
        %10829 = vmatpush1.bf16.msra.mxu0 %v7966
        %10830 = vmatprep.subr.bf16.mxu0 %v7971
        %10831 = vmatpush1.bf16.msra.mxu0 %v7970
        %10832 = vmatprep.subr.bf16.mxu0 %v7975
        %10833 = vmatpush1.bf16.msra.mxu0 %v7974
        %10834 = vmatprep.mubr.bf16.mxu0 %v1227
        %10835 = vmatmul.mubr.bf16.gmra.mrb[0].mxu0 %v1226
        %v10836 = vpop.f32.mrb[0].mxu0
        %v10837 = vadd.f32 %v10796, %v10836
        %v10838 = vpop.f32.mrb[0].mxu0
        %v10839 = vadd.f32 %v10798, %v10838
        %v10840 = vpop.f32.mrb[0].mxu0
        %v10841 = vpop.f32.mrb[0].mxu0
        %10842 = vdwg.mxu0
        %10843 = vmatprep.subr.bf16.mxu0 %v7979
        %10844 = vmatpush1.bf16.msra.mxu0 %v7978
        %10845 = vmatprep.subr.bf16.mxu0 %v7983
        %10846 = vmatpush1.bf16.msra.mxu0 %v7982
        %10847 = vmatprep.subr.bf16.mxu0 %v7987
        %10848 = vmatpush1.bf16.msra.mxu0 %v7986
        %10849 = vmatprep.subr.bf16.mxu0 %v7991
        %10850 = vmatpush1.bf16.msra.mxu0 %v7990
        %10851 = vmatprep.subr.bf16.mxu0 %v7995
        %10852 = vmatpush1.bf16.msra.mxu0 %v7994
        %10853 = vmatprep.subr.bf16.mxu0 %v7999
        %10854 = vmatpush1.bf16.msra.mxu0 %v7998
        %10855 = vmatprep.subr.bf16.mxu0 %v8003
        %10856 = vmatpush1.bf16.msra.mxu0 %v8002
        %10857 = vmatprep.subr.bf16.mxu0 %v8007
        %10858 = vmatpush1.bf16.msra.mxu0 %v8006
        %10859 = vmatprep.subr.bf16.mxu0 %v8011
        %10860 = vmatpush1.bf16.msra.mxu0 %v8010
        %10861 = vmatprep.subr.bf16.mxu0 %v8015
        %10862 = vmatpush1.bf16.msra.mxu0 %v8014
        %10863 = vmatprep.subr.bf16.mxu0 %v8019
        %10864 = vmatpush1.bf16.msra.mxu0 %v8018
        %10865 = vmatprep.subr.bf16.mxu0 %v8023
        %10866 = vmatpush1.bf16.msra.mxu0 %v8022
        %10867 = vmatprep.subr.bf16.mxu0 %v8027
        %10868 = vmatpush1.bf16.msra.mxu0 %v8026
        %10869 = vmatprep.subr.bf16.mxu0 %v8031
        %10870 = vmatpush1.bf16.msra.mxu0 %v8030
        %10871 = vmatprep.subr.bf16.mxu0 %v8035
        %10872 = vmatpush1.bf16.msra.mxu0 %v8034
        %10873 = vmatprep.subr.bf16.mxu0 %v8039
        %10874 = vmatpush1.bf16.msra.mxu0 %v8038
        %10875 = vmatprep.mubr.bf16.mxu0 %v1229
        %10876 = vmatmul.mubr.bf16.gmra.mrb[0].mxu0 %v1228
        %v10877 = vpop.f32.mrb[0].mxu0
        %v10878 = vadd.f32 %v10837, %v10877
        %v10879 = vpop.f32.mrb[0].mxu0
        %v10880 = vadd.f32 %v10839, %v10879
        %v10881 = vpop.f32.mrb[0].mxu0
        %v10882 = vpop.f32.mrb[0].mxu0
        %10883 = vdwg.mxu0
        %10884 = vmatprep.subr.bf16.mxu0 %v8043
        %10885 = vmatpush1.bf16.msra.mxu0 %v8042
        %10886 = vmatprep.subr.bf16.mxu0 %v8047
        %10887 = vmatpush1.bf16.msra.mxu0 %v8046
        %10888 = vmatprep.subr.bf16.mxu0 %v8051
        %10889 = vmatpush1.bf16.msra.mxu0 %v8050
        %10890 = vmatprep.subr.bf16.mxu0 %v8055
        %10891 = vmatpush1.bf16.msra.mxu0 %v8054
        %10892 = vmatprep.subr.bf16.mxu0 %v8059
        %10893 = vmatpush1.bf16.msra.mxu0 %v8058
        %10894 = vmatprep.subr.bf16.mxu0 %v8063
        %10895 = vmatpush1.bf16.msra.mxu0 %v8062
        %10896 = vmatprep.subr.bf16.mxu0 %v8067
        %10897 = vmatpush1.bf16.msra.mxu0 %v8066
        %10898 = vmatprep.subr.bf16.mxu0 %v8071
        %10899 = vmatpush1.bf16.msra.mxu0 %v8070
        %10900 = vmatprep.subr.bf16.mxu0 %v8075
        %10901 = vmatpush1.bf16.msra.mxu0 %v8074
        %10902 = vmatprep.subr.bf16.mxu0 %v8079
        %10903 = vmatpush1.bf16.msra.mxu0 %v8078
        %10904 = vmatprep.subr.bf16.mxu0 %v8083
        %10905 = vmatpush1.bf16.msra.mxu0 %v8082
        %10906 = vmatprep.subr.bf16.mxu0 %v8087
        %10907 = vmatpush1.bf16.msra.mxu0 %v8086
        %10908 = vmatprep.subr.bf16.mxu0 %v8091
        %10909 = vmatpush1.bf16.msra.mxu0 %v8090
        %10910 = vmatprep.subr.bf16.mxu0 %v8095
        %10911 = vmatpush1.bf16.msra.mxu0 %v8094
        %10912 = vmatprep.subr.bf16.mxu0 %v8099
        %10913 = vmatpush1.bf16.msra.mxu0 %v8098
        %10914 = vmatprep.subr.bf16.mxu0 %v8103
        %10915 = vmatpush1.bf16.msra.mxu0 %v8102
        %10916 = vmatprep.mubr.bf16.mxu0 %v1231
        %10917 = vmatmul.mubr.bf16.gmra.mrb[0].mxu0 %v1230
        %v10918 = vpop.f32.mrb[0].mxu0
        %v10919 = vadd.f32 %v10878, %v10918
        %v10920 = vpop.f32.mrb[0].mxu0
        %v10921 = vadd.f32 %v10880, %v10920
        %v10922 = vpop.f32.mrb[0].mxu0
        %v10923 = vpop.f32.mrb[0].mxu0
        %10924 = vdwg.mxu0
        %10925 = vmatprep.subr.bf16.mxu0 %v8107
        %10926 = vmatpush1.bf16.msra.mxu0 %v8106
        %10927 = vmatprep.subr.bf16.mxu0 %v8111
        %10928 = vmatpush1.bf16.msra.mxu0 %v8110
        %10929 = vmatprep.subr.bf16.mxu0 %v8115
        %10930 = vmatpush1.bf16.msra.mxu0 %v8114
        %10931 = vmatprep.subr.bf16.mxu0 %v8119
        %10932 = vmatpush1.bf16.msra.mxu0 %v8118
        %10933 = vmatprep.subr.bf16.mxu0 %v8123
        %10934 = vmatpush1.bf16.msra.mxu0 %v8122
        %10935 = vmatprep.subr.bf16.mxu0 %v8127
        %10936 = vmatpush1.bf16.msra.mxu0 %v8126
        %10937 = vmatprep.subr.bf16.mxu0 %v8131
        %10938 = vmatpush1.bf16.msra.mxu0 %v8130
        %10939 = vmatprep.subr.bf16.mxu0 %v8135
        %10940 = vmatpush1.bf16.msra.mxu0 %v8134
        %10941 = vmatprep.subr.bf16.mxu0 %v8139
        %10942 = vmatpush1.bf16.msra.mxu0 %v8138
        %10943 = vmatprep.subr.bf16.mxu0 %v8143
        %10944 = vmatpush1.bf16.msra.mxu0 %v8142
        %10945 = vmatprep.subr.bf16.mxu0 %v8147
        %10946 = vmatpush1.bf16.msra.mxu0 %v8146
        %10947 = vmatprep.subr.bf16.mxu0 %v8151
        %10948 = vmatpush1.bf16.msra.mxu0 %v8150
        %10949 = vmatprep.subr.bf16.mxu0 %v8155
        %10950 = vmatpush1.bf16.msra.mxu0 %v8154
        %10951 = vmatprep.subr.bf16.mxu0 %v8159
        %10952 = vmatpush1.bf16.msra.mxu0 %v8158
        %10953 = vmatprep.subr.bf16.mxu0 %v8163
        %10954 = vmatpush1.bf16.msra.mxu0 %v8162
        %10955 = vmatprep.subr.bf16.mxu0 %v8167
        %10956 = vmatpush1.bf16.msra.mxu0 %v8166
        %10957 = vmatprep.mubr.bf16.mxu0 %v1233
        %10958 = vmatmul.mubr.bf16.gmra.mrb[0].mxu0 %v1232
        %v10959 = vpop.f32.mrb[0].mxu0
        %v10960 = vadd.f32 %v10919, %v10959
        %v10961 = vpop.f32.mrb[0].mxu0
        %v10962 = vadd.f32 %v10921, %v10961
        %v10963 = vpop.f32.mrb[0].mxu0
        %v10964 = vpop.f32.mrb[0].mxu0
        %10965 = vdwg.mxu0
        %10966 = vmatprep.subr.bf16.mxu0 %v8171
        %10967 = vmatpush1.bf16.msra.mxu0 %v8170
        %10968 = vmatprep.subr.bf16.mxu0 %v8175
        %10969 = vmatpush1.bf16.msra.mxu0 %v8174
        %10970 = vmatprep.subr.bf16.mxu0 %v8179
        %10971 = vmatpush1.bf16.msra.mxu0 %v8178
        %10972 = vmatprep.subr.bf16.mxu0 %v8183
        %10973 = vmatpush1.bf16.msra.mxu0 %v8182
        %10974 = vmatprep.subr.bf16.mxu0 %v8187
        %10975 = vmatpush1.bf16.msra.mxu0 %v8186
        %10976 = vmatprep.subr.bf16.mxu0 %v8191
        %10977 = vmatpush1.bf16.msra.mxu0 %v8190
        %10978 = vmatprep.subr.bf16.mxu0 %v8195
        %10979 = vmatpush1.bf16.msra.mxu0 %v8194
        %10980 = vmatprep.subr.bf16.mxu0 %v8199
        %10981 = vmatpush1.bf16.msra.mxu0 %v8198
        %10982 = vmatprep.subr.bf16.mxu0 %v8203
        %10983 = vmatpush1.bf16.msra.mxu0 %v8202
        %10984 = vmatprep.subr.bf16.mxu0 %v8207
        %10985 = vmatpush1.bf16.msra.mxu0 %v8206
        %10986 = vmatprep.subr.bf16.mxu0 %v8211
        %10987 = vmatpush1.bf16.msra.mxu0 %v8210
        %10988 = vmatprep.subr.bf16.mxu0 %v8215
        %10989 = vmatpush1.bf16.msra.mxu0 %v8214
        %10990 = vmatprep.subr.bf16.mxu0 %v8219
        %10991 = vmatpush1.bf16.msra.mxu0 %v8218
        %10992 = vmatprep.subr.bf16.mxu0 %v8223
        %10993 = vmatpush1.bf16.msra.mxu0 %v8222
        %10994 = vmatprep.subr.bf16.mxu0 %v8227
        %10995 = vmatpush1.bf16.msra.mxu0 %v8226
        %10996 = vmatprep.subr.bf16.mxu0 %v8231
        %10997 = vmatpush1.bf16.msra.mxu0 %v8230
        %10998 = vmatprep.mubr.bf16.mxu0 %v1235
        %10999 = vmatmul.mubr.bf16.gmra.mrb[0].mxu0 %v1234
        %v11000 = vpop.f32.mrb[0].mxu0
        %v11001 = vadd.f32 %v10960, %v11000
        %v11002 = vpop.f32.mrb[0].mxu0
        %v11003 = vadd.f32 %v10962, %v11002
        %v11004 = vpop.f32.mrb[0].mxu0
        %v11005 = vpop.f32.mrb[0].mxu0
        %11006 = vdwg.mxu0
        %11007 = vmatprep.subr.bf16.mxu0 %v8235
        %11008 = vmatpush1.bf16.msra.mxu0 %v8234
        %11009 = vmatprep.subr.bf16.mxu0 %v8239
        %11010 = vmatpush1.bf16.msra.mxu0 %v8238
        %11011 = vmatprep.subr.bf16.mxu0 %v8243
        %11012 = vmatpush1.bf16.msra.mxu0 %v8242
        %11013 = vmatprep.subr.bf16.mxu0 %v8247
        %11014 = vmatpush1.bf16.msra.mxu0 %v8246
        %11015 = vmatprep.subr.bf16.mxu0 %v8251
        %11016 = vmatpush1.bf16.msra.mxu0 %v8250
        %11017 = vmatprep.subr.bf16.mxu0 %v8255
        %11018 = vmatpush1.bf16.msra.mxu0 %v8254
        %11019 = vmatprep.subr.bf16.mxu0 %v8259
        %11020 = vmatpush1.bf16.msra.mxu0 %v8258
        %11021 = vmatprep.subr.bf16.mxu0 %v8263
        %11022 = vmatpush1.bf16.msra.mxu0 %v8262
        %11023 = vmatprep.subr.bf16.mxu0 %v8267
        %11024 = vmatpush1.bf16.msra.mxu0 %v8266
        %11025 = vmatprep.subr.bf16.mxu0 %v8271
        %11026 = vmatpush1.bf16.msra.mxu0 %v8270
        %11027 = vmatprep.subr.bf16.mxu0 %v8275
        %11028 = vmatpush1.bf16.msra.mxu0 %v8274
        %11029 = vmatprep.subr.bf16.mxu0 %v8279
        %11030 = vmatpush1.bf16.msra.mxu0 %v8278
        %11031 = vmatprep.subr.bf16.mxu0 %v8283
        %11032 = vmatpush1.bf16.msra.mxu0 %v8282
        %11033 = vmatprep.subr.bf16.mxu0 %v8287
        %11034 = vmatpush1.bf16.msra.mxu0 %v8286
        %11035 = vmatprep.subr.bf16.mxu0 %v8291
        %11036 = vmatpush1.bf16.msra.mxu0 %v8290
        %11037 = vmatprep.subr.bf16.mxu0 %v8295
        %11038 = vmatpush1.bf16.msra.mxu0 %v8294
        %11039 = vmatprep.mubr.bf16.mxu0 %v1237
        %11040 = vmatmul.mubr.bf16.gmra.mrb[0].mxu0 %v1236
        %v11041 = vpop.f32.mrb[0].mxu0
        %v11042 = vadd.f32 %v11001, %v11041
        %v11043 = vpop.f32.mrb[0].mxu0
        %v11044 = vadd.f32 %v11003, %v11043
        %v11045 = vpop.f32.mrb[0].mxu0
        %v11046 = vpop.f32.mrb[0].mxu0
        %11047 = vdwg.mxu0
        %11048 = vmatprep.subr.bf16.mxu0 %v8299
        %11049 = vmatpush1.bf16.msra.mxu0 %v8298
        %11050 = vmatprep.subr.bf16.mxu0 %v8303
        %11051 = vmatpush1.bf16.msra.mxu0 %v8302
        %11052 = vmatprep.subr.bf16.mxu0 %v8307
        %11053 = vmatpush1.bf16.msra.mxu0 %v8306
        %11054 = vmatprep.subr.bf16.mxu0 %v8311
        %11055 = vmatpush1.bf16.msra.mxu0 %v8310
        %11056 = vmatprep.subr.bf16.mxu0 %v8315
        %11057 = vmatpush1.bf16.msra.mxu0 %v8314
        %11058 = vmatprep.subr.bf16.mxu0 %v8319
        %11059 = vmatpush1.bf16.msra.mxu0 %v8318
        %11060 = vmatprep.subr.bf16.mxu0 %v8323
        %11061 = vmatpush1.bf16.msra.mxu0 %v8322
        %11062 = vmatprep.subr.bf16.mxu0 %v8327
        %11063 = vmatpush1.bf16.msra.mxu0 %v8326
        %11064 = vmatprep.subr.bf16.mxu0 %v8331
        %11065 = vmatpush1.bf16.msra.mxu0 %v8330
        %11066 = vmatprep.subr.bf16.mxu0 %v8335
        %11067 = vmatpush1.bf16.msra.mxu0 %v8334
        %11068 = vmatprep.subr.bf16.mxu0 %v8339
        %11069 = vmatpush1.bf16.msra.mxu0 %v8338
        %11070 = vmatprep.subr.bf16.mxu0 %v8343
        %11071 = vmatpush1.bf16.msra.mxu0 %v8342
        %11072 = vmatprep.subr.bf16.mxu0 %v8347
        %11073 = vmatpush1.bf16.msra.mxu0 %v8346
        %11074 = vmatprep.subr.bf16.mxu0 %v8351
        %11075 = vmatpush1.bf16.msra.mxu0 %v8350
        %11076 = vmatprep.subr.bf16.mxu0 %v8355
        %11077 = vmatpush1.bf16.msra.mxu0 %v8354
        %11078 = vmatprep.subr.bf16.mxu0 %v8359
        %11079 = vmatpush1.bf16.msra.mxu0 %v8358
        %11080 = vmatprep.mubr.bf16.mxu0 %v1239
        %11081 = vmatmul.mubr.bf16.gmra.mrb[0].mxu0 %v1238
        %v11082 = vpop.f32.mrb[0].mxu0
        %v11083 = vadd.f32 %v11042, %v11082
        %v11084 = vpop.f32.mrb[0].mxu0
        %v11085 = vadd.f32 %v11044, %v11084
        %v11086 = vpop.f32.mrb[0].mxu0
        %v11087 = vpop.f32.mrb[0].mxu0
        %11088 = vdwg.mxu0
        %11089 = vmatprep.subr.bf16.mxu0 %v8363
        %11090 = vmatpush1.bf16.msra.mxu0 %v8362
        %11091 = vmatprep.subr.bf16.mxu0 %v8367
        %11092 = vmatpush1.bf16.msra.mxu0 %v8366
        %11093 = vmatprep.subr.bf16.mxu0 %v8371
        %11094 = vmatpush1.bf16.msra.mxu0 %v8370
        %11095 = vmatprep.subr.bf16.mxu0 %v8375
        %11096 = vmatpush1.bf16.msra.mxu0 %v8374
        %11097 = vmatprep.subr.bf16.mxu0 %v8379
        %11098 = vmatpush1.bf16.msra.mxu0 %v8378
        %11099 = vmatprep.subr.bf16.mxu0 %v8383
        %11100 = vmatpush1.bf16.msra.mxu0 %v8382
        %11101 = vmatprep.subr.bf16.mxu0 %v8387
        %11102 = vmatpush1.bf16.msra.mxu0 %v8386
        %11103 = vmatprep.subr.bf16.mxu0 %v8391
        %11104 = vmatpush1.bf16.msra.mxu0 %v8390
        %11105 = vmatprep.subr.bf16.mxu0 %v8395
        %11106 = vmatpush1.bf16.msra.mxu0 %v8394
        %11107 = vmatprep.subr.bf16.mxu0 %v8399
        %11108 = vmatpush1.bf16.msra.mxu0 %v8398
        %11109 = vmatprep.subr.bf16.mxu0 %v8403
        %11110 = vmatpush1.bf16.msra.mxu0 %v8402
        %11111 = vmatprep.subr.bf16.mxu0 %v8407
        %11112 = vmatpush1.bf16.msra.mxu0 %v8406
        %11113 = vmatprep.subr.bf16.mxu0 %v8411
        %11114 = vmatpush1.bf16.msra.mxu0 %v8410
        %11115 = vmatprep.subr.bf16.mxu0 %v8415
        %11116 = vmatpush1.bf16.msra.mxu0 %v8414
        %11117 = vmatprep.subr.bf16.mxu0 %v8419
        %11118 = vmatpush1.bf16.msra.mxu0 %v8418
        %11119 = vmatprep.subr.bf16.mxu0 %v8423
        %11120 = vmatpush1.bf16.msra.mxu0 %v8422
        %11121 = vmatprep.mubr.bf16.mxu0 %v1241
        %11122 = vmatmul.mubr.bf16.gmra.mrb[0].mxu0 %v1240
        %v11123 = vpop.f32.mrb[0].mxu0
        %v11124 = vadd.f32 %v11083, %v11123
        %v11125 = vpop.f32.mrb[0].mxu0
        %v11126 = vadd.f32 %v11085, %v11125
        %v11127 = vpop.f32.mrb[0].mxu0
        %v11128 = vpop.f32.mrb[0].mxu0
        %11129 = vdwg.mxu0
        %11130 = vmatprep.subr.bf16.mxu0 %v8427
        %11131 = vmatpush1.bf16.msra.mxu0 %v8426
        %11132 = vmatprep.subr.bf16.mxu0 %v8431
        %11133 = vmatpush1.bf16.msra.mxu0 %v8430
        %11134 = vmatprep.subr.bf16.mxu0 %v8435
        %11135 = vmatpush1.bf16.msra.mxu0 %v8434
        %11136 = vmatprep.subr.bf16.mxu0 %v8439
        %11137 = vmatpush1.bf16.msra.mxu0 %v8438
        %11138 = vmatprep.subr.bf16.mxu0 %v8443
        %11139 = vmatpush1.bf16.msra.mxu0 %v8442
        %11140 = vmatprep.subr.bf16.mxu0 %v8447
        %11141 = vmatpush1.bf16.msra.mxu0 %v8446
        %11142 = vmatprep.subr.bf16.mxu0 %v8451
        %11143 = vmatpush1.bf16.msra.mxu0 %v8450
        %11144 = vmatprep.subr.bf16.mxu0 %v8455
        %11145 = vmatpush1.bf16.msra.mxu0 %v8454
        %11146 = vmatprep.subr.bf16.mxu0 %v8459
        %11147 = vmatpush1.bf16.msra.mxu0 %v8458
        %11148 = vmatprep.subr.bf16.mxu0 %v8463
        %11149 = vmatpush1.bf16.msra.mxu0 %v8462
        %11150 = vmatprep.subr.bf16.mxu0 %v8467
        %11151 = vmatpush1.bf16.msra.mxu0 %v8466
        %11152 = vmatprep.subr.bf16.mxu0 %v8471
        %11153 = vmatpush1.bf16.msra.mxu0 %v8470
        %11154 = vmatprep.subr.bf16.mxu0 %v8475
        %11155 = vmatpush1.bf16.msra.mxu0 %v8474
        %11156 = vmatprep.subr.bf16.mxu0 %v8479
        %11157 = vmatpush1.bf16.msra.mxu0 %v8478
        %11158 = vmatprep.subr.bf16.mxu0 %v8483
        %11159 = vmatpush1.bf16.msra.mxu0 %v8482
        %11160 = vmatprep.subr.bf16.mxu0 %v8487
        %11161 = vmatpush1.bf16.msra.mxu0 %v8486
        %11162 = vmatprep.mubr.bf16.mxu0 %v1243
        %11163 = vmatmul.mubr.bf16.gmra.mrb[0].mxu0 %v1242
        %v11164 = vpop.f32.mrb[0].mxu0
        %v11165 = vadd.f32 %v11124, %v11164
        %v11166 = vpop.f32.mrb[0].mxu0
        %v11167 = vadd.f32 %v11126, %v11166
        %v11168 = vpop.f32.mrb[0].mxu0
        %v11169 = vpop.f32.mrb[0].mxu0
        %11170 = vdwg.mxu0
        %11171 = vmatprep.subr.bf16.mxu0 %v8491
        %11172 = vmatpush1.bf16.msra.mxu0 %v8490
        %11173 = vmatprep.subr.bf16.mxu0 %v8495
        %11174 = vmatpush1.bf16.msra.mxu0 %v8494
        %11175 = vmatprep.subr.bf16.mxu0 %v8499
        %11176 = vmatpush1.bf16.msra.mxu0 %v8498
        %11177 = vmatprep.subr.bf16.mxu0 %v8503
        %11178 = vmatpush1.bf16.msra.mxu0 %v8502
        %11179 = vmatprep.subr.bf16.mxu0 %v8507
        %11180 = vmatpush1.bf16.msra.mxu0 %v8506
        %11181 = vmatprep.subr.bf16.mxu0 %v8511
        %11182 = vmatpush1.bf16.msra.mxu0 %v8510
        %11183 = vmatprep.subr.bf16.mxu0 %v8515
        %11184 = vmatpush1.bf16.msra.mxu0 %v8514
        %11185 = vmatprep.subr.bf16.mxu0 %v8519
        %11186 = vmatpush1.bf16.msra.mxu0 %v8518
        %11187 = vmatprep.subr.bf16.mxu0 %v8523
        %11188 = vmatpush1.bf16.msra.mxu0 %v8522
        %11189 = vmatprep.subr.bf16.mxu0 %v8527
        %11190 = vmatpush1.bf16.msra.mxu0 %v8526
        %11191 = vmatprep.subr.bf16.mxu0 %v8531
        %11192 = vmatpush1.bf16.msra.mxu0 %v8530
        %11193 = vmatprep.subr.bf16.mxu0 %v8535
        %11194 = vmatpush1.bf16.msra.mxu0 %v8534
        %11195 = vmatprep.subr.bf16.mxu0 %v8539
        %11196 = vmatpush1.bf16.msra.mxu0 %v8538
        %11197 = vmatprep.subr.bf16.mxu0 %v8543
        %11198 = vmatpush1.bf16.msra.mxu0 %v8542
        %11199 = vmatprep.subr.bf16.mxu0 %v8547
        %11200 = vmatpush1.bf16.msra.mxu0 %v8546
        %11201 = vmatprep.subr.bf16.mxu0 %v8551
        %11202 = vmatpush1.bf16.msra.mxu0 %v8550
        %11203 = vmatprep.mubr.bf16.mxu0 %v1245
        %11204 = vmatmul.mubr.bf16.gmra.mrb[0].mxu0 %v1244
        %v11205 = vpop.f32.mrb[0].mxu0
        %v11206 = vadd.f32 %v11165, %v11205
        %v11207 = vpop.f32.mrb[0].mxu0
        %v11208 = vadd.f32 %v11167, %v11207
        %v11209 = vpop.f32.mrb[0].mxu0
        %v11210 = vpop.f32.mrb[0].mxu0
        %11211 = vdwg.mxu0
        %11212 = vmatprep.subr.bf16.mxu0 %v8555
        %11213 = vmatpush1.bf16.msra.mxu0 %v8554
        %11214 = vmatprep.subr.bf16.mxu0 %v8559
        %11215 = vmatpush1.bf16.msra.mxu0 %v8558
        %11216 = vmatprep.subr.bf16.mxu0 %v8563
        %11217 = vmatpush1.bf16.msra.mxu0 %v8562
        %11218 = vmatprep.subr.bf16.mxu0 %v8567
        %11219 = vmatpush1.bf16.msra.mxu0 %v8566
        %11220 = vmatprep.subr.bf16.mxu0 %v8571
        %11221 = vmatpush1.bf16.msra.mxu0 %v8570
        %11222 = vmatprep.subr.bf16.mxu0 %v8575
        %11223 = vmatpush1.bf16.msra.mxu0 %v8574
        %11224 = vmatprep.subr.bf16.mxu0 %v8579
        %11225 = vmatpush1.bf16.msra.mxu0 %v8578
        %11226 = vmatprep.subr.bf16.mxu0 %v8583
        %11227 = vmatpush1.bf16.msra.mxu0 %v8582
        %11228 = vmatprep.subr.bf16.mxu0 %v8587
        %11229 = vmatpush1.bf16.msra.mxu0 %v8586
        %11230 = vmatprep.subr.bf16.mxu0 %v8591
        %11231 = vmatpush1.bf16.msra.mxu0 %v8590
        %11232 = vmatprep.subr.bf16.mxu0 %v8595
        %11233 = vmatpush1.bf16.msra.mxu0 %v8594
        %11234 = vmatprep.subr.bf16.mxu0 %v8599
        %11235 = vmatpush1.bf16.msra.mxu0 %v8598
        %11236 = vmatprep.subr.bf16.mxu0 %v8603
        %11237 = vmatpush1.bf16.msra.mxu0 %v8602
        %11238 = vmatprep.subr.bf16.mxu0 %v8607
        %11239 = vmatpush1.bf16.msra.mxu0 %v8606
        %11240 = vmatprep.subr.bf16.mxu0 %v8611
        %11241 = vmatpush1.bf16.msra.mxu0 %v8610
        %11242 = vmatprep.subr.bf16.mxu0 %v8615
        %11243 = vmatpush1.bf16.msra.mxu0 %v8614
        %11244 = vmatprep.mubr.bf16.mxu0 %v1247
        %11245 = vmatmul.mubr.bf16.gmra.mrb[0].mxu0 %v1246
        %v11246 = vpop.f32.mrb[0].mxu0
        %v11247 = vadd.f32 %v11206, %v11246
        %v11248 = vpop.f32.mrb[0].mxu0
        %v11249 = vadd.f32 %v11208, %v11248
        %v11250 = vpop.f32.mrb[0].mxu0
        %v11251 = vpop.f32.mrb[0].mxu0
        %11252 = vdwg.mxu0
        %11253 = vmatprep.subr.bf16.mxu0 %v8619
        %11254 = vmatpush1.bf16.msra.mxu0 %v8618
        %11255 = vmatprep.subr.bf16.mxu0 %v8623
        %11256 = vmatpush1.bf16.msra.mxu0 %v8622
        %11257 = vmatprep.subr.bf16.mxu0 %v8627
        %11258 = vmatpush1.bf16.msra.mxu0 %v8626
        %11259 = vmatprep.subr.bf16.mxu0 %v8631
        %11260 = vmatpush1.bf16.msra.mxu0 %v8630
        %11261 = vmatprep.subr.bf16.mxu0 %v8635
        %11262 = vmatpush1.bf16.msra.mxu0 %v8634
        %11263 = vmatprep.subr.bf16.mxu0 %v8639
        %11264 = vmatpush1.bf16.msra.mxu0 %v8638
        %11265 = vmatprep.subr.bf16.mxu0 %v8643
        %11266 = vmatpush1.bf16.msra.mxu0 %v8642
        %11267 = vmatprep.subr.bf16.mxu0 %v8647
        %11268 = vmatpush1.bf16.msra.mxu0 %v8646
        %11269 = vmatprep.subr.bf16.mxu0 %v8651
        %11270 = vmatpush1.bf16.msra.mxu0 %v8650
        %11271 = vmatprep.subr.bf16.mxu0 %v8655
        %11272 = vmatpush1.bf16.msra.mxu0 %v8654
        %11273 = vmatprep.subr.bf16.mxu0 %v8659
        %11274 = vmatpush1.bf16.msra.mxu0 %v8658
        %11275 = vmatprep.subr.bf16.mxu0 %v8663
        %11276 = vmatpush1.bf16.msra.mxu0 %v8662
        %11277 = vmatprep.subr.bf16.mxu0 %v8667
        %11278 = vmatpush1.bf16.msra.mxu0 %v8666
        %11279 = vmatprep.subr.bf16.mxu0 %v8671
        %11280 = vmatpush1.bf16.msra.mxu0 %v8670
        %11281 = vmatprep.subr.bf16.mxu0 %v8675
        %11282 = vmatpush1.bf16.msra.mxu0 %v8674
        %11283 = vmatprep.subr.bf16.mxu0 %v8679
        %11284 = vmatpush1.bf16.msra.mxu0 %v8678
        %11285 = vmatprep.mubr.bf16.mxu0 %v1249
        %11286 = vmatmul.mubr.bf16.gmra.mrb[0].mxu0 %v1248
        %v11287 = vpop.f32.mrb[0].mxu0
        %v11288 = vadd.f32 %v11247, %v11287
        %v11289 = vpop.f32.mrb[0].mxu0
        %v11290 = vadd.f32 %v11249, %v11289
        %v11291 = vpop.f32.mrb[0].mxu0
        %v11292 = vpop.f32.mrb[0].mxu0
        %11293 = vdwg.mxu0
        %11294 = vmatprep.subr.bf16.mxu0 %v8683
        %11295 = vmatpush1.bf16.msra.mxu0 %v8682
        %11296 = vmatprep.subr.bf16.mxu0 %v8687
        %11297 = vmatpush1.bf16.msra.mxu0 %v8686
        %11298 = vmatprep.subr.bf16.mxu0 %v8691
        %11299 = vmatpush1.bf16.msra.mxu0 %v8690
        %11300 = vmatprep.subr.bf16.mxu0 %v8695
        %11301 = vmatpush1.bf16.msra.mxu0 %v8694
        %11302 = vmatprep.subr.bf16.mxu0 %v8699
        %11303 = vmatpush1.bf16.msra.mxu0 %v8698
        %11304 = vmatprep.subr.bf16.mxu0 %v8703
        %11305 = vmatpush1.bf16.msra.mxu0 %v8702
        %11306 = vmatprep.subr.bf16.mxu0 %v8707
        %11307 = vmatpush1.bf16.msra.mxu0 %v8706
        %11308 = vmatprep.subr.bf16.mxu0 %v8711
        %11309 = vmatpush1.bf16.msra.mxu0 %v8710
        %11310 = vmatprep.subr.bf16.mxu0 %v8715
        %11311 = vmatpush1.bf16.msra.mxu0 %v8714
        %11312 = vmatprep.subr.bf16.mxu0 %v8719
        %11313 = vmatpush1.bf16.msra.mxu0 %v8718
        %11314 = vmatprep.subr.bf16.mxu0 %v8723
        %11315 = vmatpush1.bf16.msra.mxu0 %v8722
        %11316 = vmatprep.subr.bf16.mxu0 %v8727
        %11317 = vmatpush1.bf16.msra.mxu0 %v8726
        %11318 = vmatprep.subr.bf16.mxu0 %v8731
        %11319 = vmatpush1.bf16.msra.mxu0 %v8730
        %11320 = vmatprep.subr.bf16.mxu0 %v8735
        %11321 = vmatpush1.bf16.msra.mxu0 %v8734
        %11322 = vmatprep.subr.bf16.mxu0 %v8739
        %11323 = vmatpush1.bf16.msra.mxu0 %v8738
        %11324 = vmatprep.subr.bf16.mxu0 %v8743
        %11325 = vmatpush1.bf16.msra.mxu0 %v8742
        %11326 = vmatprep.mubr.bf16.mxu0 %v1251
        %11327 = vmatmul.mubr.bf16.gmra.mrb[0].mxu0 %v1250
        %v11328 = vpop.f32.mrb[0].mxu0
        %v11329 = vadd.f32 %v11288, %v11328
        %v11330 = vpop.f32.mrb[0].mxu0
        %v11331 = vadd.f32 %v11290, %v11330
        %v11332 = vpop.f32.mrb[0].mxu0
        %v11333 = vpop.f32.mrb[0].mxu0
        %11334 = vdwg.mxu0
        %11335 = vmatprep.subr.bf16.mxu0 %v8747
        %11336 = vmatpush1.bf16.msra.mxu0 %v8746
        %11337 = vmatprep.subr.bf16.mxu0 %v8751
        %11338 = vmatpush1.bf16.msra.mxu0 %v8750
        %11339 = vmatprep.subr.bf16.mxu0 %v8755
        %11340 = vmatpush1.bf16.msra.mxu0 %v8754
        %11341 = vmatprep.subr.bf16.mxu0 %v8759
        %11342 = vmatpush1.bf16.msra.mxu0 %v8758
        %11343 = vmatprep.subr.bf16.mxu0 %v8763
        %11344 = vmatpush1.bf16.msra.mxu0 %v8762
        %11345 = vmatprep.subr.bf16.mxu0 %v8767
        %11346 = vmatpush1.bf16.msra.mxu0 %v8766
        %11347 = vmatprep.subr.bf16.mxu0 %v8771
        %11348 = vmatpush1.bf16.msra.mxu0 %v8770
        %11349 = vmatprep.subr.bf16.mxu0 %v8775
        %11350 = vmatpush1.bf16.msra.mxu0 %v8774
        %11351 = vmatprep.subr.bf16.mxu0 %v8779
        %11352 = vmatpush1.bf16.msra.mxu0 %v8778
        %11353 = vmatprep.subr.bf16.mxu0 %v8783
        %11354 = vmatpush1.bf16.msra.mxu0 %v8782
        %11355 = vmatprep.subr.bf16.mxu0 %v8787
        %11356 = vmatpush1.bf16.msra.mxu0 %v8786
        %11357 = vmatprep.subr.bf16.mxu0 %v8791
        %11358 = vmatpush1.bf16.msra.mxu0 %v8790
        %11359 = vmatprep.subr.bf16.mxu0 %v8795
        %11360 = vmatpush1.bf16.msra.mxu0 %v8794
        %11361 = vmatprep.subr.bf16.mxu0 %v8799
        %11362 = vmatpush1.bf16.msra.mxu0 %v8798
        %11363 = vmatprep.subr.bf16.mxu0 %v8803
        %11364 = vmatpush1.bf16.msra.mxu0 %v8802
        %11365 = vmatprep.subr.bf16.mxu0 %v8807
        %11366 = vmatpush1.bf16.msra.mxu0 %v8806
        %11367 = vmatprep.mubr.bf16.mxu0 %v1253
        %11368 = vmatmul.mubr.bf16.gmra.mrb[0].mxu0 %v1252
        %v11369 = vpop.f32.mrb[0].mxu0
        %v11370 = vadd.f32 %v11329, %v11369
        %v11371 = vpop.f32.mrb[0].mxu0
        %v11372 = vadd.f32 %v11331, %v11371
        %v11373 = vpop.f32.mrb[0].mxu0
        %v11374 = vpop.f32.mrb[0].mxu0
        %11375 = vdwg.mxu0
        %11376 = vmatprep.subr.bf16.mxu0 %v8811
        %11377 = vmatpush1.bf16.msra.mxu0 %v8810
        %11378 = vmatprep.subr.bf16.mxu0 %v8815
        %11379 = vmatpush1.bf16.msra.mxu0 %v8814
        %11380 = vmatprep.subr.bf16.mxu0 %v8819
        %11381 = vmatpush1.bf16.msra.mxu0 %v8818
        %11382 = vmatprep.subr.bf16.mxu0 %v8823
        %11383 = vmatpush1.bf16.msra.mxu0 %v8822
        %11384 = vmatprep.subr.bf16.mxu0 %v8827
        %11385 = vmatpush1.bf16.msra.mxu0 %v8826
        %11386 = vmatprep.subr.bf16.mxu0 %v8831
        %11387 = vmatpush1.bf16.msra.mxu0 %v8830
        %11388 = vmatprep.subr.bf16.mxu0 %v8835
        %11389 = vmatpush1.bf16.msra.mxu0 %v8834
        %11390 = vmatprep.subr.bf16.mxu0 %v8839
        %11391 = vmatpush1.bf16.msra.mxu0 %v8838
        %11392 = vmatprep.subr.bf16.mxu0 %v8843
        %11393 = vmatpush1.bf16.msra.mxu0 %v8842
        %11394 = vmatprep.subr.bf16.mxu0 %v8847
        %11395 = vmatpush1.bf16.msra.mxu0 %v8846
        %11396 = vmatprep.subr.bf16.mxu0 %v8851
        %11397 = vmatpush1.bf16.msra.mxu0 %v8850
        %11398 = vmatprep.subr.bf16.mxu0 %v8855
        %11399 = vmatpush1.bf16.msra.mxu0 %v8854
        %11400 = vmatprep.subr.bf16.mxu0 %v8859
        %11401 = vmatpush1.bf16.msra.mxu0 %v8858
        %11402 = vmatprep.subr.bf16.mxu0 %v8863
        %11403 = vmatpush1.bf16.msra.mxu0 %v8862
        %11404 = vmatprep.subr.bf16.mxu0 %v8867
        %11405 = vmatpush1.bf16.msra.mxu0 %v8866
        %11406 = vmatprep.subr.bf16.mxu0 %v8871
        %11407 = vmatpush1.bf16.msra.mxu0 %v8870
        %11408 = vmatprep.mubr.bf16.mxu0 %v1255
        %11409 = vmatmul.mubr.bf16.gmra.mrb[0].mxu0 %v1254
        %v11410 = vpop.f32.mrb[0].mxu0
        %v11411 = vadd.f32 %v11370, %v11410
        %v11412 = vpop.f32.mrb[0].mxu0
        %v11413 = vadd.f32 %v11372, %v11412
        %v11414 = vpop.f32.mrb[0].mxu0
        %v11415 = vpop.f32.mrb[0].mxu0
        %11416 = vdwg.mxu0
        %11417 = vmatprep.subr.bf16.mxu0 %v8875
        %11418 = vmatpush1.bf16.msra.mxu0 %v8874
        %11419 = vmatprep.subr.bf16.mxu0 %v8879
        %11420 = vmatpush1.bf16.msra.mxu0 %v8878
        %11421 = vmatprep.subr.bf16.mxu0 %v8883
        %11422 = vmatpush1.bf16.msra.mxu0 %v8882
        %11423 = vmatprep.subr.bf16.mxu0 %v8887
        %11424 = vmatpush1.bf16.msra.mxu0 %v8886
        %11425 = vmatprep.subr.bf16.mxu0 %v8891
        %11426 = vmatpush1.bf16.msra.mxu0 %v8890
        %11427 = vmatprep.subr.bf16.mxu0 %v8895
        %11428 = vmatpush1.bf16.msra.mxu0 %v8894
        %11429 = vmatprep.subr.bf16.mxu0 %v8899
        %11430 = vmatpush1.bf16.msra.mxu0 %v8898
        %11431 = vmatprep.subr.bf16.mxu0 %v8903
        %11432 = vmatpush1.bf16.msra.mxu0 %v8902
        %11433 = vmatprep.subr.bf16.mxu0 %v8907
        %11434 = vmatpush1.bf16.msra.mxu0 %v8906
        %11435 = vmatprep.subr.bf16.mxu0 %v8911
        %11436 = vmatpush1.bf16.msra.mxu0 %v8910
        %11437 = vmatprep.subr.bf16.mxu0 %v8915
        %11438 = vmatpush1.bf16.msra.mxu0 %v8914
        %11439 = vmatprep.subr.bf16.mxu0 %v8919
        %11440 = vmatpush1.bf16.msra.mxu0 %v8918
        %11441 = vmatprep.subr.bf16.mxu0 %v8923
        %11442 = vmatpush1.bf16.msra.mxu0 %v8922
        %11443 = vmatprep.subr.bf16.mxu0 %v8927
        %11444 = vmatpush1.bf16.msra.mxu0 %v8926
        %11445 = vmatprep.subr.bf16.mxu0 %v8931
        %11446 = vmatpush1.bf16.msra.mxu0 %v8930
        %11447 = vmatprep.subr.bf16.mxu0 %v8935
        %11448 = vmatpush1.bf16.msra.mxu0 %v8934
        %11449 = vmatprep.mubr.bf16.mxu0 %v1257
        %11450 = vmatmul.mubr.bf16.gmra.mrb[0].mxu0 %v1256
        %v11451 = vpop.f32.mrb[0].mxu0
        %v11452 = vadd.f32 %v11411, %v11451
        %v11453 = vpop.f32.mrb[0].mxu0
        %v11454 = vadd.f32 %v11413, %v11453
        %v11455 = vpop.f32.mrb[0].mxu0
        %v11456 = vpop.f32.mrb[0].mxu0
        %11457 = vdwg.mxu0
        %11458 = vmatprep.subr.bf16.mxu0 %v7405
        %11459 = vmatpush1.bf16.msra.mxu0 %v7404
        %11460 = vmatprep.subr.bf16.mxu0 %v7409
        %11461 = vmatpush1.bf16.msra.mxu0 %v7408
        %11462 = vmatprep.subr.bf16.mxu0 %v7413
        %11463 = vmatpush1.bf16.msra.mxu0 %v7412
        %11464 = vmatprep.subr.bf16.mxu0 %v7417
        %11465 = vmatpush1.bf16.msra.mxu0 %v7416
        %11466 = vmatprep.subr.bf16.mxu0 %v7421
        %11467 = vmatpush1.bf16.msra.mxu0 %v7420
        %11468 = vmatprep.subr.bf16.mxu0 %v7425
        %11469 = vmatpush1.bf16.msra.mxu0 %v7424
        %11470 = vmatprep.subr.bf16.mxu0 %v7429
        %11471 = vmatpush1.bf16.msra.mxu0 %v7428
        %11472 = vmatprep.subr.bf16.mxu0 %v7433
        %11473 = vmatpush1.bf16.msra.mxu0 %v7432
        %11474 = vmatprep.subr.bf16.mxu0 %v7437
        %11475 = vmatpush1.bf16.msra.mxu0 %v7436
        %11476 = vmatprep.subr.bf16.mxu0 %v7441
        %11477 = vmatpush1.bf16.msra.mxu0 %v7440
        %11478 = vmatprep.subr.bf16.mxu0 %v7445
        %11479 = vmatpush1.bf16.msra.mxu0 %v7444
        %11480 = vmatprep.subr.bf16.mxu0 %v7449
        %11481 = vmatpush1.bf16.msra.mxu0 %v7448
        %11482 = vmatprep.subr.bf16.mxu0 %v7453
        %11483 = vmatpush1.bf16.msra.mxu0 %v7452
        %11484 = vmatprep.subr.bf16.mxu0 %v7457
        %11485 = vmatpush1.bf16.msra.mxu0 %v7456
        %11486 = vmatprep.subr.bf16.mxu0 %v7461
        %11487 = vmatpush1.bf16.msra.mxu0 %v7460
        %11488 = vmatprep.subr.bf16.mxu0 %v7465
        %11489 = vmatpush1.bf16.msra.mxu0 %v7464
        %11490 = vmatprep.mubr.bf16.mxu0 %v1211
        %11491 = vmatmul.mubr.bf16.gmra.mrb[0].mxu0 %v1210
        %v11492 = vpop.f32.mrb[0].mxu0
        %v11493 = vadd.f32 0.0, %v11492
        %v11494 = vpop.f32.mrb[0].mxu0
        %v11495 = vadd.f32 0.0, %v11494
        %v11496 = vpop.f32.mrb[0].mxu0
        %v11497 = vpop.f32.mrb[0].mxu0
        %11498 = vdwg.mxu0
        %11499 = vmatprep.subr.bf16.mxu0 %v7469
        %11500 = vmatpush1.bf16.msra.mxu0 %v7468
        %11501 = vmatprep.subr.bf16.mxu0 %v7473
        %11502 = vmatpush1.bf16.msra.mxu0 %v7472
        %11503 = vmatprep.subr.bf16.mxu0 %v7477
        %11504 = vmatpush1.bf16.msra.mxu0 %v7476
        %11505 = vmatprep.subr.bf16.mxu0 %v7481
        %11506 = vmatpush1.bf16.msra.mxu0 %v7480
        %11507 = vmatprep.subr.bf16.mxu0 %v7485
        %11508 = vmatpush1.bf16.msra.mxu0 %v7484
        %11509 = vmatprep.subr.bf16.mxu0 %v7489
        %11510 = vmatpush1.bf16.msra.mxu0 %v7488
        %11511 = vmatprep.subr.bf16.mxu0 %v7493
        %11512 = vmatpush1.bf16.msra.mxu0 %v7492
        %11513 = vmatprep.subr.bf16.mxu0 %v7497
        %11514 = vmatpush1.bf16.msra.mxu0 %v7496
        %11515 = vmatprep.subr.bf16.mxu0 %v7501
        %11516 = vmatpush1.bf16.msra.mxu0 %v7500
        %11517 = vmatprep.subr.bf16.mxu0 %v7505
        %11518 = vmatpush1.bf16.msra.mxu0 %v7504
        %11519 = vmatprep.subr.bf16.mxu0 %v7509
        %11520 = vmatpush1.bf16.msra.mxu0 %v7508
        %11521 = vmatprep.subr.bf16.mxu0 %v7513
        %11522 = vmatpush1.bf16.msra.mxu0 %v7512
        %11523 = vmatprep.subr.bf16.mxu0 %v7517
        %11524 = vmatpush1.bf16.msra.mxu0 %v7516
        %11525 = vmatprep.subr.bf16.mxu0 %v7521
        %11526 = vmatpush1.bf16.msra.mxu0 %v7520
        %11527 = vmatprep.subr.bf16.mxu0 %v7525
        %11528 = vmatpush1.bf16.msra.mxu0 %v7524
        %11529 = vmatprep.subr.bf16.mxu0 %v7529
        %11530 = vmatpush1.bf16.msra.mxu0 %v7528
        %11531 = vmatprep.mubr.bf16.mxu0 %v1213
        %11532 = vmatmul.mubr.bf16.gmra.mrb[0].mxu0 %v1212
        %v11533 = vpop.f32.mrb[0].mxu0
        %v11534 = vadd.f32 %v11493, %v11533
        %v11535 = vpop.f32.mrb[0].mxu0
        %v11536 = vadd.f32 %v11495, %v11535
        %v11537 = vpop.f32.mrb[0].mxu0
        %v11538 = vpop.f32.mrb[0].mxu0
        %11539 = vdwg.mxu0
        %11540 = vmatprep.subr.bf16.mxu0 %v7533
        %11541 = vmatpush1.bf16.msra.mxu0 %v7532
        %11542 = vmatprep.subr.bf16.mxu0 %v7537
        %11543 = vmatpush1.bf16.msra.mxu0 %v7536
        %11544 = vmatprep.subr.bf16.mxu0 %v7541
        %11545 = vmatpush1.bf16.msra.mxu0 %v7540
        %11546 = vmatprep.subr.bf16.mxu0 %v7545
        %11547 = vmatpush1.bf16.msra.mxu0 %v7544
        %11548 = vmatprep.subr.bf16.mxu0 %v7549
        %11549 = vmatpush1.bf16.msra.mxu0 %v7548
        %11550 = vmatprep.subr.bf16.mxu0 %v7553
        %11551 = vmatpush1.bf16.msra.mxu0 %v7552
        %11552 = vmatprep.subr.bf16.mxu0 %v7557
        %11553 = vmatpush1.bf16.msra.mxu0 %v7556
        %11554 = vmatprep.subr.bf16.mxu0 %v7561
        %11555 = vmatpush1.bf16.msra.mxu0 %v7560
        %11556 = vmatprep.subr.bf16.mxu0 %v7565
        %11557 = vmatpush1.bf16.msra.mxu0 %v7564
        %11558 = vmatprep.subr.bf16.mxu0 %v7569
        %11559 = vmatpush1.bf16.msra.mxu0 %v7568
        %11560 = vmatprep.subr.bf16.mxu0 %v7573
        %11561 = vmatpush1.bf16.msra.mxu0 %v7572
        %11562 = vmatprep.subr.bf16.mxu0 %v7577
        %11563 = vmatpush1.bf16.msra.mxu0 %v7576
        %11564 = vmatprep.subr.bf16.mxu0 %v7581
        %11565 = vmatpush1.bf16.msra.mxu0 %v7580
        %11566 = vmatprep.subr.bf16.mxu0 %v7585
        %11567 = vmatpush1.bf16.msra.mxu0 %v7584
        %11568 = vmatprep.subr.bf16.mxu0 %v7589
        %11569 = vmatpush1.bf16.msra.mxu0 %v7588
        %11570 = vmatprep.subr.bf16.mxu0 %v7593
        %11571 = vmatpush1.bf16.msra.mxu0 %v7592
        %11572 = vmatprep.mubr.bf16.mxu0 %v1215
        %11573 = vmatmul.mubr.bf16.gmra.mrb[0].mxu0 %v1214
        %v11574 = vpop.f32.mrb[0].mxu0
        %v11575 = vadd.f32 %v11534, %v11574
        %v11576 = vpop.f32.mrb[0].mxu0
        %v11577 = vadd.f32 %v11536, %v11576
        %v11578 = vpop.f32.mrb[0].mxu0
        %v11579 = vpop.f32.mrb[0].mxu0
        %11580 = vdwg.mxu0
        %11581 = vmatprep.subr.bf16.mxu0 %v7597
        %11582 = vmatpush1.bf16.msra.mxu0 %v7596
        %11583 = vmatprep.subr.bf16.mxu0 %v7601
        %11584 = vmatpush1.bf16.msra.mxu0 %v7600
        %11585 = vmatprep.subr.bf16.mxu0 %v7605
        %11586 = vmatpush1.bf16.msra.mxu0 %v7604
        %11587 = vmatprep.subr.bf16.mxu0 %v7609
        %11588 = vmatpush1.bf16.msra.mxu0 %v7608
        %11589 = vmatprep.subr.bf16.mxu0 %v7613
        %11590 = vmatpush1.bf16.msra.mxu0 %v7612
        %11591 = vmatprep.subr.bf16.mxu0 %v7617
        %11592 = vmatpush1.bf16.msra.mxu0 %v7616
        %11593 = vmatprep.subr.bf16.mxu0 %v7621
        %11594 = vmatpush1.bf16.msra.mxu0 %v7620
        %11595 = vmatprep.subr.bf16.mxu0 %v7625
        %11596 = vmatpush1.bf16.msra.mxu0 %v7624
        %11597 = vmatprep.subr.bf16.mxu0 %v7629
        %11598 = vmatpush1.bf16.msra.mxu0 %v7628
        %11599 = vmatprep.subr.bf16.mxu0 %v7633
        %11600 = vmatpush1.bf16.msra.mxu0 %v7632
        %11601 = vmatprep.subr.bf16.mxu0 %v7637
        %11602 = vmatpush1.bf16.msra.mxu0 %v7636
        %11603 = vmatprep.subr.bf16.mxu0 %v7641
        %11604 = vmatpush1.bf16.msra.mxu0 %v7640
        %11605 = vmatprep.subr.bf16.mxu0 %v7645
        %11606 = vmatpush1.bf16.msra.mxu0 %v7644
        %11607 = vmatprep.subr.bf16.mxu0 %v7649
        %11608 = vmatpush1.bf16.msra.mxu0 %v7648
        %11609 = vmatprep.subr.bf16.mxu0 %v7653
        %11610 = vmatpush1.bf16.msra.mxu0 %v7652
        %11611 = vmatprep.subr.bf16.mxu0 %v7657
        %11612 = vmatpush1.bf16.msra.mxu0 %v7656
        %11613 = vmatprep.mubr.bf16.mxu0 %v1217
        %11614 = vmatmul.mubr.bf16.gmra.mrb[0].mxu0 %v1216
        %v11615 = vpop.f32.mrb[0].mxu0
        %v11616 = vadd.f32 %v11575, %v11615
        %v11617 = vpop.f32.mrb[0].mxu0
        %v11618 = vadd.f32 %v11577, %v11617
        %v11619 = vpop.f32.mrb[0].mxu0
        %v11620 = vpop.f32.mrb[0].mxu0
        %11621 = vdwg.mxu0
        %11622 = vmatprep.subr.bf16.mxu0 %v7661
        %11623 = vmatpush1.bf16.msra.mxu0 %v7660
        %11624 = vmatprep.subr.bf16.mxu0 %v7665
        %11625 = vmatpush1.bf16.msra.mxu0 %v7664
        %11626 = vmatprep.subr.bf16.mxu0 %v7669
        %11627 = vmatpush1.bf16.msra.mxu0 %v7668
        %11628 = vmatprep.subr.bf16.mxu0 %v7673
        %11629 = vmatpush1.bf16.msra.mxu0 %v7672
        %11630 = vmatprep.subr.bf16.mxu0 %v7677
        %11631 = vmatpush1.bf16.msra.mxu0 %v7676
        %11632 = vmatprep.subr.bf16.mxu0 %v7681
        %11633 = vmatpush1.bf16.msra.mxu0 %v7680
        %11634 = vmatprep.subr.bf16.mxu0 %v7685
        %11635 = vmatpush1.bf16.msra.mxu0 %v7684
        %11636 = vmatprep.subr.bf16.mxu0 %v7689
        %11637 = vmatpush1.bf16.msra.mxu0 %v7688
        %11638 = vmatprep.subr.bf16.mxu0 %v7693
        %11639 = vmatpush1.bf16.msra.mxu0 %v7692
        %11640 = vmatprep.subr.bf16.mxu0 %v7697
        %11641 = vmatpush1.bf16.msra.mxu0 %v7696
        %11642 = vmatprep.subr.bf16.mxu0 %v7701
        %11643 = vmatpush1.bf16.msra.mxu0 %v7700
        %11644 = vmatprep.subr.bf16.mxu0 %v7705
        %11645 = vmatpush1.bf16.msra.mxu0 %v7704
        %11646 = vmatprep.subr.bf16.mxu0 %v7709
        %11647 = vmatpush1.bf16.msra.mxu0 %v7708
        %11648 = vmatprep.subr.bf16.mxu0 %v7713
        %11649 = vmatpush1.bf16.msra.mxu0 %v7712
        %11650 = vmatprep.subr.bf16.mxu0 %v7717
        %11651 = vmatpush1.bf16.msra.mxu0 %v7716
        %11652 = vmatprep.subr.bf16.mxu0 %v7721
        %11653 = vmatpush1.bf16.msra.mxu0 %v7720
        %11654 = vmatprep.mubr.bf16.mxu0 %v1219
        %11655 = vmatmul.mubr.bf16.gmra.mrb[0].mxu0 %v1218
        %v11656 = vpop.f32.mrb[0].mxu0
        %v11657 = vadd.f32 %v11616, %v11656
        %v11658 = vpop.f32.mrb[0].mxu0
        %v11659 = vadd.f32 %v11618, %v11658
        %v11660 = vpop.f32.mrb[0].mxu0
        %v11661 = vpop.f32.mrb[0].mxu0
        %11662 = vdwg.mxu0
        %11663 = vmatprep.subr.bf16.mxu0 %v7725
        %11664 = vmatpush1.bf16.msra.mxu0 %v7724
        %11665 = vmatprep.subr.bf16.mxu0 %v7729
        %11666 = vmatpush1.bf16.msra.mxu0 %v7728
        %11667 = vmatprep.subr.bf16.mxu0 %v7733
        %11668 = vmatpush1.bf16.msra.mxu0 %v7732
        %11669 = vmatprep.subr.bf16.mxu0 %v7737
        %11670 = vmatpush1.bf16.msra.mxu0 %v7736
        %11671 = vmatprep.subr.bf16.mxu0 %v7741
        %11672 = vmatpush1.bf16.msra.mxu0 %v7740
        %11673 = vmatprep.subr.bf16.mxu0 %v7745
        %11674 = vmatpush1.bf16.msra.mxu0 %v7744
        %11675 = vmatprep.subr.bf16.mxu0 %v7749
        %11676 = vmatpush1.bf16.msra.mxu0 %v7748
        %11677 = vmatprep.subr.bf16.mxu0 %v7753
        %11678 = vmatpush1.bf16.msra.mxu0 %v7752
        %11679 = vmatprep.subr.bf16.mxu0 %v7757
        %11680 = vmatpush1.bf16.msra.mxu0 %v7756
        %11681 = vmatprep.subr.bf16.mxu0 %v7761
        %11682 = vmatpush1.bf16.msra.mxu0 %v7760
        %11683 = vmatprep.subr.bf16.mxu0 %v7765
        %11684 = vmatpush1.bf16.msra.mxu0 %v7764
        %11685 = vmatprep.subr.bf16.mxu0 %v7769
        %11686 = vmatpush1.bf16.msra.mxu0 %v7768
        %11687 = vmatprep.subr.bf16.mxu0 %v7773
        %11688 = vmatpush1.bf16.msra.mxu0 %v7772
        %11689 = vmatprep.subr.bf16.mxu0 %v7777
        %11690 = vmatpush1.bf16.msra.mxu0 %v7776
        %11691 = vmatprep.subr.bf16.mxu0 %v7781
        %11692 = vmatpush1.bf16.msra.mxu0 %v7780
        %11693 = vmatprep.subr.bf16.mxu0 %v7785
        %11694 = vmatpush1.bf16.msra.mxu0 %v7784
        %11695 = vmatprep.mubr.bf16.mxu0 %v1221
        %11696 = vmatmul.mubr.bf16.gmra.mrb[0].mxu0 %v1220
        %v11697 = vpop.f32.mrb[0].mxu0
        %v11698 = vadd.f32 %v11657, %v11697
        %v11699 = vpop.f32.mrb[0].mxu0
        %v11700 = vadd.f32 %v11659, %v11699
        %v11701 = vpop.f32.mrb[0].mxu0
        %v11702 = vpop.f32.mrb[0].mxu0
        %11703 = vdwg.mxu0
        %11704 = vmatprep.subr.bf16.mxu0 %v7789
        %11705 = vmatpush1.bf16.msra.mxu0 %v7788
        %11706 = vmatprep.subr.bf16.mxu0 %v7793
        %11707 = vmatpush1.bf16.msra.mxu0 %v7792
        %11708 = vmatprep.subr.bf16.mxu0 %v7797
        %11709 = vmatpush1.bf16.msra.mxu0 %v7796
        %11710 = vmatprep.subr.bf16.mxu0 %v7801
        %11711 = vmatpush1.bf16.msra.mxu0 %v7800
        %11712 = vmatprep.subr.bf16.mxu0 %v7805
        %11713 = vmatpush1.bf16.msra.mxu0 %v7804
        %11714 = vmatprep.subr.bf16.mxu0 %v7809
        %11715 = vmatpush1.bf16.msra.mxu0 %v7808
        %11716 = vmatprep.subr.bf16.mxu0 %v7813
        %11717 = vmatpush1.bf16.msra.mxu0 %v7812
        %11718 = vmatprep.subr.bf16.mxu0 %v7817
        %11719 = vmatpush1.bf16.msra.mxu0 %v7816
        %11720 = vmatprep.subr.bf16.mxu0 %v7821
        %11721 = vmatpush1.bf16.msra.mxu0 %v7820
        %11722 = vmatprep.subr.bf16.mxu0 %v7825
        %11723 = vmatpush1.bf16.msra.mxu0 %v7824
        %11724 = vmatprep.subr.bf16.mxu0 %v7829
        %11725 = vmatpush1.bf16.msra.mxu0 %v7828
        %11726 = vmatprep.subr.bf16.mxu0 %v7833
        %11727 = vmatpush1.bf16.msra.mxu0 %v7832
        %11728 = vmatprep.subr.bf16.mxu0 %v7837
        %11729 = vmatpush1.bf16.msra.mxu0 %v7836
        %11730 = vmatprep.subr.bf16.mxu0 %v7841
        %11731 = vmatpush1.bf16.msra.mxu0 %v7840
        %11732 = vmatprep.subr.bf16.mxu0 %v7845
        %11733 = vmatpush1.bf16.msra.mxu0 %v7844
        %11734 = vmatprep.subr.bf16.mxu0 %v7849
        %11735 = vmatpush1.bf16.msra.mxu0 %v7848
        %11736 = vmatprep.mubr.bf16.mxu0 %v1223
        %11737 = vmatmul.mubr.bf16.gmra.mrb[0].mxu0 %v1222
        %v11738 = vpop.f32.mrb[0].mxu0
        %v11739 = vadd.f32 %v11698, %v11738
        %v11740 = vpop.f32.mrb[0].mxu0
        %v11741 = vadd.f32 %v11700, %v11740
        %v11742 = vpop.f32.mrb[0].mxu0
        %v11743 = vpop.f32.mrb[0].mxu0
        %11744 = vdwg.mxu0
        %11745 = vmatprep.subr.bf16.mxu0 %v7853
        %11746 = vmatpush1.bf16.msra.mxu0 %v7852
        %11747 = vmatprep.subr.bf16.mxu0 %v7857
        %11748 = vmatpush1.bf16.msra.mxu0 %v7856
        %11749 = vmatprep.subr.bf16.mxu0 %v7861
        %11750 = vmatpush1.bf16.msra.mxu0 %v7860
        %11751 = vmatprep.subr.bf16.mxu0 %v7865
        %11752 = vmatpush1.bf16.msra.mxu0 %v7864
        %11753 = vmatprep.subr.bf16.mxu0 %v7869
        %11754 = vmatpush1.bf16.msra.mxu0 %v7868
        %11755 = vmatprep.subr.bf16.mxu0 %v7873
        %11756 = vmatpush1.bf16.msra.mxu0 %v7872
        %11757 = vmatprep.subr.bf16.mxu0 %v7877
        %11758 = vmatpush1.bf16.msra.mxu0 %v7876
        %11759 = vmatprep.subr.bf16.mxu0 %v7881
        %11760 = vmatpush1.bf16.msra.mxu0 %v7880
        %11761 = vmatprep.subr.bf16.mxu0 %v7885
        %11762 = vmatpush1.bf16.msra.mxu0 %v7884
        %11763 = vmatprep.subr.bf16.mxu0 %v7889
        %11764 = vmatpush1.bf16.msra.mxu0 %v7888
        %11765 = vmatprep.subr.bf16.mxu0 %v7893
        %11766 = vmatpush1.bf16.msra.mxu0 %v7892
        %11767 = vmatprep.subr.bf16.mxu0 %v7897
        %11768 = vmatpush1.bf16.msra.mxu0 %v7896
        %11769 = vmatprep.subr.bf16.mxu0 %v7901
        %11770 = vmatpush1.bf16.msra.mxu0 %v7900
        %11771 = vmatprep.subr.bf16.mxu0 %v7905
        %11772 = vmatpush1.bf16.msra.mxu0 %v7904
        %11773 = vmatprep.subr.bf16.mxu0 %v7909
        %11774 = vmatpush1.bf16.msra.mxu0 %v7908
        %11775 = vmatprep.subr.bf16.mxu0 %v7913
        %11776 = vmatpush1.bf16.msra.mxu0 %v7912
        %11777 = vmatprep.mubr.bf16.mxu0 %v1225
        %11778 = vmatmul.mubr.bf16.gmra.mrb[0].mxu0 %v1224
        %v11779 = vpop.f32.mrb[0].mxu0
        %v11780 = vadd.f32 %v11739, %v11779
        %v11781 = vpop.f32.mrb[0].mxu0
        %v11782 = vadd.f32 %v11741, %v11781
        %v11783 = vpop.f32.mrb[0].mxu0
        %v11784 = vpop.f32.mrb[0].mxu0
        %11785 = vdwg.mxu0
        %11786 = vmatprep.subr.bf16.mxu0 %v7917
        %11787 = vmatpush1.bf16.msra.mxu0 %v7916
        %11788 = vmatprep.subr.bf16.mxu0 %v7921
        %11789 = vmatpush1.bf16.msra.mxu0 %v7920
        %11790 = vmatprep.subr.bf16.mxu0 %v7925
        %11791 = vmatpush1.bf16.msra.mxu0 %v7924
        %11792 = vmatprep.subr.bf16.mxu0 %v7929
        %11793 = vmatpush1.bf16.msra.mxu0 %v7928
        %11794 = vmatprep.subr.bf16.mxu0 %v7933
        %11795 = vmatpush1.bf16.msra.mxu0 %v7932
        %11796 = vmatprep.subr.bf16.mxu0 %v7937
        %11797 = vmatpush1.bf16.msra.mxu0 %v7936
        %11798 = vmatprep.subr.bf16.mxu0 %v7941
        %11799 = vmatpush1.bf16.msra.mxu0 %v7940
        %11800 = vmatprep.subr.bf16.mxu0 %v7945
        %11801 = vmatpush1.bf16.msra.mxu0 %v7944
        %11802 = vmatprep.subr.bf16.mxu0 %v7949
        %11803 = vmatpush1.bf16.msra.mxu0 %v7948
        %11804 = vmatprep.subr.bf16.mxu0 %v7953
        %11805 = vmatpush1.bf16.msra.mxu0 %v7952
        %11806 = vmatprep.subr.bf16.mxu0 %v7957
        %11807 = vmatpush1.bf16.msra.mxu0 %v7956
        %11808 = vmatprep.subr.bf16.mxu0 %v7961
        %11809 = vmatpush1.bf16.msra.mxu0 %v7960
        %11810 = vmatprep.subr.bf16.mxu0 %v7965
        %11811 = vmatpush1.bf16.msra.mxu0 %v7964
        %11812 = vmatprep.subr.bf16.mxu0 %v7969
        %11813 = vmatpush1.bf16.msra.mxu0 %v7968
        %11814 = vmatprep.subr.bf16.mxu0 %v7973
        %11815 = vmatpush1.bf16.msra.mxu0 %v7972
        %11816 = vmatprep.subr.bf16.mxu0 %v7977
        %11817 = vmatpush1.bf16.msra.mxu0 %v7976
        %11818 = vmatprep.mubr.bf16.mxu0 %v1227
        %11819 = vmatmul.mubr.bf16.gmra.mrb[0].mxu0 %v1226
        %v11820 = vpop.f32.mrb[0].mxu0
        %v11821 = vadd.f32 %v11780, %v11820
        %v11822 = vpop.f32.mrb[0].mxu0
        %v11823 = vadd.f32 %v11782, %v11822
        %v11824 = vpop.f32.mrb[0].mxu0
        %v11825 = vpop.f32.mrb[0].mxu0
        %11826 = vdwg.mxu0
        %11827 = vmatprep.subr.bf16.mxu0 %v7981
        %11828 = vmatpush1.bf16.msra.mxu0 %v7980
        %11829 = vmatprep.subr.bf16.mxu0 %v7985
        %11830 = vmatpush1.bf16.msra.mxu0 %v7984
        %11831 = vmatprep.subr.bf16.mxu0 %v7989
        %11832 = vmatpush1.bf16.msra.mxu0 %v7988
        %11833 = vmatprep.subr.bf16.mxu0 %v7993
        %11834 = vmatpush1.bf16.msra.mxu0 %v7992
        %11835 = vmatprep.subr.bf16.mxu0 %v7997
        %11836 = vmatpush1.bf16.msra.mxu0 %v7996
        %11837 = vmatprep.subr.bf16.mxu0 %v8001
        %11838 = vmatpush1.bf16.msra.mxu0 %v8000
        %11839 = vmatprep.subr.bf16.mxu0 %v8005
        %11840 = vmatpush1.bf16.msra.mxu0 %v8004
        %11841 = vmatprep.subr.bf16.mxu0 %v8009
        %11842 = vmatpush1.bf16.msra.mxu0 %v8008
        %11843 = vmatprep.subr.bf16.mxu0 %v8013
        %11844 = vmatpush1.bf16.msra.mxu0 %v8012
        %11845 = vmatprep.subr.bf16.mxu0 %v8017
        %11846 = vmatpush1.bf16.msra.mxu0 %v8016
        %11847 = vmatprep.subr.bf16.mxu0 %v8021
        %11848 = vmatpush1.bf16.msra.mxu0 %v8020
        %11849 = vmatprep.subr.bf16.mxu0 %v8025
        %11850 = vmatpush1.bf16.msra.mxu0 %v8024
        %11851 = vmatprep.subr.bf16.mxu0 %v8029
        %11852 = vmatpush1.bf16.msra.mxu0 %v8028
        %11853 = vmatprep.subr.bf16.mxu0 %v8033
        %11854 = vmatpush1.bf16.msra.mxu0 %v8032
        %11855 = vmatprep.subr.bf16.mxu0 %v8037
        %11856 = vmatpush1.bf16.msra.mxu0 %v8036
        %11857 = vmatprep.subr.bf16.mxu0 %v8041
        %11858 = vmatpush1.bf16.msra.mxu0 %v8040
        %11859 = vmatprep.mubr.bf16.mxu0 %v1229
        %11860 = vmatmul.mubr.bf16.gmra.mrb[0].mxu0 %v1228
        %v11861 = vpop.f32.mrb[0].mxu0
        %v11862 = vadd.f32 %v11821, %v11861
        %v11863 = vpop.f32.mrb[0].mxu0
        %v11864 = vadd.f32 %v11823, %v11863
        %v11865 = vpop.f32.mrb[0].mxu0
        %v11866 = vpop.f32.mrb[0].mxu0
        %11867 = vdwg.mxu0
        %11868 = vmatprep.subr.bf16.mxu0 %v8045
        %11869 = vmatpush1.bf16.msra.mxu0 %v8044
        %11870 = vmatprep.subr.bf16.mxu0 %v8049
        %11871 = vmatpush1.bf16.msra.mxu0 %v8048
        %11872 = vmatprep.subr.bf16.mxu0 %v8053
        %11873 = vmatpush1.bf16.msra.mxu0 %v8052
        %11874 = vmatprep.subr.bf16.mxu0 %v8057
        %11875 = vmatpush1.bf16.msra.mxu0 %v8056
        %11876 = vmatprep.subr.bf16.mxu0 %v8061
        %11877 = vmatpush1.bf16.msra.mxu0 %v8060
        %11878 = vmatprep.subr.bf16.mxu0 %v8065
        %11879 = vmatpush1.bf16.msra.mxu0 %v8064
        %11880 = vmatprep.subr.bf16.mxu0 %v8069
        %11881 = vmatpush1.bf16.msra.mxu0 %v8068
        %11882 = vmatprep.subr.bf16.mxu0 %v8073
        %11883 = vmatpush1.bf16.msra.mxu0 %v8072
        %11884 = vmatprep.subr.bf16.mxu0 %v8077
        %11885 = vmatpush1.bf16.msra.mxu0 %v8076
        %11886 = vmatprep.subr.bf16.mxu0 %v8081
        %11887 = vmatpush1.bf16.msra.mxu0 %v8080
        %11888 = vmatprep.subr.bf16.mxu0 %v8085
        %11889 = vmatpush1.bf16.msra.mxu0 %v8084
        %11890 = vmatprep.subr.bf16.mxu0 %v8089
        %11891 = vmatpush1.bf16.msra.mxu0 %v8088
        %11892 = vmatprep.subr.bf16.mxu0 %v8093
        %11893 = vmatpush1.bf16.msra.mxu0 %v8092
        %11894 = vmatprep.subr.bf16.mxu0 %v8097
        %11895 = vmatpush1.bf16.msra.mxu0 %v8096
        %11896 = vmatprep.subr.bf16.mxu0 %v8101
        %11897 = vmatpush1.bf16.msra.mxu0 %v8100
        %11898 = vmatprep.subr.bf16.mxu0 %v8105
        %11899 = vmatpush1.bf16.msra.mxu0 %v8104
        %11900 = vmatprep.mubr.bf16.mxu0 %v1231
        %11901 = vmatmul.mubr.bf16.gmra.mrb[0].mxu0 %v1230
        %v11902 = vpop.f32.mrb[0].mxu0
        %v11903 = vadd.f32 %v11862, %v11902
        %v11904 = vpop.f32.mrb[0].mxu0
        %v11905 = vadd.f32 %v11864, %v11904
        %v11906 = vpop.f32.mrb[0].mxu0
        %v11907 = vpop.f32.mrb[0].mxu0
        %11908 = vdwg.mxu0
        %11909 = vmatprep.subr.bf16.mxu0 %v8109
        %11910 = vmatpush1.bf16.msra.mxu0 %v8108
        %11911 = vmatprep.subr.bf16.mxu0 %v8113
        %11912 = vmatpush1.bf16.msra.mxu0 %v8112
        %11913 = vmatprep.subr.bf16.mxu0 %v8117
        %11914 = vmatpush1.bf16.msra.mxu0 %v8116
        %11915 = vmatprep.subr.bf16.mxu0 %v8121
        %11916 = vmatpush1.bf16.msra.mxu0 %v8120
        %11917 = vmatprep.subr.bf16.mxu0 %v8125
        %11918 = vmatpush1.bf16.msra.mxu0 %v8124
        %11919 = vmatprep.subr.bf16.mxu0 %v8129
        %11920 = vmatpush1.bf16.msra.mxu0 %v8128
        %11921 = vmatprep.subr.bf16.mxu0 %v8133
        %11922 = vmatpush1.bf16.msra.mxu0 %v8132
        %11923 = vmatprep.subr.bf16.mxu0 %v8137
        %11924 = vmatpush1.bf16.msra.mxu0 %v8136
        %11925 = vmatprep.subr.bf16.mxu0 %v8141
        %11926 = vmatpush1.bf16.msra.mxu0 %v8140
        %11927 = vmatprep.subr.bf16.mxu0 %v8145
        %11928 = vmatpush1.bf16.msra.mxu0 %v8144
        %11929 = vmatprep.subr.bf16.mxu0 %v8149
        %11930 = vmatpush1.bf16.msra.mxu0 %v8148
        %11931 = vmatprep.subr.bf16.mxu0 %v8153
        %11932 = vmatpush1.bf16.msra.mxu0 %v8152
        %11933 = vmatprep.subr.bf16.mxu0 %v8157
        %11934 = vmatpush1.bf16.msra.mxu0 %v8156
        %11935 = vmatprep.subr.bf16.mxu0 %v8161
        %11936 = vmatpush1.bf16.msra.mxu0 %v8160
        %11937 = vmatprep.subr.bf16.mxu0 %v8165
        %11938 = vmatpush1.bf16.msra.mxu0 %v8164
        %11939 = vmatprep.subr.bf16.mxu0 %v8169
        %11940 = vmatpush1.bf16.msra.mxu0 %v8168
        %11941 = vmatprep.mubr.bf16.mxu0 %v1233
        %11942 = vmatmul.mubr.bf16.gmra.mrb[0].mxu0 %v1232
        %v11943 = vpop.f32.mrb[0].mxu0
        %v11944 = vadd.f32 %v11903, %v11943
        %v11945 = vpop.f32.mrb[0].mxu0
        %v11946 = vadd.f32 %v11905, %v11945
        %v11947 = vpop.f32.mrb[0].mxu0
        %v11948 = vpop.f32.mrb[0].mxu0
        %11949 = vdwg.mxu0
        %11950 = vmatprep.subr.bf16.mxu0 %v8173
        %11951 = vmatpush1.bf16.msra.mxu0 %v8172
        %11952 = vmatprep.subr.bf16.mxu0 %v8177
        %11953 = vmatpush1.bf16.msra.mxu0 %v8176
        %11954 = vmatprep.subr.bf16.mxu0 %v8181
        %11955 = vmatpush1.bf16.msra.mxu0 %v8180
        %11956 = vmatprep.subr.bf16.mxu0 %v8185
        %11957 = vmatpush1.bf16.msra.mxu0 %v8184
        %11958 = vmatprep.subr.bf16.mxu0 %v8189
        %11959 = vmatpush1.bf16.msra.mxu0 %v8188
        %11960 = vmatprep.subr.bf16.mxu0 %v8193
        %11961 = vmatpush1.bf16.msra.mxu0 %v8192
        %11962 = vmatprep.subr.bf16.mxu0 %v8197
        %11963 = vmatpush1.bf16.msra.mxu0 %v8196
        %11964 = vmatprep.subr.bf16.mxu0 %v8201
        %11965 = vmatpush1.bf16.msra.mxu0 %v8200
        %11966 = vmatprep.subr.bf16.mxu0 %v8205
        %11967 = vmatpush1.bf16.msra.mxu0 %v8204
        %11968 = vmatprep.subr.bf16.mxu0 %v8209
        %11969 = vmatpush1.bf16.msra.mxu0 %v8208
        %11970 = vmatprep.subr.bf16.mxu0 %v8213
        %11971 = vmatpush1.bf16.msra.mxu0 %v8212
        %11972 = vmatprep.subr.bf16.mxu0 %v8217
        %11973 = vmatpush1.bf16.msra.mxu0 %v8216
        %11974 = vmatprep.subr.bf16.mxu0 %v8221
        %11975 = vmatpush1.bf16.msra.mxu0 %v8220
        %11976 = vmatprep.subr.bf16.mxu0 %v8225
        %11977 = vmatpush1.bf16.msra.mxu0 %v8224
        %11978 = vmatprep.subr.bf16.mxu0 %v8229
        %11979 = vmatpush1.bf16.msra.mxu0 %v8228
        %11980 = vmatprep.subr.bf16.mxu0 %v8233
        %11981 = vmatpush1.bf16.msra.mxu0 %v8232
        %11982 = vmatprep.mubr.bf16.mxu0 %v1235
        %11983 = vmatmul.mubr.bf16.gmra.mrb[0].mxu0 %v1234
        %v11984 = vpop.f32.mrb[0].mxu0
        %v11985 = vadd.f32 %v11944, %v11984
        %v11986 = vpop.f32.mrb[0].mxu0
        %v11987 = vadd.f32 %v11946, %v11986
        %v11988 = vpop.f32.mrb[0].mxu0
        %v11989 = vpop.f32.mrb[0].mxu0
        %11990 = vdwg.mxu0
        %11991 = vmatprep.subr.bf16.mxu0 %v8237
        %11992 = vmatpush1.bf16.msra.mxu0 %v8236
        %11993 = vmatprep.subr.bf16.mxu0 %v8241
        %11994 = vmatpush1.bf16.msra.mxu0 %v8240
        %11995 = vmatprep.subr.bf16.mxu0 %v8245
        %11996 = vmatpush1.bf16.msra.mxu0 %v8244
        %11997 = vmatprep.subr.bf16.mxu0 %v8249
        %11998 = vmatpush1.bf16.msra.mxu0 %v8248
        %11999 = vmatprep.subr.bf16.mxu0 %v8253
        %12000 = vmatpush1.bf16.msra.mxu0 %v8252
        %12001 = vmatprep.subr.bf16.mxu0 %v8257
        %12002 = vmatpush1.bf16.msra.mxu0 %v8256
        %12003 = vmatprep.subr.bf16.mxu0 %v8261
        %12004 = vmatpush1.bf16.msra.mxu0 %v8260
        %12005 = vmatprep.subr.bf16.mxu0 %v8265
        %12006 = vmatpush1.bf16.msra.mxu0 %v8264
        %12007 = vmatprep.subr.bf16.mxu0 %v8269
        %12008 = vmatpush1.bf16.msra.mxu0 %v8268
        %12009 = vmatprep.subr.bf16.mxu0 %v8273
        %12010 = vmatpush1.bf16.msra.mxu0 %v8272
        %12011 = vmatprep.subr.bf16.mxu0 %v8277
        %12012 = vmatpush1.bf16.msra.mxu0 %v8276
        %12013 = vmatprep.subr.bf16.mxu0 %v8281
        %12014 = vmatpush1.bf16.msra.mxu0 %v8280
        %12015 = vmatprep.subr.bf16.mxu0 %v8285
        %12016 = vmatpush1.bf16.msra.mxu0 %v8284
        %12017 = vmatprep.subr.bf16.mxu0 %v8289
        %12018 = vmatpush1.bf16.msra.mxu0 %v8288
        %12019 = vmatprep.subr.bf16.mxu0 %v8293
        %12020 = vmatpush1.bf16.msra.mxu0 %v8292
        %12021 = vmatprep.subr.bf16.mxu0 %v8297
        %12022 = vmatpush1.bf16.msra.mxu0 %v8296
        %12023 = vmatprep.mubr.bf16.mxu0 %v1237
        %12024 = vmatmul.mubr.bf16.gmra.mrb[0].mxu0 %v1236
        %v12025 = vpop.f32.mrb[0].mxu0
        %v12026 = vadd.f32 %v11985, %v12025
        %v12027 = vpop.f32.mrb[0].mxu0
        %v12028 = vadd.f32 %v11987, %v12027
        %v12029 = vpop.f32.mrb[0].mxu0
        %v12030 = vpop.f32.mrb[0].mxu0
        %12031 = vdwg.mxu0
        %12032 = vmatprep.subr.bf16.mxu0 %v8301
        %12033 = vmatpush1.bf16.msra.mxu0 %v8300
        %12034 = vmatprep.subr.bf16.mxu0 %v8305
        %12035 = vmatpush1.bf16.msra.mxu0 %v8304
        %12036 = vmatprep.subr.bf16.mxu0 %v8309
        %12037 = vmatpush1.bf16.msra.mxu0 %v8308
        %12038 = vmatprep.subr.bf16.mxu0 %v8313
        %12039 = vmatpush1.bf16.msra.mxu0 %v8312
        %12040 = vmatprep.subr.bf16.mxu0 %v8317
        %12041 = vmatpush1.bf16.msra.mxu0 %v8316
        %12042 = vmatprep.subr.bf16.mxu0 %v8321
        %12043 = vmatpush1.bf16.msra.mxu0 %v8320
        %12044 = vmatprep.subr.bf16.mxu0 %v8325
        %12045 = vmatpush1.bf16.msra.mxu0 %v8324
        %12046 = vmatprep.subr.bf16.mxu0 %v8329
        %12047 = vmatpush1.bf16.msra.mxu0 %v8328
        %12048 = vmatprep.subr.bf16.mxu0 %v8333
        %12049 = vmatpush1.bf16.msra.mxu0 %v8332
        %12050 = vmatprep.subr.bf16.mxu0 %v8337
        %12051 = vmatpush1.bf16.msra.mxu0 %v8336
        %12052 = vmatprep.subr.bf16.mxu0 %v8341
        %12053 = vmatpush1.bf16.msra.mxu0 %v8340
        %12054 = vmatprep.subr.bf16.mxu0 %v8345
        %12055 = vmatpush1.bf16.msra.mxu0 %v8344
        %12056 = vmatprep.subr.bf16.mxu0 %v8349
        %12057 = vmatpush1.bf16.msra.mxu0 %v8348
        %12058 = vmatprep.subr.bf16.mxu0 %v8353
        %12059 = vmatpush1.bf16.msra.mxu0 %v8352
        %12060 = vmatprep.subr.bf16.mxu0 %v8357
        %12061 = vmatpush1.bf16.msra.mxu0 %v8356
        %12062 = vmatprep.subr.bf16.mxu0 %v8361
        %12063 = vmatpush1.bf16.msra.mxu0 %v8360
        %12064 = vmatprep.mubr.bf16.mxu0 %v1239
        %12065 = vmatmul.mubr.bf16.gmra.mrb[0].mxu0 %v1238
        %v12066 = vpop.f32.mrb[0].mxu0
        %v12067 = vadd.f32 %v12026, %v12066
        %v12068 = vpop.f32.mrb[0].mxu0
        %v12069 = vadd.f32 %v12028, %v12068
        %v12070 = vpop.f32.mrb[0].mxu0
        %v12071 = vpop.f32.mrb[0].mxu0
        %12072 = vdwg.mxu0
        %12073 = vmatprep.subr.bf16.mxu0 %v8365
        %12074 = vmatpush1.bf16.msra.mxu0 %v8364
        %12075 = vmatprep.subr.bf16.mxu0 %v8369
        %12076 = vmatpush1.bf16.msra.mxu0 %v8368
        %12077 = vmatprep.subr.bf16.mxu0 %v8373
        %12078 = vmatpush1.bf16.msra.mxu0 %v8372
        %12079 = vmatprep.subr.bf16.mxu0 %v8377
        %12080 = vmatpush1.bf16.msra.mxu0 %v8376
        %12081 = vmatprep.subr.bf16.mxu0 %v8381
        %12082 = vmatpush1.bf16.msra.mxu0 %v8380
        %12083 = vmatprep.subr.bf16.mxu0 %v8385
        %12084 = vmatpush1.bf16.msra.mxu0 %v8384
        %12085 = vmatprep.subr.bf16.mxu0 %v8389
        %12086 = vmatpush1.bf16.msra.mxu0 %v8388
        %12087 = vmatprep.subr.bf16.mxu0 %v8393
        %12088 = vmatpush1.bf16.msra.mxu0 %v8392
        %12089 = vmatprep.subr.bf16.mxu0 %v8397
        %12090 = vmatpush1.bf16.msra.mxu0 %v8396
        %12091 = vmatprep.subr.bf16.mxu0 %v8401
        %12092 = vmatpush1.bf16.msra.mxu0 %v8400
        %12093 = vmatprep.subr.bf16.mxu0 %v8405
        %12094 = vmatpush1.bf16.msra.mxu0 %v8404
        %12095 = vmatprep.subr.bf16.mxu0 %v8409
        %12096 = vmatpush1.bf16.msra.mxu0 %v8408
        %12097 = vmatprep.subr.bf16.mxu0 %v8413
        %12098 = vmatpush1.bf16.msra.mxu0 %v8412
        %12099 = vmatprep.subr.bf16.mxu0 %v8417
        %12100 = vmatpush1.bf16.msra.mxu0 %v8416
        %12101 = vmatprep.subr.bf16.mxu0 %v8421
        %12102 = vmatpush1.bf16.msra.mxu0 %v8420
        %12103 = vmatprep.subr.bf16.mxu0 %v8425
        %12104 = vmatpush1.bf16.msra.mxu0 %v8424
        %12105 = vmatprep.mubr.bf16.mxu0 %v1241
        %12106 = vmatmul.mubr.bf16.gmra.mrb[0].mxu0 %v1240
        %v12107 = vpop.f32.mrb[0].mxu0
        %v12108 = vadd.f32 %v12067, %v12107
        %v12109 = vpop.f32.mrb[0].mxu0
        %v12110 = vadd.f32 %v12069, %v12109
        %v12111 = vpop.f32.mrb[0].mxu0
        %v12112 = vpop.f32.mrb[0].mxu0
        %12113 = vdwg.mxu0
        %12114 = vmatprep.subr.bf16.mxu0 %v8429
        %12115 = vmatpush1.bf16.msra.mxu0 %v8428
        %12116 = vmatprep.subr.bf16.mxu0 %v8433
        %12117 = vmatpush1.bf16.msra.mxu0 %v8432
        %12118 = vmatprep.subr.bf16.mxu0 %v8437
        %12119 = vmatpush1.bf16.msra.mxu0 %v8436
        %12120 = vmatprep.subr.bf16.mxu0 %v8441
        %12121 = vmatpush1.bf16.msra.mxu0 %v8440
        %12122 = vmatprep.subr.bf16.mxu0 %v8445
        %12123 = vmatpush1.bf16.msra.mxu0 %v8444
        %12124 = vmatprep.subr.bf16.mxu0 %v8449
        %12125 = vmatpush1.bf16.msra.mxu0 %v8448
        %12126 = vmatprep.subr.bf16.mxu0 %v8453
        %12127 = vmatpush1.bf16.msra.mxu0 %v8452
        %12128 = vmatprep.subr.bf16.mxu0 %v8457
        %12129 = vmatpush1.bf16.msra.mxu0 %v8456
        %12130 = vmatprep.subr.bf16.mxu0 %v8461
        %12131 = vmatpush1.bf16.msra.mxu0 %v8460
        %12132 = vmatprep.subr.bf16.mxu0 %v8465
        %12133 = vmatpush1.bf16.msra.mxu0 %v8464
        %12134 = vmatprep.subr.bf16.mxu0 %v8469
        %12135 = vmatpush1.bf16.msra.mxu0 %v8468
        %12136 = vmatprep.subr.bf16.mxu0 %v8473
        %12137 = vmatpush1.bf16.msra.mxu0 %v8472
        %12138 = vmatprep.subr.bf16.mxu0 %v8477
        %12139 = vmatpush1.bf16.msra.mxu0 %v8476
        %12140 = vmatprep.subr.bf16.mxu0 %v8481
        %12141 = vmatpush1.bf16.msra.mxu0 %v8480
        %12142 = vmatprep.subr.bf16.mxu0 %v8485
        %12143 = vmatpush1.bf16.msra.mxu0 %v8484
        %12144 = vmatprep.subr.bf16.mxu0 %v8489
        %12145 = vmatpush1.bf16.msra.mxu0 %v8488
        %12146 = vmatprep.mubr.bf16.mxu0 %v1243
        %12147 = vmatmul.mubr.bf16.gmra.mrb[0].mxu0 %v1242
        %v12148 = vpop.f32.mrb[0].mxu0
        %v12149 = vadd.f32 %v12108, %v12148
        %v12150 = vpop.f32.mrb[0].mxu0
        %v12151 = vadd.f32 %v12110, %v12150
        %v12152 = vpop.f32.mrb[0].mxu0
        %v12153 = vpop.f32.mrb[0].mxu0
        %12154 = vdwg.mxu0
        %12155 = vmatprep.subr.bf16.mxu0 %v8493
        %12156 = vmatpush1.bf16.msra.mxu0 %v8492
        %12157 = vmatprep.subr.bf16.mxu0 %v8497
        %12158 = vmatpush1.bf16.msra.mxu0 %v8496
        %12159 = vmatprep.subr.bf16.mxu0 %v8501
        %12160 = vmatpush1.bf16.msra.mxu0 %v8500
        %12161 = vmatprep.subr.bf16.mxu0 %v8505
        %12162 = vmatpush1.bf16.msra.mxu0 %v8504
        %12163 = vmatprep.subr.bf16.mxu0 %v8509
        %12164 = vmatpush1.bf16.msra.mxu0 %v8508
        %12165 = vmatprep.subr.bf16.mxu0 %v8513
        %12166 = vmatpush1.bf16.msra.mxu0 %v8512
        %12167 = vmatprep.subr.bf16.mxu0 %v8517
        %12168 = vmatpush1.bf16.msra.mxu0 %v8516
        %12169 = vmatprep.subr.bf16.mxu0 %v8521
        %12170 = vmatpush1.bf16.msra.mxu0 %v8520
        %12171 = vmatprep.subr.bf16.mxu0 %v8525
        %12172 = vmatpush1.bf16.msra.mxu0 %v8524
        %12173 = vmatprep.subr.bf16.mxu0 %v8529
        %12174 = vmatpush1.bf16.msra.mxu0 %v8528
        %12175 = vmatprep.subr.bf16.mxu0 %v8533
        %12176 = vmatpush1.bf16.msra.mxu0 %v8532
        %12177 = vmatprep.subr.bf16.mxu0 %v8537
        %12178 = vmatpush1.bf16.msra.mxu0 %v8536
        %12179 = vmatprep.subr.bf16.mxu0 %v8541
        %12180 = vmatpush1.bf16.msra.mxu0 %v8540
        %12181 = vmatprep.subr.bf16.mxu0 %v8545
        %12182 = vmatpush1.bf16.msra.mxu0 %v8544
        %12183 = vmatprep.subr.bf16.mxu0 %v8549
        %12184 = vmatpush1.bf16.msra.mxu0 %v8548
        %12185 = vmatprep.subr.bf16.mxu0 %v8553
        %12186 = vmatpush1.bf16.msra.mxu0 %v8552
        %12187 = vmatprep.mubr.bf16.mxu0 %v1245
        %12188 = vmatmul.mubr.bf16.gmra.mrb[0].mxu0 %v1244
        %v12189 = vpop.f32.mrb[0].mxu0
        %v12190 = vadd.f32 %v12149, %v12189
        %v12191 = vpop.f32.mrb[0].mxu0
        %v12192 = vadd.f32 %v12151, %v12191
        %v12193 = vpop.f32.mrb[0].mxu0
        %v12194 = vpop.f32.mrb[0].mxu0
        %12195 = vdwg.mxu0
        %12196 = vmatprep.subr.bf16.mxu0 %v8557
        %12197 = vmatpush1.bf16.msra.mxu0 %v8556
        %12198 = vmatprep.subr.bf16.mxu0 %v8561
        %12199 = vmatpush1.bf16.msra.mxu0 %v8560
        %12200 = vmatprep.subr.bf16.mxu0 %v8565
        %12201 = vmatpush1.bf16.msra.mxu0 %v8564
        %12202 = vmatprep.subr.bf16.mxu0 %v8569
        %12203 = vmatpush1.bf16.msra.mxu0 %v8568
        %12204 = vmatprep.subr.bf16.mxu0 %v8573
        %12205 = vmatpush1.bf16.msra.mxu0 %v8572
        %12206 = vmatprep.subr.bf16.mxu0 %v8577
        %12207 = vmatpush1.bf16.msra.mxu0 %v8576
        %12208 = vmatprep.subr.bf16.mxu0 %v8581
        %12209 = vmatpush1.bf16.msra.mxu0 %v8580
        %12210 = vmatprep.subr.bf16.mxu0 %v8585
        %12211 = vmatpush1.bf16.msra.mxu0 %v8584
        %12212 = vmatprep.subr.bf16.mxu0 %v8589
        %12213 = vmatpush1.bf16.msra.mxu0 %v8588
        %12214 = vmatprep.subr.bf16.mxu0 %v8593
        %12215 = vmatpush1.bf16.msra.mxu0 %v8592
        %12216 = vmatprep.subr.bf16.mxu0 %v8597
        %12217 = vmatpush1.bf16.msra.mxu0 %v8596
        %12218 = vmatprep.subr.bf16.mxu0 %v8601
        %12219 = vmatpush1.bf16.msra.mxu0 %v8600
        %12220 = vmatprep.subr.bf16.mxu0 %v8605
        %12221 = vmatpush1.bf16.msra.mxu0 %v8604
        %12222 = vmatprep.subr.bf16.mxu0 %v8609
        %12223 = vmatpush1.bf16.msra.mxu0 %v8608
        %12224 = vmatprep.subr.bf16.mxu0 %v8613
        %12225 = vmatpush1.bf16.msra.mxu0 %v8612
        %12226 = vmatprep.subr.bf16.mxu0 %v8617
        %12227 = vmatpush1.bf16.msra.mxu0 %v8616
        %12228 = vmatprep.mubr.bf16.mxu0 %v1247
        %12229 = vmatmul.mubr.bf16.gmra.mrb[0].mxu0 %v1246
        %v12230 = vpop.f32.mrb[0].mxu0
        %v12231 = vadd.f32 %v12190, %v12230
        %v12232 = vpop.f32.mrb[0].mxu0
        %v12233 = vadd.f32 %v12192, %v12232
        %v12234 = vpop.f32.mrb[0].mxu0
        %v12235 = vpop.f32.mrb[0].mxu0
        %12236 = vdwg.mxu0
        %12237 = vmatprep.subr.bf16.mxu0 %v8621
        %12238 = vmatpush1.bf16.msra.mxu0 %v8620
        %12239 = vmatprep.subr.bf16.mxu0 %v8625
        %12240 = vmatpush1.bf16.msra.mxu0 %v8624
        %12241 = vmatprep.subr.bf16.mxu0 %v8629
        %12242 = vmatpush1.bf16.msra.mxu0 %v8628
        %12243 = vmatprep.subr.bf16.mxu0 %v8633
        %12244 = vmatpush1.bf16.msra.mxu0 %v8632
        %12245 = vmatprep.subr.bf16.mxu0 %v8637
        %12246 = vmatpush1.bf16.msra.mxu0 %v8636
        %12247 = vmatprep.subr.bf16.mxu0 %v8641
        %12248 = vmatpush1.bf16.msra.mxu0 %v8640
        %12249 = vmatprep.subr.bf16.mxu0 %v8645
        %12250 = vmatpush1.bf16.msra.mxu0 %v8644
        %12251 = vmatprep.subr.bf16.mxu0 %v8649
        %12252 = vmatpush1.bf16.msra.mxu0 %v8648
        %12253 = vmatprep.subr.bf16.mxu0 %v8653
        %12254 = vmatpush1.bf16.msra.mxu0 %v8652
        %12255 = vmatprep.subr.bf16.mxu0 %v8657
        %12256 = vmatpush1.bf16.msra.mxu0 %v8656
        %12257 = vmatprep.subr.bf16.mxu0 %v8661
        %12258 = vmatpush1.bf16.msra.mxu0 %v8660
        %12259 = vmatprep.subr.bf16.mxu0 %v8665
        %12260 = vmatpush1.bf16.msra.mxu0 %v8664
        %12261 = vmatprep.subr.bf16.mxu0 %v8669
        %12262 = vmatpush1.bf16.msra.mxu0 %v8668
        %12263 = vmatprep.subr.bf16.mxu0 %v8673
        %12264 = vmatpush1.bf16.msra.mxu0 %v8672
        %12265 = vmatprep.subr.bf16.mxu0 %v8677
        %12266 = vmatpush1.bf16.msra.mxu0 %v8676
        %12267 = vmatprep.subr.bf16.mxu0 %v8681
        %12268 = vmatpush1.bf16.msra.mxu0 %v8680
        %12269 = vmatprep.mubr.bf16.mxu0 %v1249
        %12270 = vmatmul.mubr.bf16.gmra.mrb[0].mxu0 %v1248
        %v12271 = vpop.f32.mrb[0].mxu0
        %v12272 = vadd.f32 %v12231, %v12271
        %v12273 = vpop.f32.mrb[0].mxu0
        %v12274 = vadd.f32 %v12233, %v12273
        %v12275 = vpop.f32.mrb[0].mxu0
        %v12276 = vpop.f32.mrb[0].mxu0
        %12277 = vdwg.mxu0
        %12278 = vmatprep.subr.bf16.mxu0 %v8685
        %12279 = vmatpush1.bf16.msra.mxu0 %v8684
        %12280 = vmatprep.subr.bf16.mxu0 %v8689
        %12281 = vmatpush1.bf16.msra.mxu0 %v8688
        %12282 = vmatprep.subr.bf16.mxu0 %v8693
        %12283 = vmatpush1.bf16.msra.mxu0 %v8692
        %12284 = vmatprep.subr.bf16.mxu0 %v8697
        %12285 = vmatpush1.bf16.msra.mxu0 %v8696
        %12286 = vmatprep.subr.bf16.mxu0 %v8701
        %12287 = vmatpush1.bf16.msra.mxu0 %v8700
        %12288 = vmatprep.subr.bf16.mxu0 %v8705
        %12289 = vmatpush1.bf16.msra.mxu0 %v8704
        %12290 = vmatprep.subr.bf16.mxu0 %v8709
        %12291 = vmatpush1.bf16.msra.mxu0 %v8708
        %12292 = vmatprep.subr.bf16.mxu0 %v8713
        %12293 = vmatpush1.bf16.msra.mxu0 %v8712
        %12294 = vmatprep.subr.bf16.mxu0 %v8717
        %12295 = vmatpush1.bf16.msra.mxu0 %v8716
        %12296 = vmatprep.subr.bf16.mxu0 %v8721
        %12297 = vmatpush1.bf16.msra.mxu0 %v8720
        %12298 = vmatprep.subr.bf16.mxu0 %v8725
        %12299 = vmatpush1.bf16.msra.mxu0 %v8724
        %12300 = vmatprep.subr.bf16.mxu0 %v8729
        %12301 = vmatpush1.bf16.msra.mxu0 %v8728
        %12302 = vmatprep.subr.bf16.mxu0 %v8733
        %12303 = vmatpush1.bf16.msra.mxu0 %v8732
        %12304 = vmatprep.subr.bf16.mxu0 %v8737
        %12305 = vmatpush1.bf16.msra.mxu0 %v8736
        %12306 = vmatprep.subr.bf16.mxu0 %v8741
        %12307 = vmatpush1.bf16.msra.mxu0 %v8740
        %12308 = vmatprep.subr.bf16.mxu0 %v8745
        %12309 = vmatpush1.bf16.msra.mxu0 %v8744
        %12310 = vmatprep.mubr.bf16.mxu0 %v1251
        %12311 = vmatmul.mubr.bf16.gmra.mrb[0].mxu0 %v1250
        %v12312 = vpop.f32.mrb[0].mxu0
        %v12313 = vadd.f32 %v12272, %v12312
        %v12314 = vpop.f32.mrb[0].mxu0
        %v12315 = vadd.f32 %v12274, %v12314
        %v12316 = vpop.f32.mrb[0].mxu0
        %v12317 = vpop.f32.mrb[0].mxu0
        %12318 = vdwg.mxu0
        %12319 = vmatprep.subr.bf16.mxu0 %v8749
        %12320 = vmatpush1.bf16.msra.mxu0 %v8748
        %12321 = vmatprep.subr.bf16.mxu0 %v8753
        %12322 = vmatpush1.bf16.msra.mxu0 %v8752
        %12323 = vmatprep.subr.bf16.mxu0 %v8757
        %12324 = vmatpush1.bf16.msra.mxu0 %v8756
        %12325 = vmatprep.subr.bf16.mxu0 %v8761
        %12326 = vmatpush1.bf16.msra.mxu0 %v8760
        %12327 = vmatprep.subr.bf16.mxu0 %v8765
        %12328 = vmatpush1.bf16.msra.mxu0 %v8764
        %12329 = vmatprep.subr.bf16.mxu0 %v8769
        %12330 = vmatpush1.bf16.msra.mxu0 %v8768
        %12331 = vmatprep.subr.bf16.mxu0 %v8773
        %12332 = vmatpush1.bf16.msra.mxu0 %v8772
        %12333 = vmatprep.subr.bf16.mxu0 %v8777
        %12334 = vmatpush1.bf16.msra.mxu0 %v8776
        %12335 = vmatprep.subr.bf16.mxu0 %v8781
        %12336 = vmatpush1.bf16.msra.mxu0 %v8780
        %12337 = vmatprep.subr.bf16.mxu0 %v8785
        %12338 = vmatpush1.bf16.msra.mxu0 %v8784
        %12339 = vmatprep.subr.bf16.mxu0 %v8789
        %12340 = vmatpush1.bf16.msra.mxu0 %v8788
        %12341 = vmatprep.subr.bf16.mxu0 %v8793
        %12342 = vmatpush1.bf16.msra.mxu0 %v8792
        %12343 = vmatprep.subr.bf16.mxu0 %v8797
        %12344 = vmatpush1.bf16.msra.mxu0 %v8796
        %12345 = vmatprep.subr.bf16.mxu0 %v8801
        %12346 = vmatpush1.bf16.msra.mxu0 %v8800
        %12347 = vmatprep.subr.bf16.mxu0 %v8805
        %12348 = vmatpush1.bf16.msra.mxu0 %v8804
        %12349 = vmatprep.subr.bf16.mxu0 %v8809
        %12350 = vmatpush1.bf16.msra.mxu0 %v8808
        %12351 = vmatprep.mubr.bf16.mxu0 %v1253
        %12352 = vmatmul.mubr.bf16.gmra.mrb[0].mxu0 %v1252
        %v12353 = vpop.f32.mrb[0].mxu0
        %v12354 = vadd.f32 %v12313, %v12353
        %v12355 = vpop.f32.mrb[0].mxu0
        %v12356 = vadd.f32 %v12315, %v12355
        %v12357 = vpop.f32.mrb[0].mxu0
        %v12358 = vpop.f32.mrb[0].mxu0
        %12359 = vdwg.mxu0
        %12360 = vmatprep.subr.bf16.mxu0 %v8813
        %12361 = vmatpush1.bf16.msra.mxu0 %v8812
        %12362 = vmatprep.subr.bf16.mxu0 %v8817
        %12363 = vmatpush1.bf16.msra.mxu0 %v8816
        %12364 = vmatprep.subr.bf16.mxu0 %v8821
        %12365 = vmatpush1.bf16.msra.mxu0 %v8820
        %12366 = vmatprep.subr.bf16.mxu0 %v8825
        %12367 = vmatpush1.bf16.msra.mxu0 %v8824
        %12368 = vmatprep.subr.bf16.mxu0 %v8829
        %12369 = vmatpush1.bf16.msra.mxu0 %v8828
        %12370 = vmatprep.subr.bf16.mxu0 %v8833
        %12371 = vmatpush1.bf16.msra.mxu0 %v8832
        %12372 = vmatprep.subr.bf16.mxu0 %v8837
        %12373 = vmatpush1.bf16.msra.mxu0 %v8836
        %12374 = vmatprep.subr.bf16.mxu0 %v8841
        %12375 = vmatpush1.bf16.msra.mxu0 %v8840
        %12376 = vmatprep.subr.bf16.mxu0 %v8845
        %12377 = vmatpush1.bf16.msra.mxu0 %v8844
        %12378 = vmatprep.subr.bf16.mxu0 %v8849
        %12379 = vmatpush1.bf16.msra.mxu0 %v8848
        %12380 = vmatprep.subr.bf16.mxu0 %v8853
        %12381 = vmatpush1.bf16.msra.mxu0 %v8852
        %12382 = vmatprep.subr.bf16.mxu0 %v8857
        %12383 = vmatpush1.bf16.msra.mxu0 %v8856
        %12384 = vmatprep.subr.bf16.mxu0 %v8861
        %12385 = vmatpush1.bf16.msra.mxu0 %v8860
        %12386 = vmatprep.subr.bf16.mxu0 %v8865
        %12387 = vmatpush1.bf16.msra.mxu0 %v8864
        %12388 = vmatprep.subr.bf16.mxu0 %v8869
        %12389 = vmatpush1.bf16.msra.mxu0 %v8868
        %12390 = vmatprep.subr.bf16.mxu0 %v8873
        %12391 = vmatpush1.bf16.msra.mxu0 %v8872
        %12392 = vmatprep.mubr.bf16.mxu0 %v1255
        %12393 = vmatmul.mubr.bf16.gmra.mrb[0].mxu0 %v1254
        %v12394 = vpop.f32.mrb[0].mxu0
        %v12395 = vadd.f32 %v12354, %v12394
        %v12396 = vpop.f32.mrb[0].mxu0
        %v12397 = vadd.f32 %v12356, %v12396
        %v12398 = vpop.f32.mrb[0].mxu0
        %v12399 = vpop.f32.mrb[0].mxu0
        %12400 = vdwg.mxu0
        %12401 = vmatprep.subr.bf16.mxu0 %v8877
        %12402 = vmatpush1.bf16.msra.mxu0 %v8876
        %12403 = vmatprep.subr.bf16.mxu0 %v8881
        %12404 = vmatpush1.bf16.msra.mxu0 %v8880
        %12405 = vmatprep.subr.bf16.mxu0 %v8885
        %12406 = vmatpush1.bf16.msra.mxu0 %v8884
        %12407 = vmatprep.subr.bf16.mxu0 %v8889
        %12408 = vmatpush1.bf16.msra.mxu0 %v8888
        %12409 = vmatprep.subr.bf16.mxu0 %v8893
        %12410 = vmatpush1.bf16.msra.mxu0 %v8892
        %12411 = vmatprep.subr.bf16.mxu0 %v8897
        %12412 = vmatpush1.bf16.msra.mxu0 %v8896
        %12413 = vmatprep.subr.bf16.mxu0 %v8901
        %12414 = vmatpush1.bf16.msra.mxu0 %v8900
        %12415 = vmatprep.subr.bf16.mxu0 %v8905
        %12416 = vmatpush1.bf16.msra.mxu0 %v8904
        %12417 = vmatprep.subr.bf16.mxu0 %v8909
        %12418 = vmatpush1.bf16.msra.mxu0 %v8908
        %12419 = vmatprep.subr.bf16.mxu0 %v8913
        %12420 = vmatpush1.bf16.msra.mxu0 %v8912
        %12421 = vmatprep.subr.bf16.mxu0 %v8917
        %12422 = vmatpush1.bf16.msra.mxu0 %v8916
        %12423 = vmatprep.subr.bf16.mxu0 %v8921
        %12424 = vmatpush1.bf16.msra.mxu0 %v8920
        %12425 = vmatprep.subr.bf16.mxu0 %v8925
        %12426 = vmatpush1.bf16.msra.mxu0 %v8924
        %12427 = vmatprep.subr.bf16.mxu0 %v8929
        %12428 = vmatpush1.bf16.msra.mxu0 %v8928
        %12429 = vmatprep.subr.bf16.mxu0 %v8933
        %12430 = vmatpush1.bf16.msra.mxu0 %v8932
        %12431 = vmatprep.subr.bf16.mxu0 %v8937
        %12432 = vmatpush1.bf16.msra.mxu0 %v8936
        %12433 = vmatprep.mubr.bf16.mxu0 %v1257
        %12434 = vmatmul.mubr.bf16.gmra.mrb[0].mxu0 %v1256
        %v12435 = vpop.f32.mrb[0].mxu0
        %v12436 = vadd.f32 %v12395, %v12435
        %v12437 = vpop.f32.mrb[0].mxu0
        %v12438 = vadd.f32 %v12397, %v12437
        %v12439 = vpop.f32.mrb[0].mxu0
        %v12440 = vpop.f32.mrb[0].mxu0
        %12441 = vdwg.mxu0
        %v12442 = vadd.f32 %v1206, %v11452
        %v12443 = vadd.f32 %v1207, %v11454
        %v12444 = vadd.f32 %v1208, %v12436
        %v12445 = vadd.f32 %v1209, %v12438
        %12446 = vst [vmem:[#allocation2] sm:$0xff] %v12442
        %12447 = vst [vmem:[#allocation2 + $0x8] sm:$0xff] %v12443
        %12448 = vst [vmem:[#allocation2 + $0x10] sm:$0xff] %v12444
        %12449 = vst [vmem:[#allocation2 + $0x18] sm:$0xff] %v12445
        %p12450 = scmp.eq.s32.totalorder %s20, 1
        // Predicated region
        $region37: #{_encoder_forward_impl.1} parent=31 // pred_check
          %p12451 = pneg %p12450
        $region38: #{_encoder_forward_impl.1} parent=31 // pred_check_branch
          %12453 = sbr.rel (%p12451) target = $region40
        $region39: #{_encoder_forward_impl.1} parent=31 // pred_region
          %v12454 = vld [vmem:[#allocation2] sm:$0xff]
          %v12455 = vld [vmem:[#allocation2 + $0x8] sm:$0xff]
          %v12456 = vld [vmem:[#allocation2 + $0x10] sm:$0xff]
          %v12457 = vld [vmem:[#allocation2 + $0x18] sm:$0xff]
          %v12458 = vld [vmem:[%s234] sm:$0xf]
          %v12460 = vlaneseq
          %v12461 = vshrl.u32 %v12460, 7
          %v12462 = vsub.s32 0, %v12461
          %v12463 = vrot.slane %v12458, %v12462
          %v12464 = vlaneseq
          %v12465 = vshrl.u32 %v12464, 7
          %v12466 = vsub.s32 1, %v12465
          %v12467 = vrot.slane %v12458, %v12466
          %v12468 = vlaneseq
          %v12469 = vshrl.u32 %v12468, 7
          %v12470 = vsub.s32 2, %v12469
          %v12471 = vrot.slane %v12458, %v12470
          %v12472 = vlaneseq
          %v12473 = vshrl.u32 %v12472, 7
          %v12474 = vsub.s32 3, %v12473
          %v12475 = vrot.slane %v12458, %v12474
          %v12480 = vadd.f32 %v12454, %v12463
          %v12481 = vadd.f32 %v12455, %v12467
          %v12482 = vadd.f32 %v12456, %v12471
          %v12483 = vadd.f32 %v12457, %v12475
          %vm12484 = vcmp.ge.f32.partialorder %v12480, 0.0
          %vm12485 = vcmp.ge.f32.partialorder %v12481, 0.0
          %vm12486 = vcmp.ge.f32.partialorder %v12482, 0.0
          %vm12487 = vcmp.ge.f32.partialorder %v12483, 0.0
          %v12488 = vmul.f32 %v12480, 0.5
          %v12489 = vmul.f32 %v12481, 0.5
          %v12490 = vmul.f32 %v12482, 0.5
          %v12491 = vmul.f32 %v12483, 0.5
          %v12492 = vsel %vm12484, %v12480, %v12488
          %v12493 = vsel %vm12485, %v12481, %v12489
          %v12494 = vsel %vm12486, %v12482, %v12490
          %v12495 = vsel %vm12487, %v12483, %v12491
          %12496 = vst [vmem:[#allocation2] sm:$0xff] %v12492
          %12497 = vst [vmem:[#allocation2 + $0x8] sm:$0xff] %v12493
          %12498 = vst [vmem:[#allocation2 + $0x10] sm:$0xff] %v12494
          %12499 = vst [vmem:[#allocation2 + $0x18] sm:$0xff] %v12495
        $region40: #{_encoder_forward_impl.1} parent=31 // pred_fallthru
          _
        // Predicated region
        $region41: #{_encoder_forward_impl.1} parent=31 // pred_check
          %p12500 = pneg %p125
        $region42: #{_encoder_forward_impl.1} parent=31 // pred_check_branch
          %12502 = sbr.rel (%p12500) target = $region44
        $region43: #{_encoder_forward_impl.1} parent=31 // pred_region
          %s12503 = smul.u32 4, %s19
          %s12505 = ssub.s32 512, 512
          %12506 = vsyncadd [#allocation3], %s12505
          %s12507 = smul.addr %s12503, 128
          %s12508 = scalar_lea.hbm %s3, %s12507
          %s12510 = sshll.u32 [#allocation2], 4
          %s12511 = int_to_ptr.vmem [resolvable:$true] %s12510
          %12513 = dma.vmem_to_hbm [thread:$0]  %s12511, 512, %s12508, [#allocation3]
        $region44: #{_encoder_forward_impl.1} parent=31 // pred_fallthru
          _
        // Predicated region
        $region45: #{_encoder_forward_impl.1} parent=31 // pred_check
          %p12514 = pneg %p125
        $region46: #{_encoder_forward_impl.1} parent=31 // pred_check_branch
          %12516 = sbr.rel (%p12514) target = $region48
        $region47: #{_encoder_forward_impl.1} parent=31 // pred_region
          %12517 = dma.done [#allocation3], 512
        $region48: #{_encoder_forward_impl.1} parent=31 // pred_fallthru
          _
      $region32: #{_encoder_forward_impl.1} parent=5 // pred_fallthru
        _
      %p12518 = scmp.le.s32.totalorder 2, %s10
      // Predicated region
      $region49: #{_encoder_forward_impl.1} parent=5 // pred_check
        %p12519 = pneg %p12518
      $region50: #{_encoder_forward_impl.1} parent=5 // pred_check_branch
        %12521 = sbr.rel (%p12519) target = $region52
      $region51: #{_encoder_forward_impl.1} parent=5 // pred_region
        %s12522 = ssub.s32 %s10, 2
      $region52: #{_encoder_forward_impl.1} parent=5 // pred_fallthru
        _
    $region6: #{_encoder_forward_impl.1} parent=1 // loop_footer
      %s14 = sadd.s32 1, %s10
    $region7: #{_encoder_forward_impl.1} parent=1 // loop_footer_branch
      %9 = sbr.rel target = $region3
    $region8: #{_encoder_forward_impl.1} parent=1 // loop_exit
      _
    %12523 = vsyncpa [#allocation3], 1
    %s12524 = scalar_lea.sflag [#allocation3], 1
    %12525 = vsyncpa %s12524, 1

</llo_original>
